<compile_context>
chip_gen: v7x
topology: tpu7x:2x2x1
jax: 0.10.0
libtpu: 0.0.40
codegen_flags: <defaults>
</compile_context>

<pallas_src>
import functools

import jax
import jax.numpy as jnp
from jax.experimental import pallas as pl
from jax.experimental.pallas import tpu as pltpu

# ---------------------------------------------------------------------------
# Small synthetic configuration consistent with BLIP_Base's forward pass.
# (real BLIP-base: D=768, 12 layers, 12 heads, patch=16, img=224)
# ---------------------------------------------------------------------------
BATCH       = 2
IMG_C       = 3
IMG_HW      = 16
PATCH       = 4
N_PATCH     = (IMG_HW // PATCH) ** 2      # 16
VIS_TOKENS  = N_PATCH + 1                 # +cls = 17
D           = 32                          # vision_width == text hidden_size
VIT_DEPTH   = 2
VIT_HEADS   = 4
TXT_LEN     = 8
VOCAB       = 64
MAX_POS     = 16
BERT_LAYERS = 2
BERT_HEADS  = 4
FFN_DIM     = 4 * D
ENC_TOKEN_ID = 3                          # tokenizer.enc_token_id stand-in
LN_EPS_VIT  = 1e-6                        # timm ViT LayerNorm eps
LN_EPS_BERT = 1e-12                       # HF BERT LayerNorm eps
NEG_INF     = -1e9
VMEM_LIMIT  = 32 * 1024 * 1024            # explicit scoped-VMEM budget (safe on all gens)


# ---------------------------------------------------------------------------
# In-kernel helpers (traced inside the Pallas kernels, all on 2-D slabs)
# ---------------------------------------------------------------------------
def _ln(x, g, b, eps):
    mu = jnp.mean(x, axis=-1, keepdims=True)
    xc = x - mu
    var = jnp.mean(xc * xc, axis=-1, keepdims=True)
    return xc * jax.lax.rsqrt(var + eps) * g + b


def _gelu(y):
    # TODO(synk): PyTorch nn.GELU / HF "gelu" use the exact erf form; the tanh
    # approximation is used here for guaranteed Mosaic lowering (tiny numeric diff).
    c = 0.7978845608028654  # sqrt(2/pi)
    return 0.5 * y * (1.0 + jnp.tanh(c * (y + 0.044715 * y * y * y)))


def _mm(a, w):
    """MXU matmul: bf16 inputs, f32 accumulation."""
    return jnp.dot(a.astype(jnp.bfloat16), w.astype(jnp.bfloat16),
                   preferred_element_type=jnp.float32)


def _mha(q2, k2, v2, B, Lq, Lk, H, dh, scale, mask=None):
    """Multi-head attention on 2-D slabs -> [B*Lq, H*dh] f32 context, in-register.

    q2: [B*Lq, H*dh], k2/v2: [B*Lk, H*dh]. mask (optional, additive): [B, Lk] row mask
    broadcast over query positions (never materialized per-head).
    bf16 casts are hoisted out of the (b, h) loops, the attention scale is folded into
    q before the cast, and per-batch head outputs are concatenated and returned directly
    (no scratch round-trip, no sub-128-lane masked stores).
    """
    q16 = (q2 * scale).astype(jnp.bfloat16)
    k16 = k2.astype(jnp.bfloat16)
    v16 = v2.astype(jnp.bfloat16)
    rows = []
    for b in range(B):
        qb = q16[b * Lq:(b + 1) * Lq, :]
        kb = k16[b * Lk:(b + 1) * Lk, :]
        vb = v16[b * Lk:(b + 1) * Lk, :]
        mb = None if mask is None else mask[b:b + 1, :]             # [1, Lk]
        heads = []
        for h in range(H):
            qh = qb[:, h * dh:(h + 1) * dh]
            kh = kb[:, h * dh:(h + 1) * dh]
            vh = vb[:, h * dh:(h + 1) * dh]
            s = jax.lax.dot_general(qh, kh, (((1,), (1,)), ((), ())),
                                    preferred_element_type=jnp.float32)
            if mb is not None:
                s = s + mb
            s = s - jnp.max(s, axis=-1, keepdims=True)
            e = jnp.exp(s)
            p = e * pl.reciprocal(jnp.sum(e, axis=-1, keepdims=True), approx=True)
            heads.append(jnp.dot(p.astype(jnp.bfloat16), vh,
                                 preferred_element_type=jnp.float32))
        rows.append(jnp.concatenate(heads, axis=-1))                # [Lq, H*dh]
    return jnp.concatenate(rows, axis=0)                            # [B*Lq, H*dh]


# ---------------------------------------------------------------------------
# Fused ViT encoder kernel: grid axis = layer index, residual in VMEM scratch.
# ---------------------------------------------------------------------------
def _vit_kernel(patches_ref, pw_ref, pb_ref, cls_ref, pos_ref,
                n1g, n1b, qkvw, qkvb, projw, projb,
                n2g, n2b, fc1w, fc1b, fc2w, fc2b,
                fng, fnb,
                o_ref, x_sc, *, B):
    l = pl.program_id(0)
    H, dh = VIT_HEADS, D // VIT_HEADS
    NV, NP = VIS_TOKENS, N_PATCH

    # Step 0: patch embedding (Conv2d(stride=patch) == per-patch linear) + cls + pos.
    @pl.when(l == 0)
    def _():
        pe = _mm(patches_ref[...], pw_ref[...]) + pb_ref[...]       # [B*NP, D] f32
        pos = pos_ref[...].astype(jnp.float32)                      # [NV, D]
        cls_row = cls_ref[...].astype(jnp.float32)                  # [1, D]
        for b in range(B):
            x_sc[pl.ds(b * NV, 1), :] = cls_row + pos[0:1, :]
            x_sc[pl.ds(b * NV + 1, NP), :] = pe[b * NP:(b + 1) * NP, :] + pos[1:, :]

    x = x_sc[...]

    # --- pre-LN self-attention (fused qkv projection, no mask in the ViT) ---
    h = _ln(x, n1g[0], n1b[0], LN_EPS_VIT)
    qkv = _mm(h, qkvw[0]) + qkvb[0]                                 # [B*NV, 3D]
    ctx = _mha(qkv[:, :D], qkv[:, D:2 * D], qkv[:, 2 * D:],
               B, NV, NV, H, dh, dh ** -0.5, mask=None)
    x = x + (_mm(ctx, projw[0]) + projb[0])

    # --- pre-LN MLP ---
    h2 = _ln(x, n2g[0], n2b[0], LN_EPS_VIT)
    f = _gelu(_mm(h2, fc1w[0]) + fc1b[0])
    x = x + (_mm(f, fc2w[0]) + fc2b[0])
    x_sc[...] = x

    @pl.when(l == pl.num_programs(0) - 1)
    def _():
        o_ref[...] = _ln(x, fng[...], fnb[...], LN_EPS_VIT).astype(o_ref.dtype)


# ---------------------------------------------------------------------------
# Fused BERT (med) encoder kernel: grid axis = layer index, optional cross-attn.
# ---------------------------------------------------------------------------
def _bert_kernel(*refs, B, L, Nv, has_cross):
    it = iter(refs)
    x_ref = next(it); self_mask_ref = next(it)
    if has_cross:
        enc_ref = next(it); cross_mask_ref = next(it)
    emb_g = next(it); emb_b = next(it)
    qkv_w = next(it); qkv_b = next(it)
    so_w = next(it); so_b = next(it)
    sln_g = next(it); sln_b = next(it)
    if has_cross:
        cq_w = next(it); cq_b = next(it)
        ckv_w = next(it); ckv_b = next(it)
        co_w = next(it); co_b = next(it)
        cln_g = next(it); cln_b = next(it)
    f1_w = next(it); f1_b = next(it)
    f2_w = next(it); f2_b = next(it)
    fln_g = next(it); fln_b = next(it)
    o_ref = next(it); x_sc = next(it)

    l = pl.program_id(0)
    H, dh = BERT_HEADS, D // BERT_HEADS
    scale = dh ** -0.5

    # Step 0: embedding LayerNorm (gathers themselves stay as JAX glue outside).
    @pl.when(l == 0)
    def _():
        x_sc[...] = _ln(x_ref[...].astype(jnp.float32), emb_g[...], emb_b[...],
                        LN_EPS_BERT)

    x = x_sc[...]

    # --- self-attention (post-LN), fused q/k/v projection ---
    qkv = _mm(x, qkv_w[0]) + qkv_b[0]                               # [B*L, 3D]
    ctx = _mha(qkv[:, :D], qkv[:, D:2 * D], qkv[:, 2 * D:],
               B, L, L, H, dh, scale, mask=self_mask_ref[...])
    x = _ln(x + (_mm(ctx, so_w[0]) + so_b[0]), sln_g[0], sln_b[0], LN_EPS_BERT)

    # --- cross-attention over image tokens (multimodal mode only) ---
    if has_cross:
        enc = enc_ref[...]                                          # bf16, MXU-ready
        cq = _mm(x, cq_w[0]) + cq_b[0]
        ckv = _mm(enc, ckv_w[0]) + ckv_b[0]                         # fused k/v projection
        cctx = _mha(cq, ckv[:, :D], ckv[:, D:],
                    B, L, Nv, H, dh, scale, mask=cross_mask_ref[...])
        x = _ln(x + (_mm(cctx, co_w[0]) + co_b[0]), cln_g[0], cln_b[0], LN_EPS_BERT)

    # --- feed-forward (post-LN) ---
    f = _gelu(_mm(x, f1_w[0]) + f1_b[0])
    x = _ln(x + (_mm(f, f2_w[0]) + f2_b[0]), fln_g[0], fln_b[0], LN_EPS_BERT)

    x_sc[...] = x

    @pl.when(l == pl.num_programs(0) - 1)
    def _():
        o_ref[...] = x.astype(o_ref.dtype)


# ---------------------------------------------------------------------------
# BlockSpec helpers
# ---------------------------------------------------------------------------
def _full_spec(a):
    nd = a.ndim
    return pl.BlockSpec(tuple(a.shape), lambda l: (0,) * nd)


def _layer_spec(a):
    nd = a.ndim
    return pl.BlockSpec((1,) + tuple(a.shape[1:]), lambda l: (l,) + (0,) * (nd - 1))


# ---------------------------------------------------------------------------
# Encoders (one pallas_call each)
# ---------------------------------------------------------------------------
def visual_encoder(image, p):
    B = image.shape[0]
    # NCHW -> per-patch rows [B*N_PATCH, C*P*P] (layout glue; the matmul runs in-kernel).
    x = image.reshape(B, IMG_C, IMG_HW // PATCH, PATCH, IMG_HW // PATCH, PATCH)
    patches = x.transpose(0, 2, 4, 1, 3, 5).reshape(B * N_PATCH, IMG_C * PATCH * PATCH)

    inputs = [patches, p["patch_w"], p["patch_b"], p["cls_token"], p["pos_embed"],
              p["n1_g"], p["n1_b"], p["qkv_w"], p["qkv_b"], p["proj_w"], p["proj_b"],
              p["n2_g"], p["n2_b"], p["fc1_w"], p["fc1_b"], p["fc2_w"], p["fc2_b"],
              p["norm_g"], p["norm_b"]]
    in_specs = ([_full_spec(a) for a in inputs[:5]]
                + [_layer_spec(a) for a in inputs[5:17]]
                + [_full_spec(a) for a in inputs[17:]])

    # image_embeds emitted in bf16 (halves HBM writeback; MXU consumes bf16 downstream).
    out = pl.pallas_call(
        functools.partial(_vit_kernel, B=B),
        out_shape=jax.ShapeDtypeStruct((B * VIS_TOKENS, D), jnp.bfloat16),
        grid=(VIT_DEPTH,),
        in_specs=in_specs,
        out_specs=pl.BlockSpec((B * VIS_TOKENS, D), lambda l: (0, 0)),
        scratch_shapes=[pltpu.VMEM((B * VIS_TOKENS, D), jnp.float32)],  # residual stream
        compiler_params=pltpu.CompilerParams(
            dimension_semantics=("arbitrary",),
            vmem_limit_bytes=VMEM_LIMIT),
    )(*inputs)
    return out.reshape(B, VIS_TOKENS, D)


def text_encoder(input_ids, attention_mask, enc_hidden, enc_mask, p):
    B, L = input_ids.shape
    # Embedding gathers stay in plain JAX; the embedding LN is fused into the kernel.
    w_emb = jnp.take(p["word_emb"], input_ids, axis=0)              # [B, L, D]
    p_emb = p["pos_emb"][:L][None]                                  # [1, L, D]
    t_emb = p["type_emb"][0][None, None, :]                         # token_type_ids == 0
    x = (w_emb + p_emb + t_emb).reshape(B * L, D)
    self_mask = (1.0 - attention_mask.astype(jnp.float32)) * NEG_INF  # [B, L] additive

    has_cross = enc_hidden is not None
    Nv = 0
    inputs = [x, self_mask]
    in_specs = [_full_spec(x), _full_spec(self_mask)]
    if has_cross:
        Nv = enc_hidden.shape[1]
        enc2 = enc_hidden.reshape(B * Nv, D)                        # bf16, stays bf16
        cross_mask = (1.0 - enc_mask.astype(jnp.float32)) * NEG_INF   # [B, Nv] additive
        inputs += [enc2, cross_mask]
        in_specs += [_full_spec(enc2), _full_spec(cross_mask)]

    full_keys = ["emb_ln_g", "emb_ln_b"]
    layer_keys = ["qkv_w", "qkv_b", "self_out_w", "self_out_b", "self_ln_g", "self_ln_b"]
    if has_cross:
        layer_keys += ["cq_w", "cq_b", "ckv_w", "ckv_b",
                       "cross_out_w", "cross_out_b", "cross_ln_g", "cross_ln_b"]
    layer_keys += ["ffn1_w", "ffn1_b", "ffn2_w", "ffn2_b", "ffn_ln_g", "ffn_ln_b"]

    for k in full_keys:
        inputs.append(p[k]); in_specs.append(_full_spec(p[k]))
    for k in layer_keys:
        inputs.append(p[k]); in_specs.append(_layer_spec(p[k]))

    out = pl.pallas_call(
        functools.partial(_bert_kernel, B=B, L=L, Nv=Nv, has_cross=has_cross),
        out_shape=jax.ShapeDtypeStruct((B * L, D), jnp.float32),
        grid=(BERT_LAYERS,),
        in_specs=in_specs,
        out_specs=pl.BlockSpec((B * L, D), lambda l: (0, 0)),
        scratch_shapes=[pltpu.VMEM((B * L, D), jnp.float32)],          # residual stream
        compiler_params=pltpu.CompilerParams(
            dimension_semantics=("arbitrary",),
            vmem_limit_bytes=VMEM_LIMIT),
    )(*inputs)
    return out.reshape(B, L, D)


# ---------------------------------------------------------------------------
# BLIP_Base.forward
# ---------------------------------------------------------------------------
def blip_base_forward(params, image, input_ids, attention_mask, mode="multimodal"):
    assert mode in ("image", "text", "multimodal")
    # TODO(synk): BertTokenizer (host-side string tokenization) has no Pallas
    # equivalent; pre-tokenized input_ids / attention_mask are taken as inputs.
    if mode == "image":
        return visual_encoder(image, params["vit"])                 # bf16 image embeds
    if mode == "text":
        return text_encoder(input_ids, attention_mask, None, None, params["bert"])
    image_embeds = visual_encoder(image, params["vit"])             # bf16, MXU-ready
    image_atts = jnp.ones(image_embeds.shape[:-1], jnp.int32)       # [B, VIS_TOKENS]
    input_ids = input_ids.at[:, 0].set(ENC_TOKEN_ID)                # [ENC] token
    return text_encoder(input_ids, attention_mask, image_embeds, image_atts,
                        params["bert"])


# ---------------------------------------------------------------------------
# Deterministic synthetic parameters (matmul weights stacked per layer, bf16)
# ---------------------------------------------------------------------------
def init_params(seed=0):
    key = jax.random.PRNGKey(seed)
    counter = [0]

    def w(shape, dtype=jnp.float32):
        counter[0] += 1
        return (jax.random.normal(jax.random.fold_in(key, counter[0]), shape,
                                  jnp.float32) * 0.02).astype(dtype)

    wb = lambda s: w(s, jnp.bfloat16)            # MXU-facing weights in bf16
    zeros = lambda s: jnp.zeros(s, jnp.float32)
    ones = lambda s: jnp.ones(s, jnp.float32)

    vit = dict(
        patch_w=wb((IMG_C * PATCH * PATCH, D)), patch_b=zeros((1, D)),
        cls_token=w((1, D)), pos_embed=w((VIS_TOKENS, D)),
        n1_g=ones((VIT_DEPTH, 1, D)), n1_b=zeros((VIT_DEPTH, 1, D)),
        qkv_w=wb((VIT_DEPTH, D, 3 * D)), qkv_b=zeros((VIT_DEPTH, 1, 3 * D)),
        proj_w=wb((VIT_DEPTH, D, D)), proj_b=zeros((VIT_DEPTH, 1, D)),
        n2_g=ones((VIT_DEPTH, 1, D)), n2_b=zeros((VIT_DEPTH, 1, D)),
        fc1_w=wb((VIT_DEPTH, D, FFN_DIM)), fc1_b=zeros((VIT_DEPTH, 1, FFN_DIM)),
        fc2_w=wb((VIT_DEPTH, FFN_DIM, D)), fc2_b=zeros((VIT_DEPTH, 1, D)),
        norm_g=ones((1, D)), norm_b=zeros((1, D)),
    )

    bert = dict(
        word_emb=w((VOCAB, D)), pos_emb=w((MAX_POS, D)), type_emb=w((2, D)),
        emb_ln_g=ones((1, D)), emb_ln_b=zeros((1, D)),
        qkv_w=wb((BERT_LAYERS, D, 3 * D)), qkv_b=zeros((BERT_LAYERS, 1, 3 * D)),
        self_out_w=wb((BERT_LAYERS, D, D)), self_out_b=zeros((BERT_LAYERS, 1, D)),
        self_ln_g=ones((BERT_LAYERS, 1, D)), self_ln_b=zeros((BERT_LAYERS, 1, D)),
        cq_w=wb((BERT_LAYERS, D, D)), cq_b=zeros((BERT_LAYERS, 1, D)),
        ckv_w=wb((BERT_LAYERS, D, 2 * D)), ckv_b=zeros((BERT_LAYERS, 1, 2 * D)),
        cross_out_w=wb((BERT_LAYERS, D, D)), cross_out_b=zeros((BERT_LAYERS, 1, D)),
        cross_ln_g=ones((BERT_LAYERS, 1, D)), cross_ln_b=zeros((BERT_LAYERS, 1, D)),
        ffn1_w=wb((BERT_LAYERS, D, FFN_DIM)), ffn1_b=zeros((BERT_LAYERS, 1, FFN_DIM)),
        ffn2_w=wb((BERT_LAYERS, FFN_DIM, D)), ffn2_b=zeros((BERT_LAYERS, 1, D)),
        ffn_ln_g=ones((BERT_LAYERS, 1, D)), ffn_ln_b=zeros((BERT_LAYERS, 1, D)),
    )
    # Defined in __init__ but not used by forward(): itm_head, vision_proj, text_proj.
    heads = dict(
        itm_w=wb((D, 2)), itm_b=zeros((1, 2)),
        vproj_w=wb((D, 256)), vproj_b=zeros((1, 256)),
        tproj_w=wb((D, 256)), tproj_b=zeros((1, 256)),
    )
    return dict(vit=vit, bert=bert, heads=heads)


# ---------------------------------------------------------------------------
# Main
# ---------------------------------------------------------------------------
if __name__ == "__main__":
    params = init_params(0)
    key = jax.random.PRNGKey(0)
    k_img, k_txt = jax.random.split(key)
    image = jax.random.normal(k_img, (BATCH, IMG_C, IMG_HW, IMG_HW), jnp.float32)
    input_ids = jax.random.randint(k_txt, (BATCH, TXT_LEN), 0, VOCAB, dtype=jnp.int32)
    attention_mask = jnp.ones((BATCH, TXT_LEN), jnp.int32)

    fwd = jax.jit(blip_base_forward, static_argnames=("mode",))
    out = fwd(params, image, input_ids, attention_mask, mode="multimodal")
    out = jax.block_until_ready(out)

    assert out.shape == (BATCH, TXT_LEN, D), out.shape
    assert bool(jnp.all(jnp.isfinite(out)))
    print("KERNEL_OK")
</pallas_src>

<mosaic_0001>
module attributes {stable_mosaic.version = 11 : i64} {
  func.func @_bert_kernel(%arg0: i32, %arg1: memref<16x32xf32, #tpu.memory_space<vmem>>, %arg2: memref<2x8xf32, #tpu.memory_space<vmem>>, %arg3: memref<34x32xbf16, #tpu.memory_space<vmem>>, %arg4: memref<2x17xf32, #tpu.memory_space<vmem>>, %arg5: memref<1x32xf32, #tpu.memory_space<vmem>>, %arg6: memref<1x32xf32, #tpu.memory_space<vmem>>, %arg7: memref<1x32x96xbf16, #tpu.memory_space<vmem>>, %arg8: memref<1x1x96xf32, #tpu.memory_space<vmem>>, %arg9: memref<1x32x32xbf16, #tpu.memory_space<vmem>>, %arg10: memref<1x1x32xf32, #tpu.memory_space<vmem>>, %arg11: memref<1x1x32xf32, #tpu.memory_space<vmem>>, %arg12: memref<1x1x32xf32, #tpu.memory_space<vmem>>, %arg13: memref<1x32x32xbf16, #tpu.memory_space<vmem>>, %arg14: memref<1x1x32xf32, #tpu.memory_space<vmem>>, %arg15: memref<1x32x64xbf16, #tpu.memory_space<vmem>>, %arg16: memref<1x1x64xf32, #tpu.memory_space<vmem>>, %arg17: memref<1x32x32xbf16, #tpu.memory_space<vmem>>, %arg18: memref<1x1x32xf32, #tpu.memory_space<vmem>>, %arg19: memref<1x1x32xf32, #tpu.memory_space<vmem>>, %arg20: memref<1x1x32xf32, #tpu.memory_space<vmem>>, %arg21: memref<1x32x128xbf16, #tpu.memory_space<vmem>>, %arg22: memref<1x1x128xf32, #tpu.memory_space<vmem>>, %arg23: memref<1x128x32xbf16, #tpu.memory_space<vmem>>, %arg24: memref<1x1x32xf32, #tpu.memory_space<vmem>>, %arg25: memref<1x1x32xf32, #tpu.memory_space<vmem>>, %arg26: memref<1x1x32xf32, #tpu.memory_space<vmem>>, %arg27: memref<16x32xf32, #tpu.memory_space<vmem>>, %arg28: memref<16x32xf32, #tpu.memory_space<vmem>>) attributes {dimension_semantics = [#tpu.dimension_semantics<arbitrary>], iteration_bounds = array<i64: 2>, scalar_prefetch = 0 : i64, scratch_operands = 1 : i64, tpu.core_type = #tpu.core_type<tc>, window_params = [{pipeline_mode = #tpu.pipeline_mode<synchronous>, transform_indices = @transform_0, window_bounds = array<i64: 16, 32>}, {pipeline_mode = #tpu.pipeline_mode<synchronous>, transform_indices = @transform_1, window_bounds = array<i64: 2, 8>}, {pipeline_mode = #tpu.pipeline_mode<synchronous>, transform_indices = @transform_2, window_bounds = array<i64: 34, 32>}, {pipeline_mode = #tpu.pipeline_mode<synchronous>, transform_indices = @transform_3, window_bounds = array<i64: 2, 17>}, {pipeline_mode = #tpu.pipeline_mode<synchronous>, transform_indices = @transform_4, window_bounds = array<i64: 1, 32>}, {pipeline_mode = #tpu.pipeline_mode<synchronous>, transform_indices = @transform_5, window_bounds = array<i64: 1, 32>}, {transform_indices = @transform_6, window_bounds = array<i64: 1, 32, 96>}, {transform_indices = @transform_7, window_bounds = array<i64: 1, 1, 96>}, {transform_indices = @transform_8, window_bounds = array<i64: 1, 32, 32>}, {transform_indices = @transform_9, window_bounds = array<i64: 1, 1, 32>}, {transform_indices = @transform_10, window_bounds = array<i64: 1, 1, 32>}, {transform_indices = @transform_11, window_bounds = array<i64: 1, 1, 32>}, {transform_indices = @transform_12, window_bounds = array<i64: 1, 32, 32>}, {transform_indices = @transform_13, window_bounds = array<i64: 1, 1, 32>}, {transform_indices = @transform_14, window_bounds = array<i64: 1, 32, 64>}, {transform_indices = @transform_15, window_bounds = array<i64: 1, 1, 64>}, {transform_indices = @transform_16, window_bounds = array<i64: 1, 32, 32>}, {transform_indices = @transform_17, window_bounds = array<i64: 1, 1, 32>}, {transform_indices = @transform_18, window_bounds = array<i64: 1, 1, 32>}, {transform_indices = @transform_19, window_bounds = array<i64: 1, 1, 32>}, {transform_indices = @transform_20, window_bounds = array<i64: 1, 32, 128>}, {transform_indices = @transform_21, window_bounds = array<i64: 1, 1, 128>}, {transform_indices = @transform_22, window_bounds = array<i64: 1, 128, 32>}, {transform_indices = @transform_23, window_bounds = array<i64: 1, 1, 32>}, {transform_indices = @transform_24, window_bounds = array<i64: 1, 1, 32>}, {transform_indices = @transform_25, window_bounds = array<i64: 1, 1, 32>}, {pipeline_mode = #tpu.pipeline_mode<synchronous>, transform_indices = @transform_26, window_bounds = array<i64: 16, 32>}]} {
    %c0_i32 = arith.constant 0 : i32
    %0 = arith.cmpi eq, %arg0, %c0_i32 : i32
    %1 = arith.extui %0 : i1 to i32
    %c0_i32_0 = arith.constant 0 : i32
    %2 = arith.cmpi ne, %1, %c0_i32_0 : i32
    scf.if %2 {
      %c0_162 = arith.constant 0 : index
      %c0_163 = arith.constant 0 : index
      %479 = vector.load %arg1[%c0_162, %c0_163] : memref<16x32xf32, #tpu.memory_space<vmem>>, vector<16x32xf32>
      %c0_164 = arith.constant 0 : index
      %c0_165 = arith.constant 0 : index
      %480 = vector.load %arg5[%c0_164, %c0_165] : memref<1x32xf32, #tpu.memory_space<vmem>>, vector<1x32xf32>
      %c0_166 = arith.constant 0 : index
      %c0_167 = arith.constant 0 : index
      %481 = vector.load %arg6[%c0_166, %c0_167] : memref<1x32xf32, #tpu.memory_space<vmem>>, vector<1x32xf32>
      %cst_168 = arith.constant dense<0.000000e+00> : vector<16xf32>
      %482 = vector.multi_reduction <add>, %479, %cst_168 [1] : vector<16x32xf32> to vector<16xf32>
      %483 = vector.shape_cast %482 : vector<16xf32> to vector<16x1xf32>
      %cst_169 = arith.constant 3.200000e+01 : f32
      %484 = vector.broadcast %cst_169 : f32 to vector<16x1xf32>
      %485 = arith.divf %483, %484 : vector<16x1xf32>
      %486 = vector.broadcast %485 : vector<16x1xf32> to vector<16x32xf32>
      %487 = arith.subf %479, %486 : vector<16x32xf32>
      %488 = arith.mulf %487, %487 : vector<16x32xf32>
      %cst_170 = arith.constant dense<0.000000e+00> : vector<16xf32>
      %489 = vector.multi_reduction <add>, %488, %cst_170 [1] : vector<16x32xf32> to vector<16xf32>
      %490 = vector.shape_cast %489 : vector<16xf32> to vector<16x1xf32>
      %cst_171 = arith.constant 3.200000e+01 : f32
      %491 = vector.broadcast %cst_171 : f32 to vector<16x1xf32>
      %492 = arith.divf %490, %491 : vector<16x1xf32>
      %cst_172 = arith.constant 9.99999996E-13 : f32
      %493 = vector.broadcast %cst_172 : f32 to vector<16x1xf32>
      %494 = arith.addf %492, %493 : vector<16x1xf32>
      %495 = math.rsqrt %494 : vector<16x1xf32>
      %496 = vector.broadcast %495 : vector<16x1xf32> to vector<16x32xf32>
      %497 = arith.mulf %487, %496 : vector<16x32xf32>
      %498 = vector.broadcast %480 : vector<1x32xf32> to vector<16x32xf32>
      %499 = arith.mulf %497, %498 : vector<16x32xf32>
      %500 = vector.broadcast %481 : vector<1x32xf32> to vector<16x32xf32>
      %501 = arith.addf %499, %500 : vector<16x32xf32>
      %c0_173 = arith.constant 0 : index
      %c0_174 = arith.constant 0 : index
      %502 = vector.load %arg28[%c0_173, %c0_174] : memref<16x32xf32, #tpu.memory_space<vmem>>, vector<16x32xf32>
      tpu.vector_store %arg28[%c0_173, %c0_174], %501 {strides = array<i32>} : memref<16x32xf32, #tpu.memory_space<vmem>>, vector<16x32xf32>,
    } else {
    }
    %c0 = arith.constant 0 : index
    %c0_1 = arith.constant 0 : index
    %3 = vector.load %arg28[%c0, %c0_1] : memref<16x32xf32, #tpu.memory_space<vmem>>, vector<16x32xf32>
    %c0_2 = arith.constant 0 : index
    %c0_3 = arith.constant 0 : index
    %c0_4 = arith.constant 0 : index
    %4 = vector.load %arg7[%c0_2, %c0_3, %c0_4] : memref<1x32x96xbf16, #tpu.memory_space<vmem>>, vector<1x32x96xbf16>
    %5 = vector.shape_cast %4 : vector<1x32x96xbf16> to vector<32x96xbf16>
    %6 = arith.truncf %3 : vector<16x32xf32> to vector<16x32xbf16>
    %cst = arith.constant dense<0.000000e+00> : vector<16x96xf32>
    %7 = tpu.matmul %6, %5, %cst {dimension_numbers = #tpu.dot_dimension_numbers<[1], [0], [0], [1], [0, 0, 1, 1], [], []>} : vector<16x32xbf16>, vector<32x96xbf16>, vector<16x96xf32> -> vector<16x96xf32>
    %c0_5 = arith.constant 0 : index
    %c0_6 = arith.constant 0 : index
    %c0_7 = arith.constant 0 : index
    %8 = vector.load %arg8[%c0_5, %c0_6, %c0_7] : memref<1x1x96xf32, #tpu.memory_space<vmem>>, vector<1x1x96xf32>
    %9 = vector.shape_cast %8 : vector<1x1x96xf32> to vector<1x96xf32>
    %10 = vector.broadcast %9 : vector<1x96xf32> to vector<16x96xf32>
    %11 = arith.addf %7, %10 : vector<16x96xf32>
    %12 = vector.extract_strided_slice %11 {offsets = [0, 0], sizes = [16, 32], strides = [1, 1]} : vector<16x96xf32> to vector<16x32xf32>
    %13 = vector.extract_strided_slice %11 {offsets = [0, 32], sizes = [16, 32], strides = [1, 1]} : vector<16x96xf32> to vector<16x32xf32>
    %14 = vector.extract_strided_slice %11 {offsets = [0, 64], sizes = [16, 32], strides = [1, 1]} : vector<16x96xf32> to vector<16x32xf32>
    %c0_8 = arith.constant 0 : index
    %c0_9 = arith.constant 0 : index
    %15 = vector.load %arg2[%c0_8, %c0_9] : memref<2x8xf32, #tpu.memory_space<vmem>>, vector<2x8xf32>
    %cst_10 = arith.constant 0.353553385 : f32
    %16 = vector.broadcast %cst_10 : f32 to vector<16x32xf32>
    %17 = arith.mulf %12, %16 : vector<16x32xf32>
    %18 = arith.truncf %17 : vector<16x32xf32> to vector<16x32xbf16>
    %19 = arith.truncf %13 : vector<16x32xf32> to vector<16x32xbf16>
    %20 = arith.truncf %14 : vector<16x32xf32> to vector<16x32xbf16>
    %21 = vector.extract_strided_slice %18 {offsets = [0, 0], sizes = [8, 32], strides = [1, 1]} : vector<16x32xbf16> to vector<8x32xbf16>
    %22 = vector.extract_strided_slice %19 {offsets = [0, 0], sizes = [8, 32], strides = [1, 1]} : vector<16x32xbf16> to vector<8x32xbf16>
    %23 = vector.extract_strided_slice %20 {offsets = [0, 0], sizes = [8, 32], strides = [1, 1]} : vector<16x32xbf16> to vector<8x32xbf16>
    %24 = vector.extract_strided_slice %15 {offsets = [0, 0], sizes = [1, 8], strides = [1, 1]} : vector<2x8xf32> to vector<1x8xf32>
    %25 = vector.extract_strided_slice %21 {offsets = [0, 0], sizes = [8, 8], strides = [1, 1]} : vector<8x32xbf16> to vector<8x8xbf16>
    %26 = vector.extract_strided_slice %22 {offsets = [0, 0], sizes = [8, 8], strides = [1, 1]} : vector<8x32xbf16> to vector<8x8xbf16>
    %27 = vector.extract_strided_slice %23 {offsets = [0, 0], sizes = [8, 8], strides = [1, 1]} : vector<8x32xbf16> to vector<8x8xbf16>
    %cst_11 = arith.constant dense<0.000000e+00> : vector<8x8xf32>
    %28 = tpu.matmul %25, %26, %cst_11 {dimension_numbers = #tpu.dot_dimension_numbers<[1], [1], [0], [0], [0, 0, 1, 0], [], []>} : vector<8x8xbf16>, vector<8x8xbf16>, vector<8x8xf32> -> vector<8x8xf32>
    %29 = vector.broadcast %24 : vector<1x8xf32> to vector<8x8xf32>
    %30 = arith.addf %28, %29 : vector<8x8xf32>
    %cst_12 = arith.constant dense<0xFF800000> : vector<8xf32>
    %31 = vector.multi_reduction <maximumf>, %30, %cst_12 [1] : vector<8x8xf32> to vector<8xf32>
    %32 = vector.shape_cast %31 : vector<8xf32> to vector<8x1xf32>
    %33 = vector.broadcast %32 : vector<8x1xf32> to vector<8x8xf32>
    %34 = arith.subf %30, %33 : vector<8x8xf32>
    %35 = math.exp %34 : vector<8x8xf32>
    %cst_13 = arith.constant dense<0.000000e+00> : vector<8xf32>
    %36 = vector.multi_reduction <add>, %35, %cst_13 [1] : vector<8x8xf32> to vector<8xf32>
    %37 = vector.shape_cast %36 : vector<8xf32> to vector<8x1xf32>
    %38 = tpu.reciprocal %37 {approx = true} : vector<8x1xf32> -> vector<8x1xf32>
    %39 = vector.broadcast %38 : vector<8x1xf32> to vector<8x8xf32>
    %40 = arith.mulf %35, %39 : vector<8x8xf32>
    %41 = arith.truncf %40 : vector<8x8xf32> to vector<8x8xbf16>
    %cst_14 = arith.constant dense<0.000000e+00> : vector<8x8xf32>
    %42 = tpu.matmul %41, %27, %cst_14 {dimension_numbers = #tpu.dot_dimension_numbers<[1], [0], [0], [1], [0, 0, 1, 1], [], []>} : vector<8x8xbf16>, vector<8x8xbf16>, vector<8x8xf32> -> vector<8x8xf32>
    %43 = vector.extract_strided_slice %21 {offsets = [0, 8], sizes = [8, 8], strides = [1, 1]} : vector<8x32xbf16> to vector<8x8xbf16>
    %44 = vector.extract_strided_slice %22 {offsets = [0, 8], sizes = [8, 8], strides = [1, 1]} : vector<8x32xbf16> to vector<8x8xbf16>
    %45 = vector.extract_strided_slice %23 {offsets = [0, 8], sizes = [8, 8], strides = [1, 1]} : vector<8x32xbf16> to vector<8x8xbf16>
    %cst_15 = arith.constant dense<0.000000e+00> : vector<8x8xf32>
    %46 = tpu.matmul %43, %44, %cst_15 {dimension_numbers = #tpu.dot_dimension_numbers<[1], [1], [0], [0], [0, 0, 1, 0], [], []>} : vector<8x8xbf16>, vector<8x8xbf16>, vector<8x8xf32> -> vector<8x8xf32>
    %47 = vector.broadcast %24 : vector<1x8xf32> to vector<8x8xf32>
    %48 = arith.addf %46, %47 : vector<8x8xf32>
    %cst_16 = arith.constant dense<0xFF800000> : vector<8xf32>
    %49 = vector.multi_reduction <maximumf>, %48, %cst_16 [1] : vector<8x8xf32> to vector<8xf32>
    %50 = vector.shape_cast %49 : vector<8xf32> to vector<8x1xf32>
    %51 = vector.broadcast %50 : vector<8x1xf32> to vector<8x8xf32>
    %52 = arith.subf %48, %51 : vector<8x8xf32>
    %53 = math.exp %52 : vector<8x8xf32>
    %cst_17 = arith.constant dense<0.000000e+00> : vector<8xf32>
    %54 = vector.multi_reduction <add>, %53, %cst_17 [1] : vector<8x8xf32> to vector<8xf32>
    %55 = vector.shape_cast %54 : vector<8xf32> to vector<8x1xf32>
    %56 = tpu.reciprocal %55 {approx = true} : vector<8x1xf32> -> vector<8x1xf32>
    %57 = vector.broadcast %56 : vector<8x1xf32> to vector<8x8xf32>
    %58 = arith.mulf %53, %57 : vector<8x8xf32>
    %59 = arith.truncf %58 : vector<8x8xf32> to vector<8x8xbf16>
    %cst_18 = arith.constant dense<0.000000e+00> : vector<8x8xf32>
    %60 = tpu.matmul %59, %45, %cst_18 {dimension_numbers = #tpu.dot_dimension_numbers<[1], [0], [0], [1], [0, 0, 1, 1], [], []>} : vector<8x8xbf16>, vector<8x8xbf16>, vector<8x8xf32> -> vector<8x8xf32>
    %61 = vector.extract_strided_slice %21 {offsets = [0, 16], sizes = [8, 8], strides = [1, 1]} : vector<8x32xbf16> to vector<8x8xbf16>
    %62 = vector.extract_strided_slice %22 {offsets = [0, 16], sizes = [8, 8], strides = [1, 1]} : vector<8x32xbf16> to vector<8x8xbf16>
    %63 = vector.extract_strided_slice %23 {offsets = [0, 16], sizes = [8, 8], strides = [1, 1]} : vector<8x32xbf16> to vector<8x8xbf16>
    %cst_19 = arith.constant dense<0.000000e+00> : vector<8x8xf32>
    %64 = tpu.matmul %61, %62, %cst_19 {dimension_numbers = #tpu.dot_dimension_numbers<[1], [1], [0], [0], [0, 0, 1, 0], [], []>} : vector<8x8xbf16>, vector<8x8xbf16>, vector<8x8xf32> -> vector<8x8xf32>
    %65 = vector.broadcast %24 : vector<1x8xf32> to vector<8x8xf32>
    %66 = arith.addf %64, %65 : vector<8x8xf32>
    %cst_20 = arith.constant dense<0xFF800000> : vector<8xf32>
    %67 = vector.multi_reduction <maximumf>, %66, %cst_20 [1] : vector<8x8xf32> to vector<8xf32>
    %68 = vector.shape_cast %67 : vector<8xf32> to vector<8x1xf32>
    %69 = vector.broadcast %68 : vector<8x1xf32> to vector<8x8xf32>
    %70 = arith.subf %66, %69 : vector<8x8xf32>
    %71 = math.exp %70 : vector<8x8xf32>
    %cst_21 = arith.constant dense<0.000000e+00> : vector<8xf32>
    %72 = vector.multi_reduction <add>, %71, %cst_21 [1] : vector<8x8xf32> to vector<8xf32>
    %73 = vector.shape_cast %72 : vector<8xf32> to vector<8x1xf32>
    %74 = tpu.reciprocal %73 {approx = true} : vector<8x1xf32> -> vector<8x1xf32>
    %75 = vector.broadcast %74 : vector<8x1xf32> to vector<8x8xf32>
    %76 = arith.mulf %71, %75 : vector<8x8xf32>
    %77 = arith.truncf %76 : vector<8x8xf32> to vector<8x8xbf16>
    %cst_22 = arith.constant dense<0.000000e+00> : vector<8x8xf32>
    %78 = tpu.matmul %77, %63, %cst_22 {dimension_numbers = #tpu.dot_dimension_numbers<[1], [0], [0], [1], [0, 0, 1, 1], [], []>} : vector<8x8xbf16>, vector<8x8xbf16>, vector<8x8xf32> -> vector<8x8xf32>
    %79 = vector.extract_strided_slice %21 {offsets = [0, 24], sizes = [8, 8], strides = [1, 1]} : vector<8x32xbf16> to vector<8x8xbf16>
    %80 = vector.extract_strided_slice %22 {offsets = [0, 24], sizes = [8, 8], strides = [1, 1]} : vector<8x32xbf16> to vector<8x8xbf16>
    %81 = vector.extract_strided_slice %23 {offsets = [0, 24], sizes = [8, 8], strides = [1, 1]} : vector<8x32xbf16> to vector<8x8xbf16>
    %cst_23 = arith.constant dense<0.000000e+00> : vector<8x8xf32>
    %82 = tpu.matmul %79, %80, %cst_23 {dimension_numbers = #tpu.dot_dimension_numbers<[1], [1], [0], [0], [0, 0, 1, 0], [], []>} : vector<8x8xbf16>, vector<8x8xbf16>, vector<8x8xf32> -> vector<8x8xf32>
    %83 = vector.broadcast %24 : vector<1x8xf32> to vector<8x8xf32>
    %84 = arith.addf %82, %83 : vector<8x8xf32>
    %cst_24 = arith.constant dense<0xFF800000> : vector<8xf32>
    %85 = vector.multi_reduction <maximumf>, %84, %cst_24 [1] : vector<8x8xf32> to vector<8xf32>
    %86 = vector.shape_cast %85 : vector<8xf32> to vector<8x1xf32>
    %87 = vector.broadcast %86 : vector<8x1xf32> to vector<8x8xf32>
    %88 = arith.subf %84, %87 : vector<8x8xf32>
    %89 = math.exp %88 : vector<8x8xf32>
    %cst_25 = arith.constant dense<0.000000e+00> : vector<8xf32>
    %90 = vector.multi_reduction <add>, %89, %cst_25 [1] : vector<8x8xf32> to vector<8xf32>
    %91 = vector.shape_cast %90 : vector<8xf32> to vector<8x1xf32>
    %92 = tpu.reciprocal %91 {approx = true} : vector<8x1xf32> -> vector<8x1xf32>
    %93 = vector.broadcast %92 : vector<8x1xf32> to vector<8x8xf32>
    %94 = arith.mulf %89, %93 : vector<8x8xf32>
    %95 = arith.truncf %94 : vector<8x8xf32> to vector<8x8xbf16>
    %cst_26 = arith.constant dense<0.000000e+00> : vector<8x8xf32>
    %96 = tpu.matmul %95, %81, %cst_26 {dimension_numbers = #tpu.dot_dimension_numbers<[1], [0], [0], [1], [0, 0, 1, 1], [], []>} : vector<8x8xbf16>, vector<8x8xbf16>, vector<8x8xf32> -> vector<8x8xf32>
    %97 = tpu.concatenate %42, %60, %78, %96 in 1 : vector<8x8xf32>, vector<8x8xf32>, vector<8x8xf32>, vector<8x8xf32> -> vector<8x32xf32>
    %98 = vector.extract_strided_slice %18 {offsets = [8, 0], sizes = [8, 32], strides = [1, 1]} : vector<16x32xbf16> to vector<8x32xbf16>
    %99 = vector.extract_strided_slice %19 {offsets = [8, 0], sizes = [8, 32], strides = [1, 1]} : vector<16x32xbf16> to vector<8x32xbf16>
    %100 = vector.extract_strided_slice %20 {offsets = [8, 0], sizes = [8, 32], strides = [1, 1]} : vector<16x32xbf16> to vector<8x32xbf16>
    %101 = vector.extract_strided_slice %15 {offsets = [1, 0], sizes = [1, 8], strides = [1, 1]} : vector<2x8xf32> to vector<1x8xf32>
    %102 = vector.extract_strided_slice %98 {offsets = [0, 0], sizes = [8, 8], strides = [1, 1]} : vector<8x32xbf16> to vector<8x8xbf16>
    %103 = vector.extract_strided_slice %99 {offsets = [0, 0], sizes = [8, 8], strides = [1, 1]} : vector<8x32xbf16> to vector<8x8xbf16>
    %104 = vector.extract_strided_slice %100 {offsets = [0, 0], sizes = [8, 8], strides = [1, 1]} : vector<8x32xbf16> to vector<8x8xbf16>
    %cst_27 = arith.constant dense<0.000000e+00> : vector<8x8xf32>
    %105 = tpu.matmul %102, %103, %cst_27 {dimension_numbers = #tpu.dot_dimension_numbers<[1], [1], [0], [0], [0, 0, 1, 0], [], []>} : vector<8x8xbf16>, vector<8x8xbf16>, vector<8x8xf32> -> vector<8x8xf32>
    %106 = vector.broadcast %101 : vector<1x8xf32> to vector<8x8xf32>
    %107 = arith.addf %105, %106 : vector<8x8xf32>
    %cst_28 = arith.constant dense<0xFF800000> : vector<8xf32>
    %108 = vector.multi_reduction <maximumf>, %107, %cst_28 [1] : vector<8x8xf32> to vector<8xf32>
    %109 = vector.shape_cast %108 : vector<8xf32> to vector<8x1xf32>
    %110 = vector.broadcast %109 : vector<8x1xf32> to vector<8x8xf32>
    %111 = arith.subf %107, %110 : vector<8x8xf32>
    %112 = math.exp %111 : vector<8x8xf32>
    %cst_29 = arith.constant dense<0.000000e+00> : vector<8xf32>
    %113 = vector.multi_reduction <add>, %112, %cst_29 [1] : vector<8x8xf32> to vector<8xf32>
    %114 = vector.shape_cast %113 : vector<8xf32> to vector<8x1xf32>
    %115 = tpu.reciprocal %114 {approx = true} : vector<8x1xf32> -> vector<8x1xf32>
    %116 = vector.broadcast %115 : vector<8x1xf32> to vector<8x8xf32>
    %117 = arith.mulf %112, %116 : vector<8x8xf32>
    %118 = arith.truncf %117 : vector<8x8xf32> to vector<8x8xbf16>
    %cst_30 = arith.constant dense<0.000000e+00> : vector<8x8xf32>
    %119 = tpu.matmul %118, %104, %cst_30 {dimension_numbers = #tpu.dot_dimension_numbers<[1], [0], [0], [1], [0, 0, 1, 1], [], []>} : vector<8x8xbf16>, vector<8x8xbf16>, vector<8x8xf32> -> vector<8x8xf32>
    %120 = vector.extract_strided_slice %98 {offsets = [0, 8], sizes = [8, 8], strides = [1, 1]} : vector<8x32xbf16> to vector<8x8xbf16>
    %121 = vector.extract_strided_slice %99 {offsets = [0, 8], sizes = [8, 8], strides = [1, 1]} : vector<8x32xbf16> to vector<8x8xbf16>
    %122 = vector.extract_strided_slice %100 {offsets = [0, 8], sizes = [8, 8], strides = [1, 1]} : vector<8x32xbf16> to vector<8x8xbf16>
    %cst_31 = arith.constant dense<0.000000e+00> : vector<8x8xf32>
    %123 = tpu.matmul %120, %121, %cst_31 {dimension_numbers = #tpu.dot_dimension_numbers<[1], [1], [0], [0], [0, 0, 1, 0], [], []>} : vector<8x8xbf16>, vector<8x8xbf16>, vector<8x8xf32> -> vector<8x8xf32>
    %124 = vector.broadcast %101 : vector<1x8xf32> to vector<8x8xf32>
    %125 = arith.addf %123, %124 : vector<8x8xf32>
    %cst_32 = arith.constant dense<0xFF800000> : vector<8xf32>
    %126 = vector.multi_reduction <maximumf>, %125, %cst_32 [1] : vector<8x8xf32> to vector<8xf32>
    %127 = vector.shape_cast %126 : vector<8xf32> to vector<8x1xf32>
    %128 = vector.broadcast %127 : vector<8x1xf32> to vector<8x8xf32>
    %129 = arith.subf %125, %128 : vector<8x8xf32>
    %130 = math.exp %129 : vector<8x8xf32>
    %cst_33 = arith.constant dense<0.000000e+00> : vector<8xf32>
    %131 = vector.multi_reduction <add>, %130, %cst_33 [1] : vector<8x8xf32> to vector<8xf32>
    %132 = vector.shape_cast %131 : vector<8xf32> to vector<8x1xf32>
    %133 = tpu.reciprocal %132 {approx = true} : vector<8x1xf32> -> vector<8x1xf32>
    %134 = vector.broadcast %133 : vector<8x1xf32> to vector<8x8xf32>
    %135 = arith.mulf %130, %134 : vector<8x8xf32>
    %136 = arith.truncf %135 : vector<8x8xf32> to vector<8x8xbf16>
    %cst_34 = arith.constant dense<0.000000e+00> : vector<8x8xf32>
    %137 = tpu.matmul %136, %122, %cst_34 {dimension_numbers = #tpu.dot_dimension_numbers<[1], [0], [0], [1], [0, 0, 1, 1], [], []>} : vector<8x8xbf16>, vector<8x8xbf16>, vector<8x8xf32> -> vector<8x8xf32>
    %138 = vector.extract_strided_slice %98 {offsets = [0, 16], sizes = [8, 8], strides = [1, 1]} : vector<8x32xbf16> to vector<8x8xbf16>
    %139 = vector.extract_strided_slice %99 {offsets = [0, 16], sizes = [8, 8], strides = [1, 1]} : vector<8x32xbf16> to vector<8x8xbf16>
    %140 = vector.extract_strided_slice %100 {offsets = [0, 16], sizes = [8, 8], strides = [1, 1]} : vector<8x32xbf16> to vector<8x8xbf16>
    %cst_35 = arith.constant dense<0.000000e+00> : vector<8x8xf32>
    %141 = tpu.matmul %138, %139, %cst_35 {dimension_numbers = #tpu.dot_dimension_numbers<[1], [1], [0], [0], [0, 0, 1, 0], [], []>} : vector<8x8xbf16>, vector<8x8xbf16>, vector<8x8xf32> -> vector<8x8xf32>
    %142 = vector.broadcast %101 : vector<1x8xf32> to vector<8x8xf32>
    %143 = arith.addf %141, %142 : vector<8x8xf32>
    %cst_36 = arith.constant dense<0xFF800000> : vector<8xf32>
    %144 = vector.multi_reduction <maximumf>, %143, %cst_36 [1] : vector<8x8xf32> to vector<8xf32>
    %145 = vector.shape_cast %144 : vector<8xf32> to vector<8x1xf32>
    %146 = vector.broadcast %145 : vector<8x1xf32> to vector<8x8xf32>
    %147 = arith.subf %143, %146 : vector<8x8xf32>
    %148 = math.exp %147 : vector<8x8xf32>
    %cst_37 = arith.constant dense<0.000000e+00> : vector<8xf32>
    %149 = vector.multi_reduction <add>, %148, %cst_37 [1] : vector<8x8xf32> to vector<8xf32>
    %150 = vector.shape_cast %149 : vector<8xf32> to vector<8x1xf32>
    %151 = tpu.reciprocal %150 {approx = true} : vector<8x1xf32> -> vector<8x1xf32>
    %152 = vector.broadcast %151 : vector<8x1xf32> to vector<8x8xf32>
    %153 = arith.mulf %148, %152 : vector<8x8xf32>
    %154 = arith.truncf %153 : vector<8x8xf32> to vector<8x8xbf16>
    %cst_38 = arith.constant dense<0.000000e+00> : vector<8x8xf32>
    %155 = tpu.matmul %154, %140, %cst_38 {dimension_numbers = #tpu.dot_dimension_numbers<[1], [0], [0], [1], [0, 0, 1, 1], [], []>} : vector<8x8xbf16>, vector<8x8xbf16>, vector<8x8xf32> -> vector<8x8xf32>
    %156 = vector.extract_strided_slice %98 {offsets = [0, 24], sizes = [8, 8], strides = [1, 1]} : vector<8x32xbf16> to vector<8x8xbf16>
    %157 = vector.extract_strided_slice %99 {offsets = [0, 24], sizes = [8, 8], strides = [1, 1]} : vector<8x32xbf16> to vector<8x8xbf16>
    %158 = vector.extract_strided_slice %100 {offsets = [0, 24], sizes = [8, 8], strides = [1, 1]} : vector<8x32xbf16> to vector<8x8xbf16>
    %cst_39 = arith.constant dense<0.000000e+00> : vector<8x8xf32>
    %159 = tpu.matmul %156, %157, %cst_39 {dimension_numbers = #tpu.dot_dimension_numbers<[1], [1], [0], [0], [0, 0, 1, 0], [], []>} : vector<8x8xbf16>, vector<8x8xbf16>, vector<8x8xf32> -> vector<8x8xf32>
    %160 = vector.broadcast %101 : vector<1x8xf32> to vector<8x8xf32>
    %161 = arith.addf %159, %160 : vector<8x8xf32>
    %cst_40 = arith.constant dense<0xFF800000> : vector<8xf32>
    %162 = vector.multi_reduction <maximumf>, %161, %cst_40 [1] : vector<8x8xf32> to vector<8xf32>
    %163 = vector.shape_cast %162 : vector<8xf32> to vector<8x1xf32>
    %164 = vector.broadcast %163 : vector<8x1xf32> to vector<8x8xf32>
    %165 = arith.subf %161, %164 : vector<8x8xf32>
    %166 = math.exp %165 : vector<8x8xf32>
    %cst_41 = arith.constant dense<0.000000e+00> : vector<8xf32>
    %167 = vector.multi_reduction <add>, %166, %cst_41 [1] : vector<8x8xf32> to vector<8xf32>
    %168 = vector.shape_cast %167 : vector<8xf32> to vector<8x1xf32>
    %169 = tpu.reciprocal %168 {approx = true} : vector<8x1xf32> -> vector<8x1xf32>
    %170 = vector.broadcast %169 : vector<8x1xf32> to vector<8x8xf32>
    %171 = arith.mulf %166, %170 : vector<8x8xf32>
    %172 = arith.truncf %171 : vector<8x8xf32> to vector<8x8xbf16>
    %cst_42 = arith.constant dense<0.000000e+00> : vector<8x8xf32>
    %173 = tpu.matmul %172, %158, %cst_42 {dimension_numbers = #tpu.dot_dimension_numbers<[1], [0], [0], [1], [0, 0, 1, 1], [], []>} : vector<8x8xbf16>, vector<8x8xbf16>, vector<8x8xf32> -> vector<8x8xf32>
    %174 = tpu.concatenate %119, %137, %155, %173 in 1 : vector<8x8xf32>, vector<8x8xf32>, vector<8x8xf32>, vector<8x8xf32> -> vector<8x32xf32>
    %175 = tpu.concatenate %97, %174 in 0 : vector<8x32xf32>, vector<8x32xf32> -> vector<16x32xf32>
    %c0_43 = arith.constant 0 : index
    %c0_44 = arith.constant 0 : index
    %c0_45 = arith.constant 0 : index
    %176 = vector.load %arg9[%c0_43, %c0_44, %c0_45] : memref<1x32x32xbf16, #tpu.memory_space<vmem>>, vector<1x32x32xbf16>
    %177 = vector.shape_cast %176 : vector<1x32x32xbf16> to vector<32x32xbf16>
    %178 = arith.truncf %175 : vector<16x32xf32> to vector<16x32xbf16>
    %cst_46 = arith.constant dense<0.000000e+00> : vector<16x32xf32>
    %179 = tpu.matmul %178, %177, %cst_46 {dimension_numbers = #tpu.dot_dimension_numbers<[1], [0], [0], [1], [0, 0, 1, 1], [], []>} : vector<16x32xbf16>, vector<32x32xbf16>, vector<16x32xf32> -> vector<16x32xf32>
    %c0_47 = arith.constant 0 : index
    %c0_48 = arith.constant 0 : index
    %c0_49 = arith.constant 0 : index
    %180 = vector.load %arg10[%c0_47, %c0_48, %c0_49] : memref<1x1x32xf32, #tpu.memory_space<vmem>>, vector<1x1x32xf32>
    %181 = vector.shape_cast %180 : vector<1x1x32xf32> to vector<1x32xf32>
    %182 = vector.broadcast %181 : vector<1x32xf32> to vector<16x32xf32>
    %183 = arith.addf %179, %182 : vector<16x32xf32>
    %184 = arith.addf %3, %183 : vector<16x32xf32>
    %c0_50 = arith.constant 0 : index
    %c0_51 = arith.constant 0 : index
    %c0_52 = arith.constant 0 : index
    %185 = vector.load %arg11[%c0_50, %c0_51, %c0_52] : memref<1x1x32xf32, #tpu.memory_space<vmem>>, vector<1x1x32xf32>
    %186 = vector.shape_cast %185 : vector<1x1x32xf32> to vector<1x32xf32>
    %c0_53 = arith.constant 0 : index
    %c0_54 = arith.constant 0 : index
    %c0_55 = arith.constant 0 : index
    %187 = vector.load %arg12[%c0_53, %c0_54, %c0_55] : memref<1x1x32xf32, #tpu.memory_space<vmem>>, vector<1x1x32xf32>
    %188 = vector.shape_cast %187 : vector<1x1x32xf32> to vector<1x32xf32>
    %cst_56 = arith.constant dense<0.000000e+00> : vector<16xf32>
    %189 = vector.multi_reduction <add>, %184, %cst_56 [1] : vector<16x32xf32> to vector<16xf32>
    %190 = vector.shape_cast %189 : vector<16xf32> to vector<16x1xf32>
    %cst_57 = arith.constant 3.200000e+01 : f32
    %191 = vector.broadcast %cst_57 : f32 to vector<16x1xf32>
    %192 = arith.divf %190, %191 : vector<16x1xf32>
    %193 = vector.broadcast %192 : vector<16x1xf32> to vector<16x32xf32>
    %194 = arith.subf %184, %193 : vector<16x32xf32>
    %195 = arith.mulf %194, %194 : vector<16x32xf32>
    %cst_58 = arith.constant dense<0.000000e+00> : vector<16xf32>
    %196 = vector.multi_reduction <add>, %195, %cst_58 [1] : vector<16x32xf32> to vector<16xf32>
    %197 = vector.shape_cast %196 : vector<16xf32> to vector<16x1xf32>
    %cst_59 = arith.constant 3.200000e+01 : f32
    %198 = vector.broadcast %cst_59 : f32 to vector<16x1xf32>
    %199 = arith.divf %197, %198 : vector<16x1xf32>
    %cst_60 = arith.constant 9.99999996E-13 : f32
    %200 = vector.broadcast %cst_60 : f32 to vector<16x1xf32>
    %201 = arith.addf %199, %200 : vector<16x1xf32>
    %202 = math.rsqrt %201 : vector<16x1xf32>
    %203 = vector.broadcast %202 : vector<16x1xf32> to vector<16x32xf32>
    %204 = arith.mulf %194, %203 : vector<16x32xf32>
    %205 = vector.broadcast %186 : vector<1x32xf32> to vector<16x32xf32>
    %206 = arith.mulf %204, %205 : vector<16x32xf32>
    %207 = vector.broadcast %188 : vector<1x32xf32> to vector<16x32xf32>
    %208 = arith.addf %206, %207 : vector<16x32xf32>
    %c0_61 = arith.constant 0 : index
    %c0_62 = arith.constant 0 : index
    %209 = vector.load %arg3[%c0_61, %c0_62] : memref<34x32xbf16, #tpu.memory_space<vmem>>, vector<34x32xbf16>
    %c0_63 = arith.constant 0 : index
    %c0_64 = arith.constant 0 : index
    %c0_65 = arith.constant 0 : index
    %210 = vector.load %arg13[%c0_63, %c0_64, %c0_65] : memref<1x32x32xbf16, #tpu.memory_space<vmem>>, vector<1x32x32xbf16>
    %211 = vector.shape_cast %210 : vector<1x32x32xbf16> to vector<32x32xbf16>
    %212 = arith.truncf %208 : vector<16x32xf32> to vector<16x32xbf16>
    %cst_66 = arith.constant dense<0.000000e+00> : vector<16x32xf32>
    %213 = tpu.matmul %212, %211, %cst_66 {dimension_numbers = #tpu.dot_dimension_numbers<[1], [0], [0], [1], [0, 0, 1, 1], [], []>} : vector<16x32xbf16>, vector<32x32xbf16>, vector<16x32xf32> -> vector<16x32xf32>
    %c0_67 = arith.constant 0 : index
    %c0_68 = arith.constant 0 : index
    %c0_69 = arith.constant 0 : index
    %214 = vector.load %arg14[%c0_67, %c0_68, %c0_69] : memref<1x1x32xf32, #tpu.memory_space<vmem>>, vector<1x1x32xf32>
    %215 = vector.shape_cast %214 : vector<1x1x32xf32> to vector<1x32xf32>
    %216 = vector.broadcast %215 : vector<1x32xf32> to vector<16x32xf32>
    %217 = arith.addf %213, %216 : vector<16x32xf32>
    %c0_70 = arith.constant 0 : index
    %c0_71 = arith.constant 0 : index
    %c0_72 = arith.constant 0 : index
    %218 = vector.load %arg15[%c0_70, %c0_71, %c0_72] : memref<1x32x64xbf16, #tpu.memory_space<vmem>>, vector<1x32x64xbf16>
    %219 = vector.shape_cast %218 : vector<1x32x64xbf16> to vector<32x64xbf16>
    %cst_73 = arith.constant dense<0.000000e+00> : vector<34x64xf32>
    %220 = tpu.matmul %209, %219, %cst_73 {dimension_numbers = #tpu.dot_dimension_numbers<[1], [0], [0], [1], [0, 0, 1, 1], [], []>} : vector<34x32xbf16>, vector<32x64xbf16>, vector<34x64xf32> -> vector<34x64xf32>
    %c0_74 = arith.constant 0 : index
    %c0_75 = arith.constant 0 : index
    %c0_76 = arith.constant 0 : index
    %221 = vector.load %arg16[%c0_74, %c0_75, %c0_76] : memref<1x1x64xf32, #tpu.memory_space<vmem>>, vector<1x1x64xf32>
    %222 = vector.shape_cast %221 : vector<1x1x64xf32> to vector<1x64xf32>
    %223 = vector.broadcast %222 : vector<1x64xf32> to vector<34x64xf32>
    %224 = arith.addf %220, %223 : vector<34x64xf32>
    %225 = vector.extract_strided_slice %224 {offsets = [0, 0], sizes = [34, 32], strides = [1, 1]} : vector<34x64xf32> to vector<34x32xf32>
    %226 = vector.extract_strided_slice %224 {offsets = [0, 32], sizes = [34, 32], strides = [1, 1]} : vector<34x64xf32> to vector<34x32xf32>
    %c0_77 = arith.constant 0 : index
    %c0_78 = arith.constant 0 : index
    %227 = vector.load %arg4[%c0_77, %c0_78] : memref<2x17xf32, #tpu.memory_space<vmem>>, vector<2x17xf32>
    %cst_79 = arith.constant 0.353553385 : f32
    %228 = vector.broadcast %cst_79 : f32 to vector<16x32xf32>
    %229 = arith.mulf %217, %228 : vector<16x32xf32>
    %230 = arith.truncf %229 : vector<16x32xf32> to vector<16x32xbf16>
    %231 = arith.truncf %225 : vector<34x32xf32> to vector<34x32xbf16>
    %232 = arith.truncf %226 : vector<34x32xf32> to vector<34x32xbf16>
    %233 = vector.extract_strided_slice %230 {offsets = [0, 0], sizes = [8, 32], strides = [1, 1]} : vector<16x32xbf16> to vector<8x32xbf16>
    %234 = vector.extract_strided_slice %231 {offsets = [0, 0], sizes = [17, 32], strides = [1, 1]} : vector<34x32xbf16> to vector<17x32xbf16>
    %235 = vector.extract_strided_slice %232 {offsets = [0, 0], sizes = [17, 32], strides = [1, 1]} : vector<34x32xbf16> to vector<17x32xbf16>
    %236 = vector.extract_strided_slice %227 {offsets = [0, 0], sizes = [1, 17], strides = [1, 1]} : vector<2x17xf32> to vector<1x17xf32>
    %237 = vector.extract_strided_slice %233 {offsets = [0, 0], sizes = [8, 8], strides = [1, 1]} : vector<8x32xbf16> to vector<8x8xbf16>
    %238 = vector.extract_strided_slice %234 {offsets = [0, 0], sizes = [17, 8], strides = [1, 1]} : vector<17x32xbf16> to vector<17x8xbf16>
    %239 = vector.extract_strided_slice %235 {offsets = [0, 0], sizes = [17, 8], strides = [1, 1]} : vector<17x32xbf16> to vector<17x8xbf16>
    %cst_80 = arith.constant dense<0.000000e+00> : vector<8x17xf32>
    %240 = tpu.matmul %237, %238, %cst_80 {dimension_numbers = #tpu.dot_dimension_numbers<[1], [1], [0], [0], [0, 0, 1, 0], [], []>} : vector<8x8xbf16>, vector<17x8xbf16>, vector<8x17xf32> -> vector<8x17xf32>
    %241 = vector.broadcast %236 : vector<1x17xf32> to vector<8x17xf32>
    %242 = arith.addf %240, %241 : vector<8x17xf32>
    %cst_81 = arith.constant dense<0xFF800000> : vector<8xf32>
    %243 = vector.multi_reduction <maximumf>, %242, %cst_81 [1] : vector<8x17xf32> to vector<8xf32>
    %244 = vector.shape_cast %243 : vector<8xf32> to vector<8x1xf32>
    %245 = vector.broadcast %244 : vector<8x1xf32> to vector<8x17xf32>
    %246 = arith.subf %242, %245 : vector<8x17xf32>
    %247 = math.exp %246 : vector<8x17xf32>
    %cst_82 = arith.constant dense<0.000000e+00> : vector<8xf32>
    %248 = vector.multi_reduction <add>, %247, %cst_82 [1] : vector<8x17xf32> to vector<8xf32>
    %249 = vector.shape_cast %248 : vector<8xf32> to vector<8x1xf32>
    %250 = tpu.reciprocal %249 {approx = true} : vector<8x1xf32> -> vector<8x1xf32>
    %251 = vector.broadcast %250 : vector<8x1xf32> to vector<8x17xf32>
    %252 = arith.mulf %247, %251 : vector<8x17xf32>
    %253 = arith.truncf %252 : vector<8x17xf32> to vector<8x17xbf16>
    %cst_83 = arith.constant dense<0.000000e+00> : vector<8x8xf32>
    %254 = tpu.matmul %253, %239, %cst_83 {dimension_numbers = #tpu.dot_dimension_numbers<[1], [0], [0], [1], [0, 0, 1, 1], [], []>} : vector<8x17xbf16>, vector<17x8xbf16>, vector<8x8xf32> -> vector<8x8xf32>
    %255 = vector.extract_strided_slice %233 {offsets = [0, 8], sizes = [8, 8], strides = [1, 1]} : vector<8x32xbf16> to vector<8x8xbf16>
    %256 = vector.extract_strided_slice %234 {offsets = [0, 8], sizes = [17, 8], strides = [1, 1]} : vector<17x32xbf16> to vector<17x8xbf16>
    %257 = vector.extract_strided_slice %235 {offsets = [0, 8], sizes = [17, 8], strides = [1, 1]} : vector<17x32xbf16> to vector<17x8xbf16>
    %cst_84 = arith.constant dense<0.000000e+00> : vector<8x17xf32>
    %258 = tpu.matmul %255, %256, %cst_84 {dimension_numbers = #tpu.dot_dimension_numbers<[1], [1], [0], [0], [0, 0, 1, 0], [], []>} : vector<8x8xbf16>, vector<17x8xbf16>, vector<8x17xf32> -> vector<8x17xf32>
    %259 = vector.broadcast %236 : vector<1x17xf32> to vector<8x17xf32>
    %260 = arith.addf %258, %259 : vector<8x17xf32>
    %cst_85 = arith.constant dense<0xFF800000> : vector<8xf32>
    %261 = vector.multi_reduction <maximumf>, %260, %cst_85 [1] : vector<8x17xf32> to vector<8xf32>
    %262 = vector.shape_cast %261 : vector<8xf32> to vector<8x1xf32>
    %263 = vector.broadcast %262 : vector<8x1xf32> to vector<8x17xf32>
    %264 = arith.subf %260, %263 : vector<8x17xf32>
    %265 = math.exp %264 : vector<8x17xf32>
    %cst_86 = arith.constant dense<0.000000e+00> : vector<8xf32>
    %266 = vector.multi_reduction <add>, %265, %cst_86 [1] : vector<8x17xf32> to vector<8xf32>
    %267 = vector.shape_cast %266 : vector<8xf32> to vector<8x1xf32>
    %268 = tpu.reciprocal %267 {approx = true} : vector<8x1xf32> -> vector<8x1xf32>
    %269 = vector.broadcast %268 : vector<8x1xf32> to vector<8x17xf32>
    %270 = arith.mulf %265, %269 : vector<8x17xf32>
    %271 = arith.truncf %270 : vector<8x17xf32> to vector<8x17xbf16>
    %cst_87 = arith.constant dense<0.000000e+00> : vector<8x8xf32>
    %272 = tpu.matmul %271, %257, %cst_87 {dimension_numbers = #tpu.dot_dimension_numbers<[1], [0], [0], [1], [0, 0, 1, 1], [], []>} : vector<8x17xbf16>, vector<17x8xbf16>, vector<8x8xf32> -> vector<8x8xf32>
    %273 = vector.extract_strided_slice %233 {offsets = [0, 16], sizes = [8, 8], strides = [1, 1]} : vector<8x32xbf16> to vector<8x8xbf16>
    %274 = vector.extract_strided_slice %234 {offsets = [0, 16], sizes = [17, 8], strides = [1, 1]} : vector<17x32xbf16> to vector<17x8xbf16>
    %275 = vector.extract_strided_slice %235 {offsets = [0, 16], sizes = [17, 8], strides = [1, 1]} : vector<17x32xbf16> to vector<17x8xbf16>
    %cst_88 = arith.constant dense<0.000000e+00> : vector<8x17xf32>
    %276 = tpu.matmul %273, %274, %cst_88 {dimension_numbers = #tpu.dot_dimension_numbers<[1], [1], [0], [0], [0, 0, 1, 0], [], []>} : vector<8x8xbf16>, vector<17x8xbf16>, vector<8x17xf32> -> vector<8x17xf32>
    %277 = vector.broadcast %236 : vector<1x17xf32> to vector<8x17xf32>
    %278 = arith.addf %276, %277 : vector<8x17xf32>
    %cst_89 = arith.constant dense<0xFF800000> : vector<8xf32>
    %279 = vector.multi_reduction <maximumf>, %278, %cst_89 [1] : vector<8x17xf32> to vector<8xf32>
    %280 = vector.shape_cast %279 : vector<8xf32> to vector<8x1xf32>
    %281 = vector.broadcast %280 : vector<8x1xf32> to vector<8x17xf32>
    %282 = arith.subf %278, %281 : vector<8x17xf32>
    %283 = math.exp %282 : vector<8x17xf32>
    %cst_90 = arith.constant dense<0.000000e+00> : vector<8xf32>
    %284 = vector.multi_reduction <add>, %283, %cst_90 [1] : vector<8x17xf32> to vector<8xf32>
    %285 = vector.shape_cast %284 : vector<8xf32> to vector<8x1xf32>
    %286 = tpu.reciprocal %285 {approx = true} : vector<8x1xf32> -> vector<8x1xf32>
    %287 = vector.broadcast %286 : vector<8x1xf32> to vector<8x17xf32>
    %288 = arith.mulf %283, %287 : vector<8x17xf32>
    %289 = arith.truncf %288 : vector<8x17xf32> to vector<8x17xbf16>
    %cst_91 = arith.constant dense<0.000000e+00> : vector<8x8xf32>
    %290 = tpu.matmul %289, %275, %cst_91 {dimension_numbers = #tpu.dot_dimension_numbers<[1], [0], [0], [1], [0, 0, 1, 1], [], []>} : vector<8x17xbf16>, vector<17x8xbf16>, vector<8x8xf32> -> vector<8x8xf32>
    %291 = vector.extract_strided_slice %233 {offsets = [0, 24], sizes = [8, 8], strides = [1, 1]} : vector<8x32xbf16> to vector<8x8xbf16>
    %292 = vector.extract_strided_slice %234 {offsets = [0, 24], sizes = [17, 8], strides = [1, 1]} : vector<17x32xbf16> to vector<17x8xbf16>
    %293 = vector.extract_strided_slice %235 {offsets = [0, 24], sizes = [17, 8], strides = [1, 1]} : vector<17x32xbf16> to vector<17x8xbf16>
    %cst_92 = arith.constant dense<0.000000e+00> : vector<8x17xf32>
    %294 = tpu.matmul %291, %292, %cst_92 {dimension_numbers = #tpu.dot_dimension_numbers<[1], [1], [0], [0], [0, 0, 1, 0], [], []>} : vector<8x8xbf16>, vector<17x8xbf16>, vector<8x17xf32> -> vector<8x17xf32>
    %295 = vector.broadcast %236 : vector<1x17xf32> to vector<8x17xf32>
    %296 = arith.addf %294, %295 : vector<8x17xf32>
    %cst_93 = arith.constant dense<0xFF800000> : vector<8xf32>
    %297 = vector.multi_reduction <maximumf>, %296, %cst_93 [1] : vector<8x17xf32> to vector<8xf32>
    %298 = vector.shape_cast %297 : vector<8xf32> to vector<8x1xf32>
    %299 = vector.broadcast %298 : vector<8x1xf32> to vector<8x17xf32>
    %300 = arith.subf %296, %299 : vector<8x17xf32>
    %301 = math.exp %300 : vector<8x17xf32>
    %cst_94 = arith.constant dense<0.000000e+00> : vector<8xf32>
    %302 = vector.multi_reduction <add>, %301, %cst_94 [1] : vector<8x17xf32> to vector<8xf32>
    %303 = vector.shape_cast %302 : vector<8xf32> to vector<8x1xf32>
    %304 = tpu.reciprocal %303 {approx = true} : vector<8x1xf32> -> vector<8x1xf32>
    %305 = vector.broadcast %304 : vector<8x1xf32> to vector<8x17xf32>
    %306 = arith.mulf %301, %305 : vector<8x17xf32>
    %307 = arith.truncf %306 : vector<8x17xf32> to vector<8x17xbf16>
    %cst_95 = arith.constant dense<0.000000e+00> : vector<8x8xf32>
    %308 = tpu.matmul %307, %293, %cst_95 {dimension_numbers = #tpu.dot_dimension_numbers<[1], [0], [0], [1], [0, 0, 1, 1], [], []>} : vector<8x17xbf16>, vector<17x8xbf16>, vector<8x8xf32> -> vector<8x8xf32>
    %309 = tpu.concatenate %254, %272, %290, %308 in 1 : vector<8x8xf32>, vector<8x8xf32>, vector<8x8xf32>, vector<8x8xf32> -> vector<8x32xf32>
    %310 = vector.extract_strided_slice %230 {offsets = [8, 0], sizes = [8, 32], strides = [1, 1]} : vector<16x32xbf16> to vector<8x32xbf16>
    %311 = vector.extract_strided_slice %231 {offsets = [17, 0], sizes = [17, 32], strides = [1, 1]} : vector<34x32xbf16> to vector<17x32xbf16>
    %312 = vector.extract_strided_slice %232 {offsets = [17, 0], sizes = [17, 32], strides = [1, 1]} : vector<34x32xbf16> to vector<17x32xbf16>
    %313 = vector.extract_strided_slice %227 {offsets = [1, 0], sizes = [1, 17], strides = [1, 1]} : vector<2x17xf32> to vector<1x17xf32>
    %314 = vector.extract_strided_slice %310 {offsets = [0, 0], sizes = [8, 8], strides = [1, 1]} : vector<8x32xbf16> to vector<8x8xbf16>
    %315 = vector.extract_strided_slice %311 {offsets = [0, 0], sizes = [17, 8], strides = [1, 1]} : vector<17x32xbf16> to vector<17x8xbf16>
    %316 = vector.extract_strided_slice %312 {offsets = [0, 0], sizes = [17, 8], strides = [1, 1]} : vector<17x32xbf16> to vector<17x8xbf16>
    %cst_96 = arith.constant dense<0.000000e+00> : vector<8x17xf32>
    %317 = tpu.matmul %314, %315, %cst_96 {dimension_numbers = #tpu.dot_dimension_numbers<[1], [1], [0], [0], [0, 0, 1, 0], [], []>} : vector<8x8xbf16>, vector<17x8xbf16>, vector<8x17xf32> -> vector<8x17xf32>
    %318 = vector.broadcast %313 : vector<1x17xf32> to vector<8x17xf32>
    %319 = arith.addf %317, %318 : vector<8x17xf32>
    %cst_97 = arith.constant dense<0xFF800000> : vector<8xf32>
    %320 = vector.multi_reduction <maximumf>, %319, %cst_97 [1] : vector<8x17xf32> to vector<8xf32>
    %321 = vector.shape_cast %320 : vector<8xf32> to vector<8x1xf32>
    %322 = vector.broadcast %321 : vector<8x1xf32> to vector<8x17xf32>
    %323 = arith.subf %319, %322 : vector<8x17xf32>
    %324 = math.exp %323 : vector<8x17xf32>
    %cst_98 = arith.constant dense<0.000000e+00> : vector<8xf32>
    %325 = vector.multi_reduction <add>, %324, %cst_98 [1] : vector<8x17xf32> to vector<8xf32>
    %326 = vector.shape_cast %325 : vector<8xf32> to vector<8x1xf32>
    %327 = tpu.reciprocal %326 {approx = true} : vector<8x1xf32> -> vector<8x1xf32>
    %328 = vector.broadcast %327 : vector<8x1xf32> to vector<8x17xf32>
    %329 = arith.mulf %324, %328 : vector<8x17xf32>
    %330 = arith.truncf %329 : vector<8x17xf32> to vector<8x17xbf16>
    %cst_99 = arith.constant dense<0.000000e+00> : vector<8x8xf32>
    %331 = tpu.matmul %330, %316, %cst_99 {dimension_numbers = #tpu.dot_dimension_numbers<[1], [0], [0], [1], [0, 0, 1, 1], [], []>} : vector<8x17xbf16>, vector<17x8xbf16>, vector<8x8xf32> -> vector<8x8xf32>
    %332 = vector.extract_strided_slice %310 {offsets = [0, 8], sizes = [8, 8], strides = [1, 1]} : vector<8x32xbf16> to vector<8x8xbf16>
    %333 = vector.extract_strided_slice %311 {offsets = [0, 8], sizes = [17, 8], strides = [1, 1]} : vector<17x32xbf16> to vector<17x8xbf16>
    %334 = vector.extract_strided_slice %312 {offsets = [0, 8], sizes = [17, 8], strides = [1, 1]} : vector<17x32xbf16> to vector<17x8xbf16>
    %cst_100 = arith.constant dense<0.000000e+00> : vector<8x17xf32>
    %335 = tpu.matmul %332, %333, %cst_100 {dimension_numbers = #tpu.dot_dimension_numbers<[1], [1], [0], [0], [0, 0, 1, 0], [], []>} : vector<8x8xbf16>, vector<17x8xbf16>, vector<8x17xf32> -> vector<8x17xf32>
    %336 = vector.broadcast %313 : vector<1x17xf32> to vector<8x17xf32>
    %337 = arith.addf %335, %336 : vector<8x17xf32>
    %cst_101 = arith.constant dense<0xFF800000> : vector<8xf32>
    %338 = vector.multi_reduction <maximumf>, %337, %cst_101 [1] : vector<8x17xf32> to vector<8xf32>
    %339 = vector.shape_cast %338 : vector<8xf32> to vector<8x1xf32>
    %340 = vector.broadcast %339 : vector<8x1xf32> to vector<8x17xf32>
    %341 = arith.subf %337, %340 : vector<8x17xf32>
    %342 = math.exp %341 : vector<8x17xf32>
    %cst_102 = arith.constant dense<0.000000e+00> : vector<8xf32>
    %343 = vector.multi_reduction <add>, %342, %cst_102 [1] : vector<8x17xf32> to vector<8xf32>
    %344 = vector.shape_cast %343 : vector<8xf32> to vector<8x1xf32>
    %345 = tpu.reciprocal %344 {approx = true} : vector<8x1xf32> -> vector<8x1xf32>
    %346 = vector.broadcast %345 : vector<8x1xf32> to vector<8x17xf32>
    %347 = arith.mulf %342, %346 : vector<8x17xf32>
    %348 = arith.truncf %347 : vector<8x17xf32> to vector<8x17xbf16>
    %cst_103 = arith.constant dense<0.000000e+00> : vector<8x8xf32>
    %349 = tpu.matmul %348, %334, %cst_103 {dimension_numbers = #tpu.dot_dimension_numbers<[1], [0], [0], [1], [0, 0, 1, 1], [], []>} : vector<8x17xbf16>, vector<17x8xbf16>, vector<8x8xf32> -> vector<8x8xf32>
    %350 = vector.extract_strided_slice %310 {offsets = [0, 16], sizes = [8, 8], strides = [1, 1]} : vector<8x32xbf16> to vector<8x8xbf16>
    %351 = vector.extract_strided_slice %311 {offsets = [0, 16], sizes = [17, 8], strides = [1, 1]} : vector<17x32xbf16> to vector<17x8xbf16>
    %352 = vector.extract_strided_slice %312 {offsets = [0, 16], sizes = [17, 8], strides = [1, 1]} : vector<17x32xbf16> to vector<17x8xbf16>
    %cst_104 = arith.constant dense<0.000000e+00> : vector<8x17xf32>
    %353 = tpu.matmul %350, %351, %cst_104 {dimension_numbers = #tpu.dot_dimension_numbers<[1], [1], [0], [0], [0, 0, 1, 0], [], []>} : vector<8x8xbf16>, vector<17x8xbf16>, vector<8x17xf32> -> vector<8x17xf32>
    %354 = vector.broadcast %313 : vector<1x17xf32> to vector<8x17xf32>
    %355 = arith.addf %353, %354 : vector<8x17xf32>
    %cst_105 = arith.constant dense<0xFF800000> : vector<8xf32>
    %356 = vector.multi_reduction <maximumf>, %355, %cst_105 [1] : vector<8x17xf32> to vector<8xf32>
    %357 = vector.shape_cast %356 : vector<8xf32> to vector<8x1xf32>
    %358 = vector.broadcast %357 : vector<8x1xf32> to vector<8x17xf32>
    %359 = arith.subf %355, %358 : vector<8x17xf32>
    %360 = math.exp %359 : vector<8x17xf32>
    %cst_106 = arith.constant dense<0.000000e+00> : vector<8xf32>
    %361 = vector.multi_reduction <add>, %360, %cst_106 [1] : vector<8x17xf32> to vector<8xf32>
    %362 = vector.shape_cast %361 : vector<8xf32> to vector<8x1xf32>
    %363 = tpu.reciprocal %362 {approx = true} : vector<8x1xf32> -> vector<8x1xf32>
    %364 = vector.broadcast %363 : vector<8x1xf32> to vector<8x17xf32>
    %365 = arith.mulf %360, %364 : vector<8x17xf32>
    %366 = arith.truncf %365 : vector<8x17xf32> to vector<8x17xbf16>
    %cst_107 = arith.constant dense<0.000000e+00> : vector<8x8xf32>
    %367 = tpu.matmul %366, %352, %cst_107 {dimension_numbers = #tpu.dot_dimension_numbers<[1], [0], [0], [1], [0, 0, 1, 1], [], []>} : vector<8x17xbf16>, vector<17x8xbf16>, vector<8x8xf32> -> vector<8x8xf32>
    %368 = vector.extract_strided_slice %310 {offsets = [0, 24], sizes = [8, 8], strides = [1, 1]} : vector<8x32xbf16> to vector<8x8xbf16>
    %369 = vector.extract_strided_slice %311 {offsets = [0, 24], sizes = [17, 8], strides = [1, 1]} : vector<17x32xbf16> to vector<17x8xbf16>
    %370 = vector.extract_strided_slice %312 {offsets = [0, 24], sizes = [17, 8], strides = [1, 1]} : vector<17x32xbf16> to vector<17x8xbf16>
    %cst_108 = arith.constant dense<0.000000e+00> : vector<8x17xf32>
    %371 = tpu.matmul %368, %369, %cst_108 {dimension_numbers = #tpu.dot_dimension_numbers<[1], [1], [0], [0], [0, 0, 1, 0], [], []>} : vector<8x8xbf16>, vector<17x8xbf16>, vector<8x17xf32> -> vector<8x17xf32>
    %372 = vector.broadcast %313 : vector<1x17xf32> to vector<8x17xf32>
    %373 = arith.addf %371, %372 : vector<8x17xf32>
    %cst_109 = arith.constant dense<0xFF800000> : vector<8xf32>
    %374 = vector.multi_reduction <maximumf>, %373, %cst_109 [1] : vector<8x17xf32> to vector<8xf32>
    %375 = vector.shape_cast %374 : vector<8xf32> to vector<8x1xf32>
    %376 = vector.broadcast %375 : vector<8x1xf32> to vector<8x17xf32>
    %377 = arith.subf %373, %376 : vector<8x17xf32>
    %378 = math.exp %377 : vector<8x17xf32>
    %cst_110 = arith.constant dense<0.000000e+00> : vector<8xf32>
    %379 = vector.multi_reduction <add>, %378, %cst_110 [1] : vector<8x17xf32> to vector<8xf32>
    %380 = vector.shape_cast %379 : vector<8xf32> to vector<8x1xf32>
    %381 = tpu.reciprocal %380 {approx = true} : vector<8x1xf32> -> vector<8x1xf32>
    %382 = vector.broadcast %381 : vector<8x1xf32> to vector<8x17xf32>
    %383 = arith.mulf %378, %382 : vector<8x17xf32>
    %384 = arith.truncf %383 : vector<8x17xf32> to vector<8x17xbf16>
    %cst_111 = arith.constant dense<0.000000e+00> : vector<8x8xf32>
    %385 = tpu.matmul %384, %370, %cst_111 {dimension_numbers = #tpu.dot_dimension_numbers<[1], [0], [0], [1], [0, 0, 1, 1], [], []>} : vector<8x17xbf16>, vector<17x8xbf16>, vector<8x8xf32> -> vector<8x8xf32>
    %386 = tpu.concatenate %331, %349, %367, %385 in 1 : vector<8x8xf32>, vector<8x8xf32>, vector<8x8xf32>, vector<8x8xf32> -> vector<8x32xf32>
    %387 = tpu.concatenate %309, %386 in 0 : vector<8x32xf32>, vector<8x32xf32> -> vector<16x32xf32>
    %c0_112 = arith.constant 0 : index
    %c0_113 = arith.constant 0 : index
    %c0_114 = arith.constant 0 : index
    %388 = vector.load %arg17[%c0_112, %c0_113, %c0_114] : memref<1x32x32xbf16, #tpu.memory_space<vmem>>, vector<1x32x32xbf16>
    %389 = vector.shape_cast %388 : vector<1x32x32xbf16> to vector<32x32xbf16>
    %390 = arith.truncf %387 : vector<16x32xf32> to vector<16x32xbf16>
    %cst_115 = arith.constant dense<0.000000e+00> : vector<16x32xf32>
    %391 = tpu.matmul %390, %389, %cst_115 {dimension_numbers = #tpu.dot_dimension_numbers<[1], [0], [0], [1], [0, 0, 1, 1], [], []>} : vector<16x32xbf16>, vector<32x32xbf16>, vector<16x32xf32> -> vector<16x32xf32>
    %c0_116 = arith.constant 0 : index
    %c0_117 = arith.constant 0 : index
    %c0_118 = arith.constant 0 : index
    %392 = vector.load %arg18[%c0_116, %c0_117, %c0_118] : memref<1x1x32xf32, #tpu.memory_space<vmem>>, vector<1x1x32xf32>
    %393 = vector.shape_cast %392 : vector<1x1x32xf32> to vector<1x32xf32>
    %394 = vector.broadcast %393 : vector<1x32xf32> to vector<16x32xf32>
    %395 = arith.addf %391, %394 : vector<16x32xf32>
    %396 = arith.addf %208, %395 : vector<16x32xf32>
    %c0_119 = arith.constant 0 : index
    %c0_120 = arith.constant 0 : index
    %c0_121 = arith.constant 0 : index
    %397 = vector.load %arg19[%c0_119, %c0_120, %c0_121] : memref<1x1x32xf32, #tpu.memory_space<vmem>>, vector<1x1x32xf32>
    %398 = vector.shape_cast %397 : vector<1x1x32xf32> to vector<1x32xf32>
    %c0_122 = arith.constant 0 : index
    %c0_123 = arith.constant 0 : index
    %c0_124 = arith.constant 0 : index
    %399 = vector.load %arg20[%c0_122, %c0_123, %c0_124] : memref<1x1x32xf32, #tpu.memory_space<vmem>>, vector<1x1x32xf32>
    %400 = vector.shape_cast %399 : vector<1x1x32xf32> to vector<1x32xf32>
    %cst_125 = arith.constant dense<0.000000e+00> : vector<16xf32>
    %401 = vector.multi_reduction <add>, %396, %cst_125 [1] : vector<16x32xf32> to vector<16xf32>
    %402 = vector.shape_cast %401 : vector<16xf32> to vector<16x1xf32>
    %cst_126 = arith.constant 3.200000e+01 : f32
    %403 = vector.broadcast %cst_126 : f32 to vector<16x1xf32>
    %404 = arith.divf %402, %403 : vector<16x1xf32>
    %405 = vector.broadcast %404 : vector<16x1xf32> to vector<16x32xf32>
    %406 = arith.subf %396, %405 : vector<16x32xf32>
    %407 = arith.mulf %406, %406 : vector<16x32xf32>
    %cst_127 = arith.constant dense<0.000000e+00> : vector<16xf32>
    %408 = vector.multi_reduction <add>, %407, %cst_127 [1] : vector<16x32xf32> to vector<16xf32>
    %409 = vector.shape_cast %408 : vector<16xf32> to vector<16x1xf32>
    %cst_128 = arith.constant 3.200000e+01 : f32
    %410 = vector.broadcast %cst_128 : f32 to vector<16x1xf32>
    %411 = arith.divf %409, %410 : vector<16x1xf32>
    %cst_129 = arith.constant 9.99999996E-13 : f32
    %412 = vector.broadcast %cst_129 : f32 to vector<16x1xf32>
    %413 = arith.addf %411, %412 : vector<16x1xf32>
    %414 = math.rsqrt %413 : vector<16x1xf32>
    %415 = vector.broadcast %414 : vector<16x1xf32> to vector<16x32xf32>
    %416 = arith.mulf %406, %415 : vector<16x32xf32>
    %417 = vector.broadcast %398 : vector<1x32xf32> to vector<16x32xf32>
    %418 = arith.mulf %416, %417 : vector<16x32xf32>
    %419 = vector.broadcast %400 : vector<1x32xf32> to vector<16x32xf32>
    %420 = arith.addf %418, %419 : vector<16x32xf32>
    %c0_130 = arith.constant 0 : index
    %c0_131 = arith.constant 0 : index
    %c0_132 = arith.constant 0 : index
    %421 = vector.load %arg21[%c0_130, %c0_131, %c0_132] : memref<1x32x128xbf16, #tpu.memory_space<vmem>>, vector<1x32x128xbf16>
    %422 = vector.shape_cast %421 : vector<1x32x128xbf16> to vector<32x128xbf16>
    %423 = arith.truncf %420 : vector<16x32xf32> to vector<16x32xbf16>
    %cst_133 = arith.constant dense<0.000000e+00> : vector<16x128xf32>
    %424 = tpu.matmul %423, %422, %cst_133 {dimension_numbers = #tpu.dot_dimension_numbers<[1], [0], [0], [1], [0, 0, 1, 1], [], []>} : vector<16x32xbf16>, vector<32x128xbf16>, vector<16x128xf32> -> vector<16x128xf32>
    %c0_134 = arith.constant 0 : index
    %c0_135 = arith.constant 0 : index
    %c0_136 = arith.constant 0 : index
    %425 = vector.load %arg22[%c0_134, %c0_135, %c0_136] : memref<1x1x128xf32, #tpu.memory_space<vmem>>, vector<1x1x128xf32>
    %426 = vector.shape_cast %425 : vector<1x1x128xf32> to vector<1x128xf32>
    %427 = vector.broadcast %426 : vector<1x128xf32> to vector<16x128xf32>
    %428 = arith.addf %424, %427 : vector<16x128xf32>
    %cst_137 = arith.constant 5.000000e-01 : f32
    %429 = vector.broadcast %cst_137 : f32 to vector<16x128xf32>
    %430 = arith.mulf %429, %428 : vector<16x128xf32>
    %cst_138 = arith.constant 4.471500e-02 : f32
    %431 = vector.broadcast %cst_138 : f32 to vector<16x128xf32>
    %432 = arith.mulf %431, %428 : vector<16x128xf32>
    %433 = arith.mulf %432, %428 : vector<16x128xf32>
    %434 = arith.mulf %433, %428 : vector<16x128xf32>
    %435 = arith.addf %428, %434 : vector<16x128xf32>
    %cst_139 = arith.constant 0.797884583 : f32
    %436 = vector.broadcast %cst_139 : f32 to vector<16x128xf32>
    %437 = arith.mulf %436, %435 : vector<16x128xf32>
    %438 = math.tanh %437 : vector<16x128xf32>
    %cst_140 = arith.constant 1.000000e+00 : f32
    %439 = vector.broadcast %cst_140 : f32 to vector<16x128xf32>
    %440 = arith.addf %439, %438 : vector<16x128xf32>
    %441 = arith.mulf %430, %440 : vector<16x128xf32>
    %c0_141 = arith.constant 0 : index
    %c0_142 = arith.constant 0 : index
    %c0_143 = arith.constant 0 : index
    %442 = vector.load %arg23[%c0_141, %c0_142, %c0_143] : memref<1x128x32xbf16, #tpu.memory_space<vmem>>, vector<1x128x32xbf16>
    %443 = vector.shape_cast %442 : vector<1x128x32xbf16> to vector<128x32xbf16>
    %444 = arith.truncf %441 : vector<16x128xf32> to vector<16x128xbf16>
    %cst_144 = arith.constant dense<0.000000e+00> : vector<16x32xf32>
    %445 = tpu.matmul %444, %443, %cst_144 {dimension_numbers = #tpu.dot_dimension_numbers<[1], [0], [0], [1], [0, 0, 1, 1], [], []>} : vector<16x128xbf16>, vector<128x32xbf16>, vector<16x32xf32> -> vector<16x32xf32>
    %c0_145 = arith.constant 0 : index
    %c0_146 = arith.constant 0 : index
    %c0_147 = arith.constant 0 : index
    %446 = vector.load %arg24[%c0_145, %c0_146, %c0_147] : memref<1x1x32xf32, #tpu.memory_space<vmem>>, vector<1x1x32xf32>
    %447 = vector.shape_cast %446 : vector<1x1x32xf32> to vector<1x32xf32>
    %448 = vector.broadcast %447 : vector<1x32xf32> to vector<16x32xf32>
    %449 = arith.addf %445, %448 : vector<16x32xf32>
    %450 = arith.addf %420, %449 : vector<16x32xf32>
    %c0_148 = arith.constant 0 : index
    %c0_149 = arith.constant 0 : index
    %c0_150 = arith.constant 0 : index
    %451 = vector.load %arg25[%c0_148, %c0_149, %c0_150] : memref<1x1x32xf32, #tpu.memory_space<vmem>>, vector<1x1x32xf32>
    %452 = vector.shape_cast %451 : vector<1x1x32xf32> to vector<1x32xf32>
    %c0_151 = arith.constant 0 : index
    %c0_152 = arith.constant 0 : index
    %c0_153 = arith.constant 0 : index
    %453 = vector.load %arg26[%c0_151, %c0_152, %c0_153] : memref<1x1x32xf32, #tpu.memory_space<vmem>>, vector<1x1x32xf32>
    %454 = vector.shape_cast %453 : vector<1x1x32xf32> to vector<1x32xf32>
    %cst_154 = arith.constant dense<0.000000e+00> : vector<16xf32>
    %455 = vector.multi_reduction <add>, %450, %cst_154 [1] : vector<16x32xf32> to vector<16xf32>
    %456 = vector.shape_cast %455 : vector<16xf32> to vector<16x1xf32>
    %cst_155 = arith.constant 3.200000e+01 : f32
    %457 = vector.broadcast %cst_155 : f32 to vector<16x1xf32>
    %458 = arith.divf %456, %457 : vector<16x1xf32>
    %459 = vector.broadcast %458 : vector<16x1xf32> to vector<16x32xf32>
    %460 = arith.subf %450, %459 : vector<16x32xf32>
    %461 = arith.mulf %460, %460 : vector<16x32xf32>
    %cst_156 = arith.constant dense<0.000000e+00> : vector<16xf32>
    %462 = vector.multi_reduction <add>, %461, %cst_156 [1] : vector<16x32xf32> to vector<16xf32>
    %463 = vector.shape_cast %462 : vector<16xf32> to vector<16x1xf32>
    %cst_157 = arith.constant 3.200000e+01 : f32
    %464 = vector.broadcast %cst_157 : f32 to vector<16x1xf32>
    %465 = arith.divf %463, %464 : vector<16x1xf32>
    %cst_158 = arith.constant 9.99999996E-13 : f32
    %466 = vector.broadcast %cst_158 : f32 to vector<16x1xf32>
    %467 = arith.addf %465, %466 : vector<16x1xf32>
    %468 = math.rsqrt %467 : vector<16x1xf32>
    %469 = vector.broadcast %468 : vector<16x1xf32> to vector<16x32xf32>
    %470 = arith.mulf %460, %469 : vector<16x32xf32>
    %471 = vector.broadcast %452 : vector<1x32xf32> to vector<16x32xf32>
    %472 = arith.mulf %470, %471 : vector<16x32xf32>
    %473 = vector.broadcast %454 : vector<1x32xf32> to vector<16x32xf32>
    %474 = arith.addf %472, %473 : vector<16x32xf32>
    %c0_159 = arith.constant 0 : index
    %c0_160 = arith.constant 0 : index
    %475 = vector.load %arg28[%c0_159, %c0_160] : memref<16x32xf32, #tpu.memory_space<vmem>>, vector<16x32xf32>
    tpu.vector_store %arg28[%c0_159, %c0_160], %474 {strides = array<i32>} : memref<16x32xf32, #tpu.memory_space<vmem>>, vector<16x32xf32>,
    %c1_i32 = arith.constant 1 : i32
    %476 = arith.cmpi eq, %arg0, %c1_i32 : i32
    %477 = arith.extui %476 : i1 to i32
    %c0_i32_161 = arith.constant 0 : i32
    %478 = arith.cmpi ne, %477, %c0_i32_161 : i32
    scf.if %478 {
      %c0_162 = arith.constant 0 : index
      %c0_163 = arith.constant 0 : index
      %479 = vector.load %arg27[%c0_162, %c0_163] : memref<16x32xf32, #tpu.memory_space<vmem>>, vector<16x32xf32>
      tpu.vector_store %arg27[%c0_162, %c0_163], %474 {strides = array<i32>} : memref<16x32xf32, #tpu.memory_space<vmem>>, vector<16x32xf32>,
    } else {
    }
    return
  }
  func.func @transform_0(%arg0: i32) -> (i32, i32) {
    %c0_i32 = arith.constant 0 : i32
    %c0_i32_0 = arith.constant 0 : i32
    %c0_i32_1 = arith.constant 0 : i32
    return %c0_i32, %c0_i32_0 : i32, i32
  }
  func.func @transform_1(%arg0: i32) -> (i32, i32) {
    %c0_i32 = arith.constant 0 : i32
    %c0_i32_0 = arith.constant 0 : i32
    %c0_i32_1 = arith.constant 0 : i32
    return %c0_i32, %c0_i32_0 : i32, i32
  }
  func.func @transform_2(%arg0: i32) -> (i32, i32) {
    %c0_i32 = arith.constant 0 : i32
    %c0_i32_0 = arith.constant 0 : i32
    %c0_i32_1 = arith.constant 0 : i32
    return %c0_i32, %c0_i32_0 : i32, i32
  }
  func.func @transform_3(%arg0: i32) -> (i32, i32) {
    %c0_i32 = arith.constant 0 : i32
    %c0_i32_0 = arith.constant 0 : i32
    %c0_i32_1 = arith.constant 0 : i32
    return %c0_i32, %c0_i32_0 : i32, i32
  }
  func.func @transform_4(%arg0: i32) -> (i32, i32) {
    %c0_i32 = arith.constant 0 : i32
    %c0_i32_0 = arith.constant 0 : i32
    %c0_i32_1 = arith.constant 0 : i32
    return %c0_i32, %c0_i32_0 : i32, i32
  }
  func.func @transform_5(%arg0: i32) -> (i32, i32) {
    %c0_i32 = arith.constant 0 : i32
    %c0_i32_0 = arith.constant 0 : i32
    %c0_i32_1 = arith.constant 0 : i32
    return %c0_i32, %c0_i32_0 : i32, i32
  }
  func.func @transform_6(%arg0: i32) -> (i32, i32, i32) {
    %c0_i32 = arith.constant 0 : i32
    %c0_i32_0 = arith.constant 0 : i32
    %c0_i32_1 = arith.constant 0 : i32
    return %arg0, %c0_i32, %c0_i32_0 : i32, i32, i32
  }
  func.func @transform_7(%arg0: i32) -> (i32, i32, i32) {
    %c0_i32 = arith.constant 0 : i32
    %c0_i32_0 = arith.constant 0 : i32
    %c0_i32_1 = arith.constant 0 : i32
    return %arg0, %c0_i32, %c0_i32_0 : i32, i32, i32
  }
  func.func @transform_8(%arg0: i32) -> (i32, i32, i32) {
    %c0_i32 = arith.constant 0 : i32
    %c0_i32_0 = arith.constant 0 : i32
    %c0_i32_1 = arith.constant 0 : i32
    return %arg0, %c0_i32, %c0_i32_0 : i32, i32, i32
  }
  func.func @transform_9(%arg0: i32) -> (i32, i32, i32) {
    %c0_i32 = arith.constant 0 : i32
    %c0_i32_0 = arith.constant 0 : i32
    %c0_i32_1 = arith.constant 0 : i32
    return %arg0, %c0_i32, %c0_i32_0 : i32, i32, i32
  }
  func.func @transform_10(%arg0: i32) -> (i32, i32, i32) {
    %c0_i32 = arith.constant 0 : i32
    %c0_i32_0 = arith.constant 0 : i32
    %c0_i32_1 = arith.constant 0 : i32
    return %arg0, %c0_i32, %c0_i32_0 : i32, i32, i32
  }
  func.func @transform_11(%arg0: i32) -> (i32, i32, i32) {
    %c0_i32 = arith.constant 0 : i32
    %c0_i32_0 = arith.constant 0 : i32
    %c0_i32_1 = arith.constant 0 : i32
    return %arg0, %c0_i32, %c0_i32_0 : i32, i32, i32
  }
  func.func @transform_12(%arg0: i32) -> (i32, i32, i32) {
    %c0_i32 = arith.constant 0 : i32
    %c0_i32_0 = arith.constant 0 : i32
    %c0_i32_1 = arith.constant 0 : i32
    return %arg0, %c0_i32, %c0_i32_0 : i32, i32, i32
  }
  func.func @transform_13(%arg0: i32) -> (i32, i32, i32) {
    %c0_i32 = arith.constant 0 : i32
    %c0_i32_0 = arith.constant 0 : i32
    %c0_i32_1 = arith.constant 0 : i32
    return %arg0, %c0_i32, %c0_i32_0 : i32, i32, i32
  }
  func.func @transform_14(%arg0: i32) -> (i32, i32, i32) {
    %c0_i32 = arith.constant 0 : i32
    %c0_i32_0 = arith.constant 0 : i32
    %c0_i32_1 = arith.constant 0 : i32
    return %arg0, %c0_i32, %c0_i32_0 : i32, i32, i32
  }
  func.func @transform_15(%arg0: i32) -> (i32, i32, i32) {
    %c0_i32 = arith.constant 0 : i32
    %c0_i32_0 = arith.constant 0 : i32
    %c0_i32_1 = arith.constant 0 : i32
    return %arg0, %c0_i32, %c0_i32_0 : i32, i32, i32
  }
  func.func @transform_16(%arg0: i32) -> (i32, i32, i32) {
    %c0_i32 = arith.constant 0 : i32
    %c0_i32_0 = arith.constant 0 : i32
    %c0_i32_1 = arith.constant 0 : i32
    return %arg0, %c0_i32, %c0_i32_0 : i32, i32, i32
  }
  func.func @transform_17(%arg0: i32) -> (i32, i32, i32) {
    %c0_i32 = arith.constant 0 : i32
    %c0_i32_0 = arith.constant 0 : i32
    %c0_i32_1 = arith.constant 0 : i32
    return %arg0, %c0_i32, %c0_i32_0 : i32, i32, i32
  }
  func.func @transform_18(%arg0: i32) -> (i32, i32, i32) {
    %c0_i32 = arith.constant 0 : i32
    %c0_i32_0 = arith.constant 0 : i32
    %c0_i32_1 = arith.constant 0 : i32
    return %arg0, %c0_i32, %c0_i32_0 : i32, i32, i32
  }
  func.func @transform_19(%arg0: i32) -> (i32, i32, i32) {
    %c0_i32 = arith.constant 0 : i32
    %c0_i32_0 = arith.constant 0 : i32
    %c0_i32_1 = arith.constant 0 : i32
    return %arg0, %c0_i32, %c0_i32_0 : i32, i32, i32
  }
  func.func @transform_20(%arg0: i32) -> (i32, i32, i32) {
    %c0_i32 = arith.constant 0 : i32
    %c0_i32_0 = arith.constant 0 : i32
    %c0_i32_1 = arith.constant 0 : i32
    return %arg0, %c0_i32, %c0_i32_0 : i32, i32, i32
  }
  func.func @transform_21(%arg0: i32) -> (i32, i32, i32) {
    %c0_i32 = arith.constant 0 : i32
    %c0_i32_0 = arith.constant 0 : i32
    %c0_i32_1 = arith.constant 0 : i32
    return %arg0, %c0_i32, %c0_i32_0 : i32, i32, i32
  }
  func.func @transform_22(%arg0: i32) -> (i32, i32, i32) {
    %c0_i32 = arith.constant 0 : i32
    %c0_i32_0 = arith.constant 0 : i32
    %c0_i32_1 = arith.constant 0 : i32
    return %arg0, %c0_i32, %c0_i32_0 : i32, i32, i32
  }
  func.func @transform_23(%arg0: i32) -> (i32, i32, i32) {
    %c0_i32 = arith.constant 0 : i32
    %c0_i32_0 = arith.constant 0 : i32
    %c0_i32_1 = arith.constant 0 : i32
    return %arg0, %c0_i32, %c0_i32_0 : i32, i32, i32
  }
  func.func @transform_24(%arg0: i32) -> (i32, i32, i32) {
    %c0_i32 = arith.constant 0 : i32
    %c0_i32_0 = arith.constant 0 : i32
    %c0_i32_1 = arith.constant 0 : i32
    return %arg0, %c0_i32, %c0_i32_0 : i32, i32, i32
  }
  func.func @transform_25(%arg0: i32) -> (i32, i32, i32) {
    %c0_i32 = arith.constant 0 : i32
    %c0_i32_0 = arith.constant 0 : i32
    %c0_i32_1 = arith.constant 0 : i32
    return %arg0, %c0_i32, %c0_i32_0 : i32, i32, i32
  }
  func.func @transform_26(%arg0: i32) -> (i32, i32) {
    %c0_i32 = arith.constant 0 : i32
    %c0_i32_0 = arith.constant 0 : i32
    %c0_i32_1 = arith.constant 0 : i32
    return %c0_i32, %c0_i32_0 : i32, i32
  }
}

module attributes {stable_mosaic.version = 11 : i64} {
  func.func @_vit_kernel(%arg0: i32, %arg1: memref<32x48xf32, #tpu.memory_space<vmem>>, %arg2: memref<48x32xbf16, #tpu.memory_space<vmem>>, %arg3: memref<1x32xf32, #tpu.memory_space<vmem>>, %arg4: memref<1x32xf32, #tpu.memory_space<vmem>>, %arg5: memref<17x32xf32, #tpu.memory_space<vmem>>, %arg6: memref<1x1x32xf32, #tpu.memory_space<vmem>>, %arg7: memref<1x1x32xf32, #tpu.memory_space<vmem>>, %arg8: memref<1x32x96xbf16, #tpu.memory_space<vmem>>, %arg9: memref<1x1x96xf32, #tpu.memory_space<vmem>>, %arg10: memref<1x32x32xbf16, #tpu.memory_space<vmem>>, %arg11: memref<1x1x32xf32, #tpu.memory_space<vmem>>, %arg12: memref<1x1x32xf32, #tpu.memory_space<vmem>>, %arg13: memref<1x1x32xf32, #tpu.memory_space<vmem>>, %arg14: memref<1x32x128xbf16, #tpu.memory_space<vmem>>, %arg15: memref<1x1x128xf32, #tpu.memory_space<vmem>>, %arg16: memref<1x128x32xbf16, #tpu.memory_space<vmem>>, %arg17: memref<1x1x32xf32, #tpu.memory_space<vmem>>, %arg18: memref<1x32xf32, #tpu.memory_space<vmem>>, %arg19: memref<1x32xf32, #tpu.memory_space<vmem>>, %arg20: memref<34x32xbf16, #tpu.memory_space<vmem>>, %arg21: memref<34x32xf32, #tpu.memory_space<vmem>>) attributes {dimension_semantics = [#tpu.dimension_semantics<arbitrary>], iteration_bounds = array<i64: 2>, scalar_prefetch = 0 : i64, scratch_operands = 1 : i64, tpu.core_type = #tpu.core_type<tc>, window_params = [{pipeline_mode = #tpu.pipeline_mode<synchronous>, transform_indices = @transform_0, window_bounds = array<i64: 32, 48>}, {pipeline_mode = #tpu.pipeline_mode<synchronous>, transform_indices = @transform_1, window_bounds = array<i64: 48, 32>}, {pipeline_mode = #tpu.pipeline_mode<synchronous>, transform_indices = @transform_2, window_bounds = array<i64: 1, 32>}, {pipeline_mode = #tpu.pipeline_mode<synchronous>, transform_indices = @transform_3, window_bounds = array<i64: 1, 32>}, {pipeline_mode = #tpu.pipeline_mode<synchronous>, transform_indices = @transform_4, window_bounds = array<i64: 17, 32>}, {transform_indices = @transform_5, window_bounds = array<i64: 1, 1, 32>}, {transform_indices = @transform_6, window_bounds = array<i64: 1, 1, 32>}, {transform_indices = @transform_7, window_bounds = array<i64: 1, 32, 96>}, {transform_indices = @transform_8, window_bounds = array<i64: 1, 1, 96>}, {transform_indices = @transform_9, window_bounds = array<i64: 1, 32, 32>}, {transform_indices = @transform_10, window_bounds = array<i64: 1, 1, 32>}, {transform_indices = @transform_11, window_bounds = array<i64: 1, 1, 32>}, {transform_indices = @transform_12, window_bounds = array<i64: 1, 1, 32>}, {transform_indices = @transform_13, window_bounds = array<i64: 1, 32, 128>}, {transform_indices = @transform_14, window_bounds = array<i64: 1, 1, 128>}, {transform_indices = @transform_15, window_bounds = array<i64: 1, 128, 32>}, {transform_indices = @transform_16, window_bounds = array<i64: 1, 1, 32>}, {pipeline_mode = #tpu.pipeline_mode<synchronous>, transform_indices = @transform_17, window_bounds = array<i64: 1, 32>}, {pipeline_mode = #tpu.pipeline_mode<synchronous>, transform_indices = @transform_18, window_bounds = array<i64: 1, 32>}, {pipeline_mode = #tpu.pipeline_mode<synchronous>, transform_indices = @transform_19, window_bounds = array<i64: 34, 32>}]} {
    %c0_i32 = arith.constant 0 : i32
    %0 = arith.cmpi eq, %arg0, %c0_i32 : i32
    %1 = arith.extui %0 : i1 to i32
    %c0_i32_0 = arith.constant 0 : i32
    %2 = arith.cmpi ne, %1, %c0_i32_0 : i32
    scf.if %2 {
      %c0_91 = arith.constant 0 : index
      %c0_92 = arith.constant 0 : index
      %248 = vector.load %arg1[%c0_91, %c0_92] : memref<32x48xf32, #tpu.memory_space<vmem>>, vector<32x48xf32>
      %c0_93 = arith.constant 0 : index
      %c0_94 = arith.constant 0 : index
      %249 = vector.load %arg2[%c0_93, %c0_94] : memref<48x32xbf16, #tpu.memory_space<vmem>>, vector<48x32xbf16>
      %250 = arith.truncf %248 : vector<32x48xf32> to vector<32x48xbf16>
      %cst_95 = arith.constant dense<0.000000e+00> : vector<32x32xf32>
      %251 = tpu.matmul %250, %249, %cst_95 {dimension_numbers = #tpu.dot_dimension_numbers<[1], [0], [0], [1], [0, 0, 1, 1], [], []>} : vector<32x48xbf16>, vector<48x32xbf16>, vector<32x32xf32> -> vector<32x32xf32>
      %c0_96 = arith.constant 0 : index
      %c0_97 = arith.constant 0 : index
      %252 = vector.load %arg3[%c0_96, %c0_97] : memref<1x32xf32, #tpu.memory_space<vmem>>, vector<1x32xf32>
      %253 = vector.broadcast %252 : vector<1x32xf32> to vector<32x32xf32>
      %254 = arith.addf %251, %253 : vector<32x32xf32>
      %c0_98 = arith.constant 0 : index
      %c0_99 = arith.constant 0 : index
      %255 = vector.load %arg5[%c0_98, %c0_99] : memref<17x32xf32, #tpu.memory_space<vmem>>, vector<17x32xf32>
      %c0_100 = arith.constant 0 : index
      %c0_101 = arith.constant 0 : index
      %256 = vector.load %arg4[%c0_100, %c0_101] : memref<1x32xf32, #tpu.memory_space<vmem>>, vector<1x32xf32>
      %257 = vector.extract_strided_slice %255 {offsets = [0, 0], sizes = [1, 32], strides = [1, 1]} : vector<17x32xf32> to vector<1x32xf32>
      %258 = arith.addf %256, %257 : vector<1x32xf32>
      %c0_102 = arith.constant 0 : index
      %c0_103 = arith.constant 0 : index
      %259 = vector.load %arg21[%c0_102, %c0_103] : memref<34x32xf32, #tpu.memory_space<vmem>>, vector<1x32xf32>
      tpu.vector_store %arg21[%c0_102, %c0_103], %258 {strides = array<i32>} : memref<34x32xf32, #tpu.memory_space<vmem>>, vector<1x32xf32>,
      %260 = vector.extract_strided_slice %254 {offsets = [0, 0], sizes = [16, 32], strides = [1, 1]} : vector<32x32xf32> to vector<16x32xf32>
      %261 = vector.extract_strided_slice %255 {offsets = [1, 0], sizes = [16, 32], strides = [1, 1]} : vector<17x32xf32> to vector<16x32xf32>
      %262 = arith.addf %260, %261 : vector<16x32xf32>
      %c1 = arith.constant 1 : index
      %c0_104 = arith.constant 0 : index
      %263 = vector.load %arg21[%c1, %c0_104] : memref<34x32xf32, #tpu.memory_space<vmem>>, vector<16x32xf32>
      tpu.vector_store %arg21[%c1, %c0_104], %262 {strides = array<i32>} : memref<34x32xf32, #tpu.memory_space<vmem>>, vector<16x32xf32>,
      %264 = vector.extract_strided_slice %255 {offsets = [0, 0], sizes = [1, 32], strides = [1, 1]} : vector<17x32xf32> to vector<1x32xf32>
      %265 = arith.addf %256, %264 : vector<1x32xf32>
      %c17 = arith.constant 17 : index
      %c0_105 = arith.constant 0 : index
      %266 = vector.load %arg21[%c17, %c0_105] : memref<34x32xf32, #tpu.memory_space<vmem>>, vector<1x32xf32>
      tpu.vector_store %arg21[%c17, %c0_105], %265 {strides = array<i32>} : memref<34x32xf32, #tpu.memory_space<vmem>>, vector<1x32xf32>,
      %267 = vector.extract_strided_slice %254 {offsets = [16, 0], sizes = [16, 32], strides = [1, 1]} : vector<32x32xf32> to vector<16x32xf32>
      %268 = vector.extract_strided_slice %255 {offsets = [1, 0], sizes = [16, 32], strides = [1, 1]} : vector<17x32xf32> to vector<16x32xf32>
      %269 = arith.addf %267, %268 : vector<16x32xf32>
      %c18 = arith.constant 18 : index
      %c0_106 = arith.constant 0 : index
      %270 = vector.load %arg21[%c18, %c0_106] : memref<34x32xf32, #tpu.memory_space<vmem>>, vector<16x32xf32>
      tpu.vector_store %arg21[%c18, %c0_106], %269 {strides = array<i32>} : memref<34x32xf32, #tpu.memory_space<vmem>>, vector<16x32xf32>,
    } else {
    }
    %c0 = arith.constant 0 : index
    %c0_1 = arith.constant 0 : index
    %3 = vector.load %arg21[%c0, %c0_1] : memref<34x32xf32, #tpu.memory_space<vmem>>, vector<34x32xf32>
    %c0_2 = arith.constant 0 : index
    %c0_3 = arith.constant 0 : index
    %c0_4 = arith.constant 0 : index
    %4 = vector.load %arg6[%c0_2, %c0_3, %c0_4] : memref<1x1x32xf32, #tpu.memory_space<vmem>>, vector<1x1x32xf32>
    %5 = vector.shape_cast %4 : vector<1x1x32xf32> to vector<1x32xf32>
    %c0_5 = arith.constant 0 : index
    %c0_6 = arith.constant 0 : index
    %c0_7 = arith.constant 0 : index
    %6 = vector.load %arg7[%c0_5, %c0_6, %c0_7] : memref<1x1x32xf32, #tpu.memory_space<vmem>>, vector<1x1x32xf32>
    %7 = vector.shape_cast %6 : vector<1x1x32xf32> to vector<1x32xf32>
    %cst = arith.constant dense<0.000000e+00> : vector<34xf32>
    %8 = vector.multi_reduction <add>, %3, %cst [1] : vector<34x32xf32> to vector<34xf32>
    %9 = vector.shape_cast %8 : vector<34xf32> to vector<34x1xf32>
    %cst_8 = arith.constant 3.200000e+01 : f32
    %10 = vector.broadcast %cst_8 : f32 to vector<34x1xf32>
    %11 = arith.divf %9, %10 : vector<34x1xf32>
    %12 = vector.broadcast %11 : vector<34x1xf32> to vector<34x32xf32>
    %13 = arith.subf %3, %12 : vector<34x32xf32>
    %14 = arith.mulf %13, %13 : vector<34x32xf32>
    %cst_9 = arith.constant dense<0.000000e+00> : vector<34xf32>
    %15 = vector.multi_reduction <add>, %14, %cst_9 [1] : vector<34x32xf32> to vector<34xf32>
    %16 = vector.shape_cast %15 : vector<34xf32> to vector<34x1xf32>
    %cst_10 = arith.constant 3.200000e+01 : f32
    %17 = vector.broadcast %cst_10 : f32 to vector<34x1xf32>
    %18 = arith.divf %16, %17 : vector<34x1xf32>
    %cst_11 = arith.constant 9.99999997E-7 : f32
    %19 = vector.broadcast %cst_11 : f32 to vector<34x1xf32>
    %20 = arith.addf %18, %19 : vector<34x1xf32>
    %21 = math.rsqrt %20 : vector<34x1xf32>
    %22 = vector.broadcast %21 : vector<34x1xf32> to vector<34x32xf32>
    %23 = arith.mulf %13, %22 : vector<34x32xf32>
    %24 = vector.broadcast %5 : vector<1x32xf32> to vector<34x32xf32>
    %25 = arith.mulf %23, %24 : vector<34x32xf32>
    %26 = vector.broadcast %7 : vector<1x32xf32> to vector<34x32xf32>
    %27 = arith.addf %25, %26 : vector<34x32xf32>
    %c0_12 = arith.constant 0 : index
    %c0_13 = arith.constant 0 : index
    %c0_14 = arith.constant 0 : index
    %28 = vector.load %arg8[%c0_12, %c0_13, %c0_14] : memref<1x32x96xbf16, #tpu.memory_space<vmem>>, vector<1x32x96xbf16>
    %29 = vector.shape_cast %28 : vector<1x32x96xbf16> to vector<32x96xbf16>
    %30 = arith.truncf %27 : vector<34x32xf32> to vector<34x32xbf16>
    %cst_15 = arith.constant dense<0.000000e+00> : vector<34x96xf32>
    %31 = tpu.matmul %30, %29, %cst_15 {dimension_numbers = #tpu.dot_dimension_numbers<[1], [0], [0], [1], [0, 0, 1, 1], [], []>} : vector<34x32xbf16>, vector<32x96xbf16>, vector<34x96xf32> -> vector<34x96xf32>
    %c0_16 = arith.constant 0 : index
    %c0_17 = arith.constant 0 : index
    %c0_18 = arith.constant 0 : index
    %32 = vector.load %arg9[%c0_16, %c0_17, %c0_18] : memref<1x1x96xf32, #tpu.memory_space<vmem>>, vector<1x1x96xf32>
    %33 = vector.shape_cast %32 : vector<1x1x96xf32> to vector<1x96xf32>
    %34 = vector.broadcast %33 : vector<1x96xf32> to vector<34x96xf32>
    %35 = arith.addf %31, %34 : vector<34x96xf32>
    %36 = vector.extract_strided_slice %35 {offsets = [0, 0], sizes = [34, 32], strides = [1, 1]} : vector<34x96xf32> to vector<34x32xf32>
    %37 = vector.extract_strided_slice %35 {offsets = [0, 32], sizes = [34, 32], strides = [1, 1]} : vector<34x96xf32> to vector<34x32xf32>
    %38 = vector.extract_strided_slice %35 {offsets = [0, 64], sizes = [34, 32], strides = [1, 1]} : vector<34x96xf32> to vector<34x32xf32>
    %cst_19 = arith.constant 0.353553385 : f32
    %39 = vector.broadcast %cst_19 : f32 to vector<34x32xf32>
    %40 = arith.mulf %36, %39 : vector<34x32xf32>
    %41 = arith.truncf %40 : vector<34x32xf32> to vector<34x32xbf16>
    %42 = arith.truncf %37 : vector<34x32xf32> to vector<34x32xbf16>
    %43 = arith.truncf %38 : vector<34x32xf32> to vector<34x32xbf16>
    %44 = vector.extract_strided_slice %41 {offsets = [0, 0], sizes = [17, 32], strides = [1, 1]} : vector<34x32xbf16> to vector<17x32xbf16>
    %45 = vector.extract_strided_slice %42 {offsets = [0, 0], sizes = [17, 32], strides = [1, 1]} : vector<34x32xbf16> to vector<17x32xbf16>
    %46 = vector.extract_strided_slice %43 {offsets = [0, 0], sizes = [17, 32], strides = [1, 1]} : vector<34x32xbf16> to vector<17x32xbf16>
    %47 = vector.extract_strided_slice %44 {offsets = [0, 0], sizes = [17, 8], strides = [1, 1]} : vector<17x32xbf16> to vector<17x8xbf16>
    %48 = vector.extract_strided_slice %45 {offsets = [0, 0], sizes = [17, 8], strides = [1, 1]} : vector<17x32xbf16> to vector<17x8xbf16>
    %49 = vector.extract_strided_slice %46 {offsets = [0, 0], sizes = [17, 8], strides = [1, 1]} : vector<17x32xbf16> to vector<17x8xbf16>
    %cst_20 = arith.constant dense<0.000000e+00> : vector<17x17xf32>
    %50 = tpu.matmul %47, %48, %cst_20 {dimension_numbers = #tpu.dot_dimension_numbers<[1], [1], [0], [0], [0, 0, 1, 0], [], []>} : vector<17x8xbf16>, vector<17x8xbf16>, vector<17x17xf32> -> vector<17x17xf32>
    %cst_21 = arith.constant dense<0xFF800000> : vector<17xf32>
    %51 = vector.multi_reduction <maximumf>, %50, %cst_21 [1] : vector<17x17xf32> to vector<17xf32>
    %52 = vector.shape_cast %51 : vector<17xf32> to vector<17x1xf32>
    %53 = vector.broadcast %52 : vector<17x1xf32> to vector<17x17xf32>
    %54 = arith.subf %50, %53 : vector<17x17xf32>
    %55 = math.exp %54 : vector<17x17xf32>
    %cst_22 = arith.constant dense<0.000000e+00> : vector<17xf32>
    %56 = vector.multi_reduction <add>, %55, %cst_22 [1] : vector<17x17xf32> to vector<17xf32>
    %57 = vector.shape_cast %56 : vector<17xf32> to vector<17x1xf32>
    %58 = tpu.reciprocal %57 {approx = true} : vector<17x1xf32> -> vector<17x1xf32>
    %59 = vector.broadcast %58 : vector<17x1xf32> to vector<17x17xf32>
    %60 = arith.mulf %55, %59 : vector<17x17xf32>
    %61 = arith.truncf %60 : vector<17x17xf32> to vector<17x17xbf16>
    %cst_23 = arith.constant dense<0.000000e+00> : vector<17x8xf32>
    %62 = tpu.matmul %61, %49, %cst_23 {dimension_numbers = #tpu.dot_dimension_numbers<[1], [0], [0], [1], [0, 0, 1, 1], [], []>} : vector<17x17xbf16>, vector<17x8xbf16>, vector<17x8xf32> -> vector<17x8xf32>
    %63 = vector.extract_strided_slice %44 {offsets = [0, 8], sizes = [17, 8], strides = [1, 1]} : vector<17x32xbf16> to vector<17x8xbf16>
    %64 = vector.extract_strided_slice %45 {offsets = [0, 8], sizes = [17, 8], strides = [1, 1]} : vector<17x32xbf16> to vector<17x8xbf16>
    %65 = vector.extract_strided_slice %46 {offsets = [0, 8], sizes = [17, 8], strides = [1, 1]} : vector<17x32xbf16> to vector<17x8xbf16>
    %cst_24 = arith.constant dense<0.000000e+00> : vector<17x17xf32>
    %66 = tpu.matmul %63, %64, %cst_24 {dimension_numbers = #tpu.dot_dimension_numbers<[1], [1], [0], [0], [0, 0, 1, 0], [], []>} : vector<17x8xbf16>, vector<17x8xbf16>, vector<17x17xf32> -> vector<17x17xf32>
    %cst_25 = arith.constant dense<0xFF800000> : vector<17xf32>
    %67 = vector.multi_reduction <maximumf>, %66, %cst_25 [1] : vector<17x17xf32> to vector<17xf32>
    %68 = vector.shape_cast %67 : vector<17xf32> to vector<17x1xf32>
    %69 = vector.broadcast %68 : vector<17x1xf32> to vector<17x17xf32>
    %70 = arith.subf %66, %69 : vector<17x17xf32>
    %71 = math.exp %70 : vector<17x17xf32>
    %cst_26 = arith.constant dense<0.000000e+00> : vector<17xf32>
    %72 = vector.multi_reduction <add>, %71, %cst_26 [1] : vector<17x17xf32> to vector<17xf32>
    %73 = vector.shape_cast %72 : vector<17xf32> to vector<17x1xf32>
    %74 = tpu.reciprocal %73 {approx = true} : vector<17x1xf32> -> vector<17x1xf32>
    %75 = vector.broadcast %74 : vector<17x1xf32> to vector<17x17xf32>
    %76 = arith.mulf %71, %75 : vector<17x17xf32>
    %77 = arith.truncf %76 : vector<17x17xf32> to vector<17x17xbf16>
    %cst_27 = arith.constant dense<0.000000e+00> : vector<17x8xf32>
    %78 = tpu.matmul %77, %65, %cst_27 {dimension_numbers = #tpu.dot_dimension_numbers<[1], [0], [0], [1], [0, 0, 1, 1], [], []>} : vector<17x17xbf16>, vector<17x8xbf16>, vector<17x8xf32> -> vector<17x8xf32>
    %79 = vector.extract_strided_slice %44 {offsets = [0, 16], sizes = [17, 8], strides = [1, 1]} : vector<17x32xbf16> to vector<17x8xbf16>
    %80 = vector.extract_strided_slice %45 {offsets = [0, 16], sizes = [17, 8], strides = [1, 1]} : vector<17x32xbf16> to vector<17x8xbf16>
    %81 = vector.extract_strided_slice %46 {offsets = [0, 16], sizes = [17, 8], strides = [1, 1]} : vector<17x32xbf16> to vector<17x8xbf16>
    %cst_28 = arith.constant dense<0.000000e+00> : vector<17x17xf32>
    %82 = tpu.matmul %79, %80, %cst_28 {dimension_numbers = #tpu.dot_dimension_numbers<[1], [1], [0], [0], [0, 0, 1, 0], [], []>} : vector<17x8xbf16>, vector<17x8xbf16>, vector<17x17xf32> -> vector<17x17xf32>
    %cst_29 = arith.constant dense<0xFF800000> : vector<17xf32>
    %83 = vector.multi_reduction <maximumf>, %82, %cst_29 [1] : vector<17x17xf32> to vector<17xf32>
    %84 = vector.shape_cast %83 : vector<17xf32> to vector<17x1xf32>
    %85 = vector.broadcast %84 : vector<17x1xf32> to vector<17x17xf32>
    %86 = arith.subf %82, %85 : vector<17x17xf32>
    %87 = math.exp %86 : vector<17x17xf32>
    %cst_30 = arith.constant dense<0.000000e+00> : vector<17xf32>
    %88 = vector.multi_reduction <add>, %87, %cst_30 [1] : vector<17x17xf32> to vector<17xf32>
    %89 = vector.shape_cast %88 : vector<17xf32> to vector<17x1xf32>
    %90 = tpu.reciprocal %89 {approx = true} : vector<17x1xf32> -> vector<17x1xf32>
    %91 = vector.broadcast %90 : vector<17x1xf32> to vector<17x17xf32>
    %92 = arith.mulf %87, %91 : vector<17x17xf32>
    %93 = arith.truncf %92 : vector<17x17xf32> to vector<17x17xbf16>
    %cst_31 = arith.constant dense<0.000000e+00> : vector<17x8xf32>
    %94 = tpu.matmul %93, %81, %cst_31 {dimension_numbers = #tpu.dot_dimension_numbers<[1], [0], [0], [1], [0, 0, 1, 1], [], []>} : vector<17x17xbf16>, vector<17x8xbf16>, vector<17x8xf32> -> vector<17x8xf32>
    %95 = vector.extract_strided_slice %44 {offsets = [0, 24], sizes = [17, 8], strides = [1, 1]} : vector<17x32xbf16> to vector<17x8xbf16>
    %96 = vector.extract_strided_slice %45 {offsets = [0, 24], sizes = [17, 8], strides = [1, 1]} : vector<17x32xbf16> to vector<17x8xbf16>
    %97 = vector.extract_strided_slice %46 {offsets = [0, 24], sizes = [17, 8], strides = [1, 1]} : vector<17x32xbf16> to vector<17x8xbf16>
    %cst_32 = arith.constant dense<0.000000e+00> : vector<17x17xf32>
    %98 = tpu.matmul %95, %96, %cst_32 {dimension_numbers = #tpu.dot_dimension_numbers<[1], [1], [0], [0], [0, 0, 1, 0], [], []>} : vector<17x8xbf16>, vector<17x8xbf16>, vector<17x17xf32> -> vector<17x17xf32>
    %cst_33 = arith.constant dense<0xFF800000> : vector<17xf32>
    %99 = vector.multi_reduction <maximumf>, %98, %cst_33 [1] : vector<17x17xf32> to vector<17xf32>
    %100 = vector.shape_cast %99 : vector<17xf32> to vector<17x1xf32>
    %101 = vector.broadcast %100 : vector<17x1xf32> to vector<17x17xf32>
    %102 = arith.subf %98, %101 : vector<17x17xf32>
    %103 = math.exp %102 : vector<17x17xf32>
    %cst_34 = arith.constant dense<0.000000e+00> : vector<17xf32>
    %104 = vector.multi_reduction <add>, %103, %cst_34 [1] : vector<17x17xf32> to vector<17xf32>
    %105 = vector.shape_cast %104 : vector<17xf32> to vector<17x1xf32>
    %106 = tpu.reciprocal %105 {approx = true} : vector<17x1xf32> -> vector<17x1xf32>
    %107 = vector.broadcast %106 : vector<17x1xf32> to vector<17x17xf32>
    %108 = arith.mulf %103, %107 : vector<17x17xf32>
    %109 = arith.truncf %108 : vector<17x17xf32> to vector<17x17xbf16>
    %cst_35 = arith.constant dense<0.000000e+00> : vector<17x8xf32>
    %110 = tpu.matmul %109, %97, %cst_35 {dimension_numbers = #tpu.dot_dimension_numbers<[1], [0], [0], [1], [0, 0, 1, 1], [], []>} : vector<17x17xbf16>, vector<17x8xbf16>, vector<17x8xf32> -> vector<17x8xf32>
    %111 = tpu.concatenate %62, %78, %94, %110 in 1 : vector<17x8xf32>, vector<17x8xf32>, vector<17x8xf32>, vector<17x8xf32> -> vector<17x32xf32>
    %112 = vector.extract_strided_slice %41 {offsets = [17, 0], sizes = [17, 32], strides = [1, 1]} : vector<34x32xbf16> to vector<17x32xbf16>
    %113 = vector.extract_strided_slice %42 {offsets = [17, 0], sizes = [17, 32], strides = [1, 1]} : vector<34x32xbf16> to vector<17x32xbf16>
    %114 = vector.extract_strided_slice %43 {offsets = [17, 0], sizes = [17, 32], strides = [1, 1]} : vector<34x32xbf16> to vector<17x32xbf16>
    %115 = vector.extract_strided_slice %112 {offsets = [0, 0], sizes = [17, 8], strides = [1, 1]} : vector<17x32xbf16> to vector<17x8xbf16>
    %116 = vector.extract_strided_slice %113 {offsets = [0, 0], sizes = [17, 8], strides = [1, 1]} : vector<17x32xbf16> to vector<17x8xbf16>
    %117 = vector.extract_strided_slice %114 {offsets = [0, 0], sizes = [17, 8], strides = [1, 1]} : vector<17x32xbf16> to vector<17x8xbf16>
    %cst_36 = arith.constant dense<0.000000e+00> : vector<17x17xf32>
    %118 = tpu.matmul %115, %116, %cst_36 {dimension_numbers = #tpu.dot_dimension_numbers<[1], [1], [0], [0], [0, 0, 1, 0], [], []>} : vector<17x8xbf16>, vector<17x8xbf16>, vector<17x17xf32> -> vector<17x17xf32>
    %cst_37 = arith.constant dense<0xFF800000> : vector<17xf32>
    %119 = vector.multi_reduction <maximumf>, %118, %cst_37 [1] : vector<17x17xf32> to vector<17xf32>
    %120 = vector.shape_cast %119 : vector<17xf32> to vector<17x1xf32>
    %121 = vector.broadcast %120 : vector<17x1xf32> to vector<17x17xf32>
    %122 = arith.subf %118, %121 : vector<17x17xf32>
    %123 = math.exp %122 : vector<17x17xf32>
    %cst_38 = arith.constant dense<0.000000e+00> : vector<17xf32>
    %124 = vector.multi_reduction <add>, %123, %cst_38 [1] : vector<17x17xf32> to vector<17xf32>
    %125 = vector.shape_cast %124 : vector<17xf32> to vector<17x1xf32>
    %126 = tpu.reciprocal %125 {approx = true} : vector<17x1xf32> -> vector<17x1xf32>
    %127 = vector.broadcast %126 : vector<17x1xf32> to vector<17x17xf32>
    %128 = arith.mulf %123, %127 : vector<17x17xf32>
    %129 = arith.truncf %128 : vector<17x17xf32> to vector<17x17xbf16>
    %cst_39 = arith.constant dense<0.000000e+00> : vector<17x8xf32>
    %130 = tpu.matmul %129, %117, %cst_39 {dimension_numbers = #tpu.dot_dimension_numbers<[1], [0], [0], [1], [0, 0, 1, 1], [], []>} : vector<17x17xbf16>, vector<17x8xbf16>, vector<17x8xf32> -> vector<17x8xf32>
    %131 = vector.extract_strided_slice %112 {offsets = [0, 8], sizes = [17, 8], strides = [1, 1]} : vector<17x32xbf16> to vector<17x8xbf16>
    %132 = vector.extract_strided_slice %113 {offsets = [0, 8], sizes = [17, 8], strides = [1, 1]} : vector<17x32xbf16> to vector<17x8xbf16>
    %133 = vector.extract_strided_slice %114 {offsets = [0, 8], sizes = [17, 8], strides = [1, 1]} : vector<17x32xbf16> to vector<17x8xbf16>
    %cst_40 = arith.constant dense<0.000000e+00> : vector<17x17xf32>
    %134 = tpu.matmul %131, %132, %cst_40 {dimension_numbers = #tpu.dot_dimension_numbers<[1], [1], [0], [0], [0, 0, 1, 0], [], []>} : vector<17x8xbf16>, vector<17x8xbf16>, vector<17x17xf32> -> vector<17x17xf32>
    %cst_41 = arith.constant dense<0xFF800000> : vector<17xf32>
    %135 = vector.multi_reduction <maximumf>, %134, %cst_41 [1] : vector<17x17xf32> to vector<17xf32>
    %136 = vector.shape_cast %135 : vector<17xf32> to vector<17x1xf32>
    %137 = vector.broadcast %136 : vector<17x1xf32> to vector<17x17xf32>
    %138 = arith.subf %134, %137 : vector<17x17xf32>
    %139 = math.exp %138 : vector<17x17xf32>
    %cst_42 = arith.constant dense<0.000000e+00> : vector<17xf32>
    %140 = vector.multi_reduction <add>, %139, %cst_42 [1] : vector<17x17xf32> to vector<17xf32>
    %141 = vector.shape_cast %140 : vector<17xf32> to vector<17x1xf32>
    %142 = tpu.reciprocal %141 {approx = true} : vector<17x1xf32> -> vector<17x1xf32>
    %143 = vector.broadcast %142 : vector<17x1xf32> to vector<17x17xf32>
    %144 = arith.mulf %139, %143 : vector<17x17xf32>
    %145 = arith.truncf %144 : vector<17x17xf32> to vector<17x17xbf16>
    %cst_43 = arith.constant dense<0.000000e+00> : vector<17x8xf32>
    %146 = tpu.matmul %145, %133, %cst_43 {dimension_numbers = #tpu.dot_dimension_numbers<[1], [0], [0], [1], [0, 0, 1, 1], [], []>} : vector<17x17xbf16>, vector<17x8xbf16>, vector<17x8xf32> -> vector<17x8xf32>
    %147 = vector.extract_strided_slice %112 {offsets = [0, 16], sizes = [17, 8], strides = [1, 1]} : vector<17x32xbf16> to vector<17x8xbf16>
    %148 = vector.extract_strided_slice %113 {offsets = [0, 16], sizes = [17, 8], strides = [1, 1]} : vector<17x32xbf16> to vector<17x8xbf16>
    %149 = vector.extract_strided_slice %114 {offsets = [0, 16], sizes = [17, 8], strides = [1, 1]} : vector<17x32xbf16> to vector<17x8xbf16>
    %cst_44 = arith.constant dense<0.000000e+00> : vector<17x17xf32>
    %150 = tpu.matmul %147, %148, %cst_44 {dimension_numbers = #tpu.dot_dimension_numbers<[1], [1], [0], [0], [0, 0, 1, 0], [], []>} : vector<17x8xbf16>, vector<17x8xbf16>, vector<17x17xf32> -> vector<17x17xf32>
    %cst_45 = arith.constant dense<0xFF800000> : vector<17xf32>
    %151 = vector.multi_reduction <maximumf>, %150, %cst_45 [1] : vector<17x17xf32> to vector<17xf32>
    %152 = vector.shape_cast %151 : vector<17xf32> to vector<17x1xf32>
    %153 = vector.broadcast %152 : vector<17x1xf32> to vector<17x17xf32>
    %154 = arith.subf %150, %153 : vector<17x17xf32>
    %155 = math.exp %154 : vector<17x17xf32>
    %cst_46 = arith.constant dense<0.000000e+00> : vector<17xf32>
    %156 = vector.multi_reduction <add>, %155, %cst_46 [1] : vector<17x17xf32> to vector<17xf32>
    %157 = vector.shape_cast %156 : vector<17xf32> to vector<17x1xf32>
    %158 = tpu.reciprocal %157 {approx = true} : vector<17x1xf32> -> vector<17x1xf32>
    %159 = vector.broadcast %158 : vector<17x1xf32> to vector<17x17xf32>
    %160 = arith.mulf %155, %159 : vector<17x17xf32>
    %161 = arith.truncf %160 : vector<17x17xf32> to vector<17x17xbf16>
    %cst_47 = arith.constant dense<0.000000e+00> : vector<17x8xf32>
    %162 = tpu.matmul %161, %149, %cst_47 {dimension_numbers = #tpu.dot_dimension_numbers<[1], [0], [0], [1], [0, 0, 1, 1], [], []>} : vector<17x17xbf16>, vector<17x8xbf16>, vector<17x8xf32> -> vector<17x8xf32>
    %163 = vector.extract_strided_slice %112 {offsets = [0, 24], sizes = [17, 8], strides = [1, 1]} : vector<17x32xbf16> to vector<17x8xbf16>
    %164 = vector.extract_strided_slice %113 {offsets = [0, 24], sizes = [17, 8], strides = [1, 1]} : vector<17x32xbf16> to vector<17x8xbf16>
    %165 = vector.extract_strided_slice %114 {offsets = [0, 24], sizes = [17, 8], strides = [1, 1]} : vector<17x32xbf16> to vector<17x8xbf16>
    %cst_48 = arith.constant dense<0.000000e+00> : vector<17x17xf32>
    %166 = tpu.matmul %163, %164, %cst_48 {dimension_numbers = #tpu.dot_dimension_numbers<[1], [1], [0], [0], [0, 0, 1, 0], [], []>} : vector<17x8xbf16>, vector<17x8xbf16>, vector<17x17xf32> -> vector<17x17xf32>
    %cst_49 = arith.constant dense<0xFF800000> : vector<17xf32>
    %167 = vector.multi_reduction <maximumf>, %166, %cst_49 [1] : vector<17x17xf32> to vector<17xf32>
    %168 = vector.shape_cast %167 : vector<17xf32> to vector<17x1xf32>
    %169 = vector.broadcast %168 : vector<17x1xf32> to vector<17x17xf32>
    %170 = arith.subf %166, %169 : vector<17x17xf32>
    %171 = math.exp %170 : vector<17x17xf32>
    %cst_50 = arith.constant dense<0.000000e+00> : vector<17xf32>
    %172 = vector.multi_reduction <add>, %171, %cst_50 [1] : vector<17x17xf32> to vector<17xf32>
    %173 = vector.shape_cast %172 : vector<17xf32> to vector<17x1xf32>
    %174 = tpu.reciprocal %173 {approx = true} : vector<17x1xf32> -> vector<17x1xf32>
    %175 = vector.broadcast %174 : vector<17x1xf32> to vector<17x17xf32>
    %176 = arith.mulf %171, %175 : vector<17x17xf32>
    %177 = arith.truncf %176 : vector<17x17xf32> to vector<17x17xbf16>
    %cst_51 = arith.constant dense<0.000000e+00> : vector<17x8xf32>
    %178 = tpu.matmul %177, %165, %cst_51 {dimension_numbers = #tpu.dot_dimension_numbers<[1], [0], [0], [1], [0, 0, 1, 1], [], []>} : vector<17x17xbf16>, vector<17x8xbf16>, vector<17x8xf32> -> vector<17x8xf32>
    %179 = tpu.concatenate %130, %146, %162, %178 in 1 : vector<17x8xf32>, vector<17x8xf32>, vector<17x8xf32>, vector<17x8xf32> -> vector<17x32xf32>
    %180 = tpu.concatenate %111, %179 in 0 : vector<17x32xf32>, vector<17x32xf32> -> vector<34x32xf32>
    %c0_52 = arith.constant 0 : index
    %c0_53 = arith.constant 0 : index
    %c0_54 = arith.constant 0 : index
    %181 = vector.load %arg10[%c0_52, %c0_53, %c0_54] : memref<1x32x32xbf16, #tpu.memory_space<vmem>>, vector<1x32x32xbf16>
    %182 = vector.shape_cast %181 : vector<1x32x32xbf16> to vector<32x32xbf16>
    %183 = arith.truncf %180 : vector<34x32xf32> to vector<34x32xbf16>
    %cst_55 = arith.constant dense<0.000000e+00> : vector<34x32xf32>
    %184 = tpu.matmul %183, %182, %cst_55 {dimension_numbers = #tpu.dot_dimension_numbers<[1], [0], [0], [1], [0, 0, 1, 1], [], []>} : vector<34x32xbf16>, vector<32x32xbf16>, vector<34x32xf32> -> vector<34x32xf32>
    %c0_56 = arith.constant 0 : index
    %c0_57 = arith.constant 0 : index
    %c0_58 = arith.constant 0 : index
    %185 = vector.load %arg11[%c0_56, %c0_57, %c0_58] : memref<1x1x32xf32, #tpu.memory_space<vmem>>, vector<1x1x32xf32>
    %186 = vector.shape_cast %185 : vector<1x1x32xf32> to vector<1x32xf32>
    %187 = vector.broadcast %186 : vector<1x32xf32> to vector<34x32xf32>
    %188 = arith.addf %184, %187 : vector<34x32xf32>
    %189 = arith.addf %3, %188 : vector<34x32xf32>
    %c0_59 = arith.constant 0 : index
    %c0_60 = arith.constant 0 : index
    %c0_61 = arith.constant 0 : index
    %190 = vector.load %arg12[%c0_59, %c0_60, %c0_61] : memref<1x1x32xf32, #tpu.memory_space<vmem>>, vector<1x1x32xf32>
    %191 = vector.shape_cast %190 : vector<1x1x32xf32> to vector<1x32xf32>
    %c0_62 = arith.constant 0 : index
    %c0_63 = arith.constant 0 : index
    %c0_64 = arith.constant 0 : index
    %192 = vector.load %arg13[%c0_62, %c0_63, %c0_64] : memref<1x1x32xf32, #tpu.memory_space<vmem>>, vector<1x1x32xf32>
    %193 = vector.shape_cast %192 : vector<1x1x32xf32> to vector<1x32xf32>
    %cst_65 = arith.constant dense<0.000000e+00> : vector<34xf32>
    %194 = vector.multi_reduction <add>, %189, %cst_65 [1] : vector<34x32xf32> to vector<34xf32>
    %195 = vector.shape_cast %194 : vector<34xf32> to vector<34x1xf32>
    %cst_66 = arith.constant 3.200000e+01 : f32
    %196 = vector.broadcast %cst_66 : f32 to vector<34x1xf32>
    %197 = arith.divf %195, %196 : vector<34x1xf32>
    %198 = vector.broadcast %197 : vector<34x1xf32> to vector<34x32xf32>
    %199 = arith.subf %189, %198 : vector<34x32xf32>
    %200 = arith.mulf %199, %199 : vector<34x32xf32>
    %cst_67 = arith.constant dense<0.000000e+00> : vector<34xf32>
    %201 = vector.multi_reduction <add>, %200, %cst_67 [1] : vector<34x32xf32> to vector<34xf32>
    %202 = vector.shape_cast %201 : vector<34xf32> to vector<34x1xf32>
    %cst_68 = arith.constant 3.200000e+01 : f32
    %203 = vector.broadcast %cst_68 : f32 to vector<34x1xf32>
    %204 = arith.divf %202, %203 : vector<34x1xf32>
    %cst_69 = arith.constant 9.99999997E-7 : f32
    %205 = vector.broadcast %cst_69 : f32 to vector<34x1xf32>
    %206 = arith.addf %204, %205 : vector<34x1xf32>
    %207 = math.rsqrt %206 : vector<34x1xf32>
    %208 = vector.broadcast %207 : vector<34x1xf32> to vector<34x32xf32>
    %209 = arith.mulf %199, %208 : vector<34x32xf32>
    %210 = vector.broadcast %191 : vector<1x32xf32> to vector<34x32xf32>
    %211 = arith.mulf %209, %210 : vector<34x32xf32>
    %212 = vector.broadcast %193 : vector<1x32xf32> to vector<34x32xf32>
    %213 = arith.addf %211, %212 : vector<34x32xf32>
    %c0_70 = arith.constant 0 : index
    %c0_71 = arith.constant 0 : index
    %c0_72 = arith.constant 0 : index
    %214 = vector.load %arg14[%c0_70, %c0_71, %c0_72] : memref<1x32x128xbf16, #tpu.memory_space<vmem>>, vector<1x32x128xbf16>
    %215 = vector.shape_cast %214 : vector<1x32x128xbf16> to vector<32x128xbf16>
    %216 = arith.truncf %213 : vector<34x32xf32> to vector<34x32xbf16>
    %cst_73 = arith.constant dense<0.000000e+00> : vector<34x128xf32>
    %217 = tpu.matmul %216, %215, %cst_73 {dimension_numbers = #tpu.dot_dimension_numbers<[1], [0], [0], [1], [0, 0, 1, 1], [], []>} : vector<34x32xbf16>, vector<32x128xbf16>, vector<34x128xf32> -> vector<34x128xf32>
    %c0_74 = arith.constant 0 : index
    %c0_75 = arith.constant 0 : index
    %c0_76 = arith.constant 0 : index
    %218 = vector.load %arg15[%c0_74, %c0_75, %c0_76] : memref<1x1x128xf32, #tpu.memory_space<vmem>>, vector<1x1x128xf32>
    %219 = vector.shape_cast %218 : vector<1x1x128xf32> to vector<1x128xf32>
    %220 = vector.broadcast %219 : vector<1x128xf32> to vector<34x128xf32>
    %221 = arith.addf %217, %220 : vector<34x128xf32>
    %cst_77 = arith.constant 5.000000e-01 : f32
    %222 = vector.broadcast %cst_77 : f32 to vector<34x128xf32>
    %223 = arith.mulf %222, %221 : vector<34x128xf32>
    %cst_78 = arith.constant 4.471500e-02 : f32
    %224 = vector.broadcast %cst_78 : f32 to vector<34x128xf32>
    %225 = arith.mulf %224, %221 : vector<34x128xf32>
    %226 = arith.mulf %225, %221 : vector<34x128xf32>
    %227 = arith.mulf %226, %221 : vector<34x128xf32>
    %228 = arith.addf %221, %227 : vector<34x128xf32>
    %cst_79 = arith.constant 0.797884583 : f32
    %229 = vector.broadcast %cst_79 : f32 to vector<34x128xf32>
    %230 = arith.mulf %229, %228 : vector<34x128xf32>
    %231 = math.tanh %230 : vector<34x128xf32>
    %cst_80 = arith.constant 1.000000e+00 : f32
    %232 = vector.broadcast %cst_80 : f32 to vector<34x128xf32>
    %233 = arith.addf %232, %231 : vector<34x128xf32>
    %234 = arith.mulf %223, %233 : vector<34x128xf32>
    %c0_81 = arith.constant 0 : index
    %c0_82 = arith.constant 0 : index
    %c0_83 = arith.constant 0 : index
    %235 = vector.load %arg16[%c0_81, %c0_82, %c0_83] : memref<1x128x32xbf16, #tpu.memory_space<vmem>>, vector<1x128x32xbf16>
    %236 = vector.shape_cast %235 : vector<1x128x32xbf16> to vector<128x32xbf16>
    %237 = arith.truncf %234 : vector<34x128xf32> to vector<34x128xbf16>
    %cst_84 = arith.constant dense<0.000000e+00> : vector<34x32xf32>
    %238 = tpu.matmul %237, %236, %cst_84 {dimension_numbers = #tpu.dot_dimension_numbers<[1], [0], [0], [1], [0, 0, 1, 1], [], []>} : vector<34x128xbf16>, vector<128x32xbf16>, vector<34x32xf32> -> vector<34x32xf32>
    %c0_85 = arith.constant 0 : index
    %c0_86 = arith.constant 0 : index
    %c0_87 = arith.constant 0 : index
    %239 = vector.load %arg17[%c0_85, %c0_86, %c0_87] : memref<1x1x32xf32, #tpu.memory_space<vmem>>, vector<1x1x32xf32>
    %240 = vector.shape_cast %239 : vector<1x1x32xf32> to vector<1x32xf32>
    %241 = vector.broadcast %240 : vector<1x32xf32> to vector<34x32xf32>
    %242 = arith.addf %238, %241 : vector<34x32xf32>
    %243 = arith.addf %189, %242 : vector<34x32xf32>
    %c0_88 = arith.constant 0 : index
    %c0_89 = arith.constant 0 : index
    %244 = vector.load %arg21[%c0_88, %c0_89] : memref<34x32xf32, #tpu.memory_space<vmem>>, vector<34x32xf32>
    tpu.vector_store %arg21[%c0_88, %c0_89], %243 {strides = array<i32>} : memref<34x32xf32, #tpu.memory_space<vmem>>, vector<34x32xf32>,
    %c1_i32 = arith.constant 1 : i32
    %245 = arith.cmpi eq, %arg0, %c1_i32 : i32
    %246 = arith.extui %245 : i1 to i32
    %c0_i32_90 = arith.constant 0 : i32
    %247 = arith.cmpi ne, %246, %c0_i32_90 : i32
    scf.if %247 {
      %c0_91 = arith.constant 0 : index
      %c0_92 = arith.constant 0 : index
      %248 = vector.load %arg18[%c0_91, %c0_92] : memref<1x32xf32, #tpu.memory_space<vmem>>, vector<1x32xf32>
      %c0_93 = arith.constant 0 : index
      %c0_94 = arith.constant 0 : index
      %249 = vector.load %arg19[%c0_93, %c0_94] : memref<1x32xf32, #tpu.memory_space<vmem>>, vector<1x32xf32>
      %cst_95 = arith.constant dense<0.000000e+00> : vector<34xf32>
      %250 = vector.multi_reduction <add>, %243, %cst_95 [1] : vector<34x32xf32> to vector<34xf32>
      %251 = vector.shape_cast %250 : vector<34xf32> to vector<34x1xf32>
      %cst_96 = arith.constant 3.200000e+01 : f32
      %252 = vector.broadcast %cst_96 : f32 to vector<34x1xf32>
      %253 = arith.divf %251, %252 : vector<34x1xf32>
      %254 = vector.broadcast %253 : vector<34x1xf32> to vector<34x32xf32>
      %255 = arith.subf %243, %254 : vector<34x32xf32>
      %256 = arith.mulf %255, %255 : vector<34x32xf32>
      %cst_97 = arith.constant dense<0.000000e+00> : vector<34xf32>
      %257 = vector.multi_reduction <add>, %256, %cst_97 [1] : vector<34x32xf32> to vector<34xf32>
      %258 = vector.shape_cast %257 : vector<34xf32> to vector<34x1xf32>
      %cst_98 = arith.constant 3.200000e+01 : f32
      %259 = vector.broadcast %cst_98 : f32 to vector<34x1xf32>
      %260 = arith.divf %258, %259 : vector<34x1xf32>
      %cst_99 = arith.constant 9.99999997E-7 : f32
      %261 = vector.broadcast %cst_99 : f32 to vector<34x1xf32>
      %262 = arith.addf %260, %261 : vector<34x1xf32>
      %263 = math.rsqrt %262 : vector<34x1xf32>
      %264 = vector.broadcast %263 : vector<34x1xf32> to vector<34x32xf32>
      %265 = arith.mulf %255, %264 : vector<34x32xf32>
      %266 = vector.broadcast %248 : vector<1x32xf32> to vector<34x32xf32>
      %267 = arith.mulf %265, %266 : vector<34x32xf32>
      %268 = vector.broadcast %249 : vector<1x32xf32> to vector<34x32xf32>
      %269 = arith.addf %267, %268 : vector<34x32xf32>
      %270 = arith.truncf %269 : vector<34x32xf32> to vector<34x32xbf16>
      %c0_100 = arith.constant 0 : index
      %c0_101 = arith.constant 0 : index
      %271 = vector.load %arg20[%c0_100, %c0_101] : memref<34x32xbf16, #tpu.memory_space<vmem>>, vector<34x32xbf16>
      tpu.vector_store %arg20[%c0_100, %c0_101], %270 {strides = array<i32>} : memref<34x32xbf16, #tpu.memory_space<vmem>>, vector<34x32xbf16>,
    } else {
    }
    return
  }
  func.func @transform_0(%arg0: i32) -> (i32, i32) {
    %c0_i32 = arith.constant 0 : i32
    %c0_i32_0 = arith.constant 0 : i32
    %c0_i32_1 = arith.constant 0 : i32
    return %c0_i32, %c0_i32_0 : i32, i32
  }
  func.func @transform_1(%arg0: i32) -> (i32, i32) {
    %c0_i32 = arith.constant 0 : i32
    %c0_i32_0 = arith.constant 0 : i32
    %c0_i32_1 = arith.constant 0 : i32
    return %c0_i32, %c0_i32_0 : i32, i32
  }
  func.func @transform_2(%arg0: i32) -> (i32, i32) {
    %c0_i32 = arith.constant 0 : i32
    %c0_i32_0 = arith.constant 0 : i32
    %c0_i32_1 = arith.constant 0 : i32
    return %c0_i32, %c0_i32_0 : i32, i32
  }
  func.func @transform_3(%arg0: i32) -> (i32, i32) {
    %c0_i32 = arith.constant 0 : i32
    %c0_i32_0 = arith.constant 0 : i32
    %c0_i32_1 = arith.constant 0 : i32
    return %c0_i32, %c0_i32_0 : i32, i32
  }
  func.func @transform_4(%arg0: i32) -> (i32, i32) {
    %c0_i32 = arith.constant 0 : i32
    %c0_i32_0 = arith.constant 0 : i32
    %c0_i32_1 = arith.constant 0 : i32
    return %c0_i32, %c0_i32_0 : i32, i32
  }
  func.func @transform_5(%arg0: i32) -> (i32, i32, i32) {
    %c0_i32 = arith.constant 0 : i32
    %c0_i32_0 = arith.constant 0 : i32
    %c0_i32_1 = arith.constant 0 : i32
    return %arg0, %c0_i32, %c0_i32_0 : i32, i32, i32
  }
  func.func @transform_6(%arg0: i32) -> (i32, i32, i32) {
    %c0_i32 = arith.constant 0 : i32
    %c0_i32_0 = arith.constant 0 : i32
    %c0_i32_1 = arith.constant 0 : i32
    return %arg0, %c0_i32, %c0_i32_0 : i32, i32, i32
  }
  func.func @transform_7(%arg0: i32) -> (i32, i32, i32) {
    %c0_i32 = arith.constant 0 : i32
    %c0_i32_0 = arith.constant 0 : i32
    %c0_i32_1 = arith.constant 0 : i32
    return %arg0, %c0_i32, %c0_i32_0 : i32, i32, i32
  }
  func.func @transform_8(%arg0: i32) -> (i32, i32, i32) {
    %c0_i32 = arith.constant 0 : i32
    %c0_i32_0 = arith.constant 0 : i32
    %c0_i32_1 = arith.constant 0 : i32
    return %arg0, %c0_i32, %c0_i32_0 : i32, i32, i32
  }
  func.func @transform_9(%arg0: i32) -> (i32, i32, i32) {
    %c0_i32 = arith.constant 0 : i32
    %c0_i32_0 = arith.constant 0 : i32
    %c0_i32_1 = arith.constant 0 : i32
    return %arg0, %c0_i32, %c0_i32_0 : i32, i32, i32
  }
  func.func @transform_10(%arg0: i32) -> (i32, i32, i32) {
    %c0_i32 = arith.constant 0 : i32
    %c0_i32_0 = arith.constant 0 : i32
    %c0_i32_1 = arith.constant 0 : i32
    return %arg0, %c0_i32, %c0_i32_0 : i32, i32, i32
  }
  func.func @transform_11(%arg0: i32) -> (i32, i32, i32) {
    %c0_i32 = arith.constant 0 : i32
    %c0_i32_0 = arith.constant 0 : i32
    %c0_i32_1 = arith.constant 0 : i32
    return %arg0, %c0_i32, %c0_i32_0 : i32, i32, i32
  }
  func.func @transform_12(%arg0: i32) -> (i32, i32, i32) {
    %c0_i32 = arith.constant 0 : i32
    %c0_i32_0 = arith.constant 0 : i32
    %c0_i32_1 = arith.constant 0 : i32
    return %arg0, %c0_i32, %c0_i32_0 : i32, i32, i32
  }
  func.func @transform_13(%arg0: i32) -> (i32, i32, i32) {
    %c0_i32 = arith.constant 0 : i32
    %c0_i32_0 = arith.constant 0 : i32
    %c0_i32_1 = arith.constant 0 : i32
    return %arg0, %c0_i32, %c0_i32_0 : i32, i32, i32
  }
  func.func @transform_14(%arg0: i32) -> (i32, i32, i32) {
    %c0_i32 = arith.constant 0 : i32
    %c0_i32_0 = arith.constant 0 : i32
    %c0_i32_1 = arith.constant 0 : i32
    return %arg0, %c0_i32, %c0_i32_0 : i32, i32, i32
  }
  func.func @transform_15(%arg0: i32) -> (i32, i32, i32) {
    %c0_i32 = arith.constant 0 : i32
    %c0_i32_0 = arith.constant 0 : i32
    %c0_i32_1 = arith.constant 0 : i32
    return %arg0, %c0_i32, %c0_i32_0 : i32, i32, i32
  }
  func.func @transform_16(%arg0: i32) -> (i32, i32, i32) {
    %c0_i32 = arith.constant 0 : i32
    %c0_i32_0 = arith.constant 0 : i32
    %c0_i32_1 = arith.constant 0 : i32
    return %arg0, %c0_i32, %c0_i32_0 : i32, i32, i32
  }
  func.func @transform_17(%arg0: i32) -> (i32, i32) {
    %c0_i32 = arith.constant 0 : i32
    %c0_i32_0 = arith.constant 0 : i32
    %c0_i32_1 = arith.constant 0 : i32
    return %c0_i32, %c0_i32_0 : i32, i32
  }
  func.func @transform_18(%arg0: i32) -> (i32, i32) {
    %c0_i32 = arith.constant 0 : i32
    %c0_i32_0 = arith.constant 0 : i32
    %c0_i32_1 = arith.constant 0 : i32
    return %c0_i32, %c0_i32_0 : i32, i32
  }
  func.func @transform_19(%arg0: i32) -> (i32, i32) {
    %c0_i32 = arith.constant 0 : i32
    %c0_i32_0 = arith.constant 0 : i32
    %c0_i32_1 = arith.constant 0 : i32
    return %c0_i32, %c0_i32_0 : i32, i32
  }
}

</mosaic_0001>

<llo_original>
// kernel: mul.2
$region0: #{mul.2}
  #allocation0 [shape = 's32[1]{0}', space=sflag, size = 0x4, scoped, tag = 'scoped memory for mul.2']
  %s0 = inlined_call_operand.<no memory space> [shape: f32[], index: 0, kind: input, shape index: {}]
  %s1 = inlined_call_operand.vmem [shape: f32[2,17], index: 1, kind: output, shape index: {}]
  %v2 = vstv %s0
  %3 = vst [vmem:[%s1] sm:$0x3] %v2

// kernel: blip_base_forward.3
$region0: #{blip_base_forward.3}
  #allocation0 [shape = 'u32[]', space=smem, size = 0x4, offset = 0x4, fixed_abs, tag = 'smem constant byte address 0x4 - core index']
  #allocation1 [shape = 'u32[144,128]{1,0:T(1,128)}', space=vmem, size = 0x12000, scoped, tag = 'internal scratch']
  #allocation2 [shape = 'f32[16,32]{1,0:T(8,128)}', space=vmem, size = 0x2000, scoped, tag = 'scratch operand']
  %s0 = inlined_call_operand.vmem [shape: f32[16,32], index: 0, kind: input, shape index: {}]
  %s1 = inlined_call_operand.vmem [shape: f32[2,8], index: 1, kind: input, shape index: {}]
  %s2 = inlined_call_operand.vmem [shape: bf16[34,32], index: 2, kind: input, shape index: {}]
  %s3 = inlined_call_operand.vmem [shape: f32[2,17], index: 3, kind: input, shape index: {}]
  %s4 = inlined_call_operand.vmem [shape: f32[1,32], index: 4, kind: input, shape index: {}]
  %s5 = inlined_call_operand.vmem [shape: f32[1,32], index: 5, kind: input, shape index: {}]
  %s6 = inlined_call_operand.vmem [shape: bf16[2,32,96], index: 6, kind: input, shape index: {}]
  %s7 = inlined_call_operand.vmem [shape: f32[2,1,96], index: 7, kind: input, shape index: {}]
  %s8 = inlined_call_operand.vmem [shape: bf16[2,32,32], index: 8, kind: input, shape index: {}]
  %s9 = inlined_call_operand.vmem [shape: f32[2,1,32], index: 9, kind: input, shape index: {}]
  %s10 = inlined_call_operand.vmem [shape: f32[2,1,32], index: 10, kind: input, shape index: {}]
  %s11 = inlined_call_operand.vmem [shape: f32[2,1,32], index: 11, kind: input, shape index: {}]
  %s12 = inlined_call_operand.vmem [shape: bf16[2,32,32], index: 12, kind: input, shape index: {}]
  %s13 = inlined_call_operand.vmem [shape: f32[2,1,32], index: 13, kind: input, shape index: {}]
  %s14 = inlined_call_operand.vmem [shape: bf16[2,32,64], index: 14, kind: input, shape index: {}]
  %s15 = inlined_call_operand.vmem [shape: f32[2,1,64], index: 15, kind: input, shape index: {}]
  %s16 = inlined_call_operand.vmem [shape: bf16[2,32,32], index: 16, kind: input, shape index: {}]
  %s17 = inlined_call_operand.vmem [shape: f32[2,1,32], index: 17, kind: input, shape index: {}]
  %s18 = inlined_call_operand.vmem [shape: f32[2,1,32], index: 18, kind: input, shape index: {}]
  %s19 = inlined_call_operand.vmem [shape: f32[2,1,32], index: 19, kind: input, shape index: {}]
  %s20 = inlined_call_operand.vmem [shape: bf16[2,32,128], index: 20, kind: input, shape index: {}]
  %s21 = inlined_call_operand.vmem [shape: f32[2,1,128], index: 21, kind: input, shape index: {}]
  %s22 = inlined_call_operand.vmem [shape: bf16[2,128,32], index: 22, kind: input, shape index: {}]
  %s23 = inlined_call_operand.vmem [shape: f32[2,1,32], index: 23, kind: input, shape index: {}]
  %s24 = inlined_call_operand.vmem [shape: f32[2,1,32], index: 24, kind: input, shape index: {}]
  %s25 = inlined_call_operand.vmem [shape: f32[2,1,32], index: 25, kind: input, shape index: {}]
  %s26 = inlined_call_operand.hbm [shape: f32[16,32], index: 26, kind: output, shape index: {}]
  %s27 = sld [smem:[#allocation0]]
  $region145: #{blip_base_forward.3} parent=0
    _
  %s29 = ssub.s32 1, %s27
  %s30 = scalar_select 0, %s29, %s27
  $region1: #{blip_base_forward.3} parent=0
    #allocation3 [shape = 'u8[8192]{0}', space=vmem, size = 0x2000, scoped, tag = 'output window, operand 0, single buffered']
    #allocation4 [shape = 's32[2]{0}', space=sflag, size = 0x8, scoped, tag = 'scoped memory for blip_base_forward.3']
    %31 = vsyncpa [#allocation4], 0
    loop: start=0, step=1, limit=4
    $region2: #{blip_base_forward.3} parent=1 // loop_pre_header
      _
    $region3: #{blip_base_forward.3} parent=1 // loop_header
      %s33 = sphi 0, %s37
      %p34 = scmp.ge.s32.totalorder %s33, 4
      %s41 = sphi 0, %s41
      %s43 = sphi 0, %s41
      %s44 = sphi 0, %s43
      %s58 = sphi 0, %s44
      %s62 = sphi 0, %s62
      %s64 = sphi 0, %s62
      %s65 = sphi 0, %s64
      %s79 = sphi 0, %s65
      %s83 = sphi 0, %s83
      %s85 = sphi 0, %s83
      %s86 = sphi 0, %s85
      %s100 = sphi 0, %s86
      %s104 = sphi 0, %s104
      %s106 = sphi 0, %s104
      %s107 = sphi 0, %s106
      %s121 = sphi 0, %s107
      %s125 = sphi 0, %s125
      %s127 = sphi 0, %s125
      %s128 = sphi 0, %s127
      %s142 = sphi 0, %s128
      %s146 = sphi 0, %s146
      %s148 = sphi 0, %s146
      %s149 = sphi 0, %s148
      %s163 = sphi 0, %s149
      %s169 = sphi 0, %s171
      %s172 = sphi 0, %s169
      %s173 = sphi 0, %s172
      %s189 = sphi 0, %s173
      %s195 = sphi 0, %s197
      %s198 = sphi 0, %s195
      %s199 = sphi 0, %s198
      %s215 = sphi 0, %s199
      %s221 = sphi 0, %s223
      %s224 = sphi 0, %s221
      %s225 = sphi 0, %s224
      %s241 = sphi 0, %s225
      %s247 = sphi 0, %s249
      %s250 = sphi 0, %s247
      %s251 = sphi 0, %s250
      %s267 = sphi 0, %s251
      %s273 = sphi 0, %s275
      %s276 = sphi 0, %s273
      %s277 = sphi 0, %s276
      %s293 = sphi 0, %s277
      %s299 = sphi 0, %s301
      %s302 = sphi 0, %s299
      %s303 = sphi 0, %s302
      %s319 = sphi 0, %s303
      %s325 = sphi 0, %s327
      %s328 = sphi 0, %s325
      %s329 = sphi 0, %s328
      %s345 = sphi 0, %s329
      %s351 = sphi 0, %s353
      %s354 = sphi 0, %s351
      %s355 = sphi 0, %s354
      %s371 = sphi 0, %s355
      %s377 = sphi 0, %s379
      %s380 = sphi 0, %s377
      %s381 = sphi 0, %s380
      %s397 = sphi 0, %s381
      %s403 = sphi 0, %s405
      %s406 = sphi 0, %s403
      %s407 = sphi 0, %s406
      %s423 = sphi 0, %s407
      %s429 = sphi 0, %s431
      %s432 = sphi 0, %s429
      %s433 = sphi 0, %s432
      %s449 = sphi 0, %s433
      %s455 = sphi 0, %s457
      %s458 = sphi 0, %s455
      %s459 = sphi 0, %s458
      %s475 = sphi 0, %s459
      %s481 = sphi 0, %s483
      %s484 = sphi 0, %s481
      %s485 = sphi 0, %s484
      %s501 = sphi 0, %s485
      %s507 = sphi 0, %s509
      %s510 = sphi 0, %s507
      %s511 = sphi 0, %s510
      %s527 = sphi 0, %s511
      %s533 = sphi 0, %s535
      %s536 = sphi 0, %s533
      %s537 = sphi 0, %s536
      %s553 = sphi 0, %s537
      %s559 = sphi 0, %s561
      %s562 = sphi 0, %s559
      %s563 = sphi 0, %s562
      %s579 = sphi 0, %s563
      %s585 = sphi 0, %s587
      %s588 = sphi 0, %s585
      %s589 = sphi 0, %s588
      %s605 = sphi 0, %s589
      %s611 = sphi 0, %s613
      %s614 = sphi 0, %s611
      %s615 = sphi 0, %s614
      %s631 = sphi 0, %s615
      %s637 = sphi 0, %s639
      %s640 = sphi 0, %s637
      %s641 = sphi 0, %s640
      %s657 = sphi 0, %s641
      %s663 = sphi 0, %s665
      %s666 = sphi 0, %s663
      %s667 = sphi 0, %s666
      %s683 = sphi 0, %s667
      %s687 = sphi 0, %s687
      %s689 = sphi 0, %s687
      %s690 = sphi 0, %s689
      %s704 = sphi 0, %s690
    $region4: #{blip_base_forward.3} parent=1 // loop_header_branch
      %36 = sbr.rel (%p34) target = $region8
    $region5: #{blip_base_forward.3} parent=1 // loop_body
      %s38 = ssub.s32 %s33, 1
      %s39 = ssub.s32 %s33, 2
      %s40 = sadd.s32 %s33, 1
      %s42 = sadd.s32 %s41, 1
      %p45 = scmp.eq.s32.totalorder %s33, 1
      %p46 = scmp.ne.s32.totalorder %s41, %s43
      %p47 = scmp.eq.s32.totalorder %s33, 0
      %p48 = por %p46, %p47
      %p49 = scmp.ne.s32.totalorder %s41, %s43
      %p50 = scmp.eq.s32.totalorder %s38, 1
      %p51 = por %p49, %p50
      %p52 = scmp.ne.s32.totalorder %s43, %s44
      %p53 = scmp.eq.s32.totalorder %s38, 0
      %p54 = por %p52, %p53
      %p55 = scmp.ne.s32.totalorder %s43, %s44
      %p56 = scmp.eq.s32.totalorder %s39, 1
      %p57 = por %p55, %p56
      %p59 = scmp.ne.s32.totalorder %s44, %s58
      %p60 = scmp.eq.s32.totalorder %s39, 0
      %p61 = por %p59, %p60
      %s63 = sadd.s32 %s62, 1
      %p66 = scmp.eq.s32.totalorder %s33, 1
      %p67 = scmp.ne.s32.totalorder %s62, %s64
      %p68 = scmp.eq.s32.totalorder %s33, 0
      %p69 = por %p67, %p68
      %p70 = scmp.ne.s32.totalorder %s62, %s64
      %p71 = scmp.eq.s32.totalorder %s38, 1
      %p72 = por %p70, %p71
      %p73 = scmp.ne.s32.totalorder %s64, %s65
      %p74 = scmp.eq.s32.totalorder %s38, 0
      %p75 = por %p73, %p74
      %p76 = scmp.ne.s32.totalorder %s64, %s65
      %p77 = scmp.eq.s32.totalorder %s39, 1
      %p78 = por %p76, %p77
      %p80 = scmp.ne.s32.totalorder %s65, %s79
      %p81 = scmp.eq.s32.totalorder %s39, 0
      %p82 = por %p80, %p81
      %s84 = sadd.s32 %s83, 1
      %p87 = scmp.eq.s32.totalorder %s33, 1
      %p88 = scmp.ne.s32.totalorder %s83, %s85
      %p89 = scmp.eq.s32.totalorder %s33, 0
      %p90 = por %p88, %p89
      %p91 = scmp.ne.s32.totalorder %s83, %s85
      %p92 = scmp.eq.s32.totalorder %s38, 1
      %p93 = por %p91, %p92
      %p94 = scmp.ne.s32.totalorder %s85, %s86
      %p95 = scmp.eq.s32.totalorder %s38, 0
      %p96 = por %p94, %p95
      %p97 = scmp.ne.s32.totalorder %s85, %s86
      %p98 = scmp.eq.s32.totalorder %s39, 1
      %p99 = por %p97, %p98
      %p101 = scmp.ne.s32.totalorder %s86, %s100
      %p102 = scmp.eq.s32.totalorder %s39, 0
      %p103 = por %p101, %p102
      %s105 = sadd.s32 %s104, 1
      %p108 = scmp.eq.s32.totalorder %s33, 1
      %p109 = scmp.ne.s32.totalorder %s104, %s106
      %p110 = scmp.eq.s32.totalorder %s33, 0
      %p111 = por %p109, %p110
      %p112 = scmp.ne.s32.totalorder %s104, %s106
      %p113 = scmp.eq.s32.totalorder %s38, 1
      %p114 = por %p112, %p113
      %p115 = scmp.ne.s32.totalorder %s106, %s107
      %p116 = scmp.eq.s32.totalorder %s38, 0
      %p117 = por %p115, %p116
      %p118 = scmp.ne.s32.totalorder %s106, %s107
      %p119 = scmp.eq.s32.totalorder %s39, 1
      %p120 = por %p118, %p119
      %p122 = scmp.ne.s32.totalorder %s107, %s121
      %p123 = scmp.eq.s32.totalorder %s39, 0
      %p124 = por %p122, %p123
      %s126 = sadd.s32 %s125, 1
      %p129 = scmp.eq.s32.totalorder %s33, 1
      %p130 = scmp.ne.s32.totalorder %s125, %s127
      %p131 = scmp.eq.s32.totalorder %s33, 0
      %p132 = por %p130, %p131
      %p133 = scmp.ne.s32.totalorder %s125, %s127
      %p134 = scmp.eq.s32.totalorder %s38, 1
      %p135 = por %p133, %p134
      %p136 = scmp.ne.s32.totalorder %s127, %s128
      %p137 = scmp.eq.s32.totalorder %s38, 0
      %p138 = por %p136, %p137
      %p139 = scmp.ne.s32.totalorder %s127, %s128
      %p140 = scmp.eq.s32.totalorder %s39, 1
      %p141 = por %p139, %p140
      %p143 = scmp.ne.s32.totalorder %s128, %s142
      %p144 = scmp.eq.s32.totalorder %s39, 0
      %p145 = por %p143, %p144
      %s147 = sadd.s32 %s146, 1
      %p150 = scmp.eq.s32.totalorder %s33, 1
      %p151 = scmp.ne.s32.totalorder %s146, %s148
      %p152 = scmp.eq.s32.totalorder %s33, 0
      %p153 = por %p151, %p152
      %p154 = scmp.ne.s32.totalorder %s146, %s148
      %p155 = scmp.eq.s32.totalorder %s38, 1
      %p156 = por %p154, %p155
      %p157 = scmp.ne.s32.totalorder %s148, %s149
      %p158 = scmp.eq.s32.totalorder %s38, 0
      %p159 = por %p157, %p158
      %p160 = scmp.ne.s32.totalorder %s148, %s149
      %p161 = scmp.eq.s32.totalorder %s39, 1
      %p162 = por %p160, %p161
      %p164 = scmp.ne.s32.totalorder %s149, %s163
      %p165 = scmp.eq.s32.totalorder %s39, 0
      %p166 = por %p164, %p165
      %s167 = ssub.s32 %s33, %s40
      %p168 = scmp.eq.s32.totalorder %s167, 0
      %s170 = sadd.s32 %s169, 1
      %s171 = scalar_select %p168, %s169, %s170
      %p174 = pneg %p168
      %p175 = scmp.eq.s32.totalorder %s33, 1
      %p176 = por %p174, %p175
      %p177 = scmp.ne.s32.totalorder %s169, %s172
      %p178 = scmp.eq.s32.totalorder %s33, 0
      %p179 = por %p177, %p178
      %p180 = scmp.ne.s32.totalorder %s169, %s172
      %p181 = scmp.eq.s32.totalorder %s38, 1
      %p182 = por %p180, %p181
      %p183 = scmp.ne.s32.totalorder %s172, %s173
      %p184 = scmp.eq.s32.totalorder %s38, 0
      %p185 = por %p183, %p184
      %p186 = scmp.ne.s32.totalorder %s172, %s173
      %p187 = scmp.eq.s32.totalorder %s39, 1
      %p188 = por %p186, %p187
      %p190 = scmp.ne.s32.totalorder %s173, %s189
      %p191 = scmp.eq.s32.totalorder %s39, 0
      %p192 = por %p190, %p191
      %s193 = ssub.s32 %s33, %s40
      %p194 = scmp.eq.s32.totalorder %s193, 0
      %s196 = sadd.s32 %s195, 1
      %s197 = scalar_select %p194, %s195, %s196
      %p200 = pneg %p194
      %p201 = scmp.eq.s32.totalorder %s33, 1
      %p202 = por %p200, %p201
      %p203 = scmp.ne.s32.totalorder %s195, %s198
      %p204 = scmp.eq.s32.totalorder %s33, 0
      %p205 = por %p203, %p204
      %p206 = scmp.ne.s32.totalorder %s195, %s198
      %p207 = scmp.eq.s32.totalorder %s38, 1
      %p208 = por %p206, %p207
      %p209 = scmp.ne.s32.totalorder %s198, %s199
      %p210 = scmp.eq.s32.totalorder %s38, 0
      %p211 = por %p209, %p210
      %p212 = scmp.ne.s32.totalorder %s198, %s199
      %p213 = scmp.eq.s32.totalorder %s39, 1
      %p214 = por %p212, %p213
      %p216 = scmp.ne.s32.totalorder %s199, %s215
      %p217 = scmp.eq.s32.totalorder %s39, 0
      %p218 = por %p216, %p217
      %s219 = ssub.s32 %s33, %s40
      %p220 = scmp.eq.s32.totalorder %s219, 0
      %s222 = sadd.s32 %s221, 1
      %s223 = scalar_select %p220, %s221, %s222
      %p226 = pneg %p220
      %p227 = scmp.eq.s32.totalorder %s33, 1
      %p228 = por %p226, %p227
      %p229 = scmp.ne.s32.totalorder %s221, %s224
      %p230 = scmp.eq.s32.totalorder %s33, 0
      %p231 = por %p229, %p230
      %p232 = scmp.ne.s32.totalorder %s221, %s224
      %p233 = scmp.eq.s32.totalorder %s38, 1
      %p234 = por %p232, %p233
      %p235 = scmp.ne.s32.totalorder %s224, %s225
      %p236 = scmp.eq.s32.totalorder %s38, 0
      %p237 = por %p235, %p236
      %p238 = scmp.ne.s32.totalorder %s224, %s225
      %p239 = scmp.eq.s32.totalorder %s39, 1
      %p240 = por %p238, %p239
      %p242 = scmp.ne.s32.totalorder %s225, %s241
      %p243 = scmp.eq.s32.totalorder %s39, 0
      %p244 = por %p242, %p243
      %s245 = ssub.s32 %s33, %s40
      %p246 = scmp.eq.s32.totalorder %s245, 0
      %s248 = sadd.s32 %s247, 1
      %s249 = scalar_select %p246, %s247, %s248
      %p252 = pneg %p246
      %p253 = scmp.eq.s32.totalorder %s33, 1
      %p254 = por %p252, %p253
      %p255 = scmp.ne.s32.totalorder %s247, %s250
      %p256 = scmp.eq.s32.totalorder %s33, 0
      %p257 = por %p255, %p256
      %p258 = scmp.ne.s32.totalorder %s247, %s250
      %p259 = scmp.eq.s32.totalorder %s38, 1
      %p260 = por %p258, %p259
      %p261 = scmp.ne.s32.totalorder %s250, %s251
      %p262 = scmp.eq.s32.totalorder %s38, 0
      %p263 = por %p261, %p262
      %p264 = scmp.ne.s32.totalorder %s250, %s251
      %p265 = scmp.eq.s32.totalorder %s39, 1
      %p266 = por %p264, %p265
      %p268 = scmp.ne.s32.totalorder %s251, %s267
      %p269 = scmp.eq.s32.totalorder %s39, 0
      %p270 = por %p268, %p269
      %s271 = ssub.s32 %s33, %s40
      %p272 = scmp.eq.s32.totalorder %s271, 0
      %s274 = sadd.s32 %s273, 1
      %s275 = scalar_select %p272, %s273, %s274
      %p278 = pneg %p272
      %p279 = scmp.eq.s32.totalorder %s33, 1
      %p280 = por %p278, %p279
      %p281 = scmp.ne.s32.totalorder %s273, %s276
      %p282 = scmp.eq.s32.totalorder %s33, 0
      %p283 = por %p281, %p282
      %p284 = scmp.ne.s32.totalorder %s273, %s276
      %p285 = scmp.eq.s32.totalorder %s38, 1
      %p286 = por %p284, %p285
      %p287 = scmp.ne.s32.totalorder %s276, %s277
      %p288 = scmp.eq.s32.totalorder %s38, 0
      %p289 = por %p287, %p288
      %p290 = scmp.ne.s32.totalorder %s276, %s277
      %p291 = scmp.eq.s32.totalorder %s39, 1
      %p292 = por %p290, %p291
      %p294 = scmp.ne.s32.totalorder %s277, %s293
      %p295 = scmp.eq.s32.totalorder %s39, 0
      %p296 = por %p294, %p295
      %s297 = ssub.s32 %s33, %s40
      %p298 = scmp.eq.s32.totalorder %s297, 0
      %s300 = sadd.s32 %s299, 1
      %s301 = scalar_select %p298, %s299, %s300
      %p304 = pneg %p298
      %p305 = scmp.eq.s32.totalorder %s33, 1
      %p306 = por %p304, %p305
      %p307 = scmp.ne.s32.totalorder %s299, %s302
      %p308 = scmp.eq.s32.totalorder %s33, 0
      %p309 = por %p307, %p308
      %p310 = scmp.ne.s32.totalorder %s299, %s302
      %p311 = scmp.eq.s32.totalorder %s38, 1
      %p312 = por %p310, %p311
      %p313 = scmp.ne.s32.totalorder %s302, %s303
      %p314 = scmp.eq.s32.totalorder %s38, 0
      %p315 = por %p313, %p314
      %p316 = scmp.ne.s32.totalorder %s302, %s303
      %p317 = scmp.eq.s32.totalorder %s39, 1
      %p318 = por %p316, %p317
      %p320 = scmp.ne.s32.totalorder %s303, %s319
      %p321 = scmp.eq.s32.totalorder %s39, 0
      %p322 = por %p320, %p321
      %s323 = ssub.s32 %s33, %s40
      %p324 = scmp.eq.s32.totalorder %s323, 0
      %s326 = sadd.s32 %s325, 1
      %s327 = scalar_select %p324, %s325, %s326
      %p330 = pneg %p324
      %p331 = scmp.eq.s32.totalorder %s33, 1
      %p332 = por %p330, %p331
      %p333 = scmp.ne.s32.totalorder %s325, %s328
      %p334 = scmp.eq.s32.totalorder %s33, 0
      %p335 = por %p333, %p334
      %p336 = scmp.ne.s32.totalorder %s325, %s328
      %p337 = scmp.eq.s32.totalorder %s38, 1
      %p338 = por %p336, %p337
      %p339 = scmp.ne.s32.totalorder %s328, %s329
      %p340 = scmp.eq.s32.totalorder %s38, 0
      %p341 = por %p339, %p340
      %p342 = scmp.ne.s32.totalorder %s328, %s329
      %p343 = scmp.eq.s32.totalorder %s39, 1
      %p344 = por %p342, %p343
      %p346 = scmp.ne.s32.totalorder %s329, %s345
      %p347 = scmp.eq.s32.totalorder %s39, 0
      %p348 = por %p346, %p347
      %s349 = ssub.s32 %s33, %s40
      %p350 = scmp.eq.s32.totalorder %s349, 0
      %s352 = sadd.s32 %s351, 1
      %s353 = scalar_select %p350, %s351, %s352
      %p356 = pneg %p350
      %p357 = scmp.eq.s32.totalorder %s33, 1
      %p358 = por %p356, %p357
      %p359 = scmp.ne.s32.totalorder %s351, %s354
      %p360 = scmp.eq.s32.totalorder %s33, 0
      %p361 = por %p359, %p360
      %p362 = scmp.ne.s32.totalorder %s351, %s354
      %p363 = scmp.eq.s32.totalorder %s38, 1
      %p364 = por %p362, %p363
      %p365 = scmp.ne.s32.totalorder %s354, %s355
      %p366 = scmp.eq.s32.totalorder %s38, 0
      %p367 = por %p365, %p366
      %p368 = scmp.ne.s32.totalorder %s354, %s355
      %p369 = scmp.eq.s32.totalorder %s39, 1
      %p370 = por %p368, %p369
      %p372 = scmp.ne.s32.totalorder %s355, %s371
      %p373 = scmp.eq.s32.totalorder %s39, 0
      %p374 = por %p372, %p373
      %s375 = ssub.s32 %s33, %s40
      %p376 = scmp.eq.s32.totalorder %s375, 0
      %s378 = sadd.s32 %s377, 1
      %s379 = scalar_select %p376, %s377, %s378
      %p382 = pneg %p376
      %p383 = scmp.eq.s32.totalorder %s33, 1
      %p384 = por %p382, %p383
      %p385 = scmp.ne.s32.totalorder %s377, %s380
      %p386 = scmp.eq.s32.totalorder %s33, 0
      %p387 = por %p385, %p386
      %p388 = scmp.ne.s32.totalorder %s377, %s380
      %p389 = scmp.eq.s32.totalorder %s38, 1
      %p390 = por %p388, %p389
      %p391 = scmp.ne.s32.totalorder %s380, %s381
      %p392 = scmp.eq.s32.totalorder %s38, 0
      %p393 = por %p391, %p392
      %p394 = scmp.ne.s32.totalorder %s380, %s381
      %p395 = scmp.eq.s32.totalorder %s39, 1
      %p396 = por %p394, %p395
      %p398 = scmp.ne.s32.totalorder %s381, %s397
      %p399 = scmp.eq.s32.totalorder %s39, 0
      %p400 = por %p398, %p399
      %s401 = ssub.s32 %s33, %s40
      %p402 = scmp.eq.s32.totalorder %s401, 0
      %s404 = sadd.s32 %s403, 1
      %s405 = scalar_select %p402, %s403, %s404
      %p408 = pneg %p402
      %p409 = scmp.eq.s32.totalorder %s33, 1
      %p410 = por %p408, %p409
      %p411 = scmp.ne.s32.totalorder %s403, %s406
      %p412 = scmp.eq.s32.totalorder %s33, 0
      %p413 = por %p411, %p412
      %p414 = scmp.ne.s32.totalorder %s403, %s406
      %p415 = scmp.eq.s32.totalorder %s38, 1
      %p416 = por %p414, %p415
      %p417 = scmp.ne.s32.totalorder %s406, %s407
      %p418 = scmp.eq.s32.totalorder %s38, 0
      %p419 = por %p417, %p418
      %p420 = scmp.ne.s32.totalorder %s406, %s407
      %p421 = scmp.eq.s32.totalorder %s39, 1
      %p422 = por %p420, %p421
      %p424 = scmp.ne.s32.totalorder %s407, %s423
      %p425 = scmp.eq.s32.totalorder %s39, 0
      %p426 = por %p424, %p425
      %s427 = ssub.s32 %s33, %s40
      %p428 = scmp.eq.s32.totalorder %s427, 0
      %s430 = sadd.s32 %s429, 1
      %s431 = scalar_select %p428, %s429, %s430
      %p434 = pneg %p428
      %p435 = scmp.eq.s32.totalorder %s33, 1
      %p436 = por %p434, %p435
      %p437 = scmp.ne.s32.totalorder %s429, %s432
      %p438 = scmp.eq.s32.totalorder %s33, 0
      %p439 = por %p437, %p438
      %p440 = scmp.ne.s32.totalorder %s429, %s432
      %p441 = scmp.eq.s32.totalorder %s38, 1
      %p442 = por %p440, %p441
      %p443 = scmp.ne.s32.totalorder %s432, %s433
      %p444 = scmp.eq.s32.totalorder %s38, 0
      %p445 = por %p443, %p444
      %p446 = scmp.ne.s32.totalorder %s432, %s433
      %p447 = scmp.eq.s32.totalorder %s39, 1
      %p448 = por %p446, %p447
      %p450 = scmp.ne.s32.totalorder %s433, %s449
      %p451 = scmp.eq.s32.totalorder %s39, 0
      %p452 = por %p450, %p451
      %s453 = ssub.s32 %s33, %s40
      %p454 = scmp.eq.s32.totalorder %s453, 0
      %s456 = sadd.s32 %s455, 1
      %s457 = scalar_select %p454, %s455, %s456
      %p460 = pneg %p454
      %p461 = scmp.eq.s32.totalorder %s33, 1
      %p462 = por %p460, %p461
      %p463 = scmp.ne.s32.totalorder %s455, %s458
      %p464 = scmp.eq.s32.totalorder %s33, 0
      %p465 = por %p463, %p464
      %p466 = scmp.ne.s32.totalorder %s455, %s458
      %p467 = scmp.eq.s32.totalorder %s38, 1
      %p468 = por %p466, %p467
      %p469 = scmp.ne.s32.totalorder %s458, %s459
      %p470 = scmp.eq.s32.totalorder %s38, 0
      %p471 = por %p469, %p470
      %p472 = scmp.ne.s32.totalorder %s458, %s459
      %p473 = scmp.eq.s32.totalorder %s39, 1
      %p474 = por %p472, %p473
      %p476 = scmp.ne.s32.totalorder %s459, %s475
      %p477 = scmp.eq.s32.totalorder %s39, 0
      %p478 = por %p476, %p477
      %s479 = ssub.s32 %s33, %s40
      %p480 = scmp.eq.s32.totalorder %s479, 0
      %s482 = sadd.s32 %s481, 1
      %s483 = scalar_select %p480, %s481, %s482
      %p486 = pneg %p480
      %p487 = scmp.eq.s32.totalorder %s33, 1
      %p488 = por %p486, %p487
      %p489 = scmp.ne.s32.totalorder %s481, %s484
      %p490 = scmp.eq.s32.totalorder %s33, 0
      %p491 = por %p489, %p490
      %p492 = scmp.ne.s32.totalorder %s481, %s484
      %p493 = scmp.eq.s32.totalorder %s38, 1
      %p494 = por %p492, %p493
      %p495 = scmp.ne.s32.totalorder %s484, %s485
      %p496 = scmp.eq.s32.totalorder %s38, 0
      %p497 = por %p495, %p496
      %p498 = scmp.ne.s32.totalorder %s484, %s485
      %p499 = scmp.eq.s32.totalorder %s39, 1
      %p500 = por %p498, %p499
      %p502 = scmp.ne.s32.totalorder %s485, %s501
      %p503 = scmp.eq.s32.totalorder %s39, 0
      %p504 = por %p502, %p503
      %s505 = ssub.s32 %s33, %s40
      %p506 = scmp.eq.s32.totalorder %s505, 0
      %s508 = sadd.s32 %s507, 1
      %s509 = scalar_select %p506, %s507, %s508
      %p512 = pneg %p506
      %p513 = scmp.eq.s32.totalorder %s33, 1
      %p514 = por %p512, %p513
      %p515 = scmp.ne.s32.totalorder %s507, %s510
      %p516 = scmp.eq.s32.totalorder %s33, 0
      %p517 = por %p515, %p516
      %p518 = scmp.ne.s32.totalorder %s507, %s510
      %p519 = scmp.eq.s32.totalorder %s38, 1
      %p520 = por %p518, %p519
      %p521 = scmp.ne.s32.totalorder %s510, %s511
      %p522 = scmp.eq.s32.totalorder %s38, 0
      %p523 = por %p521, %p522
      %p524 = scmp.ne.s32.totalorder %s510, %s511
      %p525 = scmp.eq.s32.totalorder %s39, 1
      %p526 = por %p524, %p525
      %p528 = scmp.ne.s32.totalorder %s511, %s527
      %p529 = scmp.eq.s32.totalorder %s39, 0
      %p530 = por %p528, %p529
      %s531 = ssub.s32 %s33, %s40
      %p532 = scmp.eq.s32.totalorder %s531, 0
      %s534 = sadd.s32 %s533, 1
      %s535 = scalar_select %p532, %s533, %s534
      %p538 = pneg %p532
      %p539 = scmp.eq.s32.totalorder %s33, 1
      %p540 = por %p538, %p539
      %p541 = scmp.ne.s32.totalorder %s533, %s536
      %p542 = scmp.eq.s32.totalorder %s33, 0
      %p543 = por %p541, %p542
      %p544 = scmp.ne.s32.totalorder %s533, %s536
      %p545 = scmp.eq.s32.totalorder %s38, 1
      %p546 = por %p544, %p545
      %p547 = scmp.ne.s32.totalorder %s536, %s537
      %p548 = scmp.eq.s32.totalorder %s38, 0
      %p549 = por %p547, %p548
      %p550 = scmp.ne.s32.totalorder %s536, %s537
      %p551 = scmp.eq.s32.totalorder %s39, 1
      %p552 = por %p550, %p551
      %p554 = scmp.ne.s32.totalorder %s537, %s553
      %p555 = scmp.eq.s32.totalorder %s39, 0
      %p556 = por %p554, %p555
      %s557 = ssub.s32 %s33, %s40
      %p558 = scmp.eq.s32.totalorder %s557, 0
      %s560 = sadd.s32 %s559, 1
      %s561 = scalar_select %p558, %s559, %s560
      %p564 = pneg %p558
      %p565 = scmp.eq.s32.totalorder %s33, 1
      %p566 = por %p564, %p565
      %p567 = scmp.ne.s32.totalorder %s559, %s562
      %p568 = scmp.eq.s32.totalorder %s33, 0
      %p569 = por %p567, %p568
      %p570 = scmp.ne.s32.totalorder %s559, %s562
      %p571 = scmp.eq.s32.totalorder %s38, 1
      %p572 = por %p570, %p571
      %p573 = scmp.ne.s32.totalorder %s562, %s563
      %p574 = scmp.eq.s32.totalorder %s38, 0
      %p575 = por %p573, %p574
      %p576 = scmp.ne.s32.totalorder %s562, %s563
      %p577 = scmp.eq.s32.totalorder %s39, 1
      %p578 = por %p576, %p577
      %p580 = scmp.ne.s32.totalorder %s563, %s579
      %p581 = scmp.eq.s32.totalorder %s39, 0
      %p582 = por %p580, %p581
      %s583 = ssub.s32 %s33, %s40
      %p584 = scmp.eq.s32.totalorder %s583, 0
      %s586 = sadd.s32 %s585, 1
      %s587 = scalar_select %p584, %s585, %s586
      %p590 = pneg %p584
      %p591 = scmp.eq.s32.totalorder %s33, 1
      %p592 = por %p590, %p591
      %p593 = scmp.ne.s32.totalorder %s585, %s588
      %p594 = scmp.eq.s32.totalorder %s33, 0
      %p595 = por %p593, %p594
      %p596 = scmp.ne.s32.totalorder %s585, %s588
      %p597 = scmp.eq.s32.totalorder %s38, 1
      %p598 = por %p596, %p597
      %p599 = scmp.ne.s32.totalorder %s588, %s589
      %p600 = scmp.eq.s32.totalorder %s38, 0
      %p601 = por %p599, %p600
      %p602 = scmp.ne.s32.totalorder %s588, %s589
      %p603 = scmp.eq.s32.totalorder %s39, 1
      %p604 = por %p602, %p603
      %p606 = scmp.ne.s32.totalorder %s589, %s605
      %p607 = scmp.eq.s32.totalorder %s39, 0
      %p608 = por %p606, %p607
      %s609 = ssub.s32 %s33, %s40
      %p610 = scmp.eq.s32.totalorder %s609, 0
      %s612 = sadd.s32 %s611, 1
      %s613 = scalar_select %p610, %s611, %s612
      %p616 = pneg %p610
      %p617 = scmp.eq.s32.totalorder %s33, 1
      %p618 = por %p616, %p617
      %p619 = scmp.ne.s32.totalorder %s611, %s614
      %p620 = scmp.eq.s32.totalorder %s33, 0
      %p621 = por %p619, %p620
      %p622 = scmp.ne.s32.totalorder %s611, %s614
      %p623 = scmp.eq.s32.totalorder %s38, 1
      %p624 = por %p622, %p623
      %p625 = scmp.ne.s32.totalorder %s614, %s615
      %p626 = scmp.eq.s32.totalorder %s38, 0
      %p627 = por %p625, %p626
      %p628 = scmp.ne.s32.totalorder %s614, %s615
      %p629 = scmp.eq.s32.totalorder %s39, 1
      %p630 = por %p628, %p629
      %p632 = scmp.ne.s32.totalorder %s615, %s631
      %p633 = scmp.eq.s32.totalorder %s39, 0
      %p634 = por %p632, %p633
      %s635 = ssub.s32 %s33, %s40
      %p636 = scmp.eq.s32.totalorder %s635, 0
      %s638 = sadd.s32 %s637, 1
      %s639 = scalar_select %p636, %s637, %s638
      %p642 = pneg %p636
      %p643 = scmp.eq.s32.totalorder %s33, 1
      %p644 = por %p642, %p643
      %p645 = scmp.ne.s32.totalorder %s637, %s640
      %p646 = scmp.eq.s32.totalorder %s33, 0
      %p647 = por %p645, %p646
      %p648 = scmp.ne.s32.totalorder %s637, %s640
      %p649 = scmp.eq.s32.totalorder %s38, 1
      %p650 = por %p648, %p649
      %p651 = scmp.ne.s32.totalorder %s640, %s641
      %p652 = scmp.eq.s32.totalorder %s38, 0
      %p653 = por %p651, %p652
      %p654 = scmp.ne.s32.totalorder %s640, %s641
      %p655 = scmp.eq.s32.totalorder %s39, 1
      %p656 = por %p654, %p655
      %p658 = scmp.ne.s32.totalorder %s641, %s657
      %p659 = scmp.eq.s32.totalorder %s39, 0
      %p660 = por %p658, %p659
      %s661 = ssub.s32 %s33, %s40
      %p662 = scmp.eq.s32.totalorder %s661, 0
      %s664 = sadd.s32 %s663, 1
      %s665 = scalar_select %p662, %s663, %s664
      %p668 = pneg %p662
      %p669 = scmp.eq.s32.totalorder %s33, 1
      %p670 = por %p668, %p669
      %p671 = scmp.ne.s32.totalorder %s663, %s666
      %p672 = scmp.eq.s32.totalorder %s33, 0
      %p673 = por %p671, %p672
      %p674 = scmp.ne.s32.totalorder %s663, %s666
      %p675 = scmp.eq.s32.totalorder %s38, 1
      %p676 = por %p674, %p675
      %p677 = scmp.ne.s32.totalorder %s666, %s667
      %p678 = scmp.eq.s32.totalorder %s38, 0
      %p679 = por %p677, %p678
      %p680 = scmp.ne.s32.totalorder %s666, %s667
      %p681 = scmp.eq.s32.totalorder %s39, 1
      %p682 = por %p680, %p681
      %p684 = scmp.ne.s32.totalorder %s667, %s683
      %p685 = scmp.eq.s32.totalorder %s39, 0
      %p686 = por %p684, %p685
      %s688 = sadd.s32 %s687, 1
      %p691 = scmp.eq.s32.totalorder %s33, 1
      %p692 = scmp.ne.s32.totalorder %s687, %s689
      %p693 = scmp.eq.s32.totalorder %s33, 0
      %p694 = por %p692, %p693
      %p695 = scmp.ne.s32.totalorder %s687, %s689
      %p696 = scmp.eq.s32.totalorder %s38, 1
      %p697 = por %p695, %p696
      %p698 = scmp.ne.s32.totalorder %s689, %s690
      %p699 = scmp.eq.s32.totalorder %s38, 0
      %p700 = por %p698, %p699
      %p701 = scmp.ne.s32.totalorder %s689, %s690
      %p702 = scmp.eq.s32.totalorder %s39, 1
      %p703 = por %p701, %p702
      %p705 = scmp.ne.s32.totalorder %s690, %s704
      %p706 = scmp.eq.s32.totalorder %s39, 0
      %p707 = por %p705, %p706
      %p708 = scmp.le.s32.totalorder 1, %s33
      %p709 = scmp.lt.s32.totalorder %s33, 3
      %p710 = pnand %p708, %p709
      %p711 = pneg %p710
      // Predicated region
      $region9: #{blip_base_forward.3} parent=5 // pred_check
        _
      $region10: #{blip_base_forward.3} parent=5 // pred_check_branch
        %713 = sbr.rel (%p710) target = $region12
      $region11: #{blip_base_forward.3} parent=5 // pred_region
        %s714 = ssub.s32 %s33, 1
        // Predicated region
        $region13: #{blip_base_forward.3} parent=11 // pred_check
          %p715 = pneg %p54
        $region14: #{blip_base_forward.3} parent=11 // pred_check_branch
          %717 = sbr.rel (%p715) target = $region16
        $region15: #{blip_base_forward.3} parent=11 // pred_region
          _
        $region16: #{blip_base_forward.3} parent=11 // pred_fallthru
          _
        // Predicated region
        $region17: #{blip_base_forward.3} parent=11 // pred_check
          %p718 = pneg %p75
        $region18: #{blip_base_forward.3} parent=11 // pred_check_branch
          %720 = sbr.rel (%p718) target = $region20
        $region19: #{blip_base_forward.3} parent=11 // pred_region
          _
        $region20: #{blip_base_forward.3} parent=11 // pred_fallthru
          _
        // Predicated region
        $region21: #{blip_base_forward.3} parent=11 // pred_check
          %p721 = pneg %p96
        $region22: #{blip_base_forward.3} parent=11 // pred_check_branch
          %723 = sbr.rel (%p721) target = $region24
        $region23: #{blip_base_forward.3} parent=11 // pred_region
          _
        $region24: #{blip_base_forward.3} parent=11 // pred_fallthru
          _
        // Predicated region
        $region25: #{blip_base_forward.3} parent=11 // pred_check
          %p724 = pneg %p117
        $region26: #{blip_base_forward.3} parent=11 // pred_check_branch
          %726 = sbr.rel (%p724) target = $region28
        $region27: #{blip_base_forward.3} parent=11 // pred_region
          _
        $region28: #{blip_base_forward.3} parent=11 // pred_fallthru
          _
        // Predicated region
        $region29: #{blip_base_forward.3} parent=11 // pred_check
          %p727 = pneg %p138
        $region30: #{blip_base_forward.3} parent=11 // pred_check_branch
          %729 = sbr.rel (%p727) target = $region32
        $region31: #{blip_base_forward.3} parent=11 // pred_region
          _
        $region32: #{blip_base_forward.3} parent=11 // pred_fallthru
          _
        // Predicated region
        $region33: #{blip_base_forward.3} parent=11 // pred_check
          %p730 = pneg %p159
        $region34: #{blip_base_forward.3} parent=11 // pred_check_branch
          %732 = sbr.rel (%p730) target = $region36
        $region35: #{blip_base_forward.3} parent=11 // pred_region
          _
        $region36: #{blip_base_forward.3} parent=11 // pred_fallthru
          _
      $region12: #{blip_base_forward.3} parent=5 // pred_fallthru
        _
      %p733 = scmp.lt.s32.totalorder %s33, 2
      // Predicated region
      $region37: #{blip_base_forward.3} parent=5 // pred_check
        %p734 = pneg %p733
      $region38: #{blip_base_forward.3} parent=5 // pred_check_branch
        %736 = sbr.rel (%p734) target = $region40
      $region39: #{blip_base_forward.3} parent=5 // pred_region
        // Predicated region
        $region41: #{blip_base_forward.3} parent=39 // pred_check
          %p737 = pneg %p179
        $region42: #{blip_base_forward.3} parent=39 // pred_check_branch
          %739 = sbr.rel (%p737) target = $region44
        $region43: #{blip_base_forward.3} parent=39 // pred_region
          %p740 = scmp.lt.s32.totalorder %s33, 1
          %s741 = scalar_select %p740, %s33, 1
          %s742 = smul.addr %s741, 4
          %s743 = smul.addr %s742, 4
          %s744 = scalar_lea.vmem %s6, %s743
        $region44: #{blip_base_forward.3} parent=39 // pred_fallthru
          _
        // Predicated region
        $region45: #{blip_base_forward.3} parent=39 // pred_check
          %p745 = pneg %p205
        $region46: #{blip_base_forward.3} parent=39 // pred_check_branch
          %747 = sbr.rel (%p745) target = $region48
        $region47: #{blip_base_forward.3} parent=39 // pred_region
          %p748 = scmp.lt.s32.totalorder %s33, 1
          %s749 = scalar_select %p748, %s33, 1
          %s750 = scalar_lea.vmem %s7, %s749
        $region48: #{blip_base_forward.3} parent=39 // pred_fallthru
          _
        // Predicated region
        $region49: #{blip_base_forward.3} parent=39 // pred_check
          %p751 = pneg %p231
        $region50: #{blip_base_forward.3} parent=39 // pred_check_branch
          %753 = sbr.rel (%p751) target = $region52
        $region51: #{blip_base_forward.3} parent=39 // pred_region
          %p754 = scmp.lt.s32.totalorder %s33, 1
          %s755 = scalar_select %p754, %s33, 1
          %s756 = smul.addr %s755, 4
          %s757 = smul.addr %s756, 4
          %s758 = scalar_lea.vmem %s8, %s757
        $region52: #{blip_base_forward.3} parent=39 // pred_fallthru
          _
        // Predicated region
        $region53: #{blip_base_forward.3} parent=39 // pred_check
          %p759 = pneg %p257
        $region54: #{blip_base_forward.3} parent=39 // pred_check_branch
          %761 = sbr.rel (%p759) target = $region56
        $region55: #{blip_base_forward.3} parent=39 // pred_region
          %p762 = scmp.lt.s32.totalorder %s33, 1
          %s763 = scalar_select %p762, %s33, 1
          %s764 = scalar_lea.vmem %s9, %s763
        $region56: #{blip_base_forward.3} parent=39 // pred_fallthru
          _
        // Predicated region
        $region57: #{blip_base_forward.3} parent=39 // pred_check
          %p765 = pneg %p283
        $region58: #{blip_base_forward.3} parent=39 // pred_check_branch
          %767 = sbr.rel (%p765) target = $region60
        $region59: #{blip_base_forward.3} parent=39 // pred_region
          %p768 = scmp.lt.s32.totalorder %s33, 1
          %s769 = scalar_select %p768, %s33, 1
          %s770 = scalar_lea.vmem %s10, %s769
        $region60: #{blip_base_forward.3} parent=39 // pred_fallthru
          _
        // Predicated region
        $region61: #{blip_base_forward.3} parent=39 // pred_check
          %p771 = pneg %p309
        $region62: #{blip_base_forward.3} parent=39 // pred_check_branch
          %773 = sbr.rel (%p771) target = $region64
        $region63: #{blip_base_forward.3} parent=39 // pred_region
          %p774 = scmp.lt.s32.totalorder %s33, 1
          %s775 = scalar_select %p774, %s33, 1
          %s776 = scalar_lea.vmem %s11, %s775
        $region64: #{blip_base_forward.3} parent=39 // pred_fallthru
          _
        // Predicated region
        $region65: #{blip_base_forward.3} parent=39 // pred_check
          %p777 = pneg %p335
        $region66: #{blip_base_forward.3} parent=39 // pred_check_branch
          %779 = sbr.rel (%p777) target = $region68
        $region67: #{blip_base_forward.3} parent=39 // pred_region
          %p780 = scmp.lt.s32.totalorder %s33, 1
          %s781 = scalar_select %p780, %s33, 1
          %s782 = smul.addr %s781, 4
          %s783 = smul.addr %s782, 4
          %s784 = scalar_lea.vmem %s12, %s783
        $region68: #{blip_base_forward.3} parent=39 // pred_fallthru
          _
        // Predicated region
        $region69: #{blip_base_forward.3} parent=39 // pred_check
          %p785 = pneg %p361
        $region70: #{blip_base_forward.3} parent=39 // pred_check_branch
          %787 = sbr.rel (%p785) target = $region72
        $region71: #{blip_base_forward.3} parent=39 // pred_region
          %p788 = scmp.lt.s32.totalorder %s33, 1
          %s789 = scalar_select %p788, %s33, 1
          %s790 = scalar_lea.vmem %s13, %s789
        $region72: #{blip_base_forward.3} parent=39 // pred_fallthru
          _
        // Predicated region
        $region73: #{blip_base_forward.3} parent=39 // pred_check
          %p791 = pneg %p387
        $region74: #{blip_base_forward.3} parent=39 // pred_check_branch
          %793 = sbr.rel (%p791) target = $region76
        $region75: #{blip_base_forward.3} parent=39 // pred_region
          %p794 = scmp.lt.s32.totalorder %s33, 1
          %s795 = scalar_select %p794, %s33, 1
          %s796 = smul.addr %s795, 4
          %s797 = smul.addr %s796, 4
          %s798 = scalar_lea.vmem %s14, %s797
        $region76: #{blip_base_forward.3} parent=39 // pred_fallthru
          _
        // Predicated region
        $region77: #{blip_base_forward.3} parent=39 // pred_check
          %p799 = pneg %p413
        $region78: #{blip_base_forward.3} parent=39 // pred_check_branch
          %801 = sbr.rel (%p799) target = $region80
        $region79: #{blip_base_forward.3} parent=39 // pred_region
          %p802 = scmp.lt.s32.totalorder %s33, 1
          %s803 = scalar_select %p802, %s33, 1
          %s804 = scalar_lea.vmem %s15, %s803
        $region80: #{blip_base_forward.3} parent=39 // pred_fallthru
          _
        // Predicated region
        $region81: #{blip_base_forward.3} parent=39 // pred_check
          %p805 = pneg %p439
        $region82: #{blip_base_forward.3} parent=39 // pred_check_branch
          %807 = sbr.rel (%p805) target = $region84
        $region83: #{blip_base_forward.3} parent=39 // pred_region
          %p808 = scmp.lt.s32.totalorder %s33, 1
          %s809 = scalar_select %p808, %s33, 1
          %s810 = smul.addr %s809, 4
          %s811 = smul.addr %s810, 4
          %s812 = scalar_lea.vmem %s16, %s811
        $region84: #{blip_base_forward.3} parent=39 // pred_fallthru
          _
        // Predicated region
        $region85: #{blip_base_forward.3} parent=39 // pred_check
          %p813 = pneg %p465
        $region86: #{blip_base_forward.3} parent=39 // pred_check_branch
          %815 = sbr.rel (%p813) target = $region88
        $region87: #{blip_base_forward.3} parent=39 // pred_region
          %p816 = scmp.lt.s32.totalorder %s33, 1
          %s817 = scalar_select %p816, %s33, 1
          %s818 = scalar_lea.vmem %s17, %s817
        $region88: #{blip_base_forward.3} parent=39 // pred_fallthru
          _
        // Predicated region
        $region89: #{blip_base_forward.3} parent=39 // pred_check
          %p819 = pneg %p491
        $region90: #{blip_base_forward.3} parent=39 // pred_check_branch
          %821 = sbr.rel (%p819) target = $region92
        $region91: #{blip_base_forward.3} parent=39 // pred_region
          %p822 = scmp.lt.s32.totalorder %s33, 1
          %s823 = scalar_select %p822, %s33, 1
          %s824 = scalar_lea.vmem %s18, %s823
        $region92: #{blip_base_forward.3} parent=39 // pred_fallthru
          _
        // Predicated region
        $region93: #{blip_base_forward.3} parent=39 // pred_check
          %p825 = pneg %p517
        $region94: #{blip_base_forward.3} parent=39 // pred_check_branch
          %827 = sbr.rel (%p825) target = $region96
        $region95: #{blip_base_forward.3} parent=39 // pred_region
          %p828 = scmp.lt.s32.totalorder %s33, 1
          %s829 = scalar_select %p828, %s33, 1
          %s830 = scalar_lea.vmem %s19, %s829
        $region96: #{blip_base_forward.3} parent=39 // pred_fallthru
          _
        // Predicated region
        $region97: #{blip_base_forward.3} parent=39 // pred_check
          %p831 = pneg %p543
        $region98: #{blip_base_forward.3} parent=39 // pred_check_branch
          %833 = sbr.rel (%p831) target = $region100
        $region99: #{blip_base_forward.3} parent=39 // pred_region
          %p834 = scmp.lt.s32.totalorder %s33, 1
          %s835 = scalar_select %p834, %s33, 1
          %s836 = smul.addr %s835, 4
          %s837 = smul.addr %s836, 4
          %s838 = scalar_lea.vmem %s20, %s837
        $region100: #{blip_base_forward.3} parent=39 // pred_fallthru
          _
        // Predicated region
        $region101: #{blip_base_forward.3} parent=39 // pred_check
          %p839 = pneg %p569
        $region102: #{blip_base_forward.3} parent=39 // pred_check_branch
          %841 = sbr.rel (%p839) target = $region104
        $region103: #{blip_base_forward.3} parent=39 // pred_region
          %p842 = scmp.lt.s32.totalorder %s33, 1
          %s843 = scalar_select %p842, %s33, 1
          %s844 = scalar_lea.vmem %s21, %s843
        $region104: #{blip_base_forward.3} parent=39 // pred_fallthru
          _
        // Predicated region
        $region105: #{blip_base_forward.3} parent=39 // pred_check
          %p845 = pneg %p595
        $region106: #{blip_base_forward.3} parent=39 // pred_check_branch
          %847 = sbr.rel (%p845) target = $region108
        $region107: #{blip_base_forward.3} parent=39 // pred_region
          %p848 = scmp.lt.s32.totalorder %s33, 1
          %s849 = scalar_select %p848, %s33, 1
          %s850 = smul.addr %s849, 16
          %s851 = smul.addr %s850, 4
          %s852 = scalar_lea.vmem %s22, %s851
        $region108: #{blip_base_forward.3} parent=39 // pred_fallthru
          _
        // Predicated region
        $region109: #{blip_base_forward.3} parent=39 // pred_check
          %p853 = pneg %p621
        $region110: #{blip_base_forward.3} parent=39 // pred_check_branch
          %855 = sbr.rel (%p853) target = $region112
        $region111: #{blip_base_forward.3} parent=39 // pred_region
          %p856 = scmp.lt.s32.totalorder %s33, 1
          %s857 = scalar_select %p856, %s33, 1
          %s858 = scalar_lea.vmem %s23, %s857
        $region112: #{blip_base_forward.3} parent=39 // pred_fallthru
          _
        // Predicated region
        $region113: #{blip_base_forward.3} parent=39 // pred_check
          %p859 = pneg %p647
        $region114: #{blip_base_forward.3} parent=39 // pred_check_branch
          %861 = sbr.rel (%p859) target = $region116
        $region115: #{blip_base_forward.3} parent=39 // pred_region
          %p862 = scmp.lt.s32.totalorder %s33, 1
          %s863 = scalar_select %p862, %s33, 1
          %s864 = scalar_lea.vmem %s24, %s863
        $region116: #{blip_base_forward.3} parent=39 // pred_fallthru
          _
        // Predicated region
        $region117: #{blip_base_forward.3} parent=39 // pred_check
          %p865 = pneg %p673
        $region118: #{blip_base_forward.3} parent=39 // pred_check_branch
          %867 = sbr.rel (%p865) target = $region120
        $region119: #{blip_base_forward.3} parent=39 // pred_region
          %p868 = scmp.lt.s32.totalorder %s33, 1
          %s869 = scalar_select %p868, %s33, 1
          %s870 = scalar_lea.vmem %s25, %s869
        $region120: #{blip_base_forward.3} parent=39 // pred_fallthru
          _
      $region40: #{blip_base_forward.3} parent=5 // pred_fallthru
        _
      %p871 = scmp.le.s32.totalorder 1, %s33
      %p872 = scmp.lt.s32.totalorder %s33, 3
      %p873 = pnand %p871, %p872
      %p874 = pneg %p873
      // Predicated region
      $region121: #{blip_base_forward.3} parent=5 // pred_check
        _
      $region122: #{blip_base_forward.3} parent=5 // pred_check_branch
        %876 = sbr.rel (%p873) target = $region124
      $region123: #{blip_base_forward.3} parent=5 // pred_region
        %s877 = ssub.s32 %s33, 1
        %p878 = pneg %p54
        %p879 = pneg %p51
        %p880 = pneg %p75
        %p881 = pneg %p72
        %p882 = pneg %p96
        %p883 = pneg %p93
        %p884 = pneg %p117
        %p885 = pneg %p114
        %p886 = pneg %p138
        %p887 = pneg %p135
        %p888 = pneg %p159
        %p889 = pneg %p156
        %p890 = scmp.lt.s32.totalorder %s38, 1
        %s891 = scalar_select %p890, %s38, 1
        %s892 = smul.addr %s891, 4
        %s893 = smul.addr %s892, 4
        %s894 = scalar_lea.vmem %s6, %s893
        %p895 = pneg %p185
        %p896 = pneg %p182
        %p897 = scmp.lt.s32.totalorder %s38, 1
        %s898 = scalar_select %p897, %s38, 1
        %s899 = scalar_lea.vmem %s7, %s898
        %p900 = pneg %p211
        %p901 = pneg %p208
        %p902 = scmp.lt.s32.totalorder %s38, 1
        %s903 = scalar_select %p902, %s38, 1
        %s904 = smul.addr %s903, 4
        %s905 = smul.addr %s904, 4
        %s906 = scalar_lea.vmem %s8, %s905
        %p907 = pneg %p237
        %p908 = pneg %p234
        %p909 = scmp.lt.s32.totalorder %s38, 1
        %s910 = scalar_select %p909, %s38, 1
        %s911 = scalar_lea.vmem %s9, %s910
        %p912 = pneg %p263
        %p913 = pneg %p260
        %p914 = scmp.lt.s32.totalorder %s38, 1
        %s915 = scalar_select %p914, %s38, 1
        %s916 = scalar_lea.vmem %s10, %s915
        %p917 = pneg %p289
        %p918 = pneg %p286
        %p919 = scmp.lt.s32.totalorder %s38, 1
        %s920 = scalar_select %p919, %s38, 1
        %s921 = scalar_lea.vmem %s11, %s920
        %p922 = pneg %p315
        %p923 = pneg %p312
        %p924 = scmp.lt.s32.totalorder %s38, 1
        %s925 = scalar_select %p924, %s38, 1
        %s926 = smul.addr %s925, 4
        %s927 = smul.addr %s926, 4
        %s928 = scalar_lea.vmem %s12, %s927
        %p929 = pneg %p341
        %p930 = pneg %p338
        %p931 = scmp.lt.s32.totalorder %s38, 1
        %s932 = scalar_select %p931, %s38, 1
        %s933 = scalar_lea.vmem %s13, %s932
        %p934 = pneg %p367
        %p935 = pneg %p364
        %p936 = scmp.lt.s32.totalorder %s38, 1
        %s937 = scalar_select %p936, %s38, 1
        %s938 = smul.addr %s937, 4
        %s939 = smul.addr %s938, 4
        %s940 = scalar_lea.vmem %s14, %s939
        %p941 = pneg %p393
        %p942 = pneg %p390
        %p943 = scmp.lt.s32.totalorder %s38, 1
        %s944 = scalar_select %p943, %s38, 1
        %s945 = scalar_lea.vmem %s15, %s944
        %p946 = pneg %p419
        %p947 = pneg %p416
        %p948 = scmp.lt.s32.totalorder %s38, 1
        %s949 = scalar_select %p948, %s38, 1
        %s950 = smul.addr %s949, 4
        %s951 = smul.addr %s950, 4
        %s952 = scalar_lea.vmem %s16, %s951
        %p953 = pneg %p445
        %p954 = pneg %p442
        %p955 = scmp.lt.s32.totalorder %s38, 1
        %s956 = scalar_select %p955, %s38, 1
        %s957 = scalar_lea.vmem %s17, %s956
        %p958 = pneg %p471
        %p959 = pneg %p468
        %p960 = scmp.lt.s32.totalorder %s38, 1
        %s961 = scalar_select %p960, %s38, 1
        %s962 = scalar_lea.vmem %s18, %s961
        %p963 = pneg %p497
        %p964 = pneg %p494
        %p965 = scmp.lt.s32.totalorder %s38, 1
        %s966 = scalar_select %p965, %s38, 1
        %s967 = scalar_lea.vmem %s19, %s966
        %p968 = pneg %p523
        %p969 = pneg %p520
        %p970 = scmp.lt.s32.totalorder %s38, 1
        %s971 = scalar_select %p970, %s38, 1
        %s972 = smul.addr %s971, 4
        %s973 = smul.addr %s972, 4
        %s974 = scalar_lea.vmem %s20, %s973
        %p975 = pneg %p549
        %p976 = pneg %p546
        %p977 = scmp.lt.s32.totalorder %s38, 1
        %s978 = scalar_select %p977, %s38, 1
        %s979 = scalar_lea.vmem %s21, %s978
        %p980 = pneg %p575
        %p981 = pneg %p572
        %p982 = scmp.lt.s32.totalorder %s38, 1
        %s983 = scalar_select %p982, %s38, 1
        %s984 = smul.addr %s983, 16
        %s985 = smul.addr %s984, 4
        %s986 = scalar_lea.vmem %s22, %s985
        %p987 = pneg %p601
        %p988 = pneg %p598
        %p989 = scmp.lt.s32.totalorder %s38, 1
        %s990 = scalar_select %p989, %s38, 1
        %s991 = scalar_lea.vmem %s23, %s990
        %p992 = pneg %p627
        %p993 = pneg %p624
        %p994 = scmp.lt.s32.totalorder %s38, 1
        %s995 = scalar_select %p994, %s38, 1
        %s996 = scalar_lea.vmem %s24, %s995
        %p997 = pneg %p653
        %p998 = pneg %p650
        %p999 = scmp.lt.s32.totalorder %s38, 1
        %s1000 = scalar_select %p999, %s38, 1
        %s1001 = scalar_lea.vmem %s25, %s1000
        %p1002 = pneg %p679
        %p1003 = pneg %p676
        %p1004 = pneg %p700
        %p1005 = pneg %p697
        %p1006 = scmp.lt.s32.totalorder %s38, 1
        %s1007 = scalar_select %p1006, %s38, 1
        %s1008 = smul.addr %s1007, 4
        %s1009 = smul.addr %s1008, 4
        %s1010 = scalar_lea.vmem %s6, %s1009
        %p1011 = scmp.lt.s32.totalorder %s38, 1
        %s1012 = scalar_select %p1011, %s38, 1
        %s1013 = scalar_lea.vmem %s7, %s1012
        %p1014 = scmp.lt.s32.totalorder %s38, 1
        %s1015 = scalar_select %p1014, %s38, 1
        %s1016 = smul.addr %s1015, 4
        %s1017 = smul.addr %s1016, 4
        %s1018 = scalar_lea.vmem %s8, %s1017
        %p1019 = scmp.lt.s32.totalorder %s38, 1
        %s1020 = scalar_select %p1019, %s38, 1
        %s1021 = scalar_lea.vmem %s9, %s1020
        %p1022 = scmp.lt.s32.totalorder %s38, 1
        %s1023 = scalar_select %p1022, %s38, 1
        %s1024 = scalar_lea.vmem %s10, %s1023
        %p1025 = scmp.lt.s32.totalorder %s38, 1
        %s1026 = scalar_select %p1025, %s38, 1
        %s1027 = scalar_lea.vmem %s11, %s1026
        %p1028 = scmp.lt.s32.totalorder %s38, 1
        %s1029 = scalar_select %p1028, %s38, 1
        %s1030 = smul.addr %s1029, 4
        %s1031 = smul.addr %s1030, 4
        %s1032 = scalar_lea.vmem %s12, %s1031
        %p1033 = scmp.lt.s32.totalorder %s38, 1
        %s1034 = scalar_select %p1033, %s38, 1
        %s1035 = scalar_lea.vmem %s13, %s1034
        %p1036 = scmp.lt.s32.totalorder %s38, 1
        %s1037 = scalar_select %p1036, %s38, 1
        %s1038 = smul.addr %s1037, 4
        %s1039 = smul.addr %s1038, 4
        %s1040 = scalar_lea.vmem %s14, %s1039
        %p1041 = scmp.lt.s32.totalorder %s38, 1
        %s1042 = scalar_select %p1041, %s38, 1
        %s1043 = scalar_lea.vmem %s15, %s1042
        %p1044 = scmp.lt.s32.totalorder %s38, 1
        %s1045 = scalar_select %p1044, %s38, 1
        %s1046 = smul.addr %s1045, 4
        %s1047 = smul.addr %s1046, 4
        %s1048 = scalar_lea.vmem %s16, %s1047
        %p1049 = scmp.lt.s32.totalorder %s38, 1
        %s1050 = scalar_select %p1049, %s38, 1
        %s1051 = scalar_lea.vmem %s17, %s1050
        %p1052 = scmp.lt.s32.totalorder %s38, 1
        %s1053 = scalar_select %p1052, %s38, 1
        %s1054 = scalar_lea.vmem %s18, %s1053
        %p1055 = scmp.lt.s32.totalorder %s38, 1
        %s1056 = scalar_select %p1055, %s38, 1
        %s1057 = scalar_lea.vmem %s19, %s1056
        %p1058 = scmp.lt.s32.totalorder %s38, 1
        %s1059 = scalar_select %p1058, %s38, 1
        %s1060 = smul.addr %s1059, 4
        %s1061 = smul.addr %s1060, 4
        %s1062 = scalar_lea.vmem %s20, %s1061
        %p1063 = scmp.lt.s32.totalorder %s38, 1
        %s1064 = scalar_select %p1063, %s38, 1
        %s1065 = scalar_lea.vmem %s21, %s1064
        %p1066 = scmp.lt.s32.totalorder %s38, 1
        %s1067 = scalar_select %p1066, %s38, 1
        %s1068 = smul.addr %s1067, 16
        %s1069 = smul.addr %s1068, 4
        %s1070 = scalar_lea.vmem %s22, %s1069
        %p1071 = scmp.lt.s32.totalorder %s38, 1
        %s1072 = scalar_select %p1071, %s38, 1
        %s1073 = scalar_lea.vmem %s23, %s1072
        %p1074 = scmp.lt.s32.totalorder %s38, 1
        %s1075 = scalar_select %p1074, %s38, 1
        %s1076 = scalar_lea.vmem %s24, %s1075
        %p1077 = scmp.lt.s32.totalorder %s38, 1
        %s1078 = scalar_select %p1077, %s38, 1
        %s1079 = scalar_lea.vmem %s25, %s1078
        %p1081 = scmp.eq.s32.totalorder %s38, 0
        // Predicated region
        $region125: #{blip_base_forward.3} parent=123 // pred_check
          %p1082 = pneg %p1081
        $region126: #{blip_base_forward.3} parent=123 // pred_check_branch
          %1084 = sbr.rel (%p1082) target = $region128
        $region127: #{blip_base_forward.3} parent=123 // pred_region
          %v1085 = vld [vmem:[%s0] sm:$0xff]
          %v1086 = vld [vmem:[%s0 + $0x8] sm:$0xff]
          %v1087 = vld [vmem:[%s4] sm:$0x1]
          %v1088 = vld [vmem:[%s5] sm:$0x1]
          %vm1089 = vcmask 261120
          %v1090 = vsel %vm1089, %v1085, 0.0
          %1091 = vadd.xlane.f32.xlu0 %v1090
          %v1092 = vpop.xlane.xlu0 %1091
          %v1093 = vsel %vm1089, %v1086, 0.0
          %1094 = vadd.xlane.f32.xlu0 %v1093
          %v1095 = vpop.xlane.xlu0 %1094
          %v1096 = vrcp.pop 32.0
          %v1097 = vmul.f32 %v1092, %v1096
          %v1098 = vmul.f32 %v1095, %v1096
          %v1099 = vsub.f32 %v1085, %v1097
          %v1100 = vsub.f32 %v1086, %v1098
          %v1101 = vmul.f32 %v1099, %v1099
          %v1102 = vmul.f32 %v1100, %v1100
          %v1103 = vsel %vm1089, %v1101, 0.0
          %1104 = vadd.xlane.f32.xlu0 %v1103
          %v1105 = vpop.xlane.xlu0 %1104
          %v1106 = vsel %vm1089, %v1102, 0.0
          %1107 = vadd.xlane.f32.xlu0 %v1106
          %v1108 = vpop.xlane.xlu0 %1107
          %v1109 = vmul.f32 %v1105, %v1096
          %v1110 = vmul.f32 %v1108, %v1096
          %v1111 = vadd.f32 %v1109, 1e-12
          %v1112 = vadd.f32 %v1110, 1e-12
          %v1113 = vrsqrt.pop %v1111
          %v1114 = vrsqrt.pop %v1112
          %v1115 = vmul.f32 %v1099, %v1113
          %v1116 = vmul.f32 %v1100, %v1114
          %v1118 = vlaneseq
          %v1119 = vshrl.u32 %v1118, 7
          %v1120 = vsub.s32 0, %v1119
          %v1121 = vrot.slane %v1087, %v1120
          %v1123 = vmul.f32 %v1115, %v1121
          %v1124 = vmul.f32 %v1116, %v1121
          %v1126 = vlaneseq
          %v1127 = vshrl.u32 %v1126, 7
          %v1128 = vsub.s32 0, %v1127
          %v1129 = vrot.slane %v1088, %v1128
          %v1131 = vadd.f32 %v1123, %v1129
          %v1132 = vadd.f32 %v1124, %v1129
          %1133 = vst.msk [vmem:[#allocation2] sm:$0xff] %vm1089, %v1131
          %1134 = vst.msk [vmem:[#allocation2 + $0x8] sm:$0xff] %vm1089, %v1132
        $region128: #{blip_base_forward.3} parent=123 // pred_fallthru
          _
        %v1135 = vld [vmem:[#allocation2] sm:$0xff]
        %v1136 = vld [vmem:[#allocation2 + $0x8] sm:$0xff]
        %v1137 = vld [vmem:[%s1010] sm:$0xf]
        %v1138 = vld [vmem:[%s1010 + $0x4] sm:$0xf]
        %v1139 = vld [vmem:[%s1010 + $0x8] sm:$0xf]
        %v1140 = vld [vmem:[%s1010 + $0xc] sm:$0xf]
        %v1141 = vpack.c.bf16 %v1136, %v1135
        %v1142 = vld [vmem:[%s1013] sm:$0x1]
        %v1144 = vlaneseq
        %v1145 = vshrl.u32 %v1144, 7
        %v1146 = vsub.s32 0, %v1145
        %v1147 = vrot.slane %v1142, %v1146
        %v1153 = vunpack.c.l.b16 %v1137
        %v1154 = vunpack.c.l.b16 %v1138
        %v1155 = vunpack.c.l.b16 %v1139
        %v1156 = vunpack.c.l.b16 %v1140
        %v1157 = vpack.c.b16 %v1154, %v1153
        %v1158 = vpack.c.b16 %v1156, %v1155
        %vm1161 = vcmask 261120
        %v1163 = vsel %vm1161, %v1141, 0
        %1165 = vmatprep.subr.bf16.mxu0 0
        %1166 = vmatpush1.bf16.msra.mxu0 %v1157
        %1167 = vmatprep.subr.bf16.mxu0 0
        %1168 = vmatpush1.bf16.msra.mxu0 %v1158
        %1169 = vmatprep.subr.bf16.mxu0 0
        %1170 = vmatpush1.bf16.msra.mxu0 0
        %1171 = vmatprep.subr.bf16.mxu0 0
        %1172 = vmatpush1.bf16.msra.mxu0 0
        %1173 = vmatprep.subr.bf16.mxu0 0
        %1174 = vmatpush1.bf16.msra.mxu0 0
        %1175 = vmatprep.subr.bf16.mxu0 0
        %1176 = vmatpush1.bf16.msra.mxu0 0
        %1177 = vmatprep.subr.bf16.mxu0 0
        %1178 = vmatpush1.bf16.msra.mxu0 0
        %1179 = vmatprep.subr.bf16.mxu0 0
        %1180 = vmatpush1.bf16.msra.mxu0 0
        %1181 = vmatprep.subr.bf16.mxu0 0
        %1182 = vmatpush1.bf16.msra.mxu0 0
        %1183 = vmatprep.subr.bf16.mxu0 0
        %1184 = vmatpush1.bf16.msra.mxu0 0
        %1185 = vmatprep.subr.bf16.mxu0 0
        %1186 = vmatpush1.bf16.msra.mxu0 0
        %1187 = vmatprep.subr.bf16.mxu0 0
        %1188 = vmatpush1.bf16.msra.mxu0 0
        %1189 = vmatprep.subr.bf16.mxu0 0
        %1190 = vmatpush1.bf16.msra.mxu0 0
        %1191 = vmatprep.subr.bf16.mxu0 0
        %1192 = vmatpush1.bf16.msra.mxu0 0
        %1193 = vmatprep.subr.bf16.mxu0 0
        %1194 = vmatpush1.bf16.msra.mxu0 0
        %1195 = vmatprep.subr.bf16.mxu0 0
        %1196 = vmatpush1.bf16.msra.mxu0 0
        %1197 = vmatprep.mubr.bf16.mxu0 0
        %1198 = vmatmul.mubr.bf16.gmra.mrb[0].mxu0 %v1163
        %v1199 = vpop.f32.mrb[0].mxu0
        %v1200 = vadd.f32 %v1147, %v1199
        %v1201 = vpop.f32.mrb[0].mxu0
        %v1202 = vpop.f32.mrb[0].mxu0
        %v1203 = vadd.f32 %v1147, %v1202
        %v1204 = vpop.f32.mrb[0].mxu0
        %1205 = vdwg.mxu0
        %v1206 = vld [vmem:[%s1] sm:$0x3]
        %v1207 = vmul.f32 %v1200, 0.35355338
        %v1208 = vmul.f32 %v1203, 0.35355338
        %v1209 = vpack.c.bf16 %v1208, %v1207
        %v1210 = vpack.c.bf16 %v1203, %v1200
        %v1211 = vlaneseq
        %v1212 = vshrl.u32 %v1211, 7
        %v1213 = vsub.s32 0, %v1212
        %v1214 = vrot.slane %v1206, %v1213
        %1216 = vrot.lane.b32.xlu0 %v1210, 96
        %v1217 = vpop.permute.xlu0 %1216
        %vm1218 = vcmask 64512
        %v1220 = vsel %vm1218, %v1209, 0
        %v1223 = vsel %vm1218, %v1217, 0
        %1225 = vmatprep.subr.bf16.mxu0 0
        %1226 = vmatpush1.bf16.xpose.msra.mxu0 %v1223
        %1227 = vmatprep.subr.bf16.mxu0 0
        %1228 = vmatpush1.bf16.xpose.msra.mxu0 0
        %1229 = vmatprep.subr.bf16.mxu0 0
        %1230 = vmatpush1.bf16.xpose.msra.mxu0 0
        %1231 = vmatprep.subr.bf16.mxu0 0
        %1232 = vmatpush1.bf16.xpose.msra.mxu0 0
        %1233 = vmatprep.subr.bf16.mxu0 0
        %1234 = vmatpush1.bf16.xpose.msra.mxu0 0
        %1235 = vmatprep.subr.bf16.mxu0 0
        %1236 = vmatpush1.bf16.xpose.msra.mxu0 0
        %1237 = vmatprep.subr.bf16.mxu0 0
        %1238 = vmatpush1.bf16.xpose.msra.mxu0 0
        %1239 = vmatprep.subr.bf16.mxu0 0
        %1240 = vmatpush1.bf16.xpose.msra.mxu0 0
        %1241 = vmatprep.subr.bf16.mxu0 0
        %1242 = vmatpush1.bf16.xpose.msra.mxu0 0
        %1243 = vmatprep.subr.bf16.mxu0 0
        %1244 = vmatpush1.bf16.xpose.msra.mxu0 0
        %1245 = vmatprep.subr.bf16.mxu0 0
        %1246 = vmatpush1.bf16.xpose.msra.mxu0 0
        %1247 = vmatprep.subr.bf16.mxu0 0
        %1248 = vmatpush1.bf16.xpose.msra.mxu0 0
        %1249 = vmatprep.subr.bf16.mxu0 0
        %1250 = vmatpush1.bf16.xpose.msra.mxu0 0
        %1251 = vmatprep.subr.bf16.mxu0 0
        %1252 = vmatpush1.bf16.xpose.msra.mxu0 0
        %1253 = vmatprep.subr.bf16.mxu0 0
        %1254 = vmatpush1.bf16.xpose.msra.mxu0 0
        %1255 = vmatprep.subr.bf16.mxu0 0
        %1256 = vmatpush1.bf16.xpose.msra.mxu0 0
        %1257 = vmatprep.mubr.bf16.mxu0 0
        %1258 = vmatmul.mubr.bf16.gmra.mrb[0].mxu0 %v1220
        %v1259 = vpop.f32.mrb[0].mxu0
        %v1260 = vadd.f32 %v1214, %v1259
        %v1261 = vpop.f32.mrb[0].mxu0
        %v1262 = vpop.f32.mrb[0].mxu0
        %v1263 = vpop.f32.mrb[0].mxu0
        %1264 = vdwg.mxu0
        %v1265 = vsel %vm1218, %v1260, -inf
        %1266 = vmax.xlane.f32.xlu0 %v1265
        %v1267 = vpop.xlane.xlu0 %1266
        %v1268 = vsub.f32 %v1260, %v1267
        %v1269 = vmul.f32 %v1268, 1.442695
        %v1270 = vpow.pop %v1269
        %v1271 = vsel %vm1218, %v1270, 0.0
        %1272 = vadd.xlane.f32.xlu0 %v1271
        %v1273 = vpop.xlane.xlu0 %1272
        %v1274 = vrcp.pop %v1273
        %v1275 = vmul.f32 %v1270, %v1274
        %v1276 = vpack.c.bf16 %v1275, %v1275
        %1277 = vrot.lane.b32.xlu0 %v1210, 64
        %v1278 = vpop.permute.xlu0 %1277
        %v1280 = vsel %vm1218, %v1276, 0
        %vm1282 = vcmask 1043456
        %v1284 = vsel %vm1282, %v1278, 0
        %1286 = vmatprep.subr.bf16.mxu0 0
        %1287 = vmatpush1.bf16.msra.mxu0 %v1284
        %1288 = vmatprep.subr.bf16.mxu0 0
        %1289 = vmatpush1.bf16.msra.mxu0 0
        %1290 = vmatprep.subr.bf16.mxu0 0
        %1291 = vmatpush1.bf16.msra.mxu0 0
        %1292 = vmatprep.subr.bf16.mxu0 0
        %1293 = vmatpush1.bf16.msra.mxu0 0
        %1294 = vmatprep.subr.bf16.mxu0 0
        %1295 = vmatpush1.bf16.msra.mxu0 0
        %1296 = vmatprep.subr.bf16.mxu0 0
        %1297 = vmatpush1.bf16.msra.mxu0 0
        %1298 = vmatprep.subr.bf16.mxu0 0
        %1299 = vmatpush1.bf16.msra.mxu0 0
        %1300 = vmatprep.subr.bf16.mxu0 0
        %1301 = vmatpush1.bf16.msra.mxu0 0
        %1302 = vmatprep.subr.bf16.mxu0 0
        %1303 = vmatpush1.bf16.msra.mxu0 0
        %1304 = vmatprep.subr.bf16.mxu0 0
        %1305 = vmatpush1.bf16.msra.mxu0 0
        %1306 = vmatprep.subr.bf16.mxu0 0
        %1307 = vmatpush1.bf16.msra.mxu0 0
        %1308 = vmatprep.subr.bf16.mxu0 0
        %1309 = vmatpush1.bf16.msra.mxu0 0
        %1310 = vmatprep.subr.bf16.mxu0 0
        %1311 = vmatpush1.bf16.msra.mxu0 0
        %1312 = vmatprep.subr.bf16.mxu0 0
        %1313 = vmatpush1.bf16.msra.mxu0 0
        %1314 = vmatprep.subr.bf16.mxu0 0
        %1315 = vmatpush1.bf16.msra.mxu0 0
        %1316 = vmatprep.subr.bf16.mxu0 0
        %1317 = vmatpush1.bf16.msra.mxu0 0
        %1318 = vmatprep.mubr.bf16.mxu0 0
        %1319 = vmatmul.mubr.bf16.gmra.mrb[0].mxu0 %v1280
        %v1320 = vpop.f32.mrb[0].mxu0
        %v1321 = vadd.f32 0.0, %v1320
        %v1322 = vpop.f32.mrb[0].mxu0
        %v1323 = vpop.f32.mrb[0].mxu0
        %v1324 = vpop.f32.mrb[0].mxu0
        %1325 = vdwg.mxu0
        %1327 = vrot.lane.b32.xlu0 %v1209, 120
        %v1328 = vpop.permute.xlu0 %1327
        %1329 = vrot.lane.b32.xlu0 %v1210, 88
        %v1330 = vpop.permute.xlu0 %1329
        %v1332 = vsel %vm1218, %v1328, 0
        %v1335 = vsel %vm1218, %v1330, 0
        %1337 = vmatprep.subr.bf16.mxu0 0
        %1338 = vmatpush1.bf16.xpose.msra.mxu0 %v1335
        %1339 = vmatprep.subr.bf16.mxu0 0
        %1340 = vmatpush1.bf16.xpose.msra.mxu0 0
        %1341 = vmatprep.subr.bf16.mxu0 0
        %1342 = vmatpush1.bf16.xpose.msra.mxu0 0
        %1343 = vmatprep.subr.bf16.mxu0 0
        %1344 = vmatpush1.bf16.xpose.msra.mxu0 0
        %1345 = vmatprep.subr.bf16.mxu0 0
        %1346 = vmatpush1.bf16.xpose.msra.mxu0 0
        %1347 = vmatprep.subr.bf16.mxu0 0
        %1348 = vmatpush1.bf16.xpose.msra.mxu0 0
        %1349 = vmatprep.subr.bf16.mxu0 0
        %1350 = vmatpush1.bf16.xpose.msra.mxu0 0
        %1351 = vmatprep.subr.bf16.mxu0 0
        %1352 = vmatpush1.bf16.xpose.msra.mxu0 0
        %1353 = vmatprep.subr.bf16.mxu0 0
        %1354 = vmatpush1.bf16.xpose.msra.mxu0 0
        %1355 = vmatprep.subr.bf16.mxu0 0
        %1356 = vmatpush1.bf16.xpose.msra.mxu0 0
        %1357 = vmatprep.subr.bf16.mxu0 0
        %1358 = vmatpush1.bf16.xpose.msra.mxu0 0
        %1359 = vmatprep.subr.bf16.mxu0 0
        %1360 = vmatpush1.bf16.xpose.msra.mxu0 0
        %1361 = vmatprep.subr.bf16.mxu0 0
        %1362 = vmatpush1.bf16.xpose.msra.mxu0 0
        %1363 = vmatprep.subr.bf16.mxu0 0
        %1364 = vmatpush1.bf16.xpose.msra.mxu0 0
        %1365 = vmatprep.subr.bf16.mxu0 0
        %1366 = vmatpush1.bf16.xpose.msra.mxu0 0
        %1367 = vmatprep.subr.bf16.mxu0 0
        %1368 = vmatpush1.bf16.xpose.msra.mxu0 0
        %1369 = vmatprep.mubr.bf16.mxu0 0
        %1370 = vmatmul.mubr.bf16.gmra.mrb[0].mxu0 %v1332
        %v1371 = vpop.f32.mrb[0].mxu0
        %v1372 = vadd.f32 %v1214, %v1371
        %v1373 = vpop.f32.mrb[0].mxu0
        %v1374 = vpop.f32.mrb[0].mxu0
        %v1375 = vpop.f32.mrb[0].mxu0
        %1376 = vdwg.mxu0
        %v1377 = vsel %vm1218, %v1372, -inf
        %1378 = vmax.xlane.f32.xlu0 %v1377
        %v1379 = vpop.xlane.xlu0 %1378
        %v1380 = vsub.f32 %v1372, %v1379
        %v1381 = vmul.f32 %v1380, 1.442695
        %v1382 = vpow.pop %v1381
        %v1383 = vsel %vm1218, %v1382, 0.0
        %1384 = vadd.xlane.f32.xlu0 %v1383
        %v1385 = vpop.xlane.xlu0 %1384
        %v1386 = vrcp.pop %v1385
        %v1387 = vmul.f32 %v1382, %v1386
        %v1388 = vpack.c.bf16 %v1387, %v1387
        %1389 = vrot.lane.b32.xlu0 %v1210, 56
        %v1390 = vpop.permute.xlu0 %1389
        %v1392 = vsel %vm1218, %v1388, 0
        %v1395 = vsel %vm1282, %v1390, 0
        %1397 = vmatprep.subr.bf16.mxu0 0
        %1398 = vmatpush1.bf16.msra.mxu0 %v1395
        %1399 = vmatprep.subr.bf16.mxu0 0
        %1400 = vmatpush1.bf16.msra.mxu0 0
        %1401 = vmatprep.subr.bf16.mxu0 0
        %1402 = vmatpush1.bf16.msra.mxu0 0
        %1403 = vmatprep.subr.bf16.mxu0 0
        %1404 = vmatpush1.bf16.msra.mxu0 0
        %1405 = vmatprep.subr.bf16.mxu0 0
        %1406 = vmatpush1.bf16.msra.mxu0 0
        %1407 = vmatprep.subr.bf16.mxu0 0
        %1408 = vmatpush1.bf16.msra.mxu0 0
        %1409 = vmatprep.subr.bf16.mxu0 0
        %1410 = vmatpush1.bf16.msra.mxu0 0
        %1411 = vmatprep.subr.bf16.mxu0 0
        %1412 = vmatpush1.bf16.msra.mxu0 0
        %1413 = vmatprep.subr.bf16.mxu0 0
        %1414 = vmatpush1.bf16.msra.mxu0 0
        %1415 = vmatprep.subr.bf16.mxu0 0
        %1416 = vmatpush1.bf16.msra.mxu0 0
        %1417 = vmatprep.subr.bf16.mxu0 0
        %1418 = vmatpush1.bf16.msra.mxu0 0
        %1419 = vmatprep.subr.bf16.mxu0 0
        %1420 = vmatpush1.bf16.msra.mxu0 0
        %1421 = vmatprep.subr.bf16.mxu0 0
        %1422 = vmatpush1.bf16.msra.mxu0 0
        %1423 = vmatprep.subr.bf16.mxu0 0
        %1424 = vmatpush1.bf16.msra.mxu0 0
        %1425 = vmatprep.subr.bf16.mxu0 0
        %1426 = vmatpush1.bf16.msra.mxu0 0
        %1427 = vmatprep.subr.bf16.mxu0 0
        %1428 = vmatpush1.bf16.msra.mxu0 0
        %1429 = vmatprep.mubr.bf16.mxu0 0
        %1430 = vmatmul.mubr.bf16.gmra.mrb[0].mxu0 %v1392
        %v1431 = vpop.f32.mrb[0].mxu0
        %v1432 = vadd.f32 0.0, %v1431
        %v1433 = vpop.f32.mrb[0].mxu0
        %v1434 = vpop.f32.mrb[0].mxu0
        %v1435 = vpop.f32.mrb[0].mxu0
        %1436 = vdwg.mxu0
        %1437 = vrot.lane.b32.xlu0 %v1209, 112
        %v1438 = vpop.permute.xlu0 %1437
        %1439 = vrot.lane.b32.xlu0 %v1210, 80
        %v1440 = vpop.permute.xlu0 %1439
        %v1442 = vsel %vm1218, %v1438, 0
        %v1445 = vsel %vm1218, %v1440, 0
        %1447 = vmatprep.subr.bf16.mxu0 0
        %1448 = vmatpush1.bf16.xpose.msra.mxu0 %v1445
        %1449 = vmatprep.subr.bf16.mxu0 0
        %1450 = vmatpush1.bf16.xpose.msra.mxu0 0
        %1451 = vmatprep.subr.bf16.mxu0 0
        %1452 = vmatpush1.bf16.xpose.msra.mxu0 0
        %1453 = vmatprep.subr.bf16.mxu0 0
        %1454 = vmatpush1.bf16.xpose.msra.mxu0 0
        %1455 = vmatprep.subr.bf16.mxu0 0
        %1456 = vmatpush1.bf16.xpose.msra.mxu0 0
        %1457 = vmatprep.subr.bf16.mxu0 0
        %1458 = vmatpush1.bf16.xpose.msra.mxu0 0
        %1459 = vmatprep.subr.bf16.mxu0 0
        %1460 = vmatpush1.bf16.xpose.msra.mxu0 0
        %1461 = vmatprep.subr.bf16.mxu0 0
        %1462 = vmatpush1.bf16.xpose.msra.mxu0 0
        %1463 = vmatprep.subr.bf16.mxu0 0
        %1464 = vmatpush1.bf16.xpose.msra.mxu0 0
        %1465 = vmatprep.subr.bf16.mxu0 0
        %1466 = vmatpush1.bf16.xpose.msra.mxu0 0
        %1467 = vmatprep.subr.bf16.mxu0 0
        %1468 = vmatpush1.bf16.xpose.msra.mxu0 0
        %1469 = vmatprep.subr.bf16.mxu0 0
        %1470 = vmatpush1.bf16.xpose.msra.mxu0 0
        %1471 = vmatprep.subr.bf16.mxu0 0
        %1472 = vmatpush1.bf16.xpose.msra.mxu0 0
        %1473 = vmatprep.subr.bf16.mxu0 0
        %1474 = vmatpush1.bf16.xpose.msra.mxu0 0
        %1475 = vmatprep.subr.bf16.mxu0 0
        %1476 = vmatpush1.bf16.xpose.msra.mxu0 0
        %1477 = vmatprep.subr.bf16.mxu0 0
        %1478 = vmatpush1.bf16.xpose.msra.mxu0 0
        %1479 = vmatprep.mubr.bf16.mxu0 0
        %1480 = vmatmul.mubr.bf16.gmra.mrb[0].mxu0 %v1442
        %v1481 = vpop.f32.mrb[0].mxu0
        %v1482 = vadd.f32 %v1214, %v1481
        %v1483 = vpop.f32.mrb[0].mxu0
        %v1484 = vpop.f32.mrb[0].mxu0
        %v1485 = vpop.f32.mrb[0].mxu0
        %1486 = vdwg.mxu0
        %v1487 = vsel %vm1218, %v1482, -inf
        %1488 = vmax.xlane.f32.xlu0 %v1487
        %v1489 = vpop.xlane.xlu0 %1488
        %v1490 = vsub.f32 %v1482, %v1489
        %v1491 = vmul.f32 %v1490, 1.442695
        %v1492 = vpow.pop %v1491
        %v1493 = vsel %vm1218, %v1492, 0.0
        %1494 = vadd.xlane.f32.xlu0 %v1493
        %v1495 = vpop.xlane.xlu0 %1494
        %v1496 = vrcp.pop %v1495
        %v1497 = vmul.f32 %v1492, %v1496
        %v1498 = vpack.c.bf16 %v1497, %v1497
        %1499 = vrot.lane.b32.xlu0 %v1210, 48
        %v1500 = vpop.permute.xlu0 %1499
        %v1502 = vsel %vm1218, %v1498, 0
        %v1505 = vsel %vm1282, %v1500, 0
        %1507 = vmatprep.subr.bf16.mxu0 0
        %1508 = vmatpush1.bf16.msra.mxu0 %v1505
        %1509 = vmatprep.subr.bf16.mxu0 0
        %1510 = vmatpush1.bf16.msra.mxu0 0
        %1511 = vmatprep.subr.bf16.mxu0 0
        %1512 = vmatpush1.bf16.msra.mxu0 0
        %1513 = vmatprep.subr.bf16.mxu0 0
        %1514 = vmatpush1.bf16.msra.mxu0 0
        %1515 = vmatprep.subr.bf16.mxu0 0
        %1516 = vmatpush1.bf16.msra.mxu0 0
        %1517 = vmatprep.subr.bf16.mxu0 0
        %1518 = vmatpush1.bf16.msra.mxu0 0
        %1519 = vmatprep.subr.bf16.mxu0 0
        %1520 = vmatpush1.bf16.msra.mxu0 0
        %1521 = vmatprep.subr.bf16.mxu0 0
        %1522 = vmatpush1.bf16.msra.mxu0 0
        %1523 = vmatprep.subr.bf16.mxu0 0
        %1524 = vmatpush1.bf16.msra.mxu0 0
        %1525 = vmatprep.subr.bf16.mxu0 0
        %1526 = vmatpush1.bf16.msra.mxu0 0
        %1527 = vmatprep.subr.bf16.mxu0 0
        %1528 = vmatpush1.bf16.msra.mxu0 0
        %1529 = vmatprep.subr.bf16.mxu0 0
        %1530 = vmatpush1.bf16.msra.mxu0 0
        %1531 = vmatprep.subr.bf16.mxu0 0
        %1532 = vmatpush1.bf16.msra.mxu0 0
        %1533 = vmatprep.subr.bf16.mxu0 0
        %1534 = vmatpush1.bf16.msra.mxu0 0
        %1535 = vmatprep.subr.bf16.mxu0 0
        %1536 = vmatpush1.bf16.msra.mxu0 0
        %1537 = vmatprep.subr.bf16.mxu0 0
        %1538 = vmatpush1.bf16.msra.mxu0 0
        %1539 = vmatprep.mubr.bf16.mxu0 0
        %1540 = vmatmul.mubr.bf16.gmra.mrb[0].mxu0 %v1502
        %v1541 = vpop.f32.mrb[0].mxu0
        %v1542 = vadd.f32 0.0, %v1541
        %v1543 = vpop.f32.mrb[0].mxu0
        %v1544 = vpop.f32.mrb[0].mxu0
        %v1545 = vpop.f32.mrb[0].mxu0
        %1546 = vdwg.mxu0
        %1547 = vrot.lane.b32.xlu0 %v1209, 104
        %v1548 = vpop.permute.xlu0 %1547
        %1549 = vrot.lane.b32.xlu0 %v1210, 72
        %v1550 = vpop.permute.xlu0 %1549
        %v1552 = vsel %vm1218, %v1548, 0
        %v1555 = vsel %vm1218, %v1550, 0
        %1557 = vmatprep.subr.bf16.mxu0 0
        %1558 = vmatpush1.bf16.xpose.msra.mxu0 %v1555
        %1559 = vmatprep.subr.bf16.mxu0 0
        %1560 = vmatpush1.bf16.xpose.msra.mxu0 0
        %1561 = vmatprep.subr.bf16.mxu0 0
        %1562 = vmatpush1.bf16.xpose.msra.mxu0 0
        %1563 = vmatprep.subr.bf16.mxu0 0
        %1564 = vmatpush1.bf16.xpose.msra.mxu0 0
        %1565 = vmatprep.subr.bf16.mxu0 0
        %1566 = vmatpush1.bf16.xpose.msra.mxu0 0
        %1567 = vmatprep.subr.bf16.mxu0 0
        %1568 = vmatpush1.bf16.xpose.msra.mxu0 0
        %1569 = vmatprep.subr.bf16.mxu0 0
        %1570 = vmatpush1.bf16.xpose.msra.mxu0 0
        %1571 = vmatprep.subr.bf16.mxu0 0
        %1572 = vmatpush1.bf16.xpose.msra.mxu0 0
        %1573 = vmatprep.subr.bf16.mxu0 0
        %1574 = vmatpush1.bf16.xpose.msra.mxu0 0
        %1575 = vmatprep.subr.bf16.mxu0 0
        %1576 = vmatpush1.bf16.xpose.msra.mxu0 0
        %1577 = vmatprep.subr.bf16.mxu0 0
        %1578 = vmatpush1.bf16.xpose.msra.mxu0 0
        %1579 = vmatprep.subr.bf16.mxu0 0
        %1580 = vmatpush1.bf16.xpose.msra.mxu0 0
        %1581 = vmatprep.subr.bf16.mxu0 0
        %1582 = vmatpush1.bf16.xpose.msra.mxu0 0
        %1583 = vmatprep.subr.bf16.mxu0 0
        %1584 = vmatpush1.bf16.xpose.msra.mxu0 0
        %1585 = vmatprep.subr.bf16.mxu0 0
        %1586 = vmatpush1.bf16.xpose.msra.mxu0 0
        %1587 = vmatprep.subr.bf16.mxu0 0
        %1588 = vmatpush1.bf16.xpose.msra.mxu0 0
        %1589 = vmatprep.mubr.bf16.mxu0 0
        %1590 = vmatmul.mubr.bf16.gmra.mrb[0].mxu0 %v1552
        %v1591 = vpop.f32.mrb[0].mxu0
        %v1592 = vadd.f32 %v1214, %v1591
        %v1593 = vpop.f32.mrb[0].mxu0
        %v1594 = vpop.f32.mrb[0].mxu0
        %v1595 = vpop.f32.mrb[0].mxu0
        %1596 = vdwg.mxu0
        %v1597 = vsel %vm1218, %v1592, -inf
        %1598 = vmax.xlane.f32.xlu0 %v1597
        %v1599 = vpop.xlane.xlu0 %1598
        %v1600 = vsub.f32 %v1592, %v1599
        %v1601 = vmul.f32 %v1600, 1.442695
        %v1602 = vpow.pop %v1601
        %v1603 = vsel %vm1218, %v1602, 0.0
        %1604 = vadd.xlane.f32.xlu0 %v1603
        %v1605 = vpop.xlane.xlu0 %1604
        %v1606 = vrcp.pop %v1605
        %v1607 = vmul.f32 %v1602, %v1606
        %v1608 = vpack.c.bf16 %v1607, %v1607
        %1609 = vrot.lane.b32.xlu0 %v1210, 40
        %v1610 = vpop.permute.xlu0 %1609
        %v1612 = vsel %vm1218, %v1608, 0
        %v1615 = vsel %vm1282, %v1610, 0
        %1617 = vmatprep.subr.bf16.mxu0 0
        %1618 = vmatpush1.bf16.msra.mxu0 %v1615
        %1619 = vmatprep.subr.bf16.mxu0 0
        %1620 = vmatpush1.bf16.msra.mxu0 0
        %1621 = vmatprep.subr.bf16.mxu0 0
        %1622 = vmatpush1.bf16.msra.mxu0 0
        %1623 = vmatprep.subr.bf16.mxu0 0
        %1624 = vmatpush1.bf16.msra.mxu0 0
        %1625 = vmatprep.subr.bf16.mxu0 0
        %1626 = vmatpush1.bf16.msra.mxu0 0
        %1627 = vmatprep.subr.bf16.mxu0 0
        %1628 = vmatpush1.bf16.msra.mxu0 0
        %1629 = vmatprep.subr.bf16.mxu0 0
        %1630 = vmatpush1.bf16.msra.mxu0 0
        %1631 = vmatprep.subr.bf16.mxu0 0
        %1632 = vmatpush1.bf16.msra.mxu0 0
        %1633 = vmatprep.subr.bf16.mxu0 0
        %1634 = vmatpush1.bf16.msra.mxu0 0
        %1635 = vmatprep.subr.bf16.mxu0 0
        %1636 = vmatpush1.bf16.msra.mxu0 0
        %1637 = vmatprep.subr.bf16.mxu0 0
        %1638 = vmatpush1.bf16.msra.mxu0 0
        %1639 = vmatprep.subr.bf16.mxu0 0
        %1640 = vmatpush1.bf16.msra.mxu0 0
        %1641 = vmatprep.subr.bf16.mxu0 0
        %1642 = vmatpush1.bf16.msra.mxu0 0
        %1643 = vmatprep.subr.bf16.mxu0 0
        %1644 = vmatpush1.bf16.msra.mxu0 0
        %1645 = vmatprep.subr.bf16.mxu0 0
        %1646 = vmatpush1.bf16.msra.mxu0 0
        %1647 = vmatprep.subr.bf16.mxu0 0
        %1648 = vmatpush1.bf16.msra.mxu0 0
        %1649 = vmatprep.mubr.bf16.mxu0 0
        %1650 = vmatmul.mubr.bf16.gmra.mrb[0].mxu0 %v1612
        %v1651 = vpop.f32.mrb[0].mxu0
        %v1652 = vadd.f32 0.0, %v1651
        %v1653 = vpop.f32.mrb[0].mxu0
        %v1654 = vpop.f32.mrb[0].mxu0
        %v1655 = vpop.f32.mrb[0].mxu0
        %1656 = vdwg.mxu0
        %1658 = vrot.lane.b32.xlu0 %v1432, 8
        %v1659 = vpop.permute.xlu0 %1658
        %1662 = vrot.lane.b32.xlu0 %v1542, 16
        %v1663 = vpop.permute.xlu0 %1662
        %1666 = vrot.lane.b32.xlu0 %v1652, 24
        %v1667 = vpop.permute.xlu0 %1666
        %v1669 = vsel %vm1218, %v1321, %v1659
        %vm1670 = vcmask 130048
        %v1671 = vsel %vm1670, %v1669, %v1663
        %vm1672 = vcmask 195584
        %v1673 = vsel %vm1672, %v1671, %v1667
        %v1674 = vlaneseq
        %v1675 = vshrl.u32 %v1674, 7
        %v1676 = vsub.s32 1, %v1675
        %v1677 = vrot.slane %v1206, %v1676
        %v1678 = vrot.slane %v1209, 4
        %v1679 = vrot.slane %v1210, 4
        %1680 = vrot.lane.b32.xlu0 %v1679, 96
        %v1681 = vpop.permute.xlu0 %1680
        %v1683 = vsel %vm1218, %v1678, 0
        %v1686 = vsel %vm1218, %v1681, 0
        %1688 = vmatprep.subr.bf16.mxu0 0
        %1689 = vmatpush1.bf16.xpose.msra.mxu0 %v1686
        %1690 = vmatprep.subr.bf16.mxu0 0
        %1691 = vmatpush1.bf16.xpose.msra.mxu0 0
        %1692 = vmatprep.subr.bf16.mxu0 0
        %1693 = vmatpush1.bf16.xpose.msra.mxu0 0
        %1694 = vmatprep.subr.bf16.mxu0 0
        %1695 = vmatpush1.bf16.xpose.msra.mxu0 0
        %1696 = vmatprep.subr.bf16.mxu0 0
        %1697 = vmatpush1.bf16.xpose.msra.mxu0 0
        %1698 = vmatprep.subr.bf16.mxu0 0
        %1699 = vmatpush1.bf16.xpose.msra.mxu0 0
        %1700 = vmatprep.subr.bf16.mxu0 0
        %1701 = vmatpush1.bf16.xpose.msra.mxu0 0
        %1702 = vmatprep.subr.bf16.mxu0 0
        %1703 = vmatpush1.bf16.xpose.msra.mxu0 0
        %1704 = vmatprep.subr.bf16.mxu0 0
        %1705 = vmatpush1.bf16.xpose.msra.mxu0 0
        %1706 = vmatprep.subr.bf16.mxu0 0
        %1707 = vmatpush1.bf16.xpose.msra.mxu0 0
        %1708 = vmatprep.subr.bf16.mxu0 0
        %1709 = vmatpush1.bf16.xpose.msra.mxu0 0
        %1710 = vmatprep.subr.bf16.mxu0 0
        %1711 = vmatpush1.bf16.xpose.msra.mxu0 0
        %1712 = vmatprep.subr.bf16.mxu0 0
        %1713 = vmatpush1.bf16.xpose.msra.mxu0 0
        %1714 = vmatprep.subr.bf16.mxu0 0
        %1715 = vmatpush1.bf16.xpose.msra.mxu0 0
        %1716 = vmatprep.subr.bf16.mxu0 0
        %1717 = vmatpush1.bf16.xpose.msra.mxu0 0
        %1718 = vmatprep.subr.bf16.mxu0 0
        %1719 = vmatpush1.bf16.xpose.msra.mxu0 0
        %1720 = vmatprep.mubr.bf16.mxu0 0
        %1721 = vmatmul.mubr.bf16.gmra.mrb[0].mxu0 %v1683
        %v1722 = vpop.f32.mrb[0].mxu0
        %v1723 = vadd.f32 %v1677, %v1722
        %v1724 = vpop.f32.mrb[0].mxu0
        %v1725 = vpop.f32.mrb[0].mxu0
        %v1726 = vpop.f32.mrb[0].mxu0
        %1727 = vdwg.mxu0
        %v1728 = vsel %vm1218, %v1723, -inf
        %1729 = vmax.xlane.f32.xlu0 %v1728
        %v1730 = vpop.xlane.xlu0 %1729
        %v1731 = vsub.f32 %v1723, %v1730
        %v1732 = vmul.f32 %v1731, 1.442695
        %v1733 = vpow.pop %v1732
        %v1734 = vsel %vm1218, %v1733, 0.0
        %1735 = vadd.xlane.f32.xlu0 %v1734
        %v1736 = vpop.xlane.xlu0 %1735
        %v1737 = vrcp.pop %v1736
        %v1738 = vmul.f32 %v1733, %v1737
        %v1739 = vpack.c.bf16 %v1738, %v1738
        %1740 = vrot.lane.b32.xlu0 %v1679, 64
        %v1741 = vpop.permute.xlu0 %1740
        %v1743 = vsel %vm1218, %v1739, 0
        %v1746 = vsel %vm1282, %v1741, 0
        %1748 = vmatprep.subr.bf16.mxu0 0
        %1749 = vmatpush1.bf16.msra.mxu0 %v1746
        %1750 = vmatprep.subr.bf16.mxu0 0
        %1751 = vmatpush1.bf16.msra.mxu0 0
        %1752 = vmatprep.subr.bf16.mxu0 0
        %1753 = vmatpush1.bf16.msra.mxu0 0
        %1754 = vmatprep.subr.bf16.mxu0 0
        %1755 = vmatpush1.bf16.msra.mxu0 0
        %1756 = vmatprep.subr.bf16.mxu0 0
        %1757 = vmatpush1.bf16.msra.mxu0 0
        %1758 = vmatprep.subr.bf16.mxu0 0
        %1759 = vmatpush1.bf16.msra.mxu0 0
        %1760 = vmatprep.subr.bf16.mxu0 0
        %1761 = vmatpush1.bf16.msra.mxu0 0
        %1762 = vmatprep.subr.bf16.mxu0 0
        %1763 = vmatpush1.bf16.msra.mxu0 0
        %1764 = vmatprep.subr.bf16.mxu0 0
        %1765 = vmatpush1.bf16.msra.mxu0 0
        %1766 = vmatprep.subr.bf16.mxu0 0
        %1767 = vmatpush1.bf16.msra.mxu0 0
        %1768 = vmatprep.subr.bf16.mxu0 0
        %1769 = vmatpush1.bf16.msra.mxu0 0
        %1770 = vmatprep.subr.bf16.mxu0 0
        %1771 = vmatpush1.bf16.msra.mxu0 0
        %1772 = vmatprep.subr.bf16.mxu0 0
        %1773 = vmatpush1.bf16.msra.mxu0 0
        %1774 = vmatprep.subr.bf16.mxu0 0
        %1775 = vmatpush1.bf16.msra.mxu0 0
        %1776 = vmatprep.subr.bf16.mxu0 0
        %1777 = vmatpush1.bf16.msra.mxu0 0
        %1778 = vmatprep.subr.bf16.mxu0 0
        %1779 = vmatpush1.bf16.msra.mxu0 0
        %1780 = vmatprep.mubr.bf16.mxu0 0
        %1781 = vmatmul.mubr.bf16.gmra.mrb[0].mxu0 %v1743
        %v1782 = vpop.f32.mrb[0].mxu0
        %v1783 = vadd.f32 0.0, %v1782
        %v1784 = vpop.f32.mrb[0].mxu0
        %v1785 = vpop.f32.mrb[0].mxu0
        %v1786 = vpop.f32.mrb[0].mxu0
        %1787 = vdwg.mxu0
        %1788 = vrot.lane.b32.xlu0 %v1678, 120
        %v1789 = vpop.permute.xlu0 %1788
        %1790 = vrot.lane.b32.xlu0 %v1679, 88
        %v1791 = vpop.permute.xlu0 %1790
        %v1793 = vsel %vm1218, %v1789, 0
        %v1796 = vsel %vm1218, %v1791, 0
        %1798 = vmatprep.subr.bf16.mxu0 0
        %1799 = vmatpush1.bf16.xpose.msra.mxu0 %v1796
        %1800 = vmatprep.subr.bf16.mxu0 0
        %1801 = vmatpush1.bf16.xpose.msra.mxu0 0
        %1802 = vmatprep.subr.bf16.mxu0 0
        %1803 = vmatpush1.bf16.xpose.msra.mxu0 0
        %1804 = vmatprep.subr.bf16.mxu0 0
        %1805 = vmatpush1.bf16.xpose.msra.mxu0 0
        %1806 = vmatprep.subr.bf16.mxu0 0
        %1807 = vmatpush1.bf16.xpose.msra.mxu0 0
        %1808 = vmatprep.subr.bf16.mxu0 0
        %1809 = vmatpush1.bf16.xpose.msra.mxu0 0
        %1810 = vmatprep.subr.bf16.mxu0 0
        %1811 = vmatpush1.bf16.xpose.msra.mxu0 0
        %1812 = vmatprep.subr.bf16.mxu0 0
        %1813 = vmatpush1.bf16.xpose.msra.mxu0 0
        %1814 = vmatprep.subr.bf16.mxu0 0
        %1815 = vmatpush1.bf16.xpose.msra.mxu0 0
        %1816 = vmatprep.subr.bf16.mxu0 0
        %1817 = vmatpush1.bf16.xpose.msra.mxu0 0
        %1818 = vmatprep.subr.bf16.mxu0 0
        %1819 = vmatpush1.bf16.xpose.msra.mxu0 0
        %1820 = vmatprep.subr.bf16.mxu0 0
        %1821 = vmatpush1.bf16.xpose.msra.mxu0 0
        %1822 = vmatprep.subr.bf16.mxu0 0
        %1823 = vmatpush1.bf16.xpose.msra.mxu0 0
        %1824 = vmatprep.subr.bf16.mxu0 0
        %1825 = vmatpush1.bf16.xpose.msra.mxu0 0
        %1826 = vmatprep.subr.bf16.mxu0 0
        %1827 = vmatpush1.bf16.xpose.msra.mxu0 0
        %1828 = vmatprep.subr.bf16.mxu0 0
        %1829 = vmatpush1.bf16.xpose.msra.mxu0 0
        %1830 = vmatprep.mubr.bf16.mxu0 0
        %1831 = vmatmul.mubr.bf16.gmra.mrb[0].mxu0 %v1793
        %v1832 = vpop.f32.mrb[0].mxu0
        %v1833 = vadd.f32 %v1677, %v1832
        %v1834 = vpop.f32.mrb[0].mxu0
        %v1835 = vpop.f32.mrb[0].mxu0
        %v1836 = vpop.f32.mrb[0].mxu0
        %1837 = vdwg.mxu0
        %v1838 = vsel %vm1218, %v1833, -inf
        %1839 = vmax.xlane.f32.xlu0 %v1838
        %v1840 = vpop.xlane.xlu0 %1839
        %v1841 = vsub.f32 %v1833, %v1840
        %v1842 = vmul.f32 %v1841, 1.442695
        %v1843 = vpow.pop %v1842
        %v1844 = vsel %vm1218, %v1843, 0.0
        %1845 = vadd.xlane.f32.xlu0 %v1844
        %v1846 = vpop.xlane.xlu0 %1845
        %v1847 = vrcp.pop %v1846
        %v1848 = vmul.f32 %v1843, %v1847
        %v1849 = vpack.c.bf16 %v1848, %v1848
        %1850 = vrot.lane.b32.xlu0 %v1679, 56
        %v1851 = vpop.permute.xlu0 %1850
        %v1853 = vsel %vm1218, %v1849, 0
        %v1856 = vsel %vm1282, %v1851, 0
        %1858 = vmatprep.subr.bf16.mxu0 0
        %1859 = vmatpush1.bf16.msra.mxu0 %v1856
        %1860 = vmatprep.subr.bf16.mxu0 0
        %1861 = vmatpush1.bf16.msra.mxu0 0
        %1862 = vmatprep.subr.bf16.mxu0 0
        %1863 = vmatpush1.bf16.msra.mxu0 0
        %1864 = vmatprep.subr.bf16.mxu0 0
        %1865 = vmatpush1.bf16.msra.mxu0 0
        %1866 = vmatprep.subr.bf16.mxu0 0
        %1867 = vmatpush1.bf16.msra.mxu0 0
        %1868 = vmatprep.subr.bf16.mxu0 0
        %1869 = vmatpush1.bf16.msra.mxu0 0
        %1870 = vmatprep.subr.bf16.mxu0 0
        %1871 = vmatpush1.bf16.msra.mxu0 0
        %1872 = vmatprep.subr.bf16.mxu0 0
        %1873 = vmatpush1.bf16.msra.mxu0 0
        %1874 = vmatprep.subr.bf16.mxu0 0
        %1875 = vmatpush1.bf16.msra.mxu0 0
        %1876 = vmatprep.subr.bf16.mxu0 0
        %1877 = vmatpush1.bf16.msra.mxu0 0
        %1878 = vmatprep.subr.bf16.mxu0 0
        %1879 = vmatpush1.bf16.msra.mxu0 0
        %1880 = vmatprep.subr.bf16.mxu0 0
        %1881 = vmatpush1.bf16.msra.mxu0 0
        %1882 = vmatprep.subr.bf16.mxu0 0
        %1883 = vmatpush1.bf16.msra.mxu0 0
        %1884 = vmatprep.subr.bf16.mxu0 0
        %1885 = vmatpush1.bf16.msra.mxu0 0
        %1886 = vmatprep.subr.bf16.mxu0 0
        %1887 = vmatpush1.bf16.msra.mxu0 0
        %1888 = vmatprep.subr.bf16.mxu0 0
        %1889 = vmatpush1.bf16.msra.mxu0 0
        %1890 = vmatprep.mubr.bf16.mxu0 0
        %1891 = vmatmul.mubr.bf16.gmra.mrb[0].mxu0 %v1853
        %v1892 = vpop.f32.mrb[0].mxu0
        %v1893 = vadd.f32 0.0, %v1892
        %v1894 = vpop.f32.mrb[0].mxu0
        %v1895 = vpop.f32.mrb[0].mxu0
        %v1896 = vpop.f32.mrb[0].mxu0
        %1897 = vdwg.mxu0
        %1898 = vrot.lane.b32.xlu0 %v1678, 112
        %v1899 = vpop.permute.xlu0 %1898
        %1900 = vrot.lane.b32.xlu0 %v1679, 80
        %v1901 = vpop.permute.xlu0 %1900
        %v1903 = vsel %vm1218, %v1899, 0
        %v1906 = vsel %vm1218, %v1901, 0
        %1908 = vmatprep.subr.bf16.mxu0 0
        %1909 = vmatpush1.bf16.xpose.msra.mxu0 %v1906
        %1910 = vmatprep.subr.bf16.mxu0 0
        %1911 = vmatpush1.bf16.xpose.msra.mxu0 0
        %1912 = vmatprep.subr.bf16.mxu0 0
        %1913 = vmatpush1.bf16.xpose.msra.mxu0 0
        %1914 = vmatprep.subr.bf16.mxu0 0
        %1915 = vmatpush1.bf16.xpose.msra.mxu0 0
        %1916 = vmatprep.subr.bf16.mxu0 0
        %1917 = vmatpush1.bf16.xpose.msra.mxu0 0
        %1918 = vmatprep.subr.bf16.mxu0 0
        %1919 = vmatpush1.bf16.xpose.msra.mxu0 0
        %1920 = vmatprep.subr.bf16.mxu0 0
        %1921 = vmatpush1.bf16.xpose.msra.mxu0 0
        %1922 = vmatprep.subr.bf16.mxu0 0
        %1923 = vmatpush1.bf16.xpose.msra.mxu0 0
        %1924 = vmatprep.subr.bf16.mxu0 0
        %1925 = vmatpush1.bf16.xpose.msra.mxu0 0
        %1926 = vmatprep.subr.bf16.mxu0 0
        %1927 = vmatpush1.bf16.xpose.msra.mxu0 0
        %1928 = vmatprep.subr.bf16.mxu0 0
        %1929 = vmatpush1.bf16.xpose.msra.mxu0 0
        %1930 = vmatprep.subr.bf16.mxu0 0
        %1931 = vmatpush1.bf16.xpose.msra.mxu0 0
        %1932 = vmatprep.subr.bf16.mxu0 0
        %1933 = vmatpush1.bf16.xpose.msra.mxu0 0
        %1934 = vmatprep.subr.bf16.mxu0 0
        %1935 = vmatpush1.bf16.xpose.msra.mxu0 0
        %1936 = vmatprep.subr.bf16.mxu0 0
        %1937 = vmatpush1.bf16.xpose.msra.mxu0 0
        %1938 = vmatprep.subr.bf16.mxu0 0
        %1939 = vmatpush1.bf16.xpose.msra.mxu0 0
        %1940 = vmatprep.mubr.bf16.mxu0 0
        %1941 = vmatmul.mubr.bf16.gmra.mrb[0].mxu0 %v1903
        %v1942 = vpop.f32.mrb[0].mxu0
        %v1943 = vadd.f32 %v1677, %v1942
        %v1944 = vpop.f32.mrb[0].mxu0
        %v1945 = vpop.f32.mrb[0].mxu0
        %v1946 = vpop.f32.mrb[0].mxu0
        %1947 = vdwg.mxu0
        %v1948 = vsel %vm1218, %v1943, -inf
        %1949 = vmax.xlane.f32.xlu0 %v1948
        %v1950 = vpop.xlane.xlu0 %1949
        %v1951 = vsub.f32 %v1943, %v1950
        %v1952 = vmul.f32 %v1951, 1.442695
        %v1953 = vpow.pop %v1952
        %v1954 = vsel %vm1218, %v1953, 0.0
        %1955 = vadd.xlane.f32.xlu0 %v1954
        %v1956 = vpop.xlane.xlu0 %1955
        %v1957 = vrcp.pop %v1956
        %v1958 = vmul.f32 %v1953, %v1957
        %v1959 = vpack.c.bf16 %v1958, %v1958
        %1960 = vrot.lane.b32.xlu0 %v1679, 48
        %v1961 = vpop.permute.xlu0 %1960
        %v1963 = vsel %vm1218, %v1959, 0
        %v1966 = vsel %vm1282, %v1961, 0
        %1968 = vmatprep.subr.bf16.mxu0 0
        %1969 = vmatpush1.bf16.msra.mxu0 %v1966
        %1970 = vmatprep.subr.bf16.mxu0 0
        %1971 = vmatpush1.bf16.msra.mxu0 0
        %1972 = vmatprep.subr.bf16.mxu0 0
        %1973 = vmatpush1.bf16.msra.mxu0 0
        %1974 = vmatprep.subr.bf16.mxu0 0
        %1975 = vmatpush1.bf16.msra.mxu0 0
        %1976 = vmatprep.subr.bf16.mxu0 0
        %1977 = vmatpush1.bf16.msra.mxu0 0
        %1978 = vmatprep.subr.bf16.mxu0 0
        %1979 = vmatpush1.bf16.msra.mxu0 0
        %1980 = vmatprep.subr.bf16.mxu0 0
        %1981 = vmatpush1.bf16.msra.mxu0 0
        %1982 = vmatprep.subr.bf16.mxu0 0
        %1983 = vmatpush1.bf16.msra.mxu0 0
        %1984 = vmatprep.subr.bf16.mxu0 0
        %1985 = vmatpush1.bf16.msra.mxu0 0
        %1986 = vmatprep.subr.bf16.mxu0 0
        %1987 = vmatpush1.bf16.msra.mxu0 0
        %1988 = vmatprep.subr.bf16.mxu0 0
        %1989 = vmatpush1.bf16.msra.mxu0 0
        %1990 = vmatprep.subr.bf16.mxu0 0
        %1991 = vmatpush1.bf16.msra.mxu0 0
        %1992 = vmatprep.subr.bf16.mxu0 0
        %1993 = vmatpush1.bf16.msra.mxu0 0
        %1994 = vmatprep.subr.bf16.mxu0 0
        %1995 = vmatpush1.bf16.msra.mxu0 0
        %1996 = vmatprep.subr.bf16.mxu0 0
        %1997 = vmatpush1.bf16.msra.mxu0 0
        %1998 = vmatprep.subr.bf16.mxu0 0
        %1999 = vmatpush1.bf16.msra.mxu0 0
        %2000 = vmatprep.mubr.bf16.mxu0 0
        %2001 = vmatmul.mubr.bf16.gmra.mrb[0].mxu0 %v1963
        %v2002 = vpop.f32.mrb[0].mxu0
        %v2003 = vadd.f32 0.0, %v2002
        %v2004 = vpop.f32.mrb[0].mxu0
        %v2005 = vpop.f32.mrb[0].mxu0
        %v2006 = vpop.f32.mrb[0].mxu0
        %2007 = vdwg.mxu0
        %2008 = vrot.lane.b32.xlu0 %v1678, 104
        %v2009 = vpop.permute.xlu0 %2008
        %2010 = vrot.lane.b32.xlu0 %v1679, 72
        %v2011 = vpop.permute.xlu0 %2010
        %v2013 = vsel %vm1218, %v2009, 0
        %v2016 = vsel %vm1218, %v2011, 0
        %2018 = vmatprep.subr.bf16.mxu0 0
        %2019 = vmatpush1.bf16.xpose.msra.mxu0 %v2016
        %2020 = vmatprep.subr.bf16.mxu0 0
        %2021 = vmatpush1.bf16.xpose.msra.mxu0 0
        %2022 = vmatprep.subr.bf16.mxu0 0
        %2023 = vmatpush1.bf16.xpose.msra.mxu0 0
        %2024 = vmatprep.subr.bf16.mxu0 0
        %2025 = vmatpush1.bf16.xpose.msra.mxu0 0
        %2026 = vmatprep.subr.bf16.mxu0 0
        %2027 = vmatpush1.bf16.xpose.msra.mxu0 0
        %2028 = vmatprep.subr.bf16.mxu0 0
        %2029 = vmatpush1.bf16.xpose.msra.mxu0 0
        %2030 = vmatprep.subr.bf16.mxu0 0
        %2031 = vmatpush1.bf16.xpose.msra.mxu0 0
        %2032 = vmatprep.subr.bf16.mxu0 0
        %2033 = vmatpush1.bf16.xpose.msra.mxu0 0
        %2034 = vmatprep.subr.bf16.mxu0 0
        %2035 = vmatpush1.bf16.xpose.msra.mxu0 0
        %2036 = vmatprep.subr.bf16.mxu0 0
        %2037 = vmatpush1.bf16.xpose.msra.mxu0 0
        %2038 = vmatprep.subr.bf16.mxu0 0
        %2039 = vmatpush1.bf16.xpose.msra.mxu0 0
        %2040 = vmatprep.subr.bf16.mxu0 0
        %2041 = vmatpush1.bf16.xpose.msra.mxu0 0
        %2042 = vmatprep.subr.bf16.mxu0 0
        %2043 = vmatpush1.bf16.xpose.msra.mxu0 0
        %2044 = vmatprep.subr.bf16.mxu0 0
        %2045 = vmatpush1.bf16.xpose.msra.mxu0 0
        %2046 = vmatprep.subr.bf16.mxu0 0
        %2047 = vmatpush1.bf16.xpose.msra.mxu0 0
        %2048 = vmatprep.subr.bf16.mxu0 0
        %2049 = vmatpush1.bf16.xpose.msra.mxu0 0
        %2050 = vmatprep.mubr.bf16.mxu0 0
        %2051 = vmatmul.mubr.bf16.gmra.mrb[0].mxu0 %v2013
        %v2052 = vpop.f32.mrb[0].mxu0
        %v2053 = vadd.f32 %v1677, %v2052
        %v2054 = vpop.f32.mrb[0].mxu0
        %v2055 = vpop.f32.mrb[0].mxu0
        %v2056 = vpop.f32.mrb[0].mxu0
        %2057 = vdwg.mxu0
        %v2058 = vsel %vm1218, %v2053, -inf
        %2059 = vmax.xlane.f32.xlu0 %v2058
        %v2060 = vpop.xlane.xlu0 %2059
        %v2061 = vsub.f32 %v2053, %v2060
        %v2062 = vmul.f32 %v2061, 1.442695
        %v2063 = vpow.pop %v2062
        %v2064 = vsel %vm1218, %v2063, 0.0
        %2065 = vadd.xlane.f32.xlu0 %v2064
        %v2066 = vpop.xlane.xlu0 %2065
        %v2067 = vrcp.pop %v2066
        %v2068 = vmul.f32 %v2063, %v2067
        %v2069 = vpack.c.bf16 %v2068, %v2068
        %2070 = vrot.lane.b32.xlu0 %v1679, 40
        %v2071 = vpop.permute.xlu0 %2070
        %v2073 = vsel %vm1218, %v2069, 0
        %v2076 = vsel %vm1282, %v2071, 0
        %2078 = vmatprep.subr.bf16.mxu0 0
        %2079 = vmatpush1.bf16.msra.mxu0 %v2076
        %2080 = vmatprep.subr.bf16.mxu0 0
        %2081 = vmatpush1.bf16.msra.mxu0 0
        %2082 = vmatprep.subr.bf16.mxu0 0
        %2083 = vmatpush1.bf16.msra.mxu0 0
        %2084 = vmatprep.subr.bf16.mxu0 0
        %2085 = vmatpush1.bf16.msra.mxu0 0
        %2086 = vmatprep.subr.bf16.mxu0 0
        %2087 = vmatpush1.bf16.msra.mxu0 0
        %2088 = vmatprep.subr.bf16.mxu0 0
        %2089 = vmatpush1.bf16.msra.mxu0 0
        %2090 = vmatprep.subr.bf16.mxu0 0
        %2091 = vmatpush1.bf16.msra.mxu0 0
        %2092 = vmatprep.subr.bf16.mxu0 0
        %2093 = vmatpush1.bf16.msra.mxu0 0
        %2094 = vmatprep.subr.bf16.mxu0 0
        %2095 = vmatpush1.bf16.msra.mxu0 0
        %2096 = vmatprep.subr.bf16.mxu0 0
        %2097 = vmatpush1.bf16.msra.mxu0 0
        %2098 = vmatprep.subr.bf16.mxu0 0
        %2099 = vmatpush1.bf16.msra.mxu0 0
        %2100 = vmatprep.subr.bf16.mxu0 0
        %2101 = vmatpush1.bf16.msra.mxu0 0
        %2102 = vmatprep.subr.bf16.mxu0 0
        %2103 = vmatpush1.bf16.msra.mxu0 0
        %2104 = vmatprep.subr.bf16.mxu0 0
        %2105 = vmatpush1.bf16.msra.mxu0 0
        %2106 = vmatprep.subr.bf16.mxu0 0
        %2107 = vmatpush1.bf16.msra.mxu0 0
        %2108 = vmatprep.subr.bf16.mxu0 0
        %2109 = vmatpush1.bf16.msra.mxu0 0
        %2110 = vmatprep.mubr.bf16.mxu0 0
        %2111 = vmatmul.mubr.bf16.gmra.mrb[0].mxu0 %v2073
        %v2112 = vpop.f32.mrb[0].mxu0
        %v2113 = vadd.f32 0.0, %v2112
        %v2114 = vpop.f32.mrb[0].mxu0
        %v2115 = vpop.f32.mrb[0].mxu0
        %v2116 = vpop.f32.mrb[0].mxu0
        %2117 = vdwg.mxu0
        %2119 = vrot.lane.b32.xlu0 %v1893, 8
        %v2120 = vpop.permute.xlu0 %2119
        %2123 = vrot.lane.b32.xlu0 %v2003, 16
        %v2124 = vpop.permute.xlu0 %2123
        %2127 = vrot.lane.b32.xlu0 %v2113, 24
        %v2128 = vpop.permute.xlu0 %2127
        %v2130 = vsel %vm1218, %v1783, %v2120
        %v2131 = vsel %vm1670, %v2130, %v2124
        %v2132 = vsel %vm1672, %v2131, %v2128
        %v2133 = vld [vmem:[%s1018] sm:$0xf]
        %v2134 = vld [vmem:[%s1018 + $0x4] sm:$0xf]
        %v2135 = vld [vmem:[%s1018 + $0x8] sm:$0xf]
        %v2136 = vld [vmem:[%s1018 + $0xc] sm:$0xf]
        %v2137 = vpack.c.bf16 %v2132, %v1673
        %v2138 = vld [vmem:[%s1021] sm:$0x1]
        %v2140 = vlaneseq
        %v2141 = vshrl.u32 %v2140, 7
        %v2142 = vsub.s32 0, %v2141
        %v2143 = vrot.slane %v2138, %v2142
        %v2149 = vunpack.c.l.b16 %v2133
        %v2150 = vunpack.c.l.b16 %v2134
        %v2151 = vunpack.c.l.b16 %v2135
        %v2152 = vunpack.c.l.b16 %v2136
        %v2153 = vpack.c.b16 %v2150, %v2149
        %v2154 = vpack.c.b16 %v2152, %v2151
        %v2158 = vsel %vm1161, %v2137, 0
        %2160 = vmatprep.subr.bf16.mxu0 0
        %2161 = vmatpush1.bf16.msra.mxu0 %v2153
        %2162 = vmatprep.subr.bf16.mxu0 0
        %2163 = vmatpush1.bf16.msra.mxu0 %v2154
        %2164 = vmatprep.subr.bf16.mxu0 0
        %2165 = vmatpush1.bf16.msra.mxu0 0
        %2166 = vmatprep.subr.bf16.mxu0 0
        %2167 = vmatpush1.bf16.msra.mxu0 0
        %2168 = vmatprep.subr.bf16.mxu0 0
        %2169 = vmatpush1.bf16.msra.mxu0 0
        %2170 = vmatprep.subr.bf16.mxu0 0
        %2171 = vmatpush1.bf16.msra.mxu0 0
        %2172 = vmatprep.subr.bf16.mxu0 0
        %2173 = vmatpush1.bf16.msra.mxu0 0
        %2174 = vmatprep.subr.bf16.mxu0 0
        %2175 = vmatpush1.bf16.msra.mxu0 0
        %2176 = vmatprep.subr.bf16.mxu0 0
        %2177 = vmatpush1.bf16.msra.mxu0 0
        %2178 = vmatprep.subr.bf16.mxu0 0
        %2179 = vmatpush1.bf16.msra.mxu0 0
        %2180 = vmatprep.subr.bf16.mxu0 0
        %2181 = vmatpush1.bf16.msra.mxu0 0
        %2182 = vmatprep.subr.bf16.mxu0 0
        %2183 = vmatpush1.bf16.msra.mxu0 0
        %2184 = vmatprep.subr.bf16.mxu0 0
        %2185 = vmatpush1.bf16.msra.mxu0 0
        %2186 = vmatprep.subr.bf16.mxu0 0
        %2187 = vmatpush1.bf16.msra.mxu0 0
        %2188 = vmatprep.subr.bf16.mxu0 0
        %2189 = vmatpush1.bf16.msra.mxu0 0
        %2190 = vmatprep.subr.bf16.mxu0 0
        %2191 = vmatpush1.bf16.msra.mxu0 0
        %2192 = vmatprep.mubr.bf16.mxu0 0
        %2193 = vmatmul.mubr.bf16.gmra.mrb[0].mxu0 %v2158
        %v2194 = vpop.f32.mrb[0].mxu0
        %v2195 = vadd.f32 %v2143, %v2194
        %v2196 = vpop.f32.mrb[0].mxu0
        %v2197 = vpop.f32.mrb[0].mxu0
        %v2198 = vadd.f32 %v2143, %v2197
        %v2199 = vpop.f32.mrb[0].mxu0
        %2200 = vdwg.mxu0
        %v2201 = vadd.f32 %v1135, %v2195
        %v2202 = vadd.f32 %v1136, %v2198
        %v2203 = vld [vmem:[%s1024] sm:$0x1]
        %v2204 = vld [vmem:[%s1027] sm:$0x1]
        %v2205 = vsel %vm1161, %v2201, 0.0
        %2206 = vadd.xlane.f32.xlu0 %v2205
        %v2207 = vpop.xlane.xlu0 %2206
        %v2208 = vsel %vm1161, %v2202, 0.0
        %2209 = vadd.xlane.f32.xlu0 %v2208
        %v2210 = vpop.xlane.xlu0 %2209
        %v2211 = vrcp.pop 32.0
        %v2212 = vmul.f32 %v2207, %v2211
        %v2213 = vmul.f32 %v2210, %v2211
        %v2214 = vsub.f32 %v2201, %v2212
        %v2215 = vsub.f32 %v2202, %v2213
        %v2216 = vmul.f32 %v2214, %v2214
        %v2217 = vmul.f32 %v2215, %v2215
        %v2218 = vsel %vm1161, %v2216, 0.0
        %2219 = vadd.xlane.f32.xlu0 %v2218
        %v2220 = vpop.xlane.xlu0 %2219
        %v2221 = vsel %vm1161, %v2217, 0.0
        %2222 = vadd.xlane.f32.xlu0 %v2221
        %v2223 = vpop.xlane.xlu0 %2222
        %v2224 = vmul.f32 %v2220, %v2211
        %v2225 = vmul.f32 %v2223, %v2211
        %v2226 = vadd.f32 %v2224, 1e-12
        %v2227 = vadd.f32 %v2225, 1e-12
        %v2228 = vrsqrt.pop %v2226
        %v2229 = vrsqrt.pop %v2227
        %v2230 = vmul.f32 %v2214, %v2228
        %v2231 = vmul.f32 %v2215, %v2229
        %v2233 = vlaneseq
        %v2234 = vshrl.u32 %v2233, 7
        %v2235 = vsub.s32 0, %v2234
        %v2236 = vrot.slane %v2203, %v2235
        %v2238 = vmul.f32 %v2230, %v2236
        %v2239 = vmul.f32 %v2231, %v2236
        %v2241 = vlaneseq
        %v2242 = vshrl.u32 %v2241, 7
        %v2243 = vsub.s32 0, %v2242
        %v2244 = vrot.slane %v2204, %v2243
        %v2246 = vadd.f32 %v2238, %v2244
        %v2247 = vadd.f32 %v2239, %v2244
        %v2248 = vld [vmem:[%s2] sm:$0xf]
        %v2249 = vld [vmem:[%s2 + $0x4] sm:$0xf]
        %v2250 = vld [vmem:[%s2 + $0x8] sm:$0xf]
        %v2251 = vld [vmem:[%s2 + $0xc] sm:$0xf]
        %v2252 = vld [vmem:[%s2 + $0x10] sm:$0x1]
        %v2253 = vld [vmem:[%s1032] sm:$0xf]
        %v2254 = vld [vmem:[%s1032 + $0x4] sm:$0xf]
        %v2255 = vld [vmem:[%s1032 + $0x8] sm:$0xf]
        %v2256 = vld [vmem:[%s1032 + $0xc] sm:$0xf]
        %v2257 = vpack.c.bf16 %v2247, %v2246
        %v2258 = vld [vmem:[%s1035] sm:$0x1]
        %v2260 = vlaneseq
        %v2261 = vshrl.u32 %v2260, 7
        %v2262 = vsub.s32 0, %v2261
        %v2263 = vrot.slane %v2258, %v2262
        %v2269 = vunpack.c.l.b16 %v2253
        %v2270 = vunpack.c.l.b16 %v2254
        %v2271 = vunpack.c.l.b16 %v2255
        %v2272 = vunpack.c.l.b16 %v2256
        %v2273 = vpack.c.b16 %v2270, %v2269
        %v2274 = vpack.c.b16 %v2272, %v2271
        %v2278 = vsel %vm1161, %v2257, 0
        %2280 = vmatprep.subr.bf16.mxu0 0
        %2281 = vmatpush1.bf16.msra.mxu0 %v2273
        %2282 = vmatprep.subr.bf16.mxu0 0
        %2283 = vmatpush1.bf16.msra.mxu0 %v2274
        %2284 = vmatprep.subr.bf16.mxu0 0
        %2285 = vmatpush1.bf16.msra.mxu0 0
        %2286 = vmatprep.subr.bf16.mxu0 0
        %2287 = vmatpush1.bf16.msra.mxu0 0
        %2288 = vmatprep.subr.bf16.mxu0 0
        %2289 = vmatpush1.bf16.msra.mxu0 0
        %2290 = vmatprep.subr.bf16.mxu0 0
        %2291 = vmatpush1.bf16.msra.mxu0 0
        %2292 = vmatprep.subr.bf16.mxu0 0
        %2293 = vmatpush1.bf16.msra.mxu0 0
        %2294 = vmatprep.subr.bf16.mxu0 0
        %2295 = vmatpush1.bf16.msra.mxu0 0
        %2296 = vmatprep.subr.bf16.mxu0 0
        %2297 = vmatpush1.bf16.msra.mxu0 0
        %2298 = vmatprep.subr.bf16.mxu0 0
        %2299 = vmatpush1.bf16.msra.mxu0 0
        %2300 = vmatprep.subr.bf16.mxu0 0
        %2301 = vmatpush1.bf16.msra.mxu0 0
        %2302 = vmatprep.subr.bf16.mxu0 0
        %2303 = vmatpush1.bf16.msra.mxu0 0
        %2304 = vmatprep.subr.bf16.mxu0 0
        %2305 = vmatpush1.bf16.msra.mxu0 0
        %2306 = vmatprep.subr.bf16.mxu0 0
        %2307 = vmatpush1.bf16.msra.mxu0 0
        %2308 = vmatprep.subr.bf16.mxu0 0
        %2309 = vmatpush1.bf16.msra.mxu0 0
        %2310 = vmatprep.subr.bf16.mxu0 0
        %2311 = vmatpush1.bf16.msra.mxu0 0
        %2312 = vmatprep.mubr.bf16.mxu0 0
        %2313 = vmatmul.mubr.bf16.gmra.mrb[0].mxu0 %v2278
        %v2314 = vpop.f32.mrb[0].mxu0
        %v2315 = vadd.f32 %v2263, %v2314
        %v2316 = vpop.f32.mrb[0].mxu0
        %v2317 = vpop.f32.mrb[0].mxu0
        %v2318 = vadd.f32 %v2263, %v2317
        %v2319 = vpop.f32.mrb[0].mxu0
        %2320 = vdwg.mxu0
        %v2321 = vld [vmem:[%s1040] sm:$0xf]
        %v2322 = vld [vmem:[%s1040 + $0x4] sm:$0xf]
        %v2323 = vld [vmem:[%s1040 + $0x8] sm:$0xf]
        %v2324 = vld [vmem:[%s1040 + $0xc] sm:$0xf]
        %v2325 = vld [vmem:[%s1043] sm:$0x1]
        %v2327 = vlaneseq
        %v2328 = vshrl.u32 %v2327, 7
        %v2329 = vsub.s32 0, %v2328
        %v2330 = vrot.slane %v2325, %v2329
        %v2337 = vunpack.c.l.b16 %v2248
        %v2338 = vunpack.c.l.b16 %v2249
        %v2339 = vunpack.c.l.b16 %v2250
        %v2340 = vunpack.c.l.b16 %v2251
        %v2341 = vunpack.c.l.b16 %v2252
        %v2342 = vpack.c.b16 %v2338, %v2337
        %v2343 = vpack.c.b16 %v2340, %v2339
        %v2344 = vpack.c.b16 %v2341, %v2341
        %v2349 = vunpack.c.l.b16 %v2321
        %v2350 = vunpack.c.l.b16 %v2322
        %v2351 = vunpack.c.l.b16 %v2323
        %v2352 = vunpack.c.l.b16 %v2324
        %v2353 = vpack.c.b16 %v2350, %v2349
        %v2354 = vpack.c.b16 %v2352, %v2351
        %v2358 = vsel %vm1161, %v2342, 0
        %v2361 = vsel %vm1161, %v2343, 0
        %v2364 = vsel %vm1161, %v2344, 0
        %2366 = vmatprep.subr.bf16.mxu0 0
        %2367 = vmatpush1.bf16.msra.mxu0 %v2353
        %2368 = vmatprep.subr.bf16.mxu0 0
        %2369 = vmatpush1.bf16.msra.mxu0 %v2354
        %2370 = vmatprep.subr.bf16.mxu0 0
        %2371 = vmatpush1.bf16.msra.mxu0 0
        %2372 = vmatprep.subr.bf16.mxu0 0
        %2373 = vmatpush1.bf16.msra.mxu0 0
        %2374 = vmatprep.subr.bf16.mxu0 0
        %2375 = vmatpush1.bf16.msra.mxu0 0
        %2376 = vmatprep.subr.bf16.mxu0 0
        %2377 = vmatpush1.bf16.msra.mxu0 0
        %2378 = vmatprep.subr.bf16.mxu0 0
        %2379 = vmatpush1.bf16.msra.mxu0 0
        %2380 = vmatprep.subr.bf16.mxu0 0
        %2381 = vmatpush1.bf16.msra.mxu0 0
        %2382 = vmatprep.subr.bf16.mxu0 0
        %2383 = vmatpush1.bf16.msra.mxu0 0
        %2384 = vmatprep.subr.bf16.mxu0 0
        %2385 = vmatpush1.bf16.msra.mxu0 0
        %2386 = vmatprep.subr.bf16.mxu0 0
        %2387 = vmatpush1.bf16.msra.mxu0 0
        %2388 = vmatprep.subr.bf16.mxu0 0
        %2389 = vmatpush1.bf16.msra.mxu0 0
        %2390 = vmatprep.subr.bf16.mxu0 0
        %2391 = vmatpush1.bf16.msra.mxu0 0
        %2392 = vmatprep.subr.bf16.mxu0 0
        %2393 = vmatpush1.bf16.msra.mxu0 0
        %2394 = vmatprep.subr.bf16.mxu0 0
        %2395 = vmatpush1.bf16.msra.mxu0 0
        %2396 = vmatprep.subr.bf16.mxu0 0
        %2397 = vmatpush1.bf16.msra.mxu0 0
        %2398 = vmatprep.mubr.bf16.mxu0 0
        %2399 = vmatmul.mubr.bf16.gmra.mrb[0].mxu0 %v2358
        %v2400 = vpop.f32.mrb[0].mxu0
        %v2401 = vadd.f32 %v2330, %v2400
        %v2402 = vpop.f32.mrb[0].mxu0
        %v2403 = vpop.f32.mrb[0].mxu0
        %v2404 = vadd.f32 %v2330, %v2403
        %v2405 = vpop.f32.mrb[0].mxu0
        %2406 = vmatprep.mubr.bf16.mxu0 0
        %2407 = vmatmul.mubr.bf16.gmra.mrb[0].mxu0 %v2361
        %v2408 = vpop.f32.mrb[0].mxu0
        %v2409 = vadd.f32 %v2330, %v2408
        %v2410 = vpop.f32.mrb[0].mxu0
        %v2411 = vpop.f32.mrb[0].mxu0
        %v2412 = vadd.f32 %v2330, %v2411
        %v2413 = vpop.f32.mrb[0].mxu0
        %2414 = vmatprep.mubr.bf16.mxu0 0
        %2415 = vmatmul.mubr.bf16.gmra.mrb[0].mxu0 %v2364
        %v2416 = vpop.f32.mrb[0].mxu0
        %v2417 = vadd.f32 %v2330, %v2416
        %v2418 = vpop.f32.mrb[0].mxu0
        %v2419 = vpop.f32.mrb[0].mxu0
        %v2420 = vpop.f32.mrb[0].mxu0
        %2421 = vdwg.mxu0
        %v2422 = vld [vmem:[%s3] sm:$0x3]
        %v2423 = vmul.f32 %v2315, 0.35355338
        %v2424 = vmul.f32 %v2318, 0.35355338
        %v2425 = vpack.c.bf16 %v2424, %v2423
        %v2426 = vpack.c.bf16 %v2404, %v2401
        %v2427 = vpack.c.bf16 %v2412, %v2409
        %v2428 = vpack.c.bf16 %v2417, %v2417
        %v2429 = vlaneseq
        %v2430 = vshrl.u32 %v2429, 7
        %v2431 = vsub.s32 0, %v2430
        %v2432 = vrot.slane %v2422, %v2431
        %v2434 = vsel %vm1218, %v2425, 0
        %v2437 = vsel %vm1218, %v2426, 0
        %v2440 = vsel %vm1218, %v2427, 0
        %2442 = vmatprep.subr.bf16.mxu0 0
        %2443 = vmatpush1.bf16.xpose.msra.mxu0 %v2437
        %2444 = vmatprep.subr.bf16.mxu0 0
        %2445 = vmatpush1.bf16.xpose.msra.mxu0 %v2440
        %2446 = vmatprep.subr.bf16.mxu0 0
        %2447 = vmatpush1.bf16.xpose.msra.mxu0 0
        %2448 = vmatprep.subr.bf16.mxu0 0
        %2449 = vmatpush1.bf16.xpose.msra.mxu0 0
        %2450 = vmatprep.subr.bf16.mxu0 0
        %2451 = vmatpush1.bf16.xpose.msra.mxu0 0
        %2452 = vmatprep.subr.bf16.mxu0 0
        %2453 = vmatpush1.bf16.xpose.msra.mxu0 0
        %2454 = vmatprep.subr.bf16.mxu0 0
        %2455 = vmatpush1.bf16.xpose.msra.mxu0 0
        %2456 = vmatprep.subr.bf16.mxu0 0
        %2457 = vmatpush1.bf16.xpose.msra.mxu0 0
        %2458 = vmatprep.subr.bf16.mxu0 0
        %2459 = vmatpush1.bf16.xpose.msra.mxu0 0
        %2460 = vmatprep.subr.bf16.mxu0 0
        %2461 = vmatpush1.bf16.xpose.msra.mxu0 0
        %2462 = vmatprep.subr.bf16.mxu0 0
        %2463 = vmatpush1.bf16.xpose.msra.mxu0 0
        %2464 = vmatprep.subr.bf16.mxu0 0
        %2465 = vmatpush1.bf16.xpose.msra.mxu0 0
        %2466 = vmatprep.subr.bf16.mxu0 0
        %2467 = vmatpush1.bf16.xpose.msra.mxu0 0
        %2468 = vmatprep.subr.bf16.mxu0 0
        %2469 = vmatpush1.bf16.xpose.msra.mxu0 0
        %2470 = vmatprep.subr.bf16.mxu0 0
        %2471 = vmatpush1.bf16.xpose.msra.mxu0 0
        %2472 = vmatprep.subr.bf16.mxu0 0
        %2473 = vmatpush1.bf16.xpose.msra.mxu0 0
        %2474 = vmatprep.mubr.bf16.mxu0 0
        %2475 = vmatmul.mubr.bf16.gmra.mrb[0].mxu0 %v2434
        %v2476 = vpop.f32.mrb[0].mxu0
        %v2477 = vadd.f32 %v2432, %v2476
        %v2478 = vpop.f32.mrb[0].mxu0
        %v2479 = vpop.f32.mrb[0].mxu0
        %v2480 = vpop.f32.mrb[0].mxu0
        %2481 = vdwg.mxu0
        %vm2482 = vcmask 138240
        %v2483 = vsel %vm2482, %v2477, -inf
        %2484 = vmax.xlane.f32.xlu0 %v2483
        %v2485 = vpop.xlane.xlu0 %2484
        %v2486 = vsub.f32 %v2477, %v2485
        %v2487 = vmul.f32 %v2486, 1.442695
        %v2488 = vpow.pop %v2487
        %v2489 = vsel %vm2482, %v2488, 0.0
        %2490 = vadd.xlane.f32.xlu0 %v2489
        %v2491 = vpop.xlane.xlu0 %2490
        %v2492 = vrcp.pop %v2491
        %v2493 = vmul.f32 %v2488, %v2492
        %v2494 = vpack.c.bf16 %v2493, %v2493
        %2497 = vrot.lane.b32.xlu0 %v2426, 96
        %v2498 = vpop.permute.xlu0 %2497
        %2499 = vrot.lane.b32.xlu0 %v2427, 96
        %v2500 = vpop.permute.xlu0 %2499
        %v2503 = vsel %vm2482, %v2494, 0
        %vm2505 = vcmask 1040384
        %v2506 = vsel 0, 4294967295, 65535
        %v2507 = vsel %vm2505, %v2506, 0
        %v2509 = vand.u32 %v2500, %v2507
        %2511 = vmatprep.subr.bf16.mxu0 0
        %2512 = vmatpush1.bf16.msra.mxu0 %v2498
        %2513 = vmatprep.subr.bf16.mxu0 0
        %2514 = vmatpush1.bf16.msra.mxu0 %v2509
        %2515 = vmatprep.subr.bf16.mxu0 0
        %2516 = vmatpush1.bf16.msra.mxu0 0
        %2517 = vmatprep.subr.bf16.mxu0 0
        %2518 = vmatpush1.bf16.msra.mxu0 0
        %2519 = vmatprep.subr.bf16.mxu0 0
        %2520 = vmatpush1.bf16.msra.mxu0 0
        %2521 = vmatprep.subr.bf16.mxu0 0
        %2522 = vmatpush1.bf16.msra.mxu0 0
        %2523 = vmatprep.subr.bf16.mxu0 0
        %2524 = vmatpush1.bf16.msra.mxu0 0
        %2525 = vmatprep.subr.bf16.mxu0 0
        %2526 = vmatpush1.bf16.msra.mxu0 0
        %2527 = vmatprep.subr.bf16.mxu0 0
        %2528 = vmatpush1.bf16.msra.mxu0 0
        %2529 = vmatprep.subr.bf16.mxu0 0
        %2530 = vmatpush1.bf16.msra.mxu0 0
        %2531 = vmatprep.subr.bf16.mxu0 0
        %2532 = vmatpush1.bf16.msra.mxu0 0
        %2533 = vmatprep.subr.bf16.mxu0 0
        %2534 = vmatpush1.bf16.msra.mxu0 0
        %2535 = vmatprep.subr.bf16.mxu0 0
        %2536 = vmatpush1.bf16.msra.mxu0 0
        %2537 = vmatprep.subr.bf16.mxu0 0
        %2538 = vmatpush1.bf16.msra.mxu0 0
        %2539 = vmatprep.subr.bf16.mxu0 0
        %2540 = vmatpush1.bf16.msra.mxu0 0
        %2541 = vmatprep.subr.bf16.mxu0 0
        %2542 = vmatpush1.bf16.msra.mxu0 0
        %2543 = vmatprep.mubr.bf16.mxu0 0
        %2544 = vmatmul.mubr.bf16.gmra.mrb[0].mxu0 %v2503
        %v2545 = vpop.f32.mrb[0].mxu0
        %v2546 = vadd.f32 0.0, %v2545
        %v2547 = vpop.f32.mrb[0].mxu0
        %v2548 = vpop.f32.mrb[0].mxu0
        %v2549 = vpop.f32.mrb[0].mxu0
        %2550 = vdwg.mxu0
        %2552 = vrot.lane.b32.xlu0 %v2425, 120
        %v2553 = vpop.permute.xlu0 %2552
        %2554 = vrot.lane.b32.xlu0 %v2426, 120
        %v2555 = vpop.permute.xlu0 %2554
        %2556 = vrot.lane.b32.xlu0 %v2427, 120
        %v2557 = vpop.permute.xlu0 %2556
        %v2559 = vsel %vm1218, %v2553, 0
        %v2562 = vsel %vm1218, %v2555, 0
        %v2565 = vsel %vm1218, %v2557, 0
        %2567 = vmatprep.subr.bf16.mxu0 0
        %2568 = vmatpush1.bf16.xpose.msra.mxu0 %v2562
        %2569 = vmatprep.subr.bf16.mxu0 0
        %2570 = vmatpush1.bf16.xpose.msra.mxu0 %v2565
        %2571 = vmatprep.subr.bf16.mxu0 0
        %2572 = vmatpush1.bf16.xpose.msra.mxu0 0
        %2573 = vmatprep.subr.bf16.mxu0 0
        %2574 = vmatpush1.bf16.xpose.msra.mxu0 0
        %2575 = vmatprep.subr.bf16.mxu0 0
        %2576 = vmatpush1.bf16.xpose.msra.mxu0 0
        %2577 = vmatprep.subr.bf16.mxu0 0
        %2578 = vmatpush1.bf16.xpose.msra.mxu0 0
        %2579 = vmatprep.subr.bf16.mxu0 0
        %2580 = vmatpush1.bf16.xpose.msra.mxu0 0
        %2581 = vmatprep.subr.bf16.mxu0 0
        %2582 = vmatpush1.bf16.xpose.msra.mxu0 0
        %2583 = vmatprep.subr.bf16.mxu0 0
        %2584 = vmatpush1.bf16.xpose.msra.mxu0 0
        %2585 = vmatprep.subr.bf16.mxu0 0
        %2586 = vmatpush1.bf16.xpose.msra.mxu0 0
        %2587 = vmatprep.subr.bf16.mxu0 0
        %2588 = vmatpush1.bf16.xpose.msra.mxu0 0
        %2589 = vmatprep.subr.bf16.mxu0 0
        %2590 = vmatpush1.bf16.xpose.msra.mxu0 0
        %2591 = vmatprep.subr.bf16.mxu0 0
        %2592 = vmatpush1.bf16.xpose.msra.mxu0 0
        %2593 = vmatprep.subr.bf16.mxu0 0
        %2594 = vmatpush1.bf16.xpose.msra.mxu0 0
        %2595 = vmatprep.subr.bf16.mxu0 0
        %2596 = vmatpush1.bf16.xpose.msra.mxu0 0
        %2597 = vmatprep.subr.bf16.mxu0 0
        %2598 = vmatpush1.bf16.xpose.msra.mxu0 0
        %2599 = vmatprep.mubr.bf16.mxu0 0
        %2600 = vmatmul.mubr.bf16.gmra.mrb[0].mxu0 %v2559
        %v2601 = vpop.f32.mrb[0].mxu0
        %v2602 = vadd.f32 %v2432, %v2601
        %v2603 = vpop.f32.mrb[0].mxu0
        %v2604 = vpop.f32.mrb[0].mxu0
        %v2605 = vpop.f32.mrb[0].mxu0
        %2606 = vdwg.mxu0
        %v2607 = vsel %vm2482, %v2602, -inf
        %2608 = vmax.xlane.f32.xlu0 %v2607
        %v2609 = vpop.xlane.xlu0 %2608
        %v2610 = vsub.f32 %v2602, %v2609
        %v2611 = vmul.f32 %v2610, 1.442695
        %v2612 = vpow.pop %v2611
        %v2613 = vsel %vm2482, %v2612, 0.0
        %2614 = vadd.xlane.f32.xlu0 %v2613
        %v2615 = vpop.xlane.xlu0 %2614
        %v2616 = vrcp.pop %v2615
        %v2617 = vmul.f32 %v2612, %v2616
        %v2618 = vpack.c.bf16 %v2617, %v2617
        %2619 = vrot.lane.b32.xlu0 %v2426, 88
        %v2620 = vpop.permute.xlu0 %2619
        %2621 = vrot.lane.b32.xlu0 %v2427, 88
        %v2622 = vpop.permute.xlu0 %2621
        %v2625 = vsel %vm2482, %v2618, 0
        %v2628 = vand.u32 %v2622, %v2507
        %2630 = vmatprep.subr.bf16.mxu0 0
        %2631 = vmatpush1.bf16.msra.mxu0 %v2620
        %2632 = vmatprep.subr.bf16.mxu0 0
        %2633 = vmatpush1.bf16.msra.mxu0 %v2628
        %2634 = vmatprep.subr.bf16.mxu0 0
        %2635 = vmatpush1.bf16.msra.mxu0 0
        %2636 = vmatprep.subr.bf16.mxu0 0
        %2637 = vmatpush1.bf16.msra.mxu0 0
        %2638 = vmatprep.subr.bf16.mxu0 0
        %2639 = vmatpush1.bf16.msra.mxu0 0
        %2640 = vmatprep.subr.bf16.mxu0 0
        %2641 = vmatpush1.bf16.msra.mxu0 0
        %2642 = vmatprep.subr.bf16.mxu0 0
        %2643 = vmatpush1.bf16.msra.mxu0 0
        %2644 = vmatprep.subr.bf16.mxu0 0
        %2645 = vmatpush1.bf16.msra.mxu0 0
        %2646 = vmatprep.subr.bf16.mxu0 0
        %2647 = vmatpush1.bf16.msra.mxu0 0
        %2648 = vmatprep.subr.bf16.mxu0 0
        %2649 = vmatpush1.bf16.msra.mxu0 0
        %2650 = vmatprep.subr.bf16.mxu0 0
        %2651 = vmatpush1.bf16.msra.mxu0 0
        %2652 = vmatprep.subr.bf16.mxu0 0
        %2653 = vmatpush1.bf16.msra.mxu0 0
        %2654 = vmatprep.subr.bf16.mxu0 0
        %2655 = vmatpush1.bf16.msra.mxu0 0
        %2656 = vmatprep.subr.bf16.mxu0 0
        %2657 = vmatpush1.bf16.msra.mxu0 0
        %2658 = vmatprep.subr.bf16.mxu0 0
        %2659 = vmatpush1.bf16.msra.mxu0 0
        %2660 = vmatprep.subr.bf16.mxu0 0
        %2661 = vmatpush1.bf16.msra.mxu0 0
        %2662 = vmatprep.mubr.bf16.mxu0 0
        %2663 = vmatmul.mubr.bf16.gmra.mrb[0].mxu0 %v2625
        %v2664 = vpop.f32.mrb[0].mxu0
        %v2665 = vadd.f32 0.0, %v2664
        %v2666 = vpop.f32.mrb[0].mxu0
        %v2667 = vpop.f32.mrb[0].mxu0
        %v2668 = vpop.f32.mrb[0].mxu0
        %2669 = vdwg.mxu0
        %2670 = vrot.lane.b32.xlu0 %v2425, 112
        %v2671 = vpop.permute.xlu0 %2670
        %2672 = vrot.lane.b32.xlu0 %v2426, 112
        %v2673 = vpop.permute.xlu0 %2672
        %2674 = vrot.lane.b32.xlu0 %v2427, 112
        %v2675 = vpop.permute.xlu0 %2674
        %v2677 = vsel %vm1218, %v2671, 0
        %v2680 = vsel %vm1218, %v2673, 0
        %v2683 = vsel %vm1218, %v2675, 0
        %2685 = vmatprep.subr.bf16.mxu0 0
        %2686 = vmatpush1.bf16.xpose.msra.mxu0 %v2680
        %2687 = vmatprep.subr.bf16.mxu0 0
        %2688 = vmatpush1.bf16.xpose.msra.mxu0 %v2683
        %2689 = vmatprep.subr.bf16.mxu0 0
        %2690 = vmatpush1.bf16.xpose.msra.mxu0 0
        %2691 = vmatprep.subr.bf16.mxu0 0
        %2692 = vmatpush1.bf16.xpose.msra.mxu0 0
        %2693 = vmatprep.subr.bf16.mxu0 0
        %2694 = vmatpush1.bf16.xpose.msra.mxu0 0
        %2695 = vmatprep.subr.bf16.mxu0 0
        %2696 = vmatpush1.bf16.xpose.msra.mxu0 0
        %2697 = vmatprep.subr.bf16.mxu0 0
        %2698 = vmatpush1.bf16.xpose.msra.mxu0 0
        %2699 = vmatprep.subr.bf16.mxu0 0
        %2700 = vmatpush1.bf16.xpose.msra.mxu0 0
        %2701 = vmatprep.subr.bf16.mxu0 0
        %2702 = vmatpush1.bf16.xpose.msra.mxu0 0
        %2703 = vmatprep.subr.bf16.mxu0 0
        %2704 = vmatpush1.bf16.xpose.msra.mxu0 0
        %2705 = vmatprep.subr.bf16.mxu0 0
        %2706 = vmatpush1.bf16.xpose.msra.mxu0 0
        %2707 = vmatprep.subr.bf16.mxu0 0
        %2708 = vmatpush1.bf16.xpose.msra.mxu0 0
        %2709 = vmatprep.subr.bf16.mxu0 0
        %2710 = vmatpush1.bf16.xpose.msra.mxu0 0
        %2711 = vmatprep.subr.bf16.mxu0 0
        %2712 = vmatpush1.bf16.xpose.msra.mxu0 0
        %2713 = vmatprep.subr.bf16.mxu0 0
        %2714 = vmatpush1.bf16.xpose.msra.mxu0 0
        %2715 = vmatprep.subr.bf16.mxu0 0
        %2716 = vmatpush1.bf16.xpose.msra.mxu0 0
        %2717 = vmatprep.mubr.bf16.mxu0 0
        %2718 = vmatmul.mubr.bf16.gmra.mrb[0].mxu0 %v2677
        %v2719 = vpop.f32.mrb[0].mxu0
        %v2720 = vadd.f32 %v2432, %v2719
        %v2721 = vpop.f32.mrb[0].mxu0
        %v2722 = vpop.f32.mrb[0].mxu0
        %v2723 = vpop.f32.mrb[0].mxu0
        %2724 = vdwg.mxu0
        %v2725 = vsel %vm2482, %v2720, -inf
        %2726 = vmax.xlane.f32.xlu0 %v2725
        %v2727 = vpop.xlane.xlu0 %2726
        %v2728 = vsub.f32 %v2720, %v2727
        %v2729 = vmul.f32 %v2728, 1.442695
        %v2730 = vpow.pop %v2729
        %v2731 = vsel %vm2482, %v2730, 0.0
        %2732 = vadd.xlane.f32.xlu0 %v2731
        %v2733 = vpop.xlane.xlu0 %2732
        %v2734 = vrcp.pop %v2733
        %v2735 = vmul.f32 %v2730, %v2734
        %v2736 = vpack.c.bf16 %v2735, %v2735
        %2737 = vrot.lane.b32.xlu0 %v2426, 80
        %v2738 = vpop.permute.xlu0 %2737
        %2739 = vrot.lane.b32.xlu0 %v2427, 80
        %v2740 = vpop.permute.xlu0 %2739
        %v2743 = vsel %vm2482, %v2736, 0
        %v2746 = vand.u32 %v2740, %v2507
        %2748 = vmatprep.subr.bf16.mxu0 0
        %2749 = vmatpush1.bf16.msra.mxu0 %v2738
        %2750 = vmatprep.subr.bf16.mxu0 0
        %2751 = vmatpush1.bf16.msra.mxu0 %v2746
        %2752 = vmatprep.subr.bf16.mxu0 0
        %2753 = vmatpush1.bf16.msra.mxu0 0
        %2754 = vmatprep.subr.bf16.mxu0 0
        %2755 = vmatpush1.bf16.msra.mxu0 0
        %2756 = vmatprep.subr.bf16.mxu0 0
        %2757 = vmatpush1.bf16.msra.mxu0 0
        %2758 = vmatprep.subr.bf16.mxu0 0
        %2759 = vmatpush1.bf16.msra.mxu0 0
        %2760 = vmatprep.subr.bf16.mxu0 0
        %2761 = vmatpush1.bf16.msra.mxu0 0
        %2762 = vmatprep.subr.bf16.mxu0 0
        %2763 = vmatpush1.bf16.msra.mxu0 0
        %2764 = vmatprep.subr.bf16.mxu0 0
        %2765 = vmatpush1.bf16.msra.mxu0 0
        %2766 = vmatprep.subr.bf16.mxu0 0
        %2767 = vmatpush1.bf16.msra.mxu0 0
        %2768 = vmatprep.subr.bf16.mxu0 0
        %2769 = vmatpush1.bf16.msra.mxu0 0
        %2770 = vmatprep.subr.bf16.mxu0 0
        %2771 = vmatpush1.bf16.msra.mxu0 0
        %2772 = vmatprep.subr.bf16.mxu0 0
        %2773 = vmatpush1.bf16.msra.mxu0 0
        %2774 = vmatprep.subr.bf16.mxu0 0
        %2775 = vmatpush1.bf16.msra.mxu0 0
        %2776 = vmatprep.subr.bf16.mxu0 0
        %2777 = vmatpush1.bf16.msra.mxu0 0
        %2778 = vmatprep.subr.bf16.mxu0 0
        %2779 = vmatpush1.bf16.msra.mxu0 0
        %2780 = vmatprep.mubr.bf16.mxu0 0
        %2781 = vmatmul.mubr.bf16.gmra.mrb[0].mxu0 %v2743
        %v2782 = vpop.f32.mrb[0].mxu0
        %v2783 = vadd.f32 0.0, %v2782
        %v2784 = vpop.f32.mrb[0].mxu0
        %v2785 = vpop.f32.mrb[0].mxu0
        %v2786 = vpop.f32.mrb[0].mxu0
        %2787 = vdwg.mxu0
        %2788 = vrot.lane.b32.xlu0 %v2425, 104
        %v2789 = vpop.permute.xlu0 %2788
        %2790 = vrot.lane.b32.xlu0 %v2426, 104
        %v2791 = vpop.permute.xlu0 %2790
        %2792 = vrot.lane.b32.xlu0 %v2427, 104
        %v2793 = vpop.permute.xlu0 %2792
        %v2795 = vsel %vm1218, %v2789, 0
        %v2798 = vsel %vm1218, %v2791, 0
        %v2801 = vsel %vm1218, %v2793, 0
        %2803 = vmatprep.subr.bf16.mxu0 0
        %2804 = vmatpush1.bf16.xpose.msra.mxu0 %v2798
        %2805 = vmatprep.subr.bf16.mxu0 0
        %2806 = vmatpush1.bf16.xpose.msra.mxu0 %v2801
        %2807 = vmatprep.subr.bf16.mxu0 0
        %2808 = vmatpush1.bf16.xpose.msra.mxu0 0
        %2809 = vmatprep.subr.bf16.mxu0 0
        %2810 = vmatpush1.bf16.xpose.msra.mxu0 0
        %2811 = vmatprep.subr.bf16.mxu0 0
        %2812 = vmatpush1.bf16.xpose.msra.mxu0 0
        %2813 = vmatprep.subr.bf16.mxu0 0
        %2814 = vmatpush1.bf16.xpose.msra.mxu0 0
        %2815 = vmatprep.subr.bf16.mxu0 0
        %2816 = vmatpush1.bf16.xpose.msra.mxu0 0
        %2817 = vmatprep.subr.bf16.mxu0 0
        %2818 = vmatpush1.bf16.xpose.msra.mxu0 0
        %2819 = vmatprep.subr.bf16.mxu0 0
        %2820 = vmatpush1.bf16.xpose.msra.mxu0 0
        %2821 = vmatprep.subr.bf16.mxu0 0
        %2822 = vmatpush1.bf16.xpose.msra.mxu0 0
        %2823 = vmatprep.subr.bf16.mxu0 0
        %2824 = vmatpush1.bf16.xpose.msra.mxu0 0
        %2825 = vmatprep.subr.bf16.mxu0 0
        %2826 = vmatpush1.bf16.xpose.msra.mxu0 0
        %2827 = vmatprep.subr.bf16.mxu0 0
        %2828 = vmatpush1.bf16.xpose.msra.mxu0 0
        %2829 = vmatprep.subr.bf16.mxu0 0
        %2830 = vmatpush1.bf16.xpose.msra.mxu0 0
        %2831 = vmatprep.subr.bf16.mxu0 0
        %2832 = vmatpush1.bf16.xpose.msra.mxu0 0
        %2833 = vmatprep.subr.bf16.mxu0 0
        %2834 = vmatpush1.bf16.xpose.msra.mxu0 0
        %2835 = vmatprep.mubr.bf16.mxu0 0
        %2836 = vmatmul.mubr.bf16.gmra.mrb[0].mxu0 %v2795
        %v2837 = vpop.f32.mrb[0].mxu0
        %v2838 = vadd.f32 %v2432, %v2837
        %v2839 = vpop.f32.mrb[0].mxu0
        %v2840 = vpop.f32.mrb[0].mxu0
        %v2841 = vpop.f32.mrb[0].mxu0
        %2842 = vdwg.mxu0
        %v2843 = vsel %vm2482, %v2838, -inf
        %2844 = vmax.xlane.f32.xlu0 %v2843
        %v2845 = vpop.xlane.xlu0 %2844
        %v2846 = vsub.f32 %v2838, %v2845
        %v2847 = vmul.f32 %v2846, 1.442695
        %v2848 = vpow.pop %v2847
        %v2849 = vsel %vm2482, %v2848, 0.0
        %2850 = vadd.xlane.f32.xlu0 %v2849
        %v2851 = vpop.xlane.xlu0 %2850
        %v2852 = vrcp.pop %v2851
        %v2853 = vmul.f32 %v2848, %v2852
        %v2854 = vpack.c.bf16 %v2853, %v2853
        %2855 = vrot.lane.b32.xlu0 %v2426, 72
        %v2856 = vpop.permute.xlu0 %2855
        %2857 = vrot.lane.b32.xlu0 %v2427, 72
        %v2858 = vpop.permute.xlu0 %2857
        %v2861 = vsel %vm2482, %v2854, 0
        %v2864 = vand.u32 %v2858, %v2507
        %2866 = vmatprep.subr.bf16.mxu0 0
        %2867 = vmatpush1.bf16.msra.mxu0 %v2856
        %2868 = vmatprep.subr.bf16.mxu0 0
        %2869 = vmatpush1.bf16.msra.mxu0 %v2864
        %2870 = vmatprep.subr.bf16.mxu0 0
        %2871 = vmatpush1.bf16.msra.mxu0 0
        %2872 = vmatprep.subr.bf16.mxu0 0
        %2873 = vmatpush1.bf16.msra.mxu0 0
        %2874 = vmatprep.subr.bf16.mxu0 0
        %2875 = vmatpush1.bf16.msra.mxu0 0
        %2876 = vmatprep.subr.bf16.mxu0 0
        %2877 = vmatpush1.bf16.msra.mxu0 0
        %2878 = vmatprep.subr.bf16.mxu0 0
        %2879 = vmatpush1.bf16.msra.mxu0 0
        %2880 = vmatprep.subr.bf16.mxu0 0
        %2881 = vmatpush1.bf16.msra.mxu0 0
        %2882 = vmatprep.subr.bf16.mxu0 0
        %2883 = vmatpush1.bf16.msra.mxu0 0
        %2884 = vmatprep.subr.bf16.mxu0 0
        %2885 = vmatpush1.bf16.msra.mxu0 0
        %2886 = vmatprep.subr.bf16.mxu0 0
        %2887 = vmatpush1.bf16.msra.mxu0 0
        %2888 = vmatprep.subr.bf16.mxu0 0
        %2889 = vmatpush1.bf16.msra.mxu0 0
        %2890 = vmatprep.subr.bf16.mxu0 0
        %2891 = vmatpush1.bf16.msra.mxu0 0
        %2892 = vmatprep.subr.bf16.mxu0 0
        %2893 = vmatpush1.bf16.msra.mxu0 0
        %2894 = vmatprep.subr.bf16.mxu0 0
        %2895 = vmatpush1.bf16.msra.mxu0 0
        %2896 = vmatprep.subr.bf16.mxu0 0
        %2897 = vmatpush1.bf16.msra.mxu0 0
        %2898 = vmatprep.mubr.bf16.mxu0 0
        %2899 = vmatmul.mubr.bf16.gmra.mrb[0].mxu0 %v2861
        %v2900 = vpop.f32.mrb[0].mxu0
        %v2901 = vadd.f32 0.0, %v2900
        %v2902 = vpop.f32.mrb[0].mxu0
        %v2903 = vpop.f32.mrb[0].mxu0
        %v2904 = vpop.f32.mrb[0].mxu0
        %2905 = vdwg.mxu0
        %2907 = vrot.lane.b32.xlu0 %v2665, 8
        %v2908 = vpop.permute.xlu0 %2907
        %2911 = vrot.lane.b32.xlu0 %v2783, 16
        %v2912 = vpop.permute.xlu0 %2911
        %2915 = vrot.lane.b32.xlu0 %v2901, 24
        %v2916 = vpop.permute.xlu0 %2915
        %v2918 = vsel %vm1218, %v2546, %v2908
        %v2919 = vsel %vm1670, %v2918, %v2912
        %v2920 = vsel %vm1672, %v2919, %v2916
        %v2921 = vlaneseq
        %v2922 = vshrl.u32 %v2921, 7
        %v2923 = vsub.s32 1, %v2922
        %v2924 = vrot.slane %v2422, %v2923
        %v2925 = vrot.slane %v2425, 4
        %vm2926 = vsmask.f32 7424
        %v2927 = vshrl.u32 %v2427, 16
        %v2929 = vshll.u32 %v2427, 16
        %v2931 = vrot.slane %v2929, 1
        %v2932 = vor.u32 %v2927, %v2931
        %v2934 = vshll.u32 %v2428, 16
        %v2936 = vrot.slane %v2934, 1
        %v2937 = vsel %vm2926, %v2932, %v2936
        %v2938 = vshrl.u32 %v2428, 16
        %v2941 = vsel %vm1218, %v2925, 0
        %v2944 = vsel %vm1218, %v2937, 0
        %v2947 = vsel %vm1218, %v2938, 0
        %2949 = vmatprep.subr.bf16.mxu0 0
        %2950 = vmatpush1.bf16.xpose.msra.mxu0 %v2944
        %2951 = vmatprep.subr.bf16.mxu0 0
        %2952 = vmatpush1.bf16.xpose.msra.mxu0 %v2947
        %2953 = vmatprep.subr.bf16.mxu0 0
        %2954 = vmatpush1.bf16.xpose.msra.mxu0 0
        %2955 = vmatprep.subr.bf16.mxu0 0
        %2956 = vmatpush1.bf16.xpose.msra.mxu0 0
        %2957 = vmatprep.subr.bf16.mxu0 0
        %2958 = vmatpush1.bf16.xpose.msra.mxu0 0
        %2959 = vmatprep.subr.bf16.mxu0 0
        %2960 = vmatpush1.bf16.xpose.msra.mxu0 0
        %2961 = vmatprep.subr.bf16.mxu0 0
        %2962 = vmatpush1.bf16.xpose.msra.mxu0 0
        %2963 = vmatprep.subr.bf16.mxu0 0
        %2964 = vmatpush1.bf16.xpose.msra.mxu0 0
        %2965 = vmatprep.subr.bf16.mxu0 0
        %2966 = vmatpush1.bf16.xpose.msra.mxu0 0
        %2967 = vmatprep.subr.bf16.mxu0 0
        %2968 = vmatpush1.bf16.xpose.msra.mxu0 0
        %2969 = vmatprep.subr.bf16.mxu0 0
        %2970 = vmatpush1.bf16.xpose.msra.mxu0 0
        %2971 = vmatprep.subr.bf16.mxu0 0
        %2972 = vmatpush1.bf16.xpose.msra.mxu0 0
        %2973 = vmatprep.subr.bf16.mxu0 0
        %2974 = vmatpush1.bf16.xpose.msra.mxu0 0
        %2975 = vmatprep.subr.bf16.mxu0 0
        %2976 = vmatpush1.bf16.xpose.msra.mxu0 0
        %2977 = vmatprep.subr.bf16.mxu0 0
        %2978 = vmatpush1.bf16.xpose.msra.mxu0 0
        %2979 = vmatprep.subr.bf16.mxu0 0
        %2980 = vmatpush1.bf16.xpose.msra.mxu0 0
        %2981 = vmatprep.mubr.bf16.mxu0 0
        %2982 = vmatmul.mubr.bf16.gmra.mrb[0].mxu0 %v2941
        %v2983 = vpop.f32.mrb[0].mxu0
        %v2984 = vadd.f32 %v2924, %v2983
        %v2985 = vpop.f32.mrb[0].mxu0
        %v2986 = vpop.f32.mrb[0].mxu0
        %v2987 = vpop.f32.mrb[0].mxu0
        %2988 = vdwg.mxu0
        %v2989 = vsel %vm2482, %v2984, -inf
        %2990 = vmax.xlane.f32.xlu0 %v2989
        %v2991 = vpop.xlane.xlu0 %2990
        %v2992 = vsub.f32 %v2984, %v2991
        %v2993 = vmul.f32 %v2992, 1.442695
        %v2994 = vpow.pop %v2993
        %v2995 = vsel %vm2482, %v2994, 0.0
        %2996 = vadd.xlane.f32.xlu0 %v2995
        %v2997 = vpop.xlane.xlu0 %2996
        %v2998 = vrcp.pop %v2997
        %v2999 = vmul.f32 %v2994, %v2998
        %v3000 = vpack.c.bf16 %v2999, %v2999
        %3001 = vrot.lane.b32.xlu0 %v2937, 96
        %v3002 = vpop.permute.xlu0 %3001
        %3003 = vrot.lane.b32.xlu0 %v2938, 96
        %v3004 = vpop.permute.xlu0 %3003
        %v3007 = vsel %vm2482, %v3000, 0
        %v3010 = vand.u32 %v3004, %v2507
        %3012 = vmatprep.subr.bf16.mxu0 0
        %3013 = vmatpush1.bf16.msra.mxu0 %v3002
        %3014 = vmatprep.subr.bf16.mxu0 0
        %3015 = vmatpush1.bf16.msra.mxu0 %v3010
        %3016 = vmatprep.subr.bf16.mxu0 0
        %3017 = vmatpush1.bf16.msra.mxu0 0
        %3018 = vmatprep.subr.bf16.mxu0 0
        %3019 = vmatpush1.bf16.msra.mxu0 0
        %3020 = vmatprep.subr.bf16.mxu0 0
        %3021 = vmatpush1.bf16.msra.mxu0 0
        %3022 = vmatprep.subr.bf16.mxu0 0
        %3023 = vmatpush1.bf16.msra.mxu0 0
        %3024 = vmatprep.subr.bf16.mxu0 0
        %3025 = vmatpush1.bf16.msra.mxu0 0
        %3026 = vmatprep.subr.bf16.mxu0 0
        %3027 = vmatpush1.bf16.msra.mxu0 0
        %3028 = vmatprep.subr.bf16.mxu0 0
        %3029 = vmatpush1.bf16.msra.mxu0 0
        %3030 = vmatprep.subr.bf16.mxu0 0
        %3031 = vmatpush1.bf16.msra.mxu0 0
        %3032 = vmatprep.subr.bf16.mxu0 0
        %3033 = vmatpush1.bf16.msra.mxu0 0
        %3034 = vmatprep.subr.bf16.mxu0 0
        %3035 = vmatpush1.bf16.msra.mxu0 0
        %3036 = vmatprep.subr.bf16.mxu0 0
        %3037 = vmatpush1.bf16.msra.mxu0 0
        %3038 = vmatprep.subr.bf16.mxu0 0
        %3039 = vmatpush1.bf16.msra.mxu0 0
        %3040 = vmatprep.subr.bf16.mxu0 0
        %3041 = vmatpush1.bf16.msra.mxu0 0
        %3042 = vmatprep.subr.bf16.mxu0 0
        %3043 = vmatpush1.bf16.msra.mxu0 0
        %3044 = vmatprep.mubr.bf16.mxu0 0
        %3045 = vmatmul.mubr.bf16.gmra.mrb[0].mxu0 %v3007
        %v3046 = vpop.f32.mrb[0].mxu0
        %v3047 = vadd.f32 0.0, %v3046
        %v3048 = vpop.f32.mrb[0].mxu0
        %v3049 = vpop.f32.mrb[0].mxu0
        %v3050 = vpop.f32.mrb[0].mxu0
        %3051 = vdwg.mxu0
        %3052 = vrot.lane.b32.xlu0 %v2925, 120
        %v3053 = vpop.permute.xlu0 %3052
        %3054 = vrot.lane.b32.xlu0 %v2937, 120
        %v3055 = vpop.permute.xlu0 %3054
        %3056 = vrot.lane.b32.xlu0 %v2938, 120
        %v3057 = vpop.permute.xlu0 %3056
        %v3059 = vsel %vm1218, %v3053, 0
        %v3062 = vsel %vm1218, %v3055, 0
        %v3065 = vsel %vm1218, %v3057, 0
        %3067 = vmatprep.subr.bf16.mxu0 0
        %3068 = vmatpush1.bf16.xpose.msra.mxu0 %v3062
        %3069 = vmatprep.subr.bf16.mxu0 0
        %3070 = vmatpush1.bf16.xpose.msra.mxu0 %v3065
        %3071 = vmatprep.subr.bf16.mxu0 0
        %3072 = vmatpush1.bf16.xpose.msra.mxu0 0
        %3073 = vmatprep.subr.bf16.mxu0 0
        %3074 = vmatpush1.bf16.xpose.msra.mxu0 0
        %3075 = vmatprep.subr.bf16.mxu0 0
        %3076 = vmatpush1.bf16.xpose.msra.mxu0 0
        %3077 = vmatprep.subr.bf16.mxu0 0
        %3078 = vmatpush1.bf16.xpose.msra.mxu0 0
        %3079 = vmatprep.subr.bf16.mxu0 0
        %3080 = vmatpush1.bf16.xpose.msra.mxu0 0
        %3081 = vmatprep.subr.bf16.mxu0 0
        %3082 = vmatpush1.bf16.xpose.msra.mxu0 0
        %3083 = vmatprep.subr.bf16.mxu0 0
        %3084 = vmatpush1.bf16.xpose.msra.mxu0 0
        %3085 = vmatprep.subr.bf16.mxu0 0
        %3086 = vmatpush1.bf16.xpose.msra.mxu0 0
        %3087 = vmatprep.subr.bf16.mxu0 0
        %3088 = vmatpush1.bf16.xpose.msra.mxu0 0
        %3089 = vmatprep.subr.bf16.mxu0 0
        %3090 = vmatpush1.bf16.xpose.msra.mxu0 0
        %3091 = vmatprep.subr.bf16.mxu0 0
        %3092 = vmatpush1.bf16.xpose.msra.mxu0 0
        %3093 = vmatprep.subr.bf16.mxu0 0
        %3094 = vmatpush1.bf16.xpose.msra.mxu0 0
        %3095 = vmatprep.subr.bf16.mxu0 0
        %3096 = vmatpush1.bf16.xpose.msra.mxu0 0
        %3097 = vmatprep.subr.bf16.mxu0 0
        %3098 = vmatpush1.bf16.xpose.msra.mxu0 0
        %3099 = vmatprep.mubr.bf16.mxu0 0
        %3100 = vmatmul.mubr.bf16.gmra.mrb[0].mxu0 %v3059
        %v3101 = vpop.f32.mrb[0].mxu0
        %v3102 = vadd.f32 %v2924, %v3101
        %v3103 = vpop.f32.mrb[0].mxu0
        %v3104 = vpop.f32.mrb[0].mxu0
        %v3105 = vpop.f32.mrb[0].mxu0
        %3106 = vdwg.mxu0
        %v3107 = vsel %vm2482, %v3102, -inf
        %3108 = vmax.xlane.f32.xlu0 %v3107
        %v3109 = vpop.xlane.xlu0 %3108
        %v3110 = vsub.f32 %v3102, %v3109
        %v3111 = vmul.f32 %v3110, 1.442695
        %v3112 = vpow.pop %v3111
        %v3113 = vsel %vm2482, %v3112, 0.0
        %3114 = vadd.xlane.f32.xlu0 %v3113
        %v3115 = vpop.xlane.xlu0 %3114
        %v3116 = vrcp.pop %v3115
        %v3117 = vmul.f32 %v3112, %v3116
        %v3118 = vpack.c.bf16 %v3117, %v3117
        %3119 = vrot.lane.b32.xlu0 %v2937, 88
        %v3120 = vpop.permute.xlu0 %3119
        %3121 = vrot.lane.b32.xlu0 %v2938, 88
        %v3122 = vpop.permute.xlu0 %3121
        %v3125 = vsel %vm2482, %v3118, 0
        %v3128 = vand.u32 %v3122, %v2507
        %3130 = vmatprep.subr.bf16.mxu0 0
        %3131 = vmatpush1.bf16.msra.mxu0 %v3120
        %3132 = vmatprep.subr.bf16.mxu0 0
        %3133 = vmatpush1.bf16.msra.mxu0 %v3128
        %3134 = vmatprep.subr.bf16.mxu0 0
        %3135 = vmatpush1.bf16.msra.mxu0 0
        %3136 = vmatprep.subr.bf16.mxu0 0
        %3137 = vmatpush1.bf16.msra.mxu0 0
        %3138 = vmatprep.subr.bf16.mxu0 0
        %3139 = vmatpush1.bf16.msra.mxu0 0
        %3140 = vmatprep.subr.bf16.mxu0 0
        %3141 = vmatpush1.bf16.msra.mxu0 0
        %3142 = vmatprep.subr.bf16.mxu0 0
        %3143 = vmatpush1.bf16.msra.mxu0 0
        %3144 = vmatprep.subr.bf16.mxu0 0
        %3145 = vmatpush1.bf16.msra.mxu0 0
        %3146 = vmatprep.subr.bf16.mxu0 0
        %3147 = vmatpush1.bf16.msra.mxu0 0
        %3148 = vmatprep.subr.bf16.mxu0 0
        %3149 = vmatpush1.bf16.msra.mxu0 0
        %3150 = vmatprep.subr.bf16.mxu0 0
        %3151 = vmatpush1.bf16.msra.mxu0 0
        %3152 = vmatprep.subr.bf16.mxu0 0
        %3153 = vmatpush1.bf16.msra.mxu0 0
        %3154 = vmatprep.subr.bf16.mxu0 0
        %3155 = vmatpush1.bf16.msra.mxu0 0
        %3156 = vmatprep.subr.bf16.mxu0 0
        %3157 = vmatpush1.bf16.msra.mxu0 0
        %3158 = vmatprep.subr.bf16.mxu0 0
        %3159 = vmatpush1.bf16.msra.mxu0 0
        %3160 = vmatprep.subr.bf16.mxu0 0
        %3161 = vmatpush1.bf16.msra.mxu0 0
        %3162 = vmatprep.mubr.bf16.mxu0 0
        %3163 = vmatmul.mubr.bf16.gmra.mrb[0].mxu0 %v3125
        %v3164 = vpop.f32.mrb[0].mxu0
        %v3165 = vadd.f32 0.0, %v3164
        %v3166 = vpop.f32.mrb[0].mxu0
        %v3167 = vpop.f32.mrb[0].mxu0
        %v3168 = vpop.f32.mrb[0].mxu0
        %3169 = vdwg.mxu0
        %3170 = vrot.lane.b32.xlu0 %v2925, 112
        %v3171 = vpop.permute.xlu0 %3170
        %3172 = vrot.lane.b32.xlu0 %v2937, 112
        %v3173 = vpop.permute.xlu0 %3172
        %3174 = vrot.lane.b32.xlu0 %v2938, 112
        %v3175 = vpop.permute.xlu0 %3174
        %v3177 = vsel %vm1218, %v3171, 0
        %v3180 = vsel %vm1218, %v3173, 0
        %v3183 = vsel %vm1218, %v3175, 0
        %3185 = vmatprep.subr.bf16.mxu0 0
        %3186 = vmatpush1.bf16.xpose.msra.mxu0 %v3180
        %3187 = vmatprep.subr.bf16.mxu0 0
        %3188 = vmatpush1.bf16.xpose.msra.mxu0 %v3183
        %3189 = vmatprep.subr.bf16.mxu0 0
        %3190 = vmatpush1.bf16.xpose.msra.mxu0 0
        %3191 = vmatprep.subr.bf16.mxu0 0
        %3192 = vmatpush1.bf16.xpose.msra.mxu0 0
        %3193 = vmatprep.subr.bf16.mxu0 0
        %3194 = vmatpush1.bf16.xpose.msra.mxu0 0
        %3195 = vmatprep.subr.bf16.mxu0 0
        %3196 = vmatpush1.bf16.xpose.msra.mxu0 0
        %3197 = vmatprep.subr.bf16.mxu0 0
        %3198 = vmatpush1.bf16.xpose.msra.mxu0 0
        %3199 = vmatprep.subr.bf16.mxu0 0
        %3200 = vmatpush1.bf16.xpose.msra.mxu0 0
        %3201 = vmatprep.subr.bf16.mxu0 0
        %3202 = vmatpush1.bf16.xpose.msra.mxu0 0
        %3203 = vmatprep.subr.bf16.mxu0 0
        %3204 = vmatpush1.bf16.xpose.msra.mxu0 0
        %3205 = vmatprep.subr.bf16.mxu0 0
        %3206 = vmatpush1.bf16.xpose.msra.mxu0 0
        %3207 = vmatprep.subr.bf16.mxu0 0
        %3208 = vmatpush1.bf16.xpose.msra.mxu0 0
        %3209 = vmatprep.subr.bf16.mxu0 0
        %3210 = vmatpush1.bf16.xpose.msra.mxu0 0
        %3211 = vmatprep.subr.bf16.mxu0 0
        %3212 = vmatpush1.bf16.xpose.msra.mxu0 0
        %3213 = vmatprep.subr.bf16.mxu0 0
        %3214 = vmatpush1.bf16.xpose.msra.mxu0 0
        %3215 = vmatprep.subr.bf16.mxu0 0
        %3216 = vmatpush1.bf16.xpose.msra.mxu0 0
        %3217 = vmatprep.mubr.bf16.mxu0 0
        %3218 = vmatmul.mubr.bf16.gmra.mrb[0].mxu0 %v3177
        %v3219 = vpop.f32.mrb[0].mxu0
        %v3220 = vadd.f32 %v2924, %v3219
        %v3221 = vpop.f32.mrb[0].mxu0
        %v3222 = vpop.f32.mrb[0].mxu0
        %v3223 = vpop.f32.mrb[0].mxu0
        %3224 = vdwg.mxu0
        %v3225 = vsel %vm2482, %v3220, -inf
        %3226 = vmax.xlane.f32.xlu0 %v3225
        %v3227 = vpop.xlane.xlu0 %3226
        %v3228 = vsub.f32 %v3220, %v3227
        %v3229 = vmul.f32 %v3228, 1.442695
        %v3230 = vpow.pop %v3229
        %v3231 = vsel %vm2482, %v3230, 0.0
        %3232 = vadd.xlane.f32.xlu0 %v3231
        %v3233 = vpop.xlane.xlu0 %3232
        %v3234 = vrcp.pop %v3233
        %v3235 = vmul.f32 %v3230, %v3234
        %v3236 = vpack.c.bf16 %v3235, %v3235
        %3237 = vrot.lane.b32.xlu0 %v2937, 80
        %v3238 = vpop.permute.xlu0 %3237
        %3239 = vrot.lane.b32.xlu0 %v2938, 80
        %v3240 = vpop.permute.xlu0 %3239
        %v3243 = vsel %vm2482, %v3236, 0
        %v3246 = vand.u32 %v3240, %v2507
        %3248 = vmatprep.subr.bf16.mxu0 0
        %3249 = vmatpush1.bf16.msra.mxu0 %v3238
        %3250 = vmatprep.subr.bf16.mxu0 0
        %3251 = vmatpush1.bf16.msra.mxu0 %v3246
        %3252 = vmatprep.subr.bf16.mxu0 0
        %3253 = vmatpush1.bf16.msra.mxu0 0
        %3254 = vmatprep.subr.bf16.mxu0 0
        %3255 = vmatpush1.bf16.msra.mxu0 0
        %3256 = vmatprep.subr.bf16.mxu0 0
        %3257 = vmatpush1.bf16.msra.mxu0 0
        %3258 = vmatprep.subr.bf16.mxu0 0
        %3259 = vmatpush1.bf16.msra.mxu0 0
        %3260 = vmatprep.subr.bf16.mxu0 0
        %3261 = vmatpush1.bf16.msra.mxu0 0
        %3262 = vmatprep.subr.bf16.mxu0 0
        %3263 = vmatpush1.bf16.msra.mxu0 0
        %3264 = vmatprep.subr.bf16.mxu0 0
        %3265 = vmatpush1.bf16.msra.mxu0 0
        %3266 = vmatprep.subr.bf16.mxu0 0
        %3267 = vmatpush1.bf16.msra.mxu0 0
        %3268 = vmatprep.subr.bf16.mxu0 0
        %3269 = vmatpush1.bf16.msra.mxu0 0
        %3270 = vmatprep.subr.bf16.mxu0 0
        %3271 = vmatpush1.bf16.msra.mxu0 0
        %3272 = vmatprep.subr.bf16.mxu0 0
        %3273 = vmatpush1.bf16.msra.mxu0 0
        %3274 = vmatprep.subr.bf16.mxu0 0
        %3275 = vmatpush1.bf16.msra.mxu0 0
        %3276 = vmatprep.subr.bf16.mxu0 0
        %3277 = vmatpush1.bf16.msra.mxu0 0
        %3278 = vmatprep.subr.bf16.mxu0 0
        %3279 = vmatpush1.bf16.msra.mxu0 0
        %3280 = vmatprep.mubr.bf16.mxu0 0
        %3281 = vmatmul.mubr.bf16.gmra.mrb[0].mxu0 %v3243
        %v3282 = vpop.f32.mrb[0].mxu0
        %v3283 = vadd.f32 0.0, %v3282
        %v3284 = vpop.f32.mrb[0].mxu0
        %v3285 = vpop.f32.mrb[0].mxu0
        %v3286 = vpop.f32.mrb[0].mxu0
        %3287 = vdwg.mxu0
        %3288 = vrot.lane.b32.xlu0 %v2925, 104
        %v3289 = vpop.permute.xlu0 %3288
        %3290 = vrot.lane.b32.xlu0 %v2937, 104
        %v3291 = vpop.permute.xlu0 %3290
        %3292 = vrot.lane.b32.xlu0 %v2938, 104
        %v3293 = vpop.permute.xlu0 %3292
        %v3295 = vsel %vm1218, %v3289, 0
        %v3298 = vsel %vm1218, %v3291, 0
        %v3301 = vsel %vm1218, %v3293, 0
        %3303 = vmatprep.subr.bf16.mxu0 0
        %3304 = vmatpush1.bf16.xpose.msra.mxu0 %v3298
        %3305 = vmatprep.subr.bf16.mxu0 0
        %3306 = vmatpush1.bf16.xpose.msra.mxu0 %v3301
        %3307 = vmatprep.subr.bf16.mxu0 0
        %3308 = vmatpush1.bf16.xpose.msra.mxu0 0
        %3309 = vmatprep.subr.bf16.mxu0 0
        %3310 = vmatpush1.bf16.xpose.msra.mxu0 0
        %3311 = vmatprep.subr.bf16.mxu0 0
        %3312 = vmatpush1.bf16.xpose.msra.mxu0 0
        %3313 = vmatprep.subr.bf16.mxu0 0
        %3314 = vmatpush1.bf16.xpose.msra.mxu0 0
        %3315 = vmatprep.subr.bf16.mxu0 0
        %3316 = vmatpush1.bf16.xpose.msra.mxu0 0
        %3317 = vmatprep.subr.bf16.mxu0 0
        %3318 = vmatpush1.bf16.xpose.msra.mxu0 0
        %3319 = vmatprep.subr.bf16.mxu0 0
        %3320 = vmatpush1.bf16.xpose.msra.mxu0 0
        %3321 = vmatprep.subr.bf16.mxu0 0
        %3322 = vmatpush1.bf16.xpose.msra.mxu0 0
        %3323 = vmatprep.subr.bf16.mxu0 0
        %3324 = vmatpush1.bf16.xpose.msra.mxu0 0
        %3325 = vmatprep.subr.bf16.mxu0 0
        %3326 = vmatpush1.bf16.xpose.msra.mxu0 0
        %3327 = vmatprep.subr.bf16.mxu0 0
        %3328 = vmatpush1.bf16.xpose.msra.mxu0 0
        %3329 = vmatprep.subr.bf16.mxu0 0
        %3330 = vmatpush1.bf16.xpose.msra.mxu0 0
        %3331 = vmatprep.subr.bf16.mxu0 0
        %3332 = vmatpush1.bf16.xpose.msra.mxu0 0
        %3333 = vmatprep.subr.bf16.mxu0 0
        %3334 = vmatpush1.bf16.xpose.msra.mxu0 0
        %3335 = vmatprep.mubr.bf16.mxu0 0
        %3336 = vmatmul.mubr.bf16.gmra.mrb[0].mxu0 %v3295
        %v3337 = vpop.f32.mrb[0].mxu0
        %v3338 = vadd.f32 %v2924, %v3337
        %v3339 = vpop.f32.mrb[0].mxu0
        %v3340 = vpop.f32.mrb[0].mxu0
        %v3341 = vpop.f32.mrb[0].mxu0
        %3342 = vdwg.mxu0
        %v3343 = vsel %vm2482, %v3338, -inf
        %3344 = vmax.xlane.f32.xlu0 %v3343
        %v3345 = vpop.xlane.xlu0 %3344
        %v3346 = vsub.f32 %v3338, %v3345
        %v3347 = vmul.f32 %v3346, 1.442695
        %v3348 = vpow.pop %v3347
        %v3349 = vsel %vm2482, %v3348, 0.0
        %3350 = vadd.xlane.f32.xlu0 %v3349
        %v3351 = vpop.xlane.xlu0 %3350
        %v3352 = vrcp.pop %v3351
        %v3353 = vmul.f32 %v3348, %v3352
        %v3354 = vpack.c.bf16 %v3353, %v3353
        %3355 = vrot.lane.b32.xlu0 %v2937, 72
        %v3356 = vpop.permute.xlu0 %3355
        %3357 = vrot.lane.b32.xlu0 %v2938, 72
        %v3358 = vpop.permute.xlu0 %3357
        %v3361 = vsel %vm2482, %v3354, 0
        %v3364 = vand.u32 %v3358, %v2507
        %3366 = vmatprep.subr.bf16.mxu0 0
        %3367 = vmatpush1.bf16.msra.mxu0 %v3356
        %3368 = vmatprep.subr.bf16.mxu0 0
        %3369 = vmatpush1.bf16.msra.mxu0 %v3364
        %3370 = vmatprep.subr.bf16.mxu0 0
        %3371 = vmatpush1.bf16.msra.mxu0 0
        %3372 = vmatprep.subr.bf16.mxu0 0
        %3373 = vmatpush1.bf16.msra.mxu0 0
        %3374 = vmatprep.subr.bf16.mxu0 0
        %3375 = vmatpush1.bf16.msra.mxu0 0
        %3376 = vmatprep.subr.bf16.mxu0 0
        %3377 = vmatpush1.bf16.msra.mxu0 0
        %3378 = vmatprep.subr.bf16.mxu0 0
        %3379 = vmatpush1.bf16.msra.mxu0 0
        %3380 = vmatprep.subr.bf16.mxu0 0
        %3381 = vmatpush1.bf16.msra.mxu0 0
        %3382 = vmatprep.subr.bf16.mxu0 0
        %3383 = vmatpush1.bf16.msra.mxu0 0
        %3384 = vmatprep.subr.bf16.mxu0 0
        %3385 = vmatpush1.bf16.msra.mxu0 0
        %3386 = vmatprep.subr.bf16.mxu0 0
        %3387 = vmatpush1.bf16.msra.mxu0 0
        %3388 = vmatprep.subr.bf16.mxu0 0
        %3389 = vmatpush1.bf16.msra.mxu0 0
        %3390 = vmatprep.subr.bf16.mxu0 0
        %3391 = vmatpush1.bf16.msra.mxu0 0
        %3392 = vmatprep.subr.bf16.mxu0 0
        %3393 = vmatpush1.bf16.msra.mxu0 0
        %3394 = vmatprep.subr.bf16.mxu0 0
        %3395 = vmatpush1.bf16.msra.mxu0 0
        %3396 = vmatprep.subr.bf16.mxu0 0
        %3397 = vmatpush1.bf16.msra.mxu0 0
        %3398 = vmatprep.mubr.bf16.mxu0 0
        %3399 = vmatmul.mubr.bf16.gmra.mrb[0].mxu0 %v3361
        %v3400 = vpop.f32.mrb[0].mxu0
        %v3401 = vadd.f32 0.0, %v3400
        %v3402 = vpop.f32.mrb[0].mxu0
        %v3403 = vpop.f32.mrb[0].mxu0
        %v3404 = vpop.f32.mrb[0].mxu0
        %3405 = vdwg.mxu0
        %3407 = vrot.lane.b32.xlu0 %v3165, 8
        %v3408 = vpop.permute.xlu0 %3407
        %3411 = vrot.lane.b32.xlu0 %v3283, 16
        %v3412 = vpop.permute.xlu0 %3411
        %3415 = vrot.lane.b32.xlu0 %v3401, 24
        %v3416 = vpop.permute.xlu0 %3415
        %v3418 = vsel %vm1218, %v3047, %v3408
        %v3419 = vsel %vm1670, %v3418, %v3412
        %v3420 = vsel %vm1672, %v3419, %v3416
        %v3421 = vld [vmem:[%s1048] sm:$0xf]
        %v3422 = vld [vmem:[%s1048 + $0x4] sm:$0xf]
        %v3423 = vld [vmem:[%s1048 + $0x8] sm:$0xf]
        %v3424 = vld [vmem:[%s1048 + $0xc] sm:$0xf]
        %v3425 = vpack.c.bf16 %v3420, %v2920
        %v3426 = vld [vmem:[%s1051] sm:$0x1]
        %v3428 = vlaneseq
        %v3429 = vshrl.u32 %v3428, 7
        %v3430 = vsub.s32 0, %v3429
        %v3431 = vrot.slane %v3426, %v3430
        %v3437 = vunpack.c.l.b16 %v3421
        %v3438 = vunpack.c.l.b16 %v3422
        %v3439 = vunpack.c.l.b16 %v3423
        %v3440 = vunpack.c.l.b16 %v3424
        %v3441 = vpack.c.b16 %v3438, %v3437
        %v3442 = vpack.c.b16 %v3440, %v3439
        %v3446 = vsel %vm1161, %v3425, 0
        %3448 = vmatprep.subr.bf16.mxu0 0
        %3449 = vmatpush1.bf16.msra.mxu0 %v3441
        %3450 = vmatprep.subr.bf16.mxu0 0
        %3451 = vmatpush1.bf16.msra.mxu0 %v3442
        %3452 = vmatprep.subr.bf16.mxu0 0
        %3453 = vmatpush1.bf16.msra.mxu0 0
        %3454 = vmatprep.subr.bf16.mxu0 0
        %3455 = vmatpush1.bf16.msra.mxu0 0
        %3456 = vmatprep.subr.bf16.mxu0 0
        %3457 = vmatpush1.bf16.msra.mxu0 0
        %3458 = vmatprep.subr.bf16.mxu0 0
        %3459 = vmatpush1.bf16.msra.mxu0 0
        %3460 = vmatprep.subr.bf16.mxu0 0
        %3461 = vmatpush1.bf16.msra.mxu0 0
        %3462 = vmatprep.subr.bf16.mxu0 0
        %3463 = vmatpush1.bf16.msra.mxu0 0
        %3464 = vmatprep.subr.bf16.mxu0 0
        %3465 = vmatpush1.bf16.msra.mxu0 0
        %3466 = vmatprep.subr.bf16.mxu0 0
        %3467 = vmatpush1.bf16.msra.mxu0 0
        %3468 = vmatprep.subr.bf16.mxu0 0
        %3469 = vmatpush1.bf16.msra.mxu0 0
        %3470 = vmatprep.subr.bf16.mxu0 0
        %3471 = vmatpush1.bf16.msra.mxu0 0
        %3472 = vmatprep.subr.bf16.mxu0 0
        %3473 = vmatpush1.bf16.msra.mxu0 0
        %3474 = vmatprep.subr.bf16.mxu0 0
        %3475 = vmatpush1.bf16.msra.mxu0 0
        %3476 = vmatprep.subr.bf16.mxu0 0
        %3477 = vmatpush1.bf16.msra.mxu0 0
        %3478 = vmatprep.subr.bf16.mxu0 0
        %3479 = vmatpush1.bf16.msra.mxu0 0
        %3480 = vmatprep.mubr.bf16.mxu0 0
        %3481 = vmatmul.mubr.bf16.gmra.mrb[0].mxu0 %v3446
        %v3482 = vpop.f32.mrb[0].mxu0
        %v3483 = vadd.f32 %v3431, %v3482
        %v3484 = vpop.f32.mrb[0].mxu0
        %v3485 = vpop.f32.mrb[0].mxu0
        %v3486 = vadd.f32 %v3431, %v3485
        %v3487 = vpop.f32.mrb[0].mxu0
        %3488 = vdwg.mxu0
        %v3489 = vadd.f32 %v2246, %v3483
        %v3490 = vadd.f32 %v2247, %v3486
        %v3491 = vld [vmem:[%s1054] sm:$0x1]
        %v3492 = vld [vmem:[%s1057] sm:$0x1]
        %v3493 = vsel %vm1161, %v3489, 0.0
        %3494 = vadd.xlane.f32.xlu0 %v3493
        %v3495 = vpop.xlane.xlu0 %3494
        %v3496 = vsel %vm1161, %v3490, 0.0
        %3497 = vadd.xlane.f32.xlu0 %v3496
        %v3498 = vpop.xlane.xlu0 %3497
        %v3499 = vmul.f32 %v3495, %v2211
        %v3500 = vmul.f32 %v3498, %v2211
        %v3501 = vsub.f32 %v3489, %v3499
        %v3502 = vsub.f32 %v3490, %v3500
        %v3503 = vmul.f32 %v3501, %v3501
        %v3504 = vmul.f32 %v3502, %v3502
        %v3505 = vsel %vm1161, %v3503, 0.0
        %3506 = vadd.xlane.f32.xlu0 %v3505
        %v3507 = vpop.xlane.xlu0 %3506
        %v3508 = vsel %vm1161, %v3504, 0.0
        %3509 = vadd.xlane.f32.xlu0 %v3508
        %v3510 = vpop.xlane.xlu0 %3509
        %v3511 = vmul.f32 %v3507, %v2211
        %v3512 = vmul.f32 %v3510, %v2211
        %v3513 = vadd.f32 %v3511, 1e-12
        %v3514 = vadd.f32 %v3512, 1e-12
        %v3515 = vrsqrt.pop %v3513
        %v3516 = vrsqrt.pop %v3514
        %v3517 = vmul.f32 %v3501, %v3515
        %v3518 = vmul.f32 %v3502, %v3516
        %v3520 = vlaneseq
        %v3521 = vshrl.u32 %v3520, 7
        %v3522 = vsub.s32 0, %v3521
        %v3523 = vrot.slane %v3491, %v3522
        %v3525 = vmul.f32 %v3517, %v3523
        %v3526 = vmul.f32 %v3518, %v3523
        %v3528 = vlaneseq
        %v3529 = vshrl.u32 %v3528, 7
        %v3530 = vsub.s32 0, %v3529
        %v3531 = vrot.slane %v3492, %v3530
        %v3533 = vadd.f32 %v3525, %v3531
        %v3534 = vadd.f32 %v3526, %v3531
        %v3535 = vld [vmem:[%s1062] sm:$0xf]
        %v3536 = vld [vmem:[%s1062 + $0x4] sm:$0xf]
        %v3537 = vld [vmem:[%s1062 + $0x8] sm:$0xf]
        %v3538 = vld [vmem:[%s1062 + $0xc] sm:$0xf]
        %v3539 = vpack.c.bf16 %v3534, %v3533
        %v3540 = vld [vmem:[%s1065] sm:$0x1]
        %v3542 = vlaneseq
        %v3543 = vshrl.u32 %v3542, 7
        %v3544 = vsub.s32 0, %v3543
        %v3545 = vrot.slane %v3540, %v3544
        %v3551 = vunpack.c.l.b16 %v3535
        %v3552 = vunpack.c.l.b16 %v3536
        %v3553 = vunpack.c.l.b16 %v3537
        %v3554 = vunpack.c.l.b16 %v3538
        %v3555 = vpack.c.b16 %v3552, %v3551
        %v3556 = vpack.c.b16 %v3554, %v3553
        %v3560 = vsel %vm1161, %v3539, 0
        %3562 = vmatprep.subr.bf16.mxu0 0
        %3563 = vmatpush1.bf16.msra.mxu0 %v3555
        %3564 = vmatprep.subr.bf16.mxu0 0
        %3565 = vmatpush1.bf16.msra.mxu0 %v3556
        %3566 = vmatprep.subr.bf16.mxu0 0
        %3567 = vmatpush1.bf16.msra.mxu0 0
        %3568 = vmatprep.subr.bf16.mxu0 0
        %3569 = vmatpush1.bf16.msra.mxu0 0
        %3570 = vmatprep.subr.bf16.mxu0 0
        %3571 = vmatpush1.bf16.msra.mxu0 0
        %3572 = vmatprep.subr.bf16.mxu0 0
        %3573 = vmatpush1.bf16.msra.mxu0 0
        %3574 = vmatprep.subr.bf16.mxu0 0
        %3575 = vmatpush1.bf16.msra.mxu0 0
        %3576 = vmatprep.subr.bf16.mxu0 0
        %3577 = vmatpush1.bf16.msra.mxu0 0
        %3578 = vmatprep.subr.bf16.mxu0 0
        %3579 = vmatpush1.bf16.msra.mxu0 0
        %3580 = vmatprep.subr.bf16.mxu0 0
        %3581 = vmatpush1.bf16.msra.mxu0 0
        %3582 = vmatprep.subr.bf16.mxu0 0
        %3583 = vmatpush1.bf16.msra.mxu0 0
        %3584 = vmatprep.subr.bf16.mxu0 0
        %3585 = vmatpush1.bf16.msra.mxu0 0
        %3586 = vmatprep.subr.bf16.mxu0 0
        %3587 = vmatpush1.bf16.msra.mxu0 0
        %3588 = vmatprep.subr.bf16.mxu0 0
        %3589 = vmatpush1.bf16.msra.mxu0 0
        %3590 = vmatprep.subr.bf16.mxu0 0
        %3591 = vmatpush1.bf16.msra.mxu0 0
        %3592 = vmatprep.subr.bf16.mxu0 0
        %3593 = vmatpush1.bf16.msra.mxu0 0
        %3594 = vmatprep.mubr.bf16.mxu0 0
        %3595 = vmatmul.mubr.bf16.gmra.mrb[0].mxu0 %v3560
        %v3596 = vpop.f32.mrb[0].mxu0
        %v3597 = vadd.f32 %v3545, %v3596
        %v3598 = vpop.f32.mrb[0].mxu0
        %v3599 = vpop.f32.mrb[0].mxu0
        %v3600 = vadd.f32 %v3545, %v3599
        %v3601 = vpop.f32.mrb[0].mxu0
        %3602 = vdwg.mxu0
        %v3603 = vmul.f32 %v3597, 0.5
        %v3604 = vmul.f32 %v3600, 0.5
        %v3605 = vmul.f32 %v3597, 0.044715
        %v3606 = vmul.f32 %v3600, 0.044715
        %v3607 = vmul.f32 %v3605, %v3597
        %v3608 = vmul.f32 %v3606, %v3600
        %v3609 = vmul.f32 %v3607, %v3597
        %v3610 = vmul.f32 %v3608, %v3600
        %v3611 = vadd.f32 %v3597, %v3609
        %v3612 = vadd.f32 %v3600, %v3610
        %v3613 = vmul.f32 %v3611, 0.7978846
        %v3614 = vmul.f32 %v3612, 0.7978846
        %v3615 = vtanh.pop %v3613
        %v3616 = vtanh.pop %v3614
        %v3617 = vadd.f32 %v3615, 1.0
        %v3618 = vadd.f32 %v3616, 1.0
        %v3619 = vmul.f32 %v3603, %v3617
        %v3620 = vmul.f32 %v3604, %v3618
        %v3621 = vld [vmem:[%s1070] sm:$0xf]
        %v3622 = vld [vmem:[%s1070 + $0x4] sm:$0xf]
        %v3623 = vld [vmem:[%s1070 + $0x8] sm:$0xf]
        %v3624 = vld [vmem:[%s1070 + $0xc] sm:$0xf]
        %v3625 = vld [vmem:[%s1070 + $0x10] sm:$0xf]
        %v3626 = vld [vmem:[%s1070 + $0x14] sm:$0xf]
        %v3627 = vld [vmem:[%s1070 + $0x18] sm:$0xf]
        %v3628 = vld [vmem:[%s1070 + $0x1c] sm:$0xf]
        %v3629 = vld [vmem:[%s1070 + $0x20] sm:$0xf]
        %v3630 = vld [vmem:[%s1070 + $0x24] sm:$0xf]
        %v3631 = vld [vmem:[%s1070 + $0x28] sm:$0xf]
        %v3632 = vld [vmem:[%s1070 + $0x2c] sm:$0xf]
        %v3633 = vld [vmem:[%s1070 + $0x30] sm:$0xf]
        %v3634 = vld [vmem:[%s1070 + $0x34] sm:$0xf]
        %v3635 = vld [vmem:[%s1070 + $0x38] sm:$0xf]
        %v3636 = vld [vmem:[%s1070 + $0x3c] sm:$0xf]
        %v3637 = vpack.c.bf16 %v3620, %v3619
        %v3638 = vld [vmem:[%s1073] sm:$0x1]
        %v3640 = vlaneseq
        %v3641 = vshrl.u32 %v3640, 7
        %v3642 = vsub.s32 0, %v3641
        %v3643 = vrot.slane %v3638, %v3642
        %v3661 = vunpack.c.l.b16 %v3621
        %v3662 = vunpack.c.l.b16 %v3622
        %v3663 = vunpack.c.l.b16 %v3623
        %v3664 = vunpack.c.l.b16 %v3624
        %v3665 = vunpack.c.l.b16 %v3625
        %v3666 = vunpack.c.l.b16 %v3626
        %v3667 = vunpack.c.l.b16 %v3627
        %v3668 = vunpack.c.l.b16 %v3628
        %v3669 = vunpack.c.l.b16 %v3629
        %v3670 = vunpack.c.l.b16 %v3630
        %v3671 = vunpack.c.l.b16 %v3631
        %v3672 = vunpack.c.l.b16 %v3632
        %v3673 = vunpack.c.l.b16 %v3633
        %v3674 = vunpack.c.l.b16 %v3634
        %v3675 = vunpack.c.l.b16 %v3635
        %v3676 = vunpack.c.l.b16 %v3636
        %v3677 = vpack.c.b16 %v3662, %v3661
        %v3678 = vpack.c.b16 %v3664, %v3663
        %v3679 = vpack.c.b16 %v3666, %v3665
        %v3680 = vpack.c.b16 %v3668, %v3667
        %v3681 = vpack.c.b16 %v3670, %v3669
        %v3682 = vpack.c.b16 %v3672, %v3671
        %v3683 = vpack.c.b16 %v3674, %v3673
        %v3684 = vpack.c.b16 %v3676, %v3675
        %3693 = vmatprep.subr.bf16.mxu0 0
        %3694 = vmatpush1.bf16.msra.mxu0 %v3677
        %3695 = vmatprep.subr.bf16.mxu0 0
        %3696 = vmatpush1.bf16.msra.mxu0 %v3678
        %3697 = vmatprep.subr.bf16.mxu0 0
        %3698 = vmatpush1.bf16.msra.mxu0 %v3679
        %3699 = vmatprep.subr.bf16.mxu0 0
        %3700 = vmatpush1.bf16.msra.mxu0 %v3680
        %3701 = vmatprep.subr.bf16.mxu0 0
        %3702 = vmatpush1.bf16.msra.mxu0 %v3681
        %3703 = vmatprep.subr.bf16.mxu0 0
        %3704 = vmatpush1.bf16.msra.mxu0 %v3682
        %3705 = vmatprep.subr.bf16.mxu0 0
        %3706 = vmatpush1.bf16.msra.mxu0 %v3683
        %3707 = vmatprep.subr.bf16.mxu0 0
        %3708 = vmatpush1.bf16.msra.mxu0 %v3684
        %3709 = vmatprep.subr.bf16.mxu0 0
        %3710 = vmatpush1.bf16.msra.mxu0 0
        %3711 = vmatprep.subr.bf16.mxu0 0
        %3712 = vmatpush1.bf16.msra.mxu0 0
        %3713 = vmatprep.subr.bf16.mxu0 0
        %3714 = vmatpush1.bf16.msra.mxu0 0
        %3715 = vmatprep.subr.bf16.mxu0 0
        %3716 = vmatpush1.bf16.msra.mxu0 0
        %3717 = vmatprep.subr.bf16.mxu0 0
        %3718 = vmatpush1.bf16.msra.mxu0 0
        %3719 = vmatprep.subr.bf16.mxu0 0
        %3720 = vmatpush1.bf16.msra.mxu0 0
        %3721 = vmatprep.subr.bf16.mxu0 0
        %3722 = vmatpush1.bf16.msra.mxu0 0
        %3723 = vmatprep.subr.bf16.mxu0 0
        %3724 = vmatpush1.bf16.msra.mxu0 0
        %3725 = vmatprep.mubr.bf16.mxu0 0
        %3726 = vmatmul.mubr.bf16.gmra.mrb[0].mxu0 %v3637
        %v3727 = vpop.f32.mrb[0].mxu0
        %v3728 = vadd.f32 %v3643, %v3727
        %v3729 = vpop.f32.mrb[0].mxu0
        %v3730 = vpop.f32.mrb[0].mxu0
        %v3731 = vadd.f32 %v3643, %v3730
        %v3732 = vpop.f32.mrb[0].mxu0
        %3733 = vdwg.mxu0
        %v3734 = vadd.f32 %v3533, %v3728
        %v3735 = vadd.f32 %v3534, %v3731
        %v3736 = vld [vmem:[%s1076] sm:$0x1]
        %v3737 = vld [vmem:[%s1079] sm:$0x1]
        %v3738 = vsel %vm1161, %v3734, 0.0
        %3739 = vadd.xlane.f32.xlu0 %v3738
        %v3740 = vpop.xlane.xlu0 %3739
        %v3741 = vsel %vm1161, %v3735, 0.0
        %3742 = vadd.xlane.f32.xlu0 %v3741
        %v3743 = vpop.xlane.xlu0 %3742
        %v3744 = vmul.f32 %v3740, %v2211
        %v3745 = vmul.f32 %v3743, %v2211
        %v3746 = vsub.f32 %v3734, %v3744
        %v3747 = vsub.f32 %v3735, %v3745
        %v3748 = vmul.f32 %v3746, %v3746
        %v3749 = vmul.f32 %v3747, %v3747
        %v3750 = vsel %vm1161, %v3748, 0.0
        %3751 = vadd.xlane.f32.xlu0 %v3750
        %v3752 = vpop.xlane.xlu0 %3751
        %v3753 = vsel %vm1161, %v3749, 0.0
        %3754 = vadd.xlane.f32.xlu0 %v3753
        %v3755 = vpop.xlane.xlu0 %3754
        %v3756 = vmul.f32 %v3752, %v2211
        %v3757 = vmul.f32 %v3755, %v2211
        %v3758 = vadd.f32 %v3756, 1e-12
        %v3759 = vadd.f32 %v3757, 1e-12
        %v3760 = vrsqrt.pop %v3758
        %v3761 = vrsqrt.pop %v3759
        %v3762 = vmul.f32 %v3746, %v3760
        %v3763 = vmul.f32 %v3747, %v3761
        %v3765 = vlaneseq
        %v3766 = vshrl.u32 %v3765, 7
        %v3767 = vsub.s32 0, %v3766
        %v3768 = vrot.slane %v3736, %v3767
        %v3770 = vmul.f32 %v3762, %v3768
        %v3771 = vmul.f32 %v3763, %v3768
        %v3773 = vlaneseq
        %v3774 = vshrl.u32 %v3773, 7
        %v3775 = vsub.s32 0, %v3774
        %v3776 = vrot.slane %v3737, %v3775
        %v3778 = vadd.f32 %v3770, %v3776
        %v3779 = vadd.f32 %v3771, %v3776
        %3780 = vst.msk [vmem:[#allocation2] sm:$0xff] %vm1161, %v3778
        %3781 = vst.msk [vmem:[#allocation2 + $0x8] sm:$0xff] %vm1161, %v3779
        %p3782 = scmp.eq.s32.totalorder %s38, 1
        // Predicated region
        $region129: #{blip_base_forward.3} parent=123 // pred_check
          %p3783 = pneg %p3782
        $region130: #{blip_base_forward.3} parent=123 // pred_check_branch
          %3785 = sbr.rel (%p3783) target = $region132
        $region131: #{blip_base_forward.3} parent=123 // pred_region
          %3786 = vst.msk [vmem:[#allocation3] sm:$0xff] %vm1161, %v3778
          %3787 = vst.msk [vmem:[#allocation3 + $0x8] sm:$0xff] %vm1161, %v3779
        $region132: #{blip_base_forward.3} parent=123 // pred_fallthru
          _
        // Predicated region
        $region133: #{blip_base_forward.3} parent=123 // pred_check
          %p3788 = pneg %p697
        $region134: #{blip_base_forward.3} parent=123 // pred_check_branch
          %3790 = sbr.rel (%p3788) target = $region136
        $region135: #{blip_base_forward.3} parent=123 // pred_region
          %s3792 = ssub.s32 256, 256
          %3793 = vsyncadd [#allocation4], %s3792
          %s3794 = sshll.u32 [#allocation3], 4
          %s3795 = int_to_ptr.vmem [resolvable:$true] %s3794
          %3800 = dma.vmem_to_hbm [thread:$0]  %s3795, 256, %s26, [#allocation4], 128, 128, 8
        $region136: #{blip_base_forward.3} parent=123 // pred_fallthru
          _
        // Predicated region
        $region137: #{blip_base_forward.3} parent=123 // pred_check
          %p3801 = pneg %p697
        $region138: #{blip_base_forward.3} parent=123 // pred_check_branch
          %3803 = sbr.rel (%p3801) target = $region140
        $region139: #{blip_base_forward.3} parent=123 // pred_region
          %3804 = dma.done [#allocation4], 256
        $region140: #{blip_base_forward.3} parent=123 // pred_fallthru
          _
      $region124: #{blip_base_forward.3} parent=5 // pred_fallthru
        _
      %p3805 = scmp.le.s32.totalorder 2, %s33
      // Predicated region
      $region141: #{blip_base_forward.3} parent=5 // pred_check
        %p3806 = pneg %p3805
      $region142: #{blip_base_forward.3} parent=5 // pred_check_branch
        %3808 = sbr.rel (%p3806) target = $region144
      $region143: #{blip_base_forward.3} parent=5 // pred_region
        %s3809 = ssub.s32 %s33, 2
      $region144: #{blip_base_forward.3} parent=5 // pred_fallthru
        _
    $region6: #{blip_base_forward.3} parent=1 // loop_footer
      %s37 = sadd.s32 1, %s33
    $region7: #{blip_base_forward.3} parent=1 // loop_footer_branch
      %32 = sbr.rel target = $region3
    $region8: #{blip_base_forward.3} parent=1 // loop_exit
      _
    %3810 = vsyncpa [#allocation4], 1
    %s3811 = scalar_lea.sflag [#allocation4], 1
    %3812 = vsyncpa %s3811, 1

// kernel: blip_base_forward.2
$region0: #{blip_base_forward.2}
  #allocation0 [shape = 'u32[]', space=smem, size = 0x4, offset = 0x4, fixed_abs, tag = 'smem constant byte address 0x4 - core index']
  #allocation1 [shape = 'u32[144,128]{1,0:T(1,128)}', space=vmem, size = 0x12000, scoped, tag = 'internal scratch']
  #allocation2 [shape = 'f32[34,32]{1,0:T(8,128)}', space=vmem, size = 0x5000, scoped, tag = 'scratch operand']
  %s0 = inlined_call_operand.vmem [shape: f32[32,48], index: 0, kind: input, shape index: {}]
  %s1 = inlined_call_operand.vmem [shape: bf16[48,32], index: 1, kind: input, shape index: {}]
  %s2 = inlined_call_operand.vmem [shape: f32[1,32], index: 2, kind: input, shape index: {}]
  %s3 = inlined_call_operand.vmem [shape: f32[1,32], index: 3, kind: input, shape index: {}]
  %s4 = inlined_call_operand.vmem [shape: f32[17,32], index: 4, kind: input, shape index: {}]
  %s5 = inlined_call_operand.vmem [shape: f32[2,1,32], index: 5, kind: input, shape index: {}]
  %s6 = inlined_call_operand.vmem [shape: f32[2,1,32], index: 6, kind: input, shape index: {}]
  %s7 = inlined_call_operand.vmem [shape: bf16[2,32,96], index: 7, kind: input, shape index: {}]
  %s8 = inlined_call_operand.vmem [shape: f32[2,1,96], index: 8, kind: input, shape index: {}]
  %s9 = inlined_call_operand.vmem [shape: bf16[2,32,32], index: 9, kind: input, shape index: {}]
  %s10 = inlined_call_operand.vmem [shape: f32[2,1,32], index: 10, kind: input, shape index: {}]
  %s11 = inlined_call_operand.vmem [shape: f32[2,1,32], index: 11, kind: input, shape index: {}]
  %s12 = inlined_call_operand.vmem [shape: f32[2,1,32], index: 12, kind: input, shape index: {}]
  %s13 = inlined_call_operand.vmem [shape: bf16[2,32,128], index: 13, kind: input, shape index: {}]
  %s14 = inlined_call_operand.vmem [shape: f32[2,1,128], index: 14, kind: input, shape index: {}]
  %s15 = inlined_call_operand.vmem [shape: bf16[2,128,32], index: 15, kind: input, shape index: {}]
  %s16 = inlined_call_operand.vmem [shape: f32[2,1,32], index: 16, kind: input, shape index: {}]
  %s17 = inlined_call_operand.vmem [shape: f32[1,32], index: 17, kind: input, shape index: {}]
  %s18 = inlined_call_operand.vmem [shape: f32[1,32], index: 18, kind: input, shape index: {}]
  %s19 = inlined_call_operand.vmem [shape: bf16[34,32], index: 19, kind: output, shape index: {}]
  %s20 = sld [smem:[#allocation0]]
  $region117: #{blip_base_forward.2} parent=0
    _
  %s22 = ssub.s32 1, %s20
  %s23 = scalar_select 0, %s22, %s20
  loop: start=0, step=1, limit=4
  $region2: #{blip_base_forward.2} parent=0 // loop_pre_header
    _
  $region3: #{blip_base_forward.2} parent=0 // loop_header
    %s25 = sphi 0, %s29
    %p26 = scmp.ge.s32.totalorder %s25, 4
    %s33 = sphi 0, %s33
    %s35 = sphi 0, %s33
    %s36 = sphi 0, %s35
    %s50 = sphi 0, %s36
    %s54 = sphi 0, %s54
    %s56 = sphi 0, %s54
    %s57 = sphi 0, %s56
    %s71 = sphi 0, %s57
    %s75 = sphi 0, %s75
    %s77 = sphi 0, %s75
    %s78 = sphi 0, %s77
    %s92 = sphi 0, %s78
    %s96 = sphi 0, %s96
    %s98 = sphi 0, %s96
    %s99 = sphi 0, %s98
    %s113 = sphi 0, %s99
    %s117 = sphi 0, %s117
    %s119 = sphi 0, %s117
    %s120 = sphi 0, %s119
    %s134 = sphi 0, %s120
    %s140 = sphi 0, %s142
    %s143 = sphi 0, %s140
    %s144 = sphi 0, %s143
    %s160 = sphi 0, %s144
    %s166 = sphi 0, %s168
    %s169 = sphi 0, %s166
    %s170 = sphi 0, %s169
    %s186 = sphi 0, %s170
    %s192 = sphi 0, %s194
    %s195 = sphi 0, %s192
    %s196 = sphi 0, %s195
    %s212 = sphi 0, %s196
    %s218 = sphi 0, %s220
    %s221 = sphi 0, %s218
    %s222 = sphi 0, %s221
    %s238 = sphi 0, %s222
    %s244 = sphi 0, %s246
    %s247 = sphi 0, %s244
    %s248 = sphi 0, %s247
    %s264 = sphi 0, %s248
    %s270 = sphi 0, %s272
    %s273 = sphi 0, %s270
    %s274 = sphi 0, %s273
    %s290 = sphi 0, %s274
    %s296 = sphi 0, %s298
    %s299 = sphi 0, %s296
    %s300 = sphi 0, %s299
    %s316 = sphi 0, %s300
    %s322 = sphi 0, %s324
    %s325 = sphi 0, %s322
    %s326 = sphi 0, %s325
    %s342 = sphi 0, %s326
    %s348 = sphi 0, %s350
    %s351 = sphi 0, %s348
    %s352 = sphi 0, %s351
    %s368 = sphi 0, %s352
    %s374 = sphi 0, %s376
    %s377 = sphi 0, %s374
    %s378 = sphi 0, %s377
    %s394 = sphi 0, %s378
    %s400 = sphi 0, %s402
    %s403 = sphi 0, %s400
    %s404 = sphi 0, %s403
    %s420 = sphi 0, %s404
    %s426 = sphi 0, %s428
    %s429 = sphi 0, %s426
    %s430 = sphi 0, %s429
    %s446 = sphi 0, %s430
    %s450 = sphi 0, %s450
    %s452 = sphi 0, %s450
    %s453 = sphi 0, %s452
    %s467 = sphi 0, %s453
    %s471 = sphi 0, %s471
    %s473 = sphi 0, %s471
    %s474 = sphi 0, %s473
    %s488 = sphi 0, %s474
    %s492 = sphi 0, %s492
    %s494 = sphi 0, %s492
    %s495 = sphi 0, %s494
    %s509 = sphi 0, %s495
  $region4: #{blip_base_forward.2} parent=0 // loop_header_branch
    %28 = sbr.rel (%p26) target = $region8
  $region5: #{blip_base_forward.2} parent=0 // loop_body
    %s30 = ssub.s32 %s25, 1
    %s31 = ssub.s32 %s25, 2
    %s32 = sadd.s32 %s25, 1
    %s34 = sadd.s32 %s33, 1
    %p37 = scmp.eq.s32.totalorder %s25, 1
    %p38 = scmp.ne.s32.totalorder %s33, %s35
    %p39 = scmp.eq.s32.totalorder %s25, 0
    %p40 = por %p38, %p39
    %p41 = scmp.ne.s32.totalorder %s33, %s35
    %p42 = scmp.eq.s32.totalorder %s30, 1
    %p43 = por %p41, %p42
    %p44 = scmp.ne.s32.totalorder %s35, %s36
    %p45 = scmp.eq.s32.totalorder %s30, 0
    %p46 = por %p44, %p45
    %p47 = scmp.ne.s32.totalorder %s35, %s36
    %p48 = scmp.eq.s32.totalorder %s31, 1
    %p49 = por %p47, %p48
    %p51 = scmp.ne.s32.totalorder %s36, %s50
    %p52 = scmp.eq.s32.totalorder %s31, 0
    %p53 = por %p51, %p52
    %s55 = sadd.s32 %s54, 1
    %p58 = scmp.eq.s32.totalorder %s25, 1
    %p59 = scmp.ne.s32.totalorder %s54, %s56
    %p60 = scmp.eq.s32.totalorder %s25, 0
    %p61 = por %p59, %p60
    %p62 = scmp.ne.s32.totalorder %s54, %s56
    %p63 = scmp.eq.s32.totalorder %s30, 1
    %p64 = por %p62, %p63
    %p65 = scmp.ne.s32.totalorder %s56, %s57
    %p66 = scmp.eq.s32.totalorder %s30, 0
    %p67 = por %p65, %p66
    %p68 = scmp.ne.s32.totalorder %s56, %s57
    %p69 = scmp.eq.s32.totalorder %s31, 1
    %p70 = por %p68, %p69
    %p72 = scmp.ne.s32.totalorder %s57, %s71
    %p73 = scmp.eq.s32.totalorder %s31, 0
    %p74 = por %p72, %p73
    %s76 = sadd.s32 %s75, 1
    %p79 = scmp.eq.s32.totalorder %s25, 1
    %p80 = scmp.ne.s32.totalorder %s75, %s77
    %p81 = scmp.eq.s32.totalorder %s25, 0
    %p82 = por %p80, %p81
    %p83 = scmp.ne.s32.totalorder %s75, %s77
    %p84 = scmp.eq.s32.totalorder %s30, 1
    %p85 = por %p83, %p84
    %p86 = scmp.ne.s32.totalorder %s77, %s78
    %p87 = scmp.eq.s32.totalorder %s30, 0
    %p88 = por %p86, %p87
    %p89 = scmp.ne.s32.totalorder %s77, %s78
    %p90 = scmp.eq.s32.totalorder %s31, 1
    %p91 = por %p89, %p90
    %p93 = scmp.ne.s32.totalorder %s78, %s92
    %p94 = scmp.eq.s32.totalorder %s31, 0
    %p95 = por %p93, %p94
    %s97 = sadd.s32 %s96, 1
    %p100 = scmp.eq.s32.totalorder %s25, 1
    %p101 = scmp.ne.s32.totalorder %s96, %s98
    %p102 = scmp.eq.s32.totalorder %s25, 0
    %p103 = por %p101, %p102
    %p104 = scmp.ne.s32.totalorder %s96, %s98
    %p105 = scmp.eq.s32.totalorder %s30, 1
    %p106 = por %p104, %p105
    %p107 = scmp.ne.s32.totalorder %s98, %s99
    %p108 = scmp.eq.s32.totalorder %s30, 0
    %p109 = por %p107, %p108
    %p110 = scmp.ne.s32.totalorder %s98, %s99
    %p111 = scmp.eq.s32.totalorder %s31, 1
    %p112 = por %p110, %p111
    %p114 = scmp.ne.s32.totalorder %s99, %s113
    %p115 = scmp.eq.s32.totalorder %s31, 0
    %p116 = por %p114, %p115
    %s118 = sadd.s32 %s117, 1
    %p121 = scmp.eq.s32.totalorder %s25, 1
    %p122 = scmp.ne.s32.totalorder %s117, %s119
    %p123 = scmp.eq.s32.totalorder %s25, 0
    %p124 = por %p122, %p123
    %p125 = scmp.ne.s32.totalorder %s117, %s119
    %p126 = scmp.eq.s32.totalorder %s30, 1
    %p127 = por %p125, %p126
    %p128 = scmp.ne.s32.totalorder %s119, %s120
    %p129 = scmp.eq.s32.totalorder %s30, 0
    %p130 = por %p128, %p129
    %p131 = scmp.ne.s32.totalorder %s119, %s120
    %p132 = scmp.eq.s32.totalorder %s31, 1
    %p133 = por %p131, %p132
    %p135 = scmp.ne.s32.totalorder %s120, %s134
    %p136 = scmp.eq.s32.totalorder %s31, 0
    %p137 = por %p135, %p136
    %s138 = ssub.s32 %s25, %s32
    %p139 = scmp.eq.s32.totalorder %s138, 0
    %s141 = sadd.s32 %s140, 1
    %s142 = scalar_select %p139, %s140, %s141
    %p145 = pneg %p139
    %p146 = scmp.eq.s32.totalorder %s25, 1
    %p147 = por %p145, %p146
    %p148 = scmp.ne.s32.totalorder %s140, %s143
    %p149 = scmp.eq.s32.totalorder %s25, 0
    %p150 = por %p148, %p149
    %p151 = scmp.ne.s32.totalorder %s140, %s143
    %p152 = scmp.eq.s32.totalorder %s30, 1
    %p153 = por %p151, %p152
    %p154 = scmp.ne.s32.totalorder %s143, %s144
    %p155 = scmp.eq.s32.totalorder %s30, 0
    %p156 = por %p154, %p155
    %p157 = scmp.ne.s32.totalorder %s143, %s144
    %p158 = scmp.eq.s32.totalorder %s31, 1
    %p159 = por %p157, %p158
    %p161 = scmp.ne.s32.totalorder %s144, %s160
    %p162 = scmp.eq.s32.totalorder %s31, 0
    %p163 = por %p161, %p162
    %s164 = ssub.s32 %s25, %s32
    %p165 = scmp.eq.s32.totalorder %s164, 0
    %s167 = sadd.s32 %s166, 1
    %s168 = scalar_select %p165, %s166, %s167
    %p171 = pneg %p165
    %p172 = scmp.eq.s32.totalorder %s25, 1
    %p173 = por %p171, %p172
    %p174 = scmp.ne.s32.totalorder %s166, %s169
    %p175 = scmp.eq.s32.totalorder %s25, 0
    %p176 = por %p174, %p175
    %p177 = scmp.ne.s32.totalorder %s166, %s169
    %p178 = scmp.eq.s32.totalorder %s30, 1
    %p179 = por %p177, %p178
    %p180 = scmp.ne.s32.totalorder %s169, %s170
    %p181 = scmp.eq.s32.totalorder %s30, 0
    %p182 = por %p180, %p181
    %p183 = scmp.ne.s32.totalorder %s169, %s170
    %p184 = scmp.eq.s32.totalorder %s31, 1
    %p185 = por %p183, %p184
    %p187 = scmp.ne.s32.totalorder %s170, %s186
    %p188 = scmp.eq.s32.totalorder %s31, 0
    %p189 = por %p187, %p188
    %s190 = ssub.s32 %s25, %s32
    %p191 = scmp.eq.s32.totalorder %s190, 0
    %s193 = sadd.s32 %s192, 1
    %s194 = scalar_select %p191, %s192, %s193
    %p197 = pneg %p191
    %p198 = scmp.eq.s32.totalorder %s25, 1
    %p199 = por %p197, %p198
    %p200 = scmp.ne.s32.totalorder %s192, %s195
    %p201 = scmp.eq.s32.totalorder %s25, 0
    %p202 = por %p200, %p201
    %p203 = scmp.ne.s32.totalorder %s192, %s195
    %p204 = scmp.eq.s32.totalorder %s30, 1
    %p205 = por %p203, %p204
    %p206 = scmp.ne.s32.totalorder %s195, %s196
    %p207 = scmp.eq.s32.totalorder %s30, 0
    %p208 = por %p206, %p207
    %p209 = scmp.ne.s32.totalorder %s195, %s196
    %p210 = scmp.eq.s32.totalorder %s31, 1
    %p211 = por %p209, %p210
    %p213 = scmp.ne.s32.totalorder %s196, %s212
    %p214 = scmp.eq.s32.totalorder %s31, 0
    %p215 = por %p213, %p214
    %s216 = ssub.s32 %s25, %s32
    %p217 = scmp.eq.s32.totalorder %s216, 0
    %s219 = sadd.s32 %s218, 1
    %s220 = scalar_select %p217, %s218, %s219
    %p223 = pneg %p217
    %p224 = scmp.eq.s32.totalorder %s25, 1
    %p225 = por %p223, %p224
    %p226 = scmp.ne.s32.totalorder %s218, %s221
    %p227 = scmp.eq.s32.totalorder %s25, 0
    %p228 = por %p226, %p227
    %p229 = scmp.ne.s32.totalorder %s218, %s221
    %p230 = scmp.eq.s32.totalorder %s30, 1
    %p231 = por %p229, %p230
    %p232 = scmp.ne.s32.totalorder %s221, %s222
    %p233 = scmp.eq.s32.totalorder %s30, 0
    %p234 = por %p232, %p233
    %p235 = scmp.ne.s32.totalorder %s221, %s222
    %p236 = scmp.eq.s32.totalorder %s31, 1
    %p237 = por %p235, %p236
    %p239 = scmp.ne.s32.totalorder %s222, %s238
    %p240 = scmp.eq.s32.totalorder %s31, 0
    %p241 = por %p239, %p240
    %s242 = ssub.s32 %s25, %s32
    %p243 = scmp.eq.s32.totalorder %s242, 0
    %s245 = sadd.s32 %s244, 1
    %s246 = scalar_select %p243, %s244, %s245
    %p249 = pneg %p243
    %p250 = scmp.eq.s32.totalorder %s25, 1
    %p251 = por %p249, %p250
    %p252 = scmp.ne.s32.totalorder %s244, %s247
    %p253 = scmp.eq.s32.totalorder %s25, 0
    %p254 = por %p252, %p253
    %p255 = scmp.ne.s32.totalorder %s244, %s247
    %p256 = scmp.eq.s32.totalorder %s30, 1
    %p257 = por %p255, %p256
    %p258 = scmp.ne.s32.totalorder %s247, %s248
    %p259 = scmp.eq.s32.totalorder %s30, 0
    %p260 = por %p258, %p259
    %p261 = scmp.ne.s32.totalorder %s247, %s248
    %p262 = scmp.eq.s32.totalorder %s31, 1
    %p263 = por %p261, %p262
    %p265 = scmp.ne.s32.totalorder %s248, %s264
    %p266 = scmp.eq.s32.totalorder %s31, 0
    %p267 = por %p265, %p266
    %s268 = ssub.s32 %s25, %s32
    %p269 = scmp.eq.s32.totalorder %s268, 0
    %s271 = sadd.s32 %s270, 1
    %s272 = scalar_select %p269, %s270, %s271
    %p275 = pneg %p269
    %p276 = scmp.eq.s32.totalorder %s25, 1
    %p277 = por %p275, %p276
    %p278 = scmp.ne.s32.totalorder %s270, %s273
    %p279 = scmp.eq.s32.totalorder %s25, 0
    %p280 = por %p278, %p279
    %p281 = scmp.ne.s32.totalorder %s270, %s273
    %p282 = scmp.eq.s32.totalorder %s30, 1
    %p283 = por %p281, %p282
    %p284 = scmp.ne.s32.totalorder %s273, %s274
    %p285 = scmp.eq.s32.totalorder %s30, 0
    %p286 = por %p284, %p285
    %p287 = scmp.ne.s32.totalorder %s273, %s274
    %p288 = scmp.eq.s32.totalorder %s31, 1
    %p289 = por %p287, %p288
    %p291 = scmp.ne.s32.totalorder %s274, %s290
    %p292 = scmp.eq.s32.totalorder %s31, 0
    %p293 = por %p291, %p292
    %s294 = ssub.s32 %s25, %s32
    %p295 = scmp.eq.s32.totalorder %s294, 0
    %s297 = sadd.s32 %s296, 1
    %s298 = scalar_select %p295, %s296, %s297
    %p301 = pneg %p295
    %p302 = scmp.eq.s32.totalorder %s25, 1
    %p303 = por %p301, %p302
    %p304 = scmp.ne.s32.totalorder %s296, %s299
    %p305 = scmp.eq.s32.totalorder %s25, 0
    %p306 = por %p304, %p305
    %p307 = scmp.ne.s32.totalorder %s296, %s299
    %p308 = scmp.eq.s32.totalorder %s30, 1
    %p309 = por %p307, %p308
    %p310 = scmp.ne.s32.totalorder %s299, %s300
    %p311 = scmp.eq.s32.totalorder %s30, 0
    %p312 = por %p310, %p311
    %p313 = scmp.ne.s32.totalorder %s299, %s300
    %p314 = scmp.eq.s32.totalorder %s31, 1
    %p315 = por %p313, %p314
    %p317 = scmp.ne.s32.totalorder %s300, %s316
    %p318 = scmp.eq.s32.totalorder %s31, 0
    %p319 = por %p317, %p318
    %s320 = ssub.s32 %s25, %s32
    %p321 = scmp.eq.s32.totalorder %s320, 0
    %s323 = sadd.s32 %s322, 1
    %s324 = scalar_select %p321, %s322, %s323
    %p327 = pneg %p321
    %p328 = scmp.eq.s32.totalorder %s25, 1
    %p329 = por %p327, %p328
    %p330 = scmp.ne.s32.totalorder %s322, %s325
    %p331 = scmp.eq.s32.totalorder %s25, 0
    %p332 = por %p330, %p331
    %p333 = scmp.ne.s32.totalorder %s322, %s325
    %p334 = scmp.eq.s32.totalorder %s30, 1
    %p335 = por %p333, %p334
    %p336 = scmp.ne.s32.totalorder %s325, %s326
    %p337 = scmp.eq.s32.totalorder %s30, 0
    %p338 = por %p336, %p337
    %p339 = scmp.ne.s32.totalorder %s325, %s326
    %p340 = scmp.eq.s32.totalorder %s31, 1
    %p341 = por %p339, %p340
    %p343 = scmp.ne.s32.totalorder %s326, %s342
    %p344 = scmp.eq.s32.totalorder %s31, 0
    %p345 = por %p343, %p344
    %s346 = ssub.s32 %s25, %s32
    %p347 = scmp.eq.s32.totalorder %s346, 0
    %s349 = sadd.s32 %s348, 1
    %s350 = scalar_select %p347, %s348, %s349
    %p353 = pneg %p347
    %p354 = scmp.eq.s32.totalorder %s25, 1
    %p355 = por %p353, %p354
    %p356 = scmp.ne.s32.totalorder %s348, %s351
    %p357 = scmp.eq.s32.totalorder %s25, 0
    %p358 = por %p356, %p357
    %p359 = scmp.ne.s32.totalorder %s348, %s351
    %p360 = scmp.eq.s32.totalorder %s30, 1
    %p361 = por %p359, %p360
    %p362 = scmp.ne.s32.totalorder %s351, %s352
    %p363 = scmp.eq.s32.totalorder %s30, 0
    %p364 = por %p362, %p363
    %p365 = scmp.ne.s32.totalorder %s351, %s352
    %p366 = scmp.eq.s32.totalorder %s31, 1
    %p367 = por %p365, %p366
    %p369 = scmp.ne.s32.totalorder %s352, %s368
    %p370 = scmp.eq.s32.totalorder %s31, 0
    %p371 = por %p369, %p370
    %s372 = ssub.s32 %s25, %s32
    %p373 = scmp.eq.s32.totalorder %s372, 0
    %s375 = sadd.s32 %s374, 1
    %s376 = scalar_select %p373, %s374, %s375
    %p379 = pneg %p373
    %p380 = scmp.eq.s32.totalorder %s25, 1
    %p381 = por %p379, %p380
    %p382 = scmp.ne.s32.totalorder %s374, %s377
    %p383 = scmp.eq.s32.totalorder %s25, 0
    %p384 = por %p382, %p383
    %p385 = scmp.ne.s32.totalorder %s374, %s377
    %p386 = scmp.eq.s32.totalorder %s30, 1
    %p387 = por %p385, %p386
    %p388 = scmp.ne.s32.totalorder %s377, %s378
    %p389 = scmp.eq.s32.totalorder %s30, 0
    %p390 = por %p388, %p389
    %p391 = scmp.ne.s32.totalorder %s377, %s378
    %p392 = scmp.eq.s32.totalorder %s31, 1
    %p393 = por %p391, %p392
    %p395 = scmp.ne.s32.totalorder %s378, %s394
    %p396 = scmp.eq.s32.totalorder %s31, 0
    %p397 = por %p395, %p396
    %s398 = ssub.s32 %s25, %s32
    %p399 = scmp.eq.s32.totalorder %s398, 0
    %s401 = sadd.s32 %s400, 1
    %s402 = scalar_select %p399, %s400, %s401
    %p405 = pneg %p399
    %p406 = scmp.eq.s32.totalorder %s25, 1
    %p407 = por %p405, %p406
    %p408 = scmp.ne.s32.totalorder %s400, %s403
    %p409 = scmp.eq.s32.totalorder %s25, 0
    %p410 = por %p408, %p409
    %p411 = scmp.ne.s32.totalorder %s400, %s403
    %p412 = scmp.eq.s32.totalorder %s30, 1
    %p413 = por %p411, %p412
    %p414 = scmp.ne.s32.totalorder %s403, %s404
    %p415 = scmp.eq.s32.totalorder %s30, 0
    %p416 = por %p414, %p415
    %p417 = scmp.ne.s32.totalorder %s403, %s404
    %p418 = scmp.eq.s32.totalorder %s31, 1
    %p419 = por %p417, %p418
    %p421 = scmp.ne.s32.totalorder %s404, %s420
    %p422 = scmp.eq.s32.totalorder %s31, 0
    %p423 = por %p421, %p422
    %s424 = ssub.s32 %s25, %s32
    %p425 = scmp.eq.s32.totalorder %s424, 0
    %s427 = sadd.s32 %s426, 1
    %s428 = scalar_select %p425, %s426, %s427
    %p431 = pneg %p425
    %p432 = scmp.eq.s32.totalorder %s25, 1
    %p433 = por %p431, %p432
    %p434 = scmp.ne.s32.totalorder %s426, %s429
    %p435 = scmp.eq.s32.totalorder %s25, 0
    %p436 = por %p434, %p435
    %p437 = scmp.ne.s32.totalorder %s426, %s429
    %p438 = scmp.eq.s32.totalorder %s30, 1
    %p439 = por %p437, %p438
    %p440 = scmp.ne.s32.totalorder %s429, %s430
    %p441 = scmp.eq.s32.totalorder %s30, 0
    %p442 = por %p440, %p441
    %p443 = scmp.ne.s32.totalorder %s429, %s430
    %p444 = scmp.eq.s32.totalorder %s31, 1
    %p445 = por %p443, %p444
    %p447 = scmp.ne.s32.totalorder %s430, %s446
    %p448 = scmp.eq.s32.totalorder %s31, 0
    %p449 = por %p447, %p448
    %s451 = sadd.s32 %s450, 1
    %p454 = scmp.eq.s32.totalorder %s25, 1
    %p455 = scmp.ne.s32.totalorder %s450, %s452
    %p456 = scmp.eq.s32.totalorder %s25, 0
    %p457 = por %p455, %p456
    %p458 = scmp.ne.s32.totalorder %s450, %s452
    %p459 = scmp.eq.s32.totalorder %s30, 1
    %p460 = por %p458, %p459
    %p461 = scmp.ne.s32.totalorder %s452, %s453
    %p462 = scmp.eq.s32.totalorder %s30, 0
    %p463 = por %p461, %p462
    %p464 = scmp.ne.s32.totalorder %s452, %s453
    %p465 = scmp.eq.s32.totalorder %s31, 1
    %p466 = por %p464, %p465
    %p468 = scmp.ne.s32.totalorder %s453, %s467
    %p469 = scmp.eq.s32.totalorder %s31, 0
    %p470 = por %p468, %p469
    %s472 = sadd.s32 %s471, 1
    %p475 = scmp.eq.s32.totalorder %s25, 1
    %p476 = scmp.ne.s32.totalorder %s471, %s473
    %p477 = scmp.eq.s32.totalorder %s25, 0
    %p478 = por %p476, %p477
    %p479 = scmp.ne.s32.totalorder %s471, %s473
    %p480 = scmp.eq.s32.totalorder %s30, 1
    %p481 = por %p479, %p480
    %p482 = scmp.ne.s32.totalorder %s473, %s474
    %p483 = scmp.eq.s32.totalorder %s30, 0
    %p484 = por %p482, %p483
    %p485 = scmp.ne.s32.totalorder %s473, %s474
    %p486 = scmp.eq.s32.totalorder %s31, 1
    %p487 = por %p485, %p486
    %p489 = scmp.ne.s32.totalorder %s474, %s488
    %p490 = scmp.eq.s32.totalorder %s31, 0
    %p491 = por %p489, %p490
    %s493 = sadd.s32 %s492, 1
    %p496 = scmp.eq.s32.totalorder %s25, 1
    %p497 = scmp.ne.s32.totalorder %s492, %s494
    %p498 = scmp.eq.s32.totalorder %s25, 0
    %p499 = por %p497, %p498
    %p500 = scmp.ne.s32.totalorder %s492, %s494
    %p501 = scmp.eq.s32.totalorder %s30, 1
    %p502 = por %p500, %p501
    %p503 = scmp.ne.s32.totalorder %s494, %s495
    %p504 = scmp.eq.s32.totalorder %s30, 0
    %p505 = por %p503, %p504
    %p506 = scmp.ne.s32.totalorder %s494, %s495
    %p507 = scmp.eq.s32.totalorder %s31, 1
    %p508 = por %p506, %p507
    %p510 = scmp.ne.s32.totalorder %s495, %s509
    %p511 = scmp.eq.s32.totalorder %s31, 0
    %p512 = por %p510, %p511
    %p513 = scmp.le.s32.totalorder 1, %s25
    %p514 = scmp.lt.s32.totalorder %s25, 3
    %p515 = pnand %p513, %p514
    %p516 = pneg %p515
    // Predicated region
    $region9: #{blip_base_forward.2} parent=5 // pred_check
      _
    $region10: #{blip_base_forward.2} parent=5 // pred_check_branch
      %518 = sbr.rel (%p515) target = $region12
    $region11: #{blip_base_forward.2} parent=5 // pred_region
      %s519 = ssub.s32 %s25, 1
      // Predicated region
      $region13: #{blip_base_forward.2} parent=11 // pred_check
        %p520 = pneg %p46
      $region14: #{blip_base_forward.2} parent=11 // pred_check_branch
        %522 = sbr.rel (%p520) target = $region16
      $region15: #{blip_base_forward.2} parent=11 // pred_region
        _
      $region16: #{blip_base_forward.2} parent=11 // pred_fallthru
        _
      // Predicated region
      $region17: #{blip_base_forward.2} parent=11 // pred_check
        %p523 = pneg %p67
      $region18: #{blip_base_forward.2} parent=11 // pred_check_branch
        %525 = sbr.rel (%p523) target = $region20
      $region19: #{blip_base_forward.2} parent=11 // pred_region
        _
      $region20: #{blip_base_forward.2} parent=11 // pred_fallthru
        _
      // Predicated region
      $region21: #{blip_base_forward.2} parent=11 // pred_check
        %p526 = pneg %p88
      $region22: #{blip_base_forward.2} parent=11 // pred_check_branch
        %528 = sbr.rel (%p526) target = $region24
      $region23: #{blip_base_forward.2} parent=11 // pred_region
        _
      $region24: #{blip_base_forward.2} parent=11 // pred_fallthru
        _
      // Predicated region
      $region25: #{blip_base_forward.2} parent=11 // pred_check
        %p529 = pneg %p109
      $region26: #{blip_base_forward.2} parent=11 // pred_check_branch
        %531 = sbr.rel (%p529) target = $region28
      $region27: #{blip_base_forward.2} parent=11 // pred_region
        _
      $region28: #{blip_base_forward.2} parent=11 // pred_fallthru
        _
      // Predicated region
      $region29: #{blip_base_forward.2} parent=11 // pred_check
        %p532 = pneg %p130
      $region30: #{blip_base_forward.2} parent=11 // pred_check_branch
        %534 = sbr.rel (%p532) target = $region32
      $region31: #{blip_base_forward.2} parent=11 // pred_region
        _
      $region32: #{blip_base_forward.2} parent=11 // pred_fallthru
        _
      // Predicated region
      $region33: #{blip_base_forward.2} parent=11 // pred_check
        %p535 = pneg %p463
      $region34: #{blip_base_forward.2} parent=11 // pred_check_branch
        %537 = sbr.rel (%p535) target = $region36
      $region35: #{blip_base_forward.2} parent=11 // pred_region
        _
      $region36: #{blip_base_forward.2} parent=11 // pred_fallthru
        _
      // Predicated region
      $region37: #{blip_base_forward.2} parent=11 // pred_check
        %p538 = pneg %p484
      $region38: #{blip_base_forward.2} parent=11 // pred_check_branch
        %540 = sbr.rel (%p538) target = $region40
      $region39: #{blip_base_forward.2} parent=11 // pred_region
        _
      $region40: #{blip_base_forward.2} parent=11 // pred_fallthru
        _
    $region12: #{blip_base_forward.2} parent=5 // pred_fallthru
      _
    %p541 = scmp.lt.s32.totalorder %s25, 2
    // Predicated region
    $region41: #{blip_base_forward.2} parent=5 // pred_check
      %p542 = pneg %p541
    $region42: #{blip_base_forward.2} parent=5 // pred_check_branch
      %544 = sbr.rel (%p542) target = $region44
    $region43: #{blip_base_forward.2} parent=5 // pred_region
      // Predicated region
      $region45: #{blip_base_forward.2} parent=43 // pred_check
        %p545 = pneg %p150
      $region46: #{blip_base_forward.2} parent=43 // pred_check_branch
        %547 = sbr.rel (%p545) target = $region48
      $region47: #{blip_base_forward.2} parent=43 // pred_region
        %p548 = scmp.lt.s32.totalorder %s25, 1
        %s549 = scalar_select %p548, %s25, 1
        %s550 = scalar_lea.vmem %s5, %s549
      $region48: #{blip_base_forward.2} parent=43 // pred_fallthru
        _
      // Predicated region
      $region49: #{blip_base_forward.2} parent=43 // pred_check
        %p551 = pneg %p176
      $region50: #{blip_base_forward.2} parent=43 // pred_check_branch
        %553 = sbr.rel (%p551) target = $region52
      $region51: #{blip_base_forward.2} parent=43 // pred_region
        %p554 = scmp.lt.s32.totalorder %s25, 1
        %s555 = scalar_select %p554, %s25, 1
        %s556 = scalar_lea.vmem %s6, %s555
      $region52: #{blip_base_forward.2} parent=43 // pred_fallthru
        _
      // Predicated region
      $region53: #{blip_base_forward.2} parent=43 // pred_check
        %p557 = pneg %p202
      $region54: #{blip_base_forward.2} parent=43 // pred_check_branch
        %559 = sbr.rel (%p557) target = $region56
      $region55: #{blip_base_forward.2} parent=43 // pred_region
        %p560 = scmp.lt.s32.totalorder %s25, 1
        %s561 = scalar_select %p560, %s25, 1
        %s562 = smul.addr %s561, 4
        %s563 = smul.addr %s562, 4
        %s564 = scalar_lea.vmem %s7, %s563
      $region56: #{blip_base_forward.2} parent=43 // pred_fallthru
        _
      // Predicated region
      $region57: #{blip_base_forward.2} parent=43 // pred_check
        %p565 = pneg %p228
      $region58: #{blip_base_forward.2} parent=43 // pred_check_branch
        %567 = sbr.rel (%p565) target = $region60
      $region59: #{blip_base_forward.2} parent=43 // pred_region
        %p568 = scmp.lt.s32.totalorder %s25, 1
        %s569 = scalar_select %p568, %s25, 1
        %s570 = scalar_lea.vmem %s8, %s569
      $region60: #{blip_base_forward.2} parent=43 // pred_fallthru
        _
      // Predicated region
      $region61: #{blip_base_forward.2} parent=43 // pred_check
        %p571 = pneg %p254
      $region62: #{blip_base_forward.2} parent=43 // pred_check_branch
        %573 = sbr.rel (%p571) target = $region64
      $region63: #{blip_base_forward.2} parent=43 // pred_region
        %p574 = scmp.lt.s32.totalorder %s25, 1
        %s575 = scalar_select %p574, %s25, 1
        %s576 = smul.addr %s575, 4
        %s577 = smul.addr %s576, 4
        %s578 = scalar_lea.vmem %s9, %s577
      $region64: #{blip_base_forward.2} parent=43 // pred_fallthru
        _
      // Predicated region
      $region65: #{blip_base_forward.2} parent=43 // pred_check
        %p579 = pneg %p280
      $region66: #{blip_base_forward.2} parent=43 // pred_check_branch
        %581 = sbr.rel (%p579) target = $region68
      $region67: #{blip_base_forward.2} parent=43 // pred_region
        %p582 = scmp.lt.s32.totalorder %s25, 1
        %s583 = scalar_select %p582, %s25, 1
        %s584 = scalar_lea.vmem %s10, %s583
      $region68: #{blip_base_forward.2} parent=43 // pred_fallthru
        _
      // Predicated region
      $region69: #{blip_base_forward.2} parent=43 // pred_check
        %p585 = pneg %p306
      $region70: #{blip_base_forward.2} parent=43 // pred_check_branch
        %587 = sbr.rel (%p585) target = $region72
      $region71: #{blip_base_forward.2} parent=43 // pred_region
        %p588 = scmp.lt.s32.totalorder %s25, 1
        %s589 = scalar_select %p588, %s25, 1
        %s590 = scalar_lea.vmem %s11, %s589
      $region72: #{blip_base_forward.2} parent=43 // pred_fallthru
        _
      // Predicated region
      $region73: #{blip_base_forward.2} parent=43 // pred_check
        %p591 = pneg %p332
      $region74: #{blip_base_forward.2} parent=43 // pred_check_branch
        %593 = sbr.rel (%p591) target = $region76
      $region75: #{blip_base_forward.2} parent=43 // pred_region
        %p594 = scmp.lt.s32.totalorder %s25, 1
        %s595 = scalar_select %p594, %s25, 1
        %s596 = scalar_lea.vmem %s12, %s595
      $region76: #{blip_base_forward.2} parent=43 // pred_fallthru
        _
      // Predicated region
      $region77: #{blip_base_forward.2} parent=43 // pred_check
        %p597 = pneg %p358
      $region78: #{blip_base_forward.2} parent=43 // pred_check_branch
        %599 = sbr.rel (%p597) target = $region80
      $region79: #{blip_base_forward.2} parent=43 // pred_region
        %p600 = scmp.lt.s32.totalorder %s25, 1
        %s601 = scalar_select %p600, %s25, 1
        %s602 = smul.addr %s601, 4
        %s603 = smul.addr %s602, 4
        %s604 = scalar_lea.vmem %s13, %s603
      $region80: #{blip_base_forward.2} parent=43 // pred_fallthru
        _
      // Predicated region
      $region81: #{blip_base_forward.2} parent=43 // pred_check
        %p605 = pneg %p384
      $region82: #{blip_base_forward.2} parent=43 // pred_check_branch
        %607 = sbr.rel (%p605) target = $region84
      $region83: #{blip_base_forward.2} parent=43 // pred_region
        %p608 = scmp.lt.s32.totalorder %s25, 1
        %s609 = scalar_select %p608, %s25, 1
        %s610 = scalar_lea.vmem %s14, %s609
      $region84: #{blip_base_forward.2} parent=43 // pred_fallthru
        _
      // Predicated region
      $region85: #{blip_base_forward.2} parent=43 // pred_check
        %p611 = pneg %p410
      $region86: #{blip_base_forward.2} parent=43 // pred_check_branch
        %613 = sbr.rel (%p611) target = $region88
      $region87: #{blip_base_forward.2} parent=43 // pred_region
        %p614 = scmp.lt.s32.totalorder %s25, 1
        %s615 = scalar_select %p614, %s25, 1
        %s616 = smul.addr %s615, 16
        %s617 = smul.addr %s616, 4
        %s618 = scalar_lea.vmem %s15, %s617
      $region88: #{blip_base_forward.2} parent=43 // pred_fallthru
        _
      // Predicated region
      $region89: #{blip_base_forward.2} parent=43 // pred_check
        %p619 = pneg %p436
      $region90: #{blip_base_forward.2} parent=43 // pred_check_branch
        %621 = sbr.rel (%p619) target = $region92
      $region91: #{blip_base_forward.2} parent=43 // pred_region
        %p622 = scmp.lt.s32.totalorder %s25, 1
        %s623 = scalar_select %p622, %s25, 1
        %s624 = scalar_lea.vmem %s16, %s623
      $region92: #{blip_base_forward.2} parent=43 // pred_fallthru
        _
    $region44: #{blip_base_forward.2} parent=5 // pred_fallthru
      _
    %p625 = scmp.le.s32.totalorder 1, %s25
    %p626 = scmp.lt.s32.totalorder %s25, 3
    %p627 = pnand %p625, %p626
    %p628 = pneg %p627
    // Predicated region
    $region93: #{blip_base_forward.2} parent=5 // pred_check
      _
    $region94: #{blip_base_forward.2} parent=5 // pred_check_branch
      %630 = sbr.rel (%p627) target = $region96
    $region95: #{blip_base_forward.2} parent=5 // pred_region
      %s631 = ssub.s32 %s25, 1
      %p632 = pneg %p46
      %p633 = pneg %p43
      %p634 = pneg %p67
      %p635 = pneg %p64
      %p636 = pneg %p88
      %p637 = pneg %p85
      %p638 = pneg %p109
      %p639 = pneg %p106
      %p640 = pneg %p130
      %p641 = pneg %p127
      %p642 = scmp.lt.s32.totalorder %s30, 1
      %s643 = scalar_select %p642, %s30, 1
      %s644 = scalar_lea.vmem %s5, %s643
      %p645 = pneg %p156
      %p646 = pneg %p153
      %p647 = scmp.lt.s32.totalorder %s30, 1
      %s648 = scalar_select %p647, %s30, 1
      %s649 = scalar_lea.vmem %s6, %s648
      %p650 = pneg %p182
      %p651 = pneg %p179
      %p652 = scmp.lt.s32.totalorder %s30, 1
      %s653 = scalar_select %p652, %s30, 1
      %s654 = smul.addr %s653, 4
      %s655 = smul.addr %s654, 4
      %s656 = scalar_lea.vmem %s7, %s655
      %p657 = pneg %p208
      %p658 = pneg %p205
      %p659 = scmp.lt.s32.totalorder %s30, 1
      %s660 = scalar_select %p659, %s30, 1
      %s661 = scalar_lea.vmem %s8, %s660
      %p662 = pneg %p234
      %p663 = pneg %p231
      %p664 = scmp.lt.s32.totalorder %s30, 1
      %s665 = scalar_select %p664, %s30, 1
      %s666 = smul.addr %s665, 4
      %s667 = smul.addr %s666, 4
      %s668 = scalar_lea.vmem %s9, %s667
      %p669 = pneg %p260
      %p670 = pneg %p257
      %p671 = scmp.lt.s32.totalorder %s30, 1
      %s672 = scalar_select %p671, %s30, 1
      %s673 = scalar_lea.vmem %s10, %s672
      %p674 = pneg %p286
      %p675 = pneg %p283
      %p676 = scmp.lt.s32.totalorder %s30, 1
      %s677 = scalar_select %p676, %s30, 1
      %s678 = scalar_lea.vmem %s11, %s677
      %p679 = pneg %p312
      %p680 = pneg %p309
      %p681 = scmp.lt.s32.totalorder %s30, 1
      %s682 = scalar_select %p681, %s30, 1
      %s683 = scalar_lea.vmem %s12, %s682
      %p684 = pneg %p338
      %p685 = pneg %p335
      %p686 = scmp.lt.s32.totalorder %s30, 1
      %s687 = scalar_select %p686, %s30, 1
      %s688 = smul.addr %s687, 4
      %s689 = smul.addr %s688, 4
      %s690 = scalar_lea.vmem %s13, %s689
      %p691 = pneg %p364
      %p692 = pneg %p361
      %p693 = scmp.lt.s32.totalorder %s30, 1
      %s694 = scalar_select %p693, %s30, 1
      %s695 = scalar_lea.vmem %s14, %s694
      %p696 = pneg %p390
      %p697 = pneg %p387
      %p698 = scmp.lt.s32.totalorder %s30, 1
      %s699 = scalar_select %p698, %s30, 1
      %s700 = smul.addr %s699, 16
      %s701 = smul.addr %s700, 4
      %s702 = scalar_lea.vmem %s15, %s701
      %p703 = pneg %p416
      %p704 = pneg %p413
      %p705 = scmp.lt.s32.totalorder %s30, 1
      %s706 = scalar_select %p705, %s30, 1
      %s707 = scalar_lea.vmem %s16, %s706
      %p708 = pneg %p442
      %p709 = pneg %p439
      %p710 = pneg %p463
      %p711 = pneg %p460
      %p712 = pneg %p484
      %p713 = pneg %p481
      %p714 = pneg %p505
      %p715 = pneg %p502
      %p716 = scmp.lt.s32.totalorder %s30, 1
      %s717 = scalar_select %p716, %s30, 1
      %s718 = scalar_lea.vmem %s5, %s717
      %p719 = scmp.lt.s32.totalorder %s30, 1
      %s720 = scalar_select %p719, %s30, 1
      %s721 = scalar_lea.vmem %s6, %s720
      %p722 = scmp.lt.s32.totalorder %s30, 1
      %s723 = scalar_select %p722, %s30, 1
      %s724 = smul.addr %s723, 4
      %s725 = smul.addr %s724, 4
      %s726 = scalar_lea.vmem %s7, %s725
      %p727 = scmp.lt.s32.totalorder %s30, 1
      %s728 = scalar_select %p727, %s30, 1
      %s729 = scalar_lea.vmem %s8, %s728
      %p730 = scmp.lt.s32.totalorder %s30, 1
      %s731 = scalar_select %p730, %s30, 1
      %s732 = smul.addr %s731, 4
      %s733 = smul.addr %s732, 4
      %s734 = scalar_lea.vmem %s9, %s733
      %p735 = scmp.lt.s32.totalorder %s30, 1
      %s736 = scalar_select %p735, %s30, 1
      %s737 = scalar_lea.vmem %s10, %s736
      %p738 = scmp.lt.s32.totalorder %s30, 1
      %s739 = scalar_select %p738, %s30, 1
      %s740 = scalar_lea.vmem %s11, %s739
      %p741 = scmp.lt.s32.totalorder %s30, 1
      %s742 = scalar_select %p741, %s30, 1
      %s743 = scalar_lea.vmem %s12, %s742
      %p744 = scmp.lt.s32.totalorder %s30, 1
      %s745 = scalar_select %p744, %s30, 1
      %s746 = smul.addr %s745, 4
      %s747 = smul.addr %s746, 4
      %s748 = scalar_lea.vmem %s13, %s747
      %p749 = scmp.lt.s32.totalorder %s30, 1
      %s750 = scalar_select %p749, %s30, 1
      %s751 = scalar_lea.vmem %s14, %s750
      %p752 = scmp.lt.s32.totalorder %s30, 1
      %s753 = scalar_select %p752, %s30, 1
      %s754 = smul.addr %s753, 16
      %s755 = smul.addr %s754, 4
      %s756 = scalar_lea.vmem %s15, %s755
      %p757 = scmp.lt.s32.totalorder %s30, 1
      %s758 = scalar_select %p757, %s30, 1
      %s759 = scalar_lea.vmem %s16, %s758
      %p761 = scmp.eq.s32.totalorder %s30, 0
      // Predicated region
      $region97: #{blip_base_forward.2} parent=95 // pred_check
        %p762 = pneg %p761
      $region98: #{blip_base_forward.2} parent=95 // pred_check_branch
        %764 = sbr.rel (%p762) target = $region100
      $region99: #{blip_base_forward.2} parent=95 // pred_region
        %v765 = vld [vmem:[%s0] sm:$0xff]
        %v766 = vld [vmem:[%s0 + $0x8] sm:$0xff]
        %v767 = vld [vmem:[%s0 + $0x10] sm:$0xff]
        %v768 = vld [vmem:[%s0 + $0x18] sm:$0xff]
        %v769 = vld [vmem:[%s1] sm:$0xf]
        %v770 = vld [vmem:[%s1 + $0x4] sm:$0xf]
        %v771 = vld [vmem:[%s1 + $0x8] sm:$0xf]
        %v772 = vld [vmem:[%s1 + $0xc] sm:$0xf]
        %v773 = vld [vmem:[%s1 + $0x10] sm:$0xf]
        %v774 = vld [vmem:[%s1 + $0x14] sm:$0xf]
        %v775 = vpack.c.bf16 %v766, %v765
        %v776 = vpack.c.bf16 %v768, %v767
        %v777 = vld [vmem:[%s2] sm:$0x1]
        %v779 = vlaneseq
        %v780 = vshrl.u32 %v779, 7
        %v781 = vsub.s32 0, %v780
        %v782 = vrot.slane %v777, %v781
        %v790 = vunpack.c.l.b16 %v769
        %v791 = vunpack.c.l.b16 %v770
        %v792 = vunpack.c.l.b16 %v771
        %v793 = vunpack.c.l.b16 %v772
        %v794 = vunpack.c.l.b16 %v773
        %v795 = vunpack.c.l.b16 %v774
        %v796 = vpack.c.b16 %v791, %v790
        %v797 = vpack.c.b16 %v793, %v792
        %v798 = vpack.c.b16 %v795, %v794
        %vm802 = vcmask 392192
        %v804 = vsel %vm802, %v775, 0
        %v807 = vsel %vm802, %v776, 0
        %809 = vmatprep.subr.bf16.mxu0 0
        %810 = vmatpush1.bf16.msra.mxu0 %v796
        %811 = vmatprep.subr.bf16.mxu0 0
        %812 = vmatpush1.bf16.msra.mxu0 %v797
        %813 = vmatprep.subr.bf16.mxu0 0
        %814 = vmatpush1.bf16.msra.mxu0 %v798
        %815 = vmatprep.subr.bf16.mxu0 0
        %816 = vmatpush1.bf16.msra.mxu0 0
        %817 = vmatprep.subr.bf16.mxu0 0
        %818 = vmatpush1.bf16.msra.mxu0 0
        %819 = vmatprep.subr.bf16.mxu0 0
        %820 = vmatpush1.bf16.msra.mxu0 0
        %821 = vmatprep.subr.bf16.mxu0 0
        %822 = vmatpush1.bf16.msra.mxu0 0
        %823 = vmatprep.subr.bf16.mxu0 0
        %824 = vmatpush1.bf16.msra.mxu0 0
        %825 = vmatprep.subr.bf16.mxu0 0
        %826 = vmatpush1.bf16.msra.mxu0 0
        %827 = vmatprep.subr.bf16.mxu0 0
        %828 = vmatpush1.bf16.msra.mxu0 0
        %829 = vmatprep.subr.bf16.mxu0 0
        %830 = vmatpush1.bf16.msra.mxu0 0
        %831 = vmatprep.subr.bf16.mxu0 0
        %832 = vmatpush1.bf16.msra.mxu0 0
        %833 = vmatprep.subr.bf16.mxu0 0
        %834 = vmatpush1.bf16.msra.mxu0 0
        %835 = vmatprep.subr.bf16.mxu0 0
        %836 = vmatpush1.bf16.msra.mxu0 0
        %837 = vmatprep.subr.bf16.mxu0 0
        %838 = vmatpush1.bf16.msra.mxu0 0
        %839 = vmatprep.subr.bf16.mxu0 0
        %840 = vmatpush1.bf16.msra.mxu0 0
        %841 = vmatprep.mubr.bf16.mxu0 0
        %842 = vmatmul.mubr.bf16.gmra.mrb[0].mxu0 %v804
        %v843 = vpop.f32.mrb[0].mxu0
        %v844 = vadd.f32 %v782, %v843
        %v845 = vpop.f32.mrb[0].mxu0
        %v846 = vpop.f32.mrb[0].mxu0
        %v847 = vadd.f32 %v782, %v846
        %v848 = vpop.f32.mrb[0].mxu0
        %849 = vmatprep.mubr.bf16.mxu0 0
        %850 = vmatmul.mubr.bf16.gmra.mrb[0].mxu0 %v807
        %v851 = vpop.f32.mrb[0].mxu0
        %v852 = vadd.f32 %v782, %v851
        %v853 = vpop.f32.mrb[0].mxu0
        %v854 = vpop.f32.mrb[0].mxu0
        %v855 = vadd.f32 %v782, %v854
        %v856 = vpop.f32.mrb[0].mxu0
        %857 = vdwg.mxu0
        %v858 = vld [vmem:[%s4] sm:$0xff]
        %v859 = vld [vmem:[%s4 + $0x8] sm:$0xff]
        %v860 = vld [vmem:[%s4 + $0x10] sm:$0x1]
        %v861 = vld [vmem:[%s3] sm:$0x1]
        %v862 = vadd.f32 %v861, %v858
        %vm863 = vcmask 253952
        %864 = vst.msk [vmem:[#allocation2] sm:$0x1] %vm863, %v862
        %vm868 = vcmask 1046528
        %v869 = vrot.slane %v858, 1
        %v870 = vrot.slane %v859, 1
        %v871 = vsel %vm868, %v869, %v870
        %v872 = vrot.slane %v860, 1
        %v873 = vsel %vm868, %v870, %v872
        %v876 = vadd.f32 %v844, %v871
        %v877 = vadd.f32 %v847, %v873
        %vm878 = vcmask 261120
        %879 = vst.msk [vmem:[#allocation2 + $0x1] sm:$0xff] %vm878, %v876
        %880 = vst.msk [vmem:[#allocation2 + $0x9] sm:$0xff] %vm878, %v877
        %881 = vst.msk [vmem:[#allocation2 + $0x11] sm:$0x1] %vm863, %v862
        %v882 = vadd.f32 %v852, %v871
        %v883 = vadd.f32 %v855, %v873
        %884 = vst.msk [vmem:[#allocation2 + $0x12] sm:$0xff] %vm878, %v882
        %885 = vst.msk [vmem:[#allocation2 + $0x1a] sm:$0xff] %vm878, %v883
      $region100: #{blip_base_forward.2} parent=95 // pred_fallthru
        _
      %v886 = vld [vmem:[#allocation2] sm:$0xff]
      %v887 = vld [vmem:[#allocation2 + $0x8] sm:$0xff]
      %v888 = vld [vmem:[#allocation2 + $0x10] sm:$0xff]
      %v889 = vld [vmem:[#allocation2 + $0x18] sm:$0xff]
      %v890 = vld [vmem:[#allocation2 + $0x20] sm:$0x3]
      %v891 = vld [vmem:[%s718] sm:$0x1]
      %v892 = vld [vmem:[%s721] sm:$0x1]
      %vm893 = vcmask 261120
      %v894 = vsel %vm893, %v886, 0.0
      %895 = vadd.xlane.f32.xlu0 %v894
      %v896 = vpop.xlane.xlu0 %895
      %v897 = vsel %vm893, %v887, 0.0
      %898 = vadd.xlane.f32.xlu0 %v897
      %v899 = vpop.xlane.xlu0 %898
      %v900 = vsel %vm893, %v888, 0.0
      %901 = vadd.xlane.f32.xlu0 %v900
      %v902 = vpop.xlane.xlu0 %901
      %v903 = vsel %vm893, %v889, 0.0
      %904 = vadd.xlane.f32.xlu0 %v903
      %v905 = vpop.xlane.xlu0 %904
      %vm906 = vcmask 254976
      %v907 = vsel %vm906, %v890, 0.0
      %908 = vadd.xlane.f32.xlu0 %v907
      %v909 = vpop.xlane.xlu0 %908
      %v910 = vrcp.pop 32.0
      %v911 = vmul.f32 %v896, %v910
      %v912 = vmul.f32 %v899, %v910
      %v913 = vmul.f32 %v902, %v910
      %v914 = vmul.f32 %v905, %v910
      %v915 = vmul.f32 %v909, %v910
      %v916 = vsub.f32 %v886, %v911
      %v917 = vsub.f32 %v887, %v912
      %v918 = vsub.f32 %v888, %v913
      %v919 = vsub.f32 %v889, %v914
      %v920 = vsub.f32 %v890, %v915
      %v921 = vmul.f32 %v916, %v916
      %v922 = vmul.f32 %v917, %v917
      %v923 = vmul.f32 %v918, %v918
      %v924 = vmul.f32 %v919, %v919
      %v925 = vmul.f32 %v920, %v920
      %v926 = vsel %vm893, %v921, 0.0
      %927 = vadd.xlane.f32.xlu0 %v926
      %v928 = vpop.xlane.xlu0 %927
      %v929 = vsel %vm893, %v922, 0.0
      %930 = vadd.xlane.f32.xlu0 %v929
      %v931 = vpop.xlane.xlu0 %930
      %v932 = vsel %vm893, %v923, 0.0
      %933 = vadd.xlane.f32.xlu0 %v932
      %v934 = vpop.xlane.xlu0 %933
      %v935 = vsel %vm893, %v924, 0.0
      %936 = vadd.xlane.f32.xlu0 %v935
      %v937 = vpop.xlane.xlu0 %936
      %v938 = vsel %vm906, %v925, 0.0
      %939 = vadd.xlane.f32.xlu0 %v938
      %v940 = vpop.xlane.xlu0 %939
      %v941 = vmul.f32 %v928, %v910
      %v942 = vmul.f32 %v931, %v910
      %v943 = vmul.f32 %v934, %v910
      %v944 = vmul.f32 %v937, %v910
      %v945 = vmul.f32 %v940, %v910
      %v946 = vadd.f32 %v941, 1e-06
      %v947 = vadd.f32 %v942, 1e-06
      %v948 = vadd.f32 %v943, 1e-06
      %v949 = vadd.f32 %v944, 1e-06
      %v950 = vadd.f32 %v945, 1e-06
      %v951 = vrsqrt.pop %v946
      %v952 = vrsqrt.pop %v947
      %v953 = vrsqrt.pop %v948
      %v954 = vrsqrt.pop %v949
      %v955 = vrsqrt.pop %v950
      %v956 = vmul.f32 %v916, %v951
      %v957 = vmul.f32 %v917, %v952
      %v958 = vmul.f32 %v918, %v953
      %v959 = vmul.f32 %v919, %v954
      %v960 = vmul.f32 %v920, %v955
      %v962 = vlaneseq
      %v963 = vshrl.u32 %v962, 7
      %v964 = vsub.s32 0, %v963
      %v965 = vrot.slane %v891, %v964
      %v967 = vmul.f32 %v956, %v965
      %v968 = vmul.f32 %v957, %v965
      %v969 = vmul.f32 %v958, %v965
      %v970 = vmul.f32 %v959, %v965
      %v971 = vmul.f32 %v960, %v965
      %v973 = vlaneseq
      %v974 = vshrl.u32 %v973, 7
      %v975 = vsub.s32 0, %v974
      %v976 = vrot.slane %v892, %v975
      %v978 = vadd.f32 %v967, %v976
      %v979 = vadd.f32 %v968, %v976
      %v980 = vadd.f32 %v969, %v976
      %v981 = vadd.f32 %v970, %v976
      %v982 = vadd.f32 %v971, %v976
      %v983 = vld [vmem:[%s726] sm:$0xf]
      %v984 = vld [vmem:[%s726 + $0x4] sm:$0xf]
      %v985 = vld [vmem:[%s726 + $0x8] sm:$0xf]
      %v986 = vld [vmem:[%s726 + $0xc] sm:$0xf]
      %v987 = vpack.c.bf16 %v979, %v978
      %v988 = vpack.c.bf16 %v981, %v980
      %v989 = vpack.c.bf16 %v982, %v982
      %v990 = vld [vmem:[%s729] sm:$0x1]
      %v992 = vlaneseq
      %v993 = vshrl.u32 %v992, 7
      %v994 = vsub.s32 0, %v993
      %v995 = vrot.slane %v990, %v994
      %v1001 = vunpack.c.l.b16 %v983
      %v1002 = vunpack.c.l.b16 %v984
      %v1003 = vunpack.c.l.b16 %v985
      %v1004 = vunpack.c.l.b16 %v986
      %v1005 = vpack.c.b16 %v1002, %v1001
      %v1006 = vpack.c.b16 %v1004, %v1003
      %v1010 = vsel %vm893, %v987, 0
      %v1013 = vsel %vm893, %v988, 0
      %v1016 = vsel %vm893, %v989, 0
      %1018 = vmatprep.subr.bf16.mxu0 0
      %1019 = vmatpush1.bf16.msra.mxu0 %v1005
      %1020 = vmatprep.subr.bf16.mxu0 0
      %1021 = vmatpush1.bf16.msra.mxu0 %v1006
      %1022 = vmatprep.subr.bf16.mxu0 0
      %1023 = vmatpush1.bf16.msra.mxu0 0
      %1024 = vmatprep.subr.bf16.mxu0 0
      %1025 = vmatpush1.bf16.msra.mxu0 0
      %1026 = vmatprep.subr.bf16.mxu0 0
      %1027 = vmatpush1.bf16.msra.mxu0 0
      %1028 = vmatprep.subr.bf16.mxu0 0
      %1029 = vmatpush1.bf16.msra.mxu0 0
      %1030 = vmatprep.subr.bf16.mxu0 0
      %1031 = vmatpush1.bf16.msra.mxu0 0
      %1032 = vmatprep.subr.bf16.mxu0 0
      %1033 = vmatpush1.bf16.msra.mxu0 0
      %1034 = vmatprep.subr.bf16.mxu0 0
      %1035 = vmatpush1.bf16.msra.mxu0 0
      %1036 = vmatprep.subr.bf16.mxu0 0
      %1037 = vmatpush1.bf16.msra.mxu0 0
      %1038 = vmatprep.subr.bf16.mxu0 0
      %1039 = vmatpush1.bf16.msra.mxu0 0
      %1040 = vmatprep.subr.bf16.mxu0 0
      %1041 = vmatpush1.bf16.msra.mxu0 0
      %1042 = vmatprep.subr.bf16.mxu0 0
      %1043 = vmatpush1.bf16.msra.mxu0 0
      %1044 = vmatprep.subr.bf16.mxu0 0
      %1045 = vmatpush1.bf16.msra.mxu0 0
      %1046 = vmatprep.subr.bf16.mxu0 0
      %1047 = vmatpush1.bf16.msra.mxu0 0
      %1048 = vmatprep.subr.bf16.mxu0 0
      %1049 = vmatpush1.bf16.msra.mxu0 0
      %1050 = vmatprep.mubr.bf16.mxu0 0
      %1051 = vmatmul.mubr.bf16.gmra.mrb[0].mxu0 %v1010
      %v1052 = vpop.f32.mrb[0].mxu0
      %v1053 = vadd.f32 %v995, %v1052
      %v1054 = vpop.f32.mrb[0].mxu0
      %v1055 = vpop.f32.mrb[0].mxu0
      %v1056 = vadd.f32 %v995, %v1055
      %v1057 = vpop.f32.mrb[0].mxu0
      %1058 = vmatprep.mubr.bf16.mxu0 0
      %1059 = vmatmul.mubr.bf16.gmra.mrb[0].mxu0 %v1013
      %v1060 = vpop.f32.mrb[0].mxu0
      %v1061 = vadd.f32 %v995, %v1060
      %v1062 = vpop.f32.mrb[0].mxu0
      %v1063 = vpop.f32.mrb[0].mxu0
      %v1064 = vadd.f32 %v995, %v1063
      %v1065 = vpop.f32.mrb[0].mxu0
      %1066 = vmatprep.mubr.bf16.mxu0 0
      %1067 = vmatmul.mubr.bf16.gmra.mrb[0].mxu0 %v1016
      %v1068 = vpop.f32.mrb[0].mxu0
      %v1069 = vadd.f32 %v995, %v1068
      %v1070 = vpop.f32.mrb[0].mxu0
      %v1071 = vpop.f32.mrb[0].mxu0
      %v1072 = vpop.f32.mrb[0].mxu0
      %1073 = vdwg.mxu0
      %v1074 = vmul.f32 %v1053, 0.35355338
      %v1075 = vmul.f32 %v1056, 0.35355338
      %v1076 = vmul.f32 %v1061, 0.35355338
      %v1077 = vmul.f32 %v1064, 0.35355338
      %v1078 = vmul.f32 %v1069, 0.35355338
      %v1079 = vpack.c.bf16 %v1075, %v1074
      %v1080 = vpack.c.bf16 %v1077, %v1076
      %v1081 = vpack.c.bf16 %v1078, %v1078
      %v1082 = vpack.c.bf16 %v1056, %v1053
      %v1083 = vpack.c.bf16 %v1064, %v1061
      %v1084 = vpack.c.bf16 %v1069, %v1069
      %1087 = vrot.lane.b32.xlu0 %v1082, 96
      %v1088 = vpop.permute.xlu0 %1087
      %1089 = vrot.lane.b32.xlu0 %v1083, 96
      %v1090 = vpop.permute.xlu0 %1089
      %vm1091 = vcmask 64512
      %v1093 = vsel %vm1091, %v1079, 0
      %v1096 = vsel %vm1091, %v1080, 0
      %v1099 = vsel %vm1091, %v1088, 0
      %v1102 = vsel %vm1091, %v1090, 0
      %1104 = vmatprep.subr.bf16.mxu0 0
      %1105 = vmatpush1.bf16.xpose.msra.mxu0 %v1099
      %1106 = vmatprep.subr.bf16.mxu0 0
      %1107 = vmatpush1.bf16.xpose.msra.mxu0 %v1102
      %1108 = vmatprep.subr.bf16.mxu0 0
      %1109 = vmatpush1.bf16.xpose.msra.mxu0 0
      %1110 = vmatprep.subr.bf16.mxu0 0
      %1111 = vmatpush1.bf16.xpose.msra.mxu0 0
      %1112 = vmatprep.subr.bf16.mxu0 0
      %1113 = vmatpush1.bf16.xpose.msra.mxu0 0
      %1114 = vmatprep.subr.bf16.mxu0 0
      %1115 = vmatpush1.bf16.xpose.msra.mxu0 0
      %1116 = vmatprep.subr.bf16.mxu0 0
      %1117 = vmatpush1.bf16.xpose.msra.mxu0 0
      %1118 = vmatprep.subr.bf16.mxu0 0
      %1119 = vmatpush1.bf16.xpose.msra.mxu0 0
      %1120 = vmatprep.subr.bf16.mxu0 0
      %1121 = vmatpush1.bf16.xpose.msra.mxu0 0
      %1122 = vmatprep.subr.bf16.mxu0 0
      %1123 = vmatpush1.bf16.xpose.msra.mxu0 0
      %1124 = vmatprep.subr.bf16.mxu0 0
      %1125 = vmatpush1.bf16.xpose.msra.mxu0 0
      %1126 = vmatprep.subr.bf16.mxu0 0
      %1127 = vmatpush1.bf16.xpose.msra.mxu0 0
      %1128 = vmatprep.subr.bf16.mxu0 0
      %1129 = vmatpush1.bf16.xpose.msra.mxu0 0
      %1130 = vmatprep.subr.bf16.mxu0 0
      %1131 = vmatpush1.bf16.xpose.msra.mxu0 0
      %1132 = vmatprep.subr.bf16.mxu0 0
      %1133 = vmatpush1.bf16.xpose.msra.mxu0 0
      %1134 = vmatprep.subr.bf16.mxu0 0
      %1135 = vmatpush1.bf16.xpose.msra.mxu0 0
      %1136 = vmatprep.mubr.bf16.mxu0 0
      %1137 = vmatmul.mubr.bf16.gmra.mrb[0].mxu0 %v1093
      %v1138 = vpop.f32.mrb[0].mxu0
      %v1139 = vadd.f32 0.0, %v1138
      %v1140 = vpop.f32.mrb[0].mxu0
      %v1141 = vpop.f32.mrb[0].mxu0
      %v1142 = vadd.f32 0.0, %v1141
      %v1143 = vpop.f32.mrb[0].mxu0
      %1144 = vmatprep.mubr.bf16.mxu0 0
      %1145 = vmatmul.mubr.bf16.gmra.mrb[0].mxu0 %v1096
      %v1146 = vpop.f32.mrb[0].mxu0
      %v1147 = vadd.f32 0.0, %v1146
      %v1148 = vpop.f32.mrb[0].mxu0
      %v1149 = vpop.f32.mrb[0].mxu0
      %v1150 = vpop.f32.mrb[0].mxu0
      %1151 = vdwg.mxu0
      %vm1152 = vcmask 138240
      %v1153 = vsel %vm1152, %v1139, -inf
      %1154 = vmax.xlane.f32.xlu0 %v1153
      %v1155 = vpop.xlane.xlu0 %1154
      %v1156 = vsel %vm1152, %v1142, -inf
      %1157 = vmax.xlane.f32.xlu0 %v1156
      %v1158 = vpop.xlane.xlu0 %1157
      %vm1159 = vcmask 131072
      %v1160 = vsel %vm1159, %v1147, -inf
      %1161 = vmax.xlane.f32.xlu0 %v1160
      %v1162 = vpop.xlane.xlu0 %1161
      %v1163 = vsub.f32 %v1139, %v1155
      %v1164 = vsub.f32 %v1142, %v1158
      %v1165 = vsub.f32 %v1147, %v1162
      %v1166 = vmul.f32 %v1163, 1.442695
      %v1167 = vpow.pop %v1166
      %v1168 = vmul.f32 %v1164, 1.442695
      %v1169 = vpow.pop %v1168
      %v1170 = vmul.f32 %v1165, 1.442695
      %v1171 = vpow.pop %v1170
      %v1172 = vsel %vm1152, %v1167, 0.0
      %1173 = vadd.xlane.f32.xlu0 %v1172
      %v1174 = vpop.xlane.xlu0 %1173
      %v1175 = vsel %vm1152, %v1169, 0.0
      %1176 = vadd.xlane.f32.xlu0 %v1175
      %v1177 = vpop.xlane.xlu0 %1176
      %v1178 = vsel %vm1159, %v1171, 0.0
      %1179 = vadd.xlane.f32.xlu0 %v1178
      %v1180 = vpop.xlane.xlu0 %1179
      %v1181 = vrcp.pop %v1174
      %v1182 = vrcp.pop %v1177
      %v1183 = vrcp.pop %v1180
      %v1184 = vmul.f32 %v1167, %v1181
      %v1185 = vmul.f32 %v1169, %v1182
      %v1186 = vmul.f32 %v1171, %v1183
      %v1187 = vpack.c.bf16 %v1185, %v1184
      %v1188 = vpack.c.bf16 %v1186, %v1186
      %1189 = vrot.lane.b32.xlu0 %v1082, 64
      %v1190 = vpop.permute.xlu0 %1189
      %1191 = vrot.lane.b32.xlu0 %v1083, 64
      %v1192 = vpop.permute.xlu0 %1191
      %v1195 = vsel %vm1152, %v1187, 0
      %v1198 = vsel %vm1152, %v1188, 0
      %vm1200 = vcmask 1040384
      %v1201 = vsel 0, 4294967295, 65535
      %v1202 = vsel %vm1200, %v1201, 0
      %v1204 = vand.u32 %v1192, %v1202
      %1206 = vmatprep.subr.bf16.mxu0 0
      %1207 = vmatpush1.bf16.msra.mxu0 %v1190
      %1208 = vmatprep.subr.bf16.mxu0 0
      %1209 = vmatpush1.bf16.msra.mxu0 %v1204
      %1210 = vmatprep.subr.bf16.mxu0 0
      %1211 = vmatpush1.bf16.msra.mxu0 0
      %1212 = vmatprep.subr.bf16.mxu0 0
      %1213 = vmatpush1.bf16.msra.mxu0 0
      %1214 = vmatprep.subr.bf16.mxu0 0
      %1215 = vmatpush1.bf16.msra.mxu0 0
      %1216 = vmatprep.subr.bf16.mxu0 0
      %1217 = vmatpush1.bf16.msra.mxu0 0
      %1218 = vmatprep.subr.bf16.mxu0 0
      %1219 = vmatpush1.bf16.msra.mxu0 0
      %1220 = vmatprep.subr.bf16.mxu0 0
      %1221 = vmatpush1.bf16.msra.mxu0 0
      %1222 = vmatprep.subr.bf16.mxu0 0
      %1223 = vmatpush1.bf16.msra.mxu0 0
      %1224 = vmatprep.subr.bf16.mxu0 0
      %1225 = vmatpush1.bf16.msra.mxu0 0
      %1226 = vmatprep.subr.bf16.mxu0 0
      %1227 = vmatpush1.bf16.msra.mxu0 0
      %1228 = vmatprep.subr.bf16.mxu0 0
      %1229 = vmatpush1.bf16.msra.mxu0 0
      %1230 = vmatprep.subr.bf16.mxu0 0
      %1231 = vmatpush1.bf16.msra.mxu0 0
      %1232 = vmatprep.subr.bf16.mxu0 0
      %1233 = vmatpush1.bf16.msra.mxu0 0
      %1234 = vmatprep.subr.bf16.mxu0 0
      %1235 = vmatpush1.bf16.msra.mxu0 0
      %1236 = vmatprep.subr.bf16.mxu0 0
      %1237 = vmatpush1.bf16.msra.mxu0 0
      %1238 = vmatprep.mubr.bf16.mxu0 0
      %1239 = vmatmul.mubr.bf16.gmra.mrb[0].mxu0 %v1195
      %v1240 = vpop.f32.mrb[0].mxu0
      %v1241 = vadd.f32 0.0, %v1240
      %v1242 = vpop.f32.mrb[0].mxu0
      %v1243 = vpop.f32.mrb[0].mxu0
      %v1244 = vadd.f32 0.0, %v1243
      %v1245 = vpop.f32.mrb[0].mxu0
      %1246 = vmatprep.mubr.bf16.mxu0 0
      %1247 = vmatmul.mubr.bf16.gmra.mrb[0].mxu0 %v1198
      %v1248 = vpop.f32.mrb[0].mxu0
      %v1249 = vadd.f32 0.0, %v1248
      %v1250 = vpop.f32.mrb[0].mxu0
      %v1251 = vpop.f32.mrb[0].mxu0
      %v1252 = vpop.f32.mrb[0].mxu0
      %1253 = vdwg.mxu0
      %1256 = vrot.lane.b32.xlu0 %v1079, 120
      %v1257 = vpop.permute.xlu0 %1256
      %1258 = vrot.lane.b32.xlu0 %v1080, 120
      %v1259 = vpop.permute.xlu0 %1258
      %1260 = vrot.lane.b32.xlu0 %v1082, 88
      %v1261 = vpop.permute.xlu0 %1260
      %1262 = vrot.lane.b32.xlu0 %v1083, 88
      %v1263 = vpop.permute.xlu0 %1262
      %v1265 = vsel %vm1091, %v1257, 0
      %v1268 = vsel %vm1091, %v1259, 0
      %v1271 = vsel %vm1091, %v1261, 0
      %v1274 = vsel %vm1091, %v1263, 0
      %1276 = vmatprep.subr.bf16.mxu0 0
      %1277 = vmatpush1.bf16.xpose.msra.mxu0 %v1271
      %1278 = vmatprep.subr.bf16.mxu0 0
      %1279 = vmatpush1.bf16.xpose.msra.mxu0 %v1274
      %1280 = vmatprep.subr.bf16.mxu0 0
      %1281 = vmatpush1.bf16.xpose.msra.mxu0 0
      %1282 = vmatprep.subr.bf16.mxu0 0
      %1283 = vmatpush1.bf16.xpose.msra.mxu0 0
      %1284 = vmatprep.subr.bf16.mxu0 0
      %1285 = vmatpush1.bf16.xpose.msra.mxu0 0
      %1286 = vmatprep.subr.bf16.mxu0 0
      %1287 = vmatpush1.bf16.xpose.msra.mxu0 0
      %1288 = vmatprep.subr.bf16.mxu0 0
      %1289 = vmatpush1.bf16.xpose.msra.mxu0 0
      %1290 = vmatprep.subr.bf16.mxu0 0
      %1291 = vmatpush1.bf16.xpose.msra.mxu0 0
      %1292 = vmatprep.subr.bf16.mxu0 0
      %1293 = vmatpush1.bf16.xpose.msra.mxu0 0
      %1294 = vmatprep.subr.bf16.mxu0 0
      %1295 = vmatpush1.bf16.xpose.msra.mxu0 0
      %1296 = vmatprep.subr.bf16.mxu0 0
      %1297 = vmatpush1.bf16.xpose.msra.mxu0 0
      %1298 = vmatprep.subr.bf16.mxu0 0
      %1299 = vmatpush1.bf16.xpose.msra.mxu0 0
      %1300 = vmatprep.subr.bf16.mxu0 0
      %1301 = vmatpush1.bf16.xpose.msra.mxu0 0
      %1302 = vmatprep.subr.bf16.mxu0 0
      %1303 = vmatpush1.bf16.xpose.msra.mxu0 0
      %1304 = vmatprep.subr.bf16.mxu0 0
      %1305 = vmatpush1.bf16.xpose.msra.mxu0 0
      %1306 = vmatprep.subr.bf16.mxu0 0
      %1307 = vmatpush1.bf16.xpose.msra.mxu0 0
      %1308 = vmatprep.mubr.bf16.mxu0 0
      %1309 = vmatmul.mubr.bf16.gmra.mrb[0].mxu0 %v1265
      %v1310 = vpop.f32.mrb[0].mxu0
      %v1311 = vadd.f32 0.0, %v1310
      %v1312 = vpop.f32.mrb[0].mxu0
      %v1313 = vpop.f32.mrb[0].mxu0
      %v1314 = vadd.f32 0.0, %v1313
      %v1315 = vpop.f32.mrb[0].mxu0
      %1316 = vmatprep.mubr.bf16.mxu0 0
      %1317 = vmatmul.mubr.bf16.gmra.mrb[0].mxu0 %v1268
      %v1318 = vpop.f32.mrb[0].mxu0
      %v1319 = vadd.f32 0.0, %v1318
      %v1320 = vpop.f32.mrb[0].mxu0
      %v1321 = vpop.f32.mrb[0].mxu0
      %v1322 = vpop.f32.mrb[0].mxu0
      %1323 = vdwg.mxu0
      %v1324 = vsel %vm1152, %v1311, -inf
      %1325 = vmax.xlane.f32.xlu0 %v1324
      %v1326 = vpop.xlane.xlu0 %1325
      %v1327 = vsel %vm1152, %v1314, -inf
      %1328 = vmax.xlane.f32.xlu0 %v1327
      %v1329 = vpop.xlane.xlu0 %1328
      %v1330 = vsel %vm1159, %v1319, -inf
      %1331 = vmax.xlane.f32.xlu0 %v1330
      %v1332 = vpop.xlane.xlu0 %1331
      %v1333 = vsub.f32 %v1311, %v1326
      %v1334 = vsub.f32 %v1314, %v1329
      %v1335 = vsub.f32 %v1319, %v1332
      %v1336 = vmul.f32 %v1333, 1.442695
      %v1337 = vpow.pop %v1336
      %v1338 = vmul.f32 %v1334, 1.442695
      %v1339 = vpow.pop %v1338
      %v1340 = vmul.f32 %v1335, 1.442695
      %v1341 = vpow.pop %v1340
      %v1342 = vsel %vm1152, %v1337, 0.0
      %1343 = vadd.xlane.f32.xlu0 %v1342
      %v1344 = vpop.xlane.xlu0 %1343
      %v1345 = vsel %vm1152, %v1339, 0.0
      %1346 = vadd.xlane.f32.xlu0 %v1345
      %v1347 = vpop.xlane.xlu0 %1346
      %v1348 = vsel %vm1159, %v1341, 0.0
      %1349 = vadd.xlane.f32.xlu0 %v1348
      %v1350 = vpop.xlane.xlu0 %1349
      %v1351 = vrcp.pop %v1344
      %v1352 = vrcp.pop %v1347
      %v1353 = vrcp.pop %v1350
      %v1354 = vmul.f32 %v1337, %v1351
      %v1355 = vmul.f32 %v1339, %v1352
      %v1356 = vmul.f32 %v1341, %v1353
      %v1357 = vpack.c.bf16 %v1355, %v1354
      %v1358 = vpack.c.bf16 %v1356, %v1356
      %1359 = vrot.lane.b32.xlu0 %v1082, 56
      %v1360 = vpop.permute.xlu0 %1359
      %1361 = vrot.lane.b32.xlu0 %v1083, 56
      %v1362 = vpop.permute.xlu0 %1361
      %v1365 = vsel %vm1152, %v1357, 0
      %v1368 = vsel %vm1152, %v1358, 0
      %v1371 = vand.u32 %v1362, %v1202
      %1373 = vmatprep.subr.bf16.mxu0 0
      %1374 = vmatpush1.bf16.msra.mxu0 %v1360
      %1375 = vmatprep.subr.bf16.mxu0 0
      %1376 = vmatpush1.bf16.msra.mxu0 %v1371
      %1377 = vmatprep.subr.bf16.mxu0 0
      %1378 = vmatpush1.bf16.msra.mxu0 0
      %1379 = vmatprep.subr.bf16.mxu0 0
      %1380 = vmatpush1.bf16.msra.mxu0 0
      %1381 = vmatprep.subr.bf16.mxu0 0
      %1382 = vmatpush1.bf16.msra.mxu0 0
      %1383 = vmatprep.subr.bf16.mxu0 0
      %1384 = vmatpush1.bf16.msra.mxu0 0
      %1385 = vmatprep.subr.bf16.mxu0 0
      %1386 = vmatpush1.bf16.msra.mxu0 0
      %1387 = vmatprep.subr.bf16.mxu0 0
      %1388 = vmatpush1.bf16.msra.mxu0 0
      %1389 = vmatprep.subr.bf16.mxu0 0
      %1390 = vmatpush1.bf16.msra.mxu0 0
      %1391 = vmatprep.subr.bf16.mxu0 0
      %1392 = vmatpush1.bf16.msra.mxu0 0
      %1393 = vmatprep.subr.bf16.mxu0 0
      %1394 = vmatpush1.bf16.msra.mxu0 0
      %1395 = vmatprep.subr.bf16.mxu0 0
      %1396 = vmatpush1.bf16.msra.mxu0 0
      %1397 = vmatprep.subr.bf16.mxu0 0
      %1398 = vmatpush1.bf16.msra.mxu0 0
      %1399 = vmatprep.subr.bf16.mxu0 0
      %1400 = vmatpush1.bf16.msra.mxu0 0
      %1401 = vmatprep.subr.bf16.mxu0 0
      %1402 = vmatpush1.bf16.msra.mxu0 0
      %1403 = vmatprep.subr.bf16.mxu0 0
      %1404 = vmatpush1.bf16.msra.mxu0 0
      %1405 = vmatprep.mubr.bf16.mxu0 0
      %1406 = vmatmul.mubr.bf16.gmra.mrb[0].mxu0 %v1365
      %v1407 = vpop.f32.mrb[0].mxu0
      %v1408 = vadd.f32 0.0, %v1407
      %v1409 = vpop.f32.mrb[0].mxu0
      %v1410 = vpop.f32.mrb[0].mxu0
      %v1411 = vadd.f32 0.0, %v1410
      %v1412 = vpop.f32.mrb[0].mxu0
      %1413 = vmatprep.mubr.bf16.mxu0 0
      %1414 = vmatmul.mubr.bf16.gmra.mrb[0].mxu0 %v1368
      %v1415 = vpop.f32.mrb[0].mxu0
      %v1416 = vadd.f32 0.0, %v1415
      %v1417 = vpop.f32.mrb[0].mxu0
      %v1418 = vpop.f32.mrb[0].mxu0
      %v1419 = vpop.f32.mrb[0].mxu0
      %1420 = vdwg.mxu0
      %1421 = vrot.lane.b32.xlu0 %v1079, 112
      %v1422 = vpop.permute.xlu0 %1421
      %1423 = vrot.lane.b32.xlu0 %v1080, 112
      %v1424 = vpop.permute.xlu0 %1423
      %1425 = vrot.lane.b32.xlu0 %v1082, 80
      %v1426 = vpop.permute.xlu0 %1425
      %1427 = vrot.lane.b32.xlu0 %v1083, 80
      %v1428 = vpop.permute.xlu0 %1427
      %v1430 = vsel %vm1091, %v1422, 0
      %v1433 = vsel %vm1091, %v1424, 0
      %v1436 = vsel %vm1091, %v1426, 0
      %v1439 = vsel %vm1091, %v1428, 0
      %1441 = vmatprep.subr.bf16.mxu0 0
      %1442 = vmatpush1.bf16.xpose.msra.mxu0 %v1436
      %1443 = vmatprep.subr.bf16.mxu0 0
      %1444 = vmatpush1.bf16.xpose.msra.mxu0 %v1439
      %1445 = vmatprep.subr.bf16.mxu0 0
      %1446 = vmatpush1.bf16.xpose.msra.mxu0 0
      %1447 = vmatprep.subr.bf16.mxu0 0
      %1448 = vmatpush1.bf16.xpose.msra.mxu0 0
      %1449 = vmatprep.subr.bf16.mxu0 0
      %1450 = vmatpush1.bf16.xpose.msra.mxu0 0
      %1451 = vmatprep.subr.bf16.mxu0 0
      %1452 = vmatpush1.bf16.xpose.msra.mxu0 0
      %1453 = vmatprep.subr.bf16.mxu0 0
      %1454 = vmatpush1.bf16.xpose.msra.mxu0 0
      %1455 = vmatprep.subr.bf16.mxu0 0
      %1456 = vmatpush1.bf16.xpose.msra.mxu0 0
      %1457 = vmatprep.subr.bf16.mxu0 0
      %1458 = vmatpush1.bf16.xpose.msra.mxu0 0
      %1459 = vmatprep.subr.bf16.mxu0 0
      %1460 = vmatpush1.bf16.xpose.msra.mxu0 0
      %1461 = vmatprep.subr.bf16.mxu0 0
      %1462 = vmatpush1.bf16.xpose.msra.mxu0 0
      %1463 = vmatprep.subr.bf16.mxu0 0
      %1464 = vmatpush1.bf16.xpose.msra.mxu0 0
      %1465 = vmatprep.subr.bf16.mxu0 0
      %1466 = vmatpush1.bf16.xpose.msra.mxu0 0
      %1467 = vmatprep.subr.bf16.mxu0 0
      %1468 = vmatpush1.bf16.xpose.msra.mxu0 0
      %1469 = vmatprep.subr.bf16.mxu0 0
      %1470 = vmatpush1.bf16.xpose.msra.mxu0 0
      %1471 = vmatprep.subr.bf16.mxu0 0
      %1472 = vmatpush1.bf16.xpose.msra.mxu0 0
      %1473 = vmatprep.mubr.bf16.mxu0 0
      %1474 = vmatmul.mubr.bf16.gmra.mrb[0].mxu0 %v1430
      %v1475 = vpop.f32.mrb[0].mxu0
      %v1476 = vadd.f32 0.0, %v1475
      %v1477 = vpop.f32.mrb[0].mxu0
      %v1478 = vpop.f32.mrb[0].mxu0
      %v1479 = vadd.f32 0.0, %v1478
      %v1480 = vpop.f32.mrb[0].mxu0
      %1481 = vmatprep.mubr.bf16.mxu0 0
      %1482 = vmatmul.mubr.bf16.gmra.mrb[0].mxu0 %v1433
      %v1483 = vpop.f32.mrb[0].mxu0
      %v1484 = vadd.f32 0.0, %v1483
      %v1485 = vpop.f32.mrb[0].mxu0
      %v1486 = vpop.f32.mrb[0].mxu0
      %v1487 = vpop.f32.mrb[0].mxu0
      %1488 = vdwg.mxu0
      %v1489 = vsel %vm1152, %v1476, -inf
      %1490 = vmax.xlane.f32.xlu0 %v1489
      %v1491 = vpop.xlane.xlu0 %1490
      %v1492 = vsel %vm1152, %v1479, -inf
      %1493 = vmax.xlane.f32.xlu0 %v1492
      %v1494 = vpop.xlane.xlu0 %1493
      %v1495 = vsel %vm1159, %v1484, -inf
      %1496 = vmax.xlane.f32.xlu0 %v1495
      %v1497 = vpop.xlane.xlu0 %1496
      %v1498 = vsub.f32 %v1476, %v1491
      %v1499 = vsub.f32 %v1479, %v1494
      %v1500 = vsub.f32 %v1484, %v1497
      %v1501 = vmul.f32 %v1498, 1.442695
      %v1502 = vpow.pop %v1501
      %v1503 = vmul.f32 %v1499, 1.442695
      %v1504 = vpow.pop %v1503
      %v1505 = vmul.f32 %v1500, 1.442695
      %v1506 = vpow.pop %v1505
      %v1507 = vsel %vm1152, %v1502, 0.0
      %1508 = vadd.xlane.f32.xlu0 %v1507
      %v1509 = vpop.xlane.xlu0 %1508
      %v1510 = vsel %vm1152, %v1504, 0.0
      %1511 = vadd.xlane.f32.xlu0 %v1510
      %v1512 = vpop.xlane.xlu0 %1511
      %v1513 = vsel %vm1159, %v1506, 0.0
      %1514 = vadd.xlane.f32.xlu0 %v1513
      %v1515 = vpop.xlane.xlu0 %1514
      %v1516 = vrcp.pop %v1509
      %v1517 = vrcp.pop %v1512
      %v1518 = vrcp.pop %v1515
      %v1519 = vmul.f32 %v1502, %v1516
      %v1520 = vmul.f32 %v1504, %v1517
      %v1521 = vmul.f32 %v1506, %v1518
      %v1522 = vpack.c.bf16 %v1520, %v1519
      %v1523 = vpack.c.bf16 %v1521, %v1521
      %1524 = vrot.lane.b32.xlu0 %v1082, 48
      %v1525 = vpop.permute.xlu0 %1524
      %1526 = vrot.lane.b32.xlu0 %v1083, 48
      %v1527 = vpop.permute.xlu0 %1526
      %v1530 = vsel %vm1152, %v1522, 0
      %v1533 = vsel %vm1152, %v1523, 0
      %v1536 = vand.u32 %v1527, %v1202
      %1538 = vmatprep.subr.bf16.mxu0 0
      %1539 = vmatpush1.bf16.msra.mxu0 %v1525
      %1540 = vmatprep.subr.bf16.mxu0 0
      %1541 = vmatpush1.bf16.msra.mxu0 %v1536
      %1542 = vmatprep.subr.bf16.mxu0 0
      %1543 = vmatpush1.bf16.msra.mxu0 0
      %1544 = vmatprep.subr.bf16.mxu0 0
      %1545 = vmatpush1.bf16.msra.mxu0 0
      %1546 = vmatprep.subr.bf16.mxu0 0
      %1547 = vmatpush1.bf16.msra.mxu0 0
      %1548 = vmatprep.subr.bf16.mxu0 0
      %1549 = vmatpush1.bf16.msra.mxu0 0
      %1550 = vmatprep.subr.bf16.mxu0 0
      %1551 = vmatpush1.bf16.msra.mxu0 0
      %1552 = vmatprep.subr.bf16.mxu0 0
      %1553 = vmatpush1.bf16.msra.mxu0 0
      %1554 = vmatprep.subr.bf16.mxu0 0
      %1555 = vmatpush1.bf16.msra.mxu0 0
      %1556 = vmatprep.subr.bf16.mxu0 0
      %1557 = vmatpush1.bf16.msra.mxu0 0
      %1558 = vmatprep.subr.bf16.mxu0 0
      %1559 = vmatpush1.bf16.msra.mxu0 0
      %1560 = vmatprep.subr.bf16.mxu0 0
      %1561 = vmatpush1.bf16.msra.mxu0 0
      %1562 = vmatprep.subr.bf16.mxu0 0
      %1563 = vmatpush1.bf16.msra.mxu0 0
      %1564 = vmatprep.subr.bf16.mxu0 0
      %1565 = vmatpush1.bf16.msra.mxu0 0
      %1566 = vmatprep.subr.bf16.mxu0 0
      %1567 = vmatpush1.bf16.msra.mxu0 0
      %1568 = vmatprep.subr.bf16.mxu0 0
      %1569 = vmatpush1.bf16.msra.mxu0 0
      %1570 = vmatprep.mubr.bf16.mxu0 0
      %1571 = vmatmul.mubr.bf16.gmra.mrb[0].mxu0 %v1530
      %v1572 = vpop.f32.mrb[0].mxu0
      %v1573 = vadd.f32 0.0, %v1572
      %v1574 = vpop.f32.mrb[0].mxu0
      %v1575 = vpop.f32.mrb[0].mxu0
      %v1576 = vadd.f32 0.0, %v1575
      %v1577 = vpop.f32.mrb[0].mxu0
      %1578 = vmatprep.mubr.bf16.mxu0 0
      %1579 = vmatmul.mubr.bf16.gmra.mrb[0].mxu0 %v1533
      %v1580 = vpop.f32.mrb[0].mxu0
      %v1581 = vadd.f32 0.0, %v1580
      %v1582 = vpop.f32.mrb[0].mxu0
      %v1583 = vpop.f32.mrb[0].mxu0
      %v1584 = vpop.f32.mrb[0].mxu0
      %1585 = vdwg.mxu0
      %1586 = vrot.lane.b32.xlu0 %v1079, 104
      %v1587 = vpop.permute.xlu0 %1586
      %1588 = vrot.lane.b32.xlu0 %v1080, 104
      %v1589 = vpop.permute.xlu0 %1588
      %1590 = vrot.lane.b32.xlu0 %v1082, 72
      %v1591 = vpop.permute.xlu0 %1590
      %1592 = vrot.lane.b32.xlu0 %v1083, 72
      %v1593 = vpop.permute.xlu0 %1592
      %v1595 = vsel %vm1091, %v1587, 0
      %v1598 = vsel %vm1091, %v1589, 0
      %v1601 = vsel %vm1091, %v1591, 0
      %v1604 = vsel %vm1091, %v1593, 0
      %1606 = vmatprep.subr.bf16.mxu0 0
      %1607 = vmatpush1.bf16.xpose.msra.mxu0 %v1601
      %1608 = vmatprep.subr.bf16.mxu0 0
      %1609 = vmatpush1.bf16.xpose.msra.mxu0 %v1604
      %1610 = vmatprep.subr.bf16.mxu0 0
      %1611 = vmatpush1.bf16.xpose.msra.mxu0 0
      %1612 = vmatprep.subr.bf16.mxu0 0
      %1613 = vmatpush1.bf16.xpose.msra.mxu0 0
      %1614 = vmatprep.subr.bf16.mxu0 0
      %1615 = vmatpush1.bf16.xpose.msra.mxu0 0
      %1616 = vmatprep.subr.bf16.mxu0 0
      %1617 = vmatpush1.bf16.xpose.msra.mxu0 0
      %1618 = vmatprep.subr.bf16.mxu0 0
      %1619 = vmatpush1.bf16.xpose.msra.mxu0 0
      %1620 = vmatprep.subr.bf16.mxu0 0
      %1621 = vmatpush1.bf16.xpose.msra.mxu0 0
      %1622 = vmatprep.subr.bf16.mxu0 0
      %1623 = vmatpush1.bf16.xpose.msra.mxu0 0
      %1624 = vmatprep.subr.bf16.mxu0 0
      %1625 = vmatpush1.bf16.xpose.msra.mxu0 0
      %1626 = vmatprep.subr.bf16.mxu0 0
      %1627 = vmatpush1.bf16.xpose.msra.mxu0 0
      %1628 = vmatprep.subr.bf16.mxu0 0
      %1629 = vmatpush1.bf16.xpose.msra.mxu0 0
      %1630 = vmatprep.subr.bf16.mxu0 0
      %1631 = vmatpush1.bf16.xpose.msra.mxu0 0
      %1632 = vmatprep.subr.bf16.mxu0 0
      %1633 = vmatpush1.bf16.xpose.msra.mxu0 0
      %1634 = vmatprep.subr.bf16.mxu0 0
      %1635 = vmatpush1.bf16.xpose.msra.mxu0 0
      %1636 = vmatprep.subr.bf16.mxu0 0
      %1637 = vmatpush1.bf16.xpose.msra.mxu0 0
      %1638 = vmatprep.mubr.bf16.mxu0 0
      %1639 = vmatmul.mubr.bf16.gmra.mrb[0].mxu0 %v1595
      %v1640 = vpop.f32.mrb[0].mxu0
      %v1641 = vadd.f32 0.0, %v1640
      %v1642 = vpop.f32.mrb[0].mxu0
      %v1643 = vpop.f32.mrb[0].mxu0
      %v1644 = vadd.f32 0.0, %v1643
      %v1645 = vpop.f32.mrb[0].mxu0
      %1646 = vmatprep.mubr.bf16.mxu0 0
      %1647 = vmatmul.mubr.bf16.gmra.mrb[0].mxu0 %v1598
      %v1648 = vpop.f32.mrb[0].mxu0
      %v1649 = vadd.f32 0.0, %v1648
      %v1650 = vpop.f32.mrb[0].mxu0
      %v1651 = vpop.f32.mrb[0].mxu0
      %v1652 = vpop.f32.mrb[0].mxu0
      %1653 = vdwg.mxu0
      %v1654 = vsel %vm1152, %v1641, -inf
      %1655 = vmax.xlane.f32.xlu0 %v1654
      %v1656 = vpop.xlane.xlu0 %1655
      %v1657 = vsel %vm1152, %v1644, -inf
      %1658 = vmax.xlane.f32.xlu0 %v1657
      %v1659 = vpop.xlane.xlu0 %1658
      %v1660 = vsel %vm1159, %v1649, -inf
      %1661 = vmax.xlane.f32.xlu0 %v1660
      %v1662 = vpop.xlane.xlu0 %1661
      %v1663 = vsub.f32 %v1641, %v1656
      %v1664 = vsub.f32 %v1644, %v1659
      %v1665 = vsub.f32 %v1649, %v1662
      %v1666 = vmul.f32 %v1663, 1.442695
      %v1667 = vpow.pop %v1666
      %v1668 = vmul.f32 %v1664, 1.442695
      %v1669 = vpow.pop %v1668
      %v1670 = vmul.f32 %v1665, 1.442695
      %v1671 = vpow.pop %v1670
      %v1672 = vsel %vm1152, %v1667, 0.0
      %1673 = vadd.xlane.f32.xlu0 %v1672
      %v1674 = vpop.xlane.xlu0 %1673
      %v1675 = vsel %vm1152, %v1669, 0.0
      %1676 = vadd.xlane.f32.xlu0 %v1675
      %v1677 = vpop.xlane.xlu0 %1676
      %v1678 = vsel %vm1159, %v1671, 0.0
      %1679 = vadd.xlane.f32.xlu0 %v1678
      %v1680 = vpop.xlane.xlu0 %1679
      %v1681 = vrcp.pop %v1674
      %v1682 = vrcp.pop %v1677
      %v1683 = vrcp.pop %v1680
      %v1684 = vmul.f32 %v1667, %v1681
      %v1685 = vmul.f32 %v1669, %v1682
      %v1686 = vmul.f32 %v1671, %v1683
      %v1687 = vpack.c.bf16 %v1685, %v1684
      %v1688 = vpack.c.bf16 %v1686, %v1686
      %1689 = vrot.lane.b32.xlu0 %v1082, 40
      %v1690 = vpop.permute.xlu0 %1689
      %1691 = vrot.lane.b32.xlu0 %v1083, 40
      %v1692 = vpop.permute.xlu0 %1691
      %v1695 = vsel %vm1152, %v1687, 0
      %v1698 = vsel %vm1152, %v1688, 0
      %v1701 = vand.u32 %v1692, %v1202
      %1703 = vmatprep.subr.bf16.mxu0 0
      %1704 = vmatpush1.bf16.msra.mxu0 %v1690
      %1705 = vmatprep.subr.bf16.mxu0 0
      %1706 = vmatpush1.bf16.msra.mxu0 %v1701
      %1707 = vmatprep.subr.bf16.mxu0 0
      %1708 = vmatpush1.bf16.msra.mxu0 0
      %1709 = vmatprep.subr.bf16.mxu0 0
      %1710 = vmatpush1.bf16.msra.mxu0 0
      %1711 = vmatprep.subr.bf16.mxu0 0
      %1712 = vmatpush1.bf16.msra.mxu0 0
      %1713 = vmatprep.subr.bf16.mxu0 0
      %1714 = vmatpush1.bf16.msra.mxu0 0
      %1715 = vmatprep.subr.bf16.mxu0 0
      %1716 = vmatpush1.bf16.msra.mxu0 0
      %1717 = vmatprep.subr.bf16.mxu0 0
      %1718 = vmatpush1.bf16.msra.mxu0 0
      %1719 = vmatprep.subr.bf16.mxu0 0
      %1720 = vmatpush1.bf16.msra.mxu0 0
      %1721 = vmatprep.subr.bf16.mxu0 0
      %1722 = vmatpush1.bf16.msra.mxu0 0
      %1723 = vmatprep.subr.bf16.mxu0 0
      %1724 = vmatpush1.bf16.msra.mxu0 0
      %1725 = vmatprep.subr.bf16.mxu0 0
      %1726 = vmatpush1.bf16.msra.mxu0 0
      %1727 = vmatprep.subr.bf16.mxu0 0
      %1728 = vmatpush1.bf16.msra.mxu0 0
      %1729 = vmatprep.subr.bf16.mxu0 0
      %1730 = vmatpush1.bf16.msra.mxu0 0
      %1731 = vmatprep.subr.bf16.mxu0 0
      %1732 = vmatpush1.bf16.msra.mxu0 0
      %1733 = vmatprep.subr.bf16.mxu0 0
      %1734 = vmatpush1.bf16.msra.mxu0 0
      %1735 = vmatprep.mubr.bf16.mxu0 0
      %1736 = vmatmul.mubr.bf16.gmra.mrb[0].mxu0 %v1695
      %v1737 = vpop.f32.mrb[0].mxu0
      %v1738 = vadd.f32 0.0, %v1737
      %v1739 = vpop.f32.mrb[0].mxu0
      %v1740 = vpop.f32.mrb[0].mxu0
      %v1741 = vadd.f32 0.0, %v1740
      %v1742 = vpop.f32.mrb[0].mxu0
      %1743 = vmatprep.mubr.bf16.mxu0 0
      %1744 = vmatmul.mubr.bf16.gmra.mrb[0].mxu0 %v1698
      %v1745 = vpop.f32.mrb[0].mxu0
      %v1746 = vadd.f32 0.0, %v1745
      %v1747 = vpop.f32.mrb[0].mxu0
      %v1748 = vpop.f32.mrb[0].mxu0
      %v1749 = vpop.f32.mrb[0].mxu0
      %1750 = vdwg.mxu0
      %1754 = vrot.lane.b32.xlu0 %v1408, 8
      %v1755 = vpop.permute.xlu0 %1754
      %1756 = vrot.lane.b32.xlu0 %v1411, 8
      %v1757 = vpop.permute.xlu0 %1756
      %1758 = vrot.lane.b32.xlu0 %v1416, 8
      %v1759 = vpop.permute.xlu0 %1758
      %1766 = vrot.lane.b32.xlu0 %v1573, 16
      %v1767 = vpop.permute.xlu0 %1766
      %1768 = vrot.lane.b32.xlu0 %v1576, 16
      %v1769 = vpop.permute.xlu0 %1768
      %1770 = vrot.lane.b32.xlu0 %v1581, 16
      %v1771 = vpop.permute.xlu0 %1770
      %1778 = vrot.lane.b32.xlu0 %v1738, 24
      %v1779 = vpop.permute.xlu0 %1778
      %1780 = vrot.lane.b32.xlu0 %v1741, 24
      %v1781 = vpop.permute.xlu0 %1780
      %1782 = vrot.lane.b32.xlu0 %v1746, 24
      %v1783 = vpop.permute.xlu0 %1782
      %v1787 = vsel %vm1091, %v1241, %v1755
      %v1788 = vsel %vm1091, %v1244, %v1757
      %v1789 = vsel %vm1091, %v1249, %v1759
      %vm1790 = vcmask 130048
      %v1791 = vsel %vm1790, %v1787, %v1767
      %v1792 = vsel %vm1790, %v1788, %v1769
      %v1793 = vsel %vm1790, %v1789, %v1771
      %vm1794 = vcmask 195584
      %v1795 = vsel %vm1794, %v1791, %v1779
      %v1796 = vsel %vm1794, %v1792, %v1781
      %v1797 = vsel %vm1794, %v1793, %v1783
      %vm1798 = vsmask.f32 7424
      %v1799 = vshrl.u32 %v1080, 16
      %v1801 = vshll.u32 %v1080, 16
      %v1803 = vrot.slane %v1801, 1
      %v1804 = vor.u32 %v1799, %v1803
      %v1806 = vshll.u32 %v1081, 16
      %v1808 = vrot.slane %v1806, 1
      %v1809 = vsel %vm1798, %v1804, %v1808
      %v1810 = vshrl.u32 %v1081, 16
      %v1813 = vshrl.u32 %v1083, 16
      %v1815 = vshll.u32 %v1083, 16
      %v1817 = vrot.slane %v1815, 1
      %v1818 = vor.u32 %v1813, %v1817
      %v1820 = vshll.u32 %v1084, 16
      %v1822 = vrot.slane %v1820, 1
      %v1823 = vsel %vm1798, %v1818, %v1822
      %v1824 = vshrl.u32 %v1084, 16
      %1826 = vrot.lane.b32.xlu0 %v1823, 96
      %v1827 = vpop.permute.xlu0 %1826
      %1828 = vrot.lane.b32.xlu0 %v1824, 96
      %v1829 = vpop.permute.xlu0 %1828
      %v1831 = vsel %vm1091, %v1809, 0
      %v1834 = vsel %vm1091, %v1810, 0
      %v1837 = vsel %vm1091, %v1827, 0
      %v1840 = vsel %vm1091, %v1829, 0
      %1842 = vmatprep.subr.bf16.mxu0 0
      %1843 = vmatpush1.bf16.xpose.msra.mxu0 %v1837
      %1844 = vmatprep.subr.bf16.mxu0 0
      %1845 = vmatpush1.bf16.xpose.msra.mxu0 %v1840
      %1846 = vmatprep.subr.bf16.mxu0 0
      %1847 = vmatpush1.bf16.xpose.msra.mxu0 0
      %1848 = vmatprep.subr.bf16.mxu0 0
      %1849 = vmatpush1.bf16.xpose.msra.mxu0 0
      %1850 = vmatprep.subr.bf16.mxu0 0
      %1851 = vmatpush1.bf16.xpose.msra.mxu0 0
      %1852 = vmatprep.subr.bf16.mxu0 0
      %1853 = vmatpush1.bf16.xpose.msra.mxu0 0
      %1854 = vmatprep.subr.bf16.mxu0 0
      %1855 = vmatpush1.bf16.xpose.msra.mxu0 0
      %1856 = vmatprep.subr.bf16.mxu0 0
      %1857 = vmatpush1.bf16.xpose.msra.mxu0 0
      %1858 = vmatprep.subr.bf16.mxu0 0
      %1859 = vmatpush1.bf16.xpose.msra.mxu0 0
      %1860 = vmatprep.subr.bf16.mxu0 0
      %1861 = vmatpush1.bf16.xpose.msra.mxu0 0
      %1862 = vmatprep.subr.bf16.mxu0 0
      %1863 = vmatpush1.bf16.xpose.msra.mxu0 0
      %1864 = vmatprep.subr.bf16.mxu0 0
      %1865 = vmatpush1.bf16.xpose.msra.mxu0 0
      %1866 = vmatprep.subr.bf16.mxu0 0
      %1867 = vmatpush1.bf16.xpose.msra.mxu0 0
      %1868 = vmatprep.subr.bf16.mxu0 0
      %1869 = vmatpush1.bf16.xpose.msra.mxu0 0
      %1870 = vmatprep.subr.bf16.mxu0 0
      %1871 = vmatpush1.bf16.xpose.msra.mxu0 0
      %1872 = vmatprep.subr.bf16.mxu0 0
      %1873 = vmatpush1.bf16.xpose.msra.mxu0 0
      %1874 = vmatprep.mubr.bf16.mxu0 0
      %1875 = vmatmul.mubr.bf16.gmra.mrb[0].mxu0 %v1831
      %v1876 = vpop.f32.mrb[0].mxu0
      %v1877 = vadd.f32 0.0, %v1876
      %v1878 = vpop.f32.mrb[0].mxu0
      %v1879 = vpop.f32.mrb[0].mxu0
      %v1880 = vadd.f32 0.0, %v1879
      %v1881 = vpop.f32.mrb[0].mxu0
      %1882 = vmatprep.mubr.bf16.mxu0 0
      %1883 = vmatmul.mubr.bf16.gmra.mrb[0].mxu0 %v1834
      %v1884 = vpop.f32.mrb[0].mxu0
      %v1885 = vadd.f32 0.0, %v1884
      %v1886 = vpop.f32.mrb[0].mxu0
      %v1887 = vpop.f32.mrb[0].mxu0
      %v1888 = vpop.f32.mrb[0].mxu0
      %1889 = vdwg.mxu0
      %v1890 = vsel %vm1152, %v1877, -inf
      %1891 = vmax.xlane.f32.xlu0 %v1890
      %v1892 = vpop.xlane.xlu0 %1891
      %v1893 = vsel %vm1152, %v1880, -inf
      %1894 = vmax.xlane.f32.xlu0 %v1893
      %v1895 = vpop.xlane.xlu0 %1894
      %v1896 = vsel %vm1159, %v1885, -inf
      %1897 = vmax.xlane.f32.xlu0 %v1896
      %v1898 = vpop.xlane.xlu0 %1897
      %v1899 = vsub.f32 %v1877, %v1892
      %v1900 = vsub.f32 %v1880, %v1895
      %v1901 = vsub.f32 %v1885, %v1898
      %v1902 = vmul.f32 %v1899, 1.442695
      %v1903 = vpow.pop %v1902
      %v1904 = vmul.f32 %v1900, 1.442695
      %v1905 = vpow.pop %v1904
      %v1906 = vmul.f32 %v1901, 1.442695
      %v1907 = vpow.pop %v1906
      %v1908 = vsel %vm1152, %v1903, 0.0
      %1909 = vadd.xlane.f32.xlu0 %v1908
      %v1910 = vpop.xlane.xlu0 %1909
      %v1911 = vsel %vm1152, %v1905, 0.0
      %1912 = vadd.xlane.f32.xlu0 %v1911
      %v1913 = vpop.xlane.xlu0 %1912
      %v1914 = vsel %vm1159, %v1907, 0.0
      %1915 = vadd.xlane.f32.xlu0 %v1914
      %v1916 = vpop.xlane.xlu0 %1915
      %v1917 = vrcp.pop %v1910
      %v1918 = vrcp.pop %v1913
      %v1919 = vrcp.pop %v1916
      %v1920 = vmul.f32 %v1903, %v1917
      %v1921 = vmul.f32 %v1905, %v1918
      %v1922 = vmul.f32 %v1907, %v1919
      %v1923 = vpack.c.bf16 %v1921, %v1920
      %v1924 = vpack.c.bf16 %v1922, %v1922
      %1925 = vrot.lane.b32.xlu0 %v1823, 64
      %v1926 = vpop.permute.xlu0 %1925
      %1927 = vrot.lane.b32.xlu0 %v1824, 64
      %v1928 = vpop.permute.xlu0 %1927
      %v1931 = vsel %vm1152, %v1923, 0
      %v1934 = vsel %vm1152, %v1924, 0
      %v1937 = vand.u32 %v1928, %v1202
      %1939 = vmatprep.subr.bf16.mxu0 0
      %1940 = vmatpush1.bf16.msra.mxu0 %v1926
      %1941 = vmatprep.subr.bf16.mxu0 0
      %1942 = vmatpush1.bf16.msra.mxu0 %v1937
      %1943 = vmatprep.subr.bf16.mxu0 0
      %1944 = vmatpush1.bf16.msra.mxu0 0
      %1945 = vmatprep.subr.bf16.mxu0 0
      %1946 = vmatpush1.bf16.msra.mxu0 0
      %1947 = vmatprep.subr.bf16.mxu0 0
      %1948 = vmatpush1.bf16.msra.mxu0 0
      %1949 = vmatprep.subr.bf16.mxu0 0
      %1950 = vmatpush1.bf16.msra.mxu0 0
      %1951 = vmatprep.subr.bf16.mxu0 0
      %1952 = vmatpush1.bf16.msra.mxu0 0
      %1953 = vmatprep.subr.bf16.mxu0 0
      %1954 = vmatpush1.bf16.msra.mxu0 0
      %1955 = vmatprep.subr.bf16.mxu0 0
      %1956 = vmatpush1.bf16.msra.mxu0 0
      %1957 = vmatprep.subr.bf16.mxu0 0
      %1958 = vmatpush1.bf16.msra.mxu0 0
      %1959 = vmatprep.subr.bf16.mxu0 0
      %1960 = vmatpush1.bf16.msra.mxu0 0
      %1961 = vmatprep.subr.bf16.mxu0 0
      %1962 = vmatpush1.bf16.msra.mxu0 0
      %1963 = vmatprep.subr.bf16.mxu0 0
      %1964 = vmatpush1.bf16.msra.mxu0 0
      %1965 = vmatprep.subr.bf16.mxu0 0
      %1966 = vmatpush1.bf16.msra.mxu0 0
      %1967 = vmatprep.subr.bf16.mxu0 0
      %1968 = vmatpush1.bf16.msra.mxu0 0
      %1969 = vmatprep.subr.bf16.mxu0 0
      %1970 = vmatpush1.bf16.msra.mxu0 0
      %1971 = vmatprep.mubr.bf16.mxu0 0
      %1972 = vmatmul.mubr.bf16.gmra.mrb[0].mxu0 %v1931
      %v1973 = vpop.f32.mrb[0].mxu0
      %v1974 = vadd.f32 0.0, %v1973
      %v1975 = vpop.f32.mrb[0].mxu0
      %v1976 = vpop.f32.mrb[0].mxu0
      %v1977 = vadd.f32 0.0, %v1976
      %v1978 = vpop.f32.mrb[0].mxu0
      %1979 = vmatprep.mubr.bf16.mxu0 0
      %1980 = vmatmul.mubr.bf16.gmra.mrb[0].mxu0 %v1934
      %v1981 = vpop.f32.mrb[0].mxu0
      %v1982 = vadd.f32 0.0, %v1981
      %v1983 = vpop.f32.mrb[0].mxu0
      %v1984 = vpop.f32.mrb[0].mxu0
      %v1985 = vpop.f32.mrb[0].mxu0
      %1986 = vdwg.mxu0
      %1987 = vrot.lane.b32.xlu0 %v1809, 120
      %v1988 = vpop.permute.xlu0 %1987
      %1989 = vrot.lane.b32.xlu0 %v1810, 120
      %v1990 = vpop.permute.xlu0 %1989
      %1991 = vrot.lane.b32.xlu0 %v1823, 88
      %v1992 = vpop.permute.xlu0 %1991
      %1993 = vrot.lane.b32.xlu0 %v1824, 88
      %v1994 = vpop.permute.xlu0 %1993
      %v1996 = vsel %vm1091, %v1988, 0
      %v1999 = vsel %vm1091, %v1990, 0
      %v2002 = vsel %vm1091, %v1992, 0
      %v2005 = vsel %vm1091, %v1994, 0
      %2007 = vmatprep.subr.bf16.mxu0 0
      %2008 = vmatpush1.bf16.xpose.msra.mxu0 %v2002
      %2009 = vmatprep.subr.bf16.mxu0 0
      %2010 = vmatpush1.bf16.xpose.msra.mxu0 %v2005
      %2011 = vmatprep.subr.bf16.mxu0 0
      %2012 = vmatpush1.bf16.xpose.msra.mxu0 0
      %2013 = vmatprep.subr.bf16.mxu0 0
      %2014 = vmatpush1.bf16.xpose.msra.mxu0 0
      %2015 = vmatprep.subr.bf16.mxu0 0
      %2016 = vmatpush1.bf16.xpose.msra.mxu0 0
      %2017 = vmatprep.subr.bf16.mxu0 0
      %2018 = vmatpush1.bf16.xpose.msra.mxu0 0
      %2019 = vmatprep.subr.bf16.mxu0 0
      %2020 = vmatpush1.bf16.xpose.msra.mxu0 0
      %2021 = vmatprep.subr.bf16.mxu0 0
      %2022 = vmatpush1.bf16.xpose.msra.mxu0 0
      %2023 = vmatprep.subr.bf16.mxu0 0
      %2024 = vmatpush1.bf16.xpose.msra.mxu0 0
      %2025 = vmatprep.subr.bf16.mxu0 0
      %2026 = vmatpush1.bf16.xpose.msra.mxu0 0
      %2027 = vmatprep.subr.bf16.mxu0 0
      %2028 = vmatpush1.bf16.xpose.msra.mxu0 0
      %2029 = vmatprep.subr.bf16.mxu0 0
      %2030 = vmatpush1.bf16.xpose.msra.mxu0 0
      %2031 = vmatprep.subr.bf16.mxu0 0
      %2032 = vmatpush1.bf16.xpose.msra.mxu0 0
      %2033 = vmatprep.subr.bf16.mxu0 0
      %2034 = vmatpush1.bf16.xpose.msra.mxu0 0
      %2035 = vmatprep.subr.bf16.mxu0 0
      %2036 = vmatpush1.bf16.xpose.msra.mxu0 0
      %2037 = vmatprep.subr.bf16.mxu0 0
      %2038 = vmatpush1.bf16.xpose.msra.mxu0 0
      %2039 = vmatprep.mubr.bf16.mxu0 0
      %2040 = vmatmul.mubr.bf16.gmra.mrb[0].mxu0 %v1996
      %v2041 = vpop.f32.mrb[0].mxu0
      %v2042 = vadd.f32 0.0, %v2041
      %v2043 = vpop.f32.mrb[0].mxu0
      %v2044 = vpop.f32.mrb[0].mxu0
      %v2045 = vadd.f32 0.0, %v2044
      %v2046 = vpop.f32.mrb[0].mxu0
      %2047 = vmatprep.mubr.bf16.mxu0 0
      %2048 = vmatmul.mubr.bf16.gmra.mrb[0].mxu0 %v1999
      %v2049 = vpop.f32.mrb[0].mxu0
      %v2050 = vadd.f32 0.0, %v2049
      %v2051 = vpop.f32.mrb[0].mxu0
      %v2052 = vpop.f32.mrb[0].mxu0
      %v2053 = vpop.f32.mrb[0].mxu0
      %2054 = vdwg.mxu0
      %v2055 = vsel %vm1152, %v2042, -inf
      %2056 = vmax.xlane.f32.xlu0 %v2055
      %v2057 = vpop.xlane.xlu0 %2056
      %v2058 = vsel %vm1152, %v2045, -inf
      %2059 = vmax.xlane.f32.xlu0 %v2058
      %v2060 = vpop.xlane.xlu0 %2059
      %v2061 = vsel %vm1159, %v2050, -inf
      %2062 = vmax.xlane.f32.xlu0 %v2061
      %v2063 = vpop.xlane.xlu0 %2062
      %v2064 = vsub.f32 %v2042, %v2057
      %v2065 = vsub.f32 %v2045, %v2060
      %v2066 = vsub.f32 %v2050, %v2063
      %v2067 = vmul.f32 %v2064, 1.442695
      %v2068 = vpow.pop %v2067
      %v2069 = vmul.f32 %v2065, 1.442695
      %v2070 = vpow.pop %v2069
      %v2071 = vmul.f32 %v2066, 1.442695
      %v2072 = vpow.pop %v2071
      %v2073 = vsel %vm1152, %v2068, 0.0
      %2074 = vadd.xlane.f32.xlu0 %v2073
      %v2075 = vpop.xlane.xlu0 %2074
      %v2076 = vsel %vm1152, %v2070, 0.0
      %2077 = vadd.xlane.f32.xlu0 %v2076
      %v2078 = vpop.xlane.xlu0 %2077
      %v2079 = vsel %vm1159, %v2072, 0.0
      %2080 = vadd.xlane.f32.xlu0 %v2079
      %v2081 = vpop.xlane.xlu0 %2080
      %v2082 = vrcp.pop %v2075
      %v2083 = vrcp.pop %v2078
      %v2084 = vrcp.pop %v2081
      %v2085 = vmul.f32 %v2068, %v2082
      %v2086 = vmul.f32 %v2070, %v2083
      %v2087 = vmul.f32 %v2072, %v2084
      %v2088 = vpack.c.bf16 %v2086, %v2085
      %v2089 = vpack.c.bf16 %v2087, %v2087
      %2090 = vrot.lane.b32.xlu0 %v1823, 56
      %v2091 = vpop.permute.xlu0 %2090
      %2092 = vrot.lane.b32.xlu0 %v1824, 56
      %v2093 = vpop.permute.xlu0 %2092
      %v2096 = vsel %vm1152, %v2088, 0
      %v2099 = vsel %vm1152, %v2089, 0
      %v2102 = vand.u32 %v2093, %v1202
      %2104 = vmatprep.subr.bf16.mxu0 0
      %2105 = vmatpush1.bf16.msra.mxu0 %v2091
      %2106 = vmatprep.subr.bf16.mxu0 0
      %2107 = vmatpush1.bf16.msra.mxu0 %v2102
      %2108 = vmatprep.subr.bf16.mxu0 0
      %2109 = vmatpush1.bf16.msra.mxu0 0
      %2110 = vmatprep.subr.bf16.mxu0 0
      %2111 = vmatpush1.bf16.msra.mxu0 0
      %2112 = vmatprep.subr.bf16.mxu0 0
      %2113 = vmatpush1.bf16.msra.mxu0 0
      %2114 = vmatprep.subr.bf16.mxu0 0
      %2115 = vmatpush1.bf16.msra.mxu0 0
      %2116 = vmatprep.subr.bf16.mxu0 0
      %2117 = vmatpush1.bf16.msra.mxu0 0
      %2118 = vmatprep.subr.bf16.mxu0 0
      %2119 = vmatpush1.bf16.msra.mxu0 0
      %2120 = vmatprep.subr.bf16.mxu0 0
      %2121 = vmatpush1.bf16.msra.mxu0 0
      %2122 = vmatprep.subr.bf16.mxu0 0
      %2123 = vmatpush1.bf16.msra.mxu0 0
      %2124 = vmatprep.subr.bf16.mxu0 0
      %2125 = vmatpush1.bf16.msra.mxu0 0
      %2126 = vmatprep.subr.bf16.mxu0 0
      %2127 = vmatpush1.bf16.msra.mxu0 0
      %2128 = vmatprep.subr.bf16.mxu0 0
      %2129 = vmatpush1.bf16.msra.mxu0 0
      %2130 = vmatprep.subr.bf16.mxu0 0
      %2131 = vmatpush1.bf16.msra.mxu0 0
      %2132 = vmatprep.subr.bf16.mxu0 0
      %2133 = vmatpush1.bf16.msra.mxu0 0
      %2134 = vmatprep.subr.bf16.mxu0 0
      %2135 = vmatpush1.bf16.msra.mxu0 0
      %2136 = vmatprep.mubr.bf16.mxu0 0
      %2137 = vmatmul.mubr.bf16.gmra.mrb[0].mxu0 %v2096
      %v2138 = vpop.f32.mrb[0].mxu0
      %v2139 = vadd.f32 0.0, %v2138
      %v2140 = vpop.f32.mrb[0].mxu0
      %v2141 = vpop.f32.mrb[0].mxu0
      %v2142 = vadd.f32 0.0, %v2141
      %v2143 = vpop.f32.mrb[0].mxu0
      %2144 = vmatprep.mubr.bf16.mxu0 0
      %2145 = vmatmul.mubr.bf16.gmra.mrb[0].mxu0 %v2099
      %v2146 = vpop.f32.mrb[0].mxu0
      %v2147 = vadd.f32 0.0, %v2146
      %v2148 = vpop.f32.mrb[0].mxu0
      %v2149 = vpop.f32.mrb[0].mxu0
      %v2150 = vpop.f32.mrb[0].mxu0
      %2151 = vdwg.mxu0
      %2152 = vrot.lane.b32.xlu0 %v1809, 112
      %v2153 = vpop.permute.xlu0 %2152
      %2154 = vrot.lane.b32.xlu0 %v1810, 112
      %v2155 = vpop.permute.xlu0 %2154
      %2156 = vrot.lane.b32.xlu0 %v1823, 80
      %v2157 = vpop.permute.xlu0 %2156
      %2158 = vrot.lane.b32.xlu0 %v1824, 80
      %v2159 = vpop.permute.xlu0 %2158
      %v2161 = vsel %vm1091, %v2153, 0
      %v2164 = vsel %vm1091, %v2155, 0
      %v2167 = vsel %vm1091, %v2157, 0
      %v2170 = vsel %vm1091, %v2159, 0
      %2172 = vmatprep.subr.bf16.mxu0 0
      %2173 = vmatpush1.bf16.xpose.msra.mxu0 %v2167
      %2174 = vmatprep.subr.bf16.mxu0 0
      %2175 = vmatpush1.bf16.xpose.msra.mxu0 %v2170
      %2176 = vmatprep.subr.bf16.mxu0 0
      %2177 = vmatpush1.bf16.xpose.msra.mxu0 0
      %2178 = vmatprep.subr.bf16.mxu0 0
      %2179 = vmatpush1.bf16.xpose.msra.mxu0 0
      %2180 = vmatprep.subr.bf16.mxu0 0
      %2181 = vmatpush1.bf16.xpose.msra.mxu0 0
      %2182 = vmatprep.subr.bf16.mxu0 0
      %2183 = vmatpush1.bf16.xpose.msra.mxu0 0
      %2184 = vmatprep.subr.bf16.mxu0 0
      %2185 = vmatpush1.bf16.xpose.msra.mxu0 0
      %2186 = vmatprep.subr.bf16.mxu0 0
      %2187 = vmatpush1.bf16.xpose.msra.mxu0 0
      %2188 = vmatprep.subr.bf16.mxu0 0
      %2189 = vmatpush1.bf16.xpose.msra.mxu0 0
      %2190 = vmatprep.subr.bf16.mxu0 0
      %2191 = vmatpush1.bf16.xpose.msra.mxu0 0
      %2192 = vmatprep.subr.bf16.mxu0 0
      %2193 = vmatpush1.bf16.xpose.msra.mxu0 0
      %2194 = vmatprep.subr.bf16.mxu0 0
      %2195 = vmatpush1.bf16.xpose.msra.mxu0 0
      %2196 = vmatprep.subr.bf16.mxu0 0
      %2197 = vmatpush1.bf16.xpose.msra.mxu0 0
      %2198 = vmatprep.subr.bf16.mxu0 0
      %2199 = vmatpush1.bf16.xpose.msra.mxu0 0
      %2200 = vmatprep.subr.bf16.mxu0 0
      %2201 = vmatpush1.bf16.xpose.msra.mxu0 0
      %2202 = vmatprep.subr.bf16.mxu0 0
      %2203 = vmatpush1.bf16.xpose.msra.mxu0 0
      %2204 = vmatprep.mubr.bf16.mxu0 0
      %2205 = vmatmul.mubr.bf16.gmra.mrb[0].mxu0 %v2161
      %v2206 = vpop.f32.mrb[0].mxu0
      %v2207 = vadd.f32 0.0, %v2206
      %v2208 = vpop.f32.mrb[0].mxu0
      %v2209 = vpop.f32.mrb[0].mxu0
      %v2210 = vadd.f32 0.0, %v2209
      %v2211 = vpop.f32.mrb[0].mxu0
      %2212 = vmatprep.mubr.bf16.mxu0 0
      %2213 = vmatmul.mubr.bf16.gmra.mrb[0].mxu0 %v2164
      %v2214 = vpop.f32.mrb[0].mxu0
      %v2215 = vadd.f32 0.0, %v2214
      %v2216 = vpop.f32.mrb[0].mxu0
      %v2217 = vpop.f32.mrb[0].mxu0
      %v2218 = vpop.f32.mrb[0].mxu0
      %2219 = vdwg.mxu0
      %v2220 = vsel %vm1152, %v2207, -inf
      %2221 = vmax.xlane.f32.xlu0 %v2220
      %v2222 = vpop.xlane.xlu0 %2221
      %v2223 = vsel %vm1152, %v2210, -inf
      %2224 = vmax.xlane.f32.xlu0 %v2223
      %v2225 = vpop.xlane.xlu0 %2224
      %v2226 = vsel %vm1159, %v2215, -inf
      %2227 = vmax.xlane.f32.xlu0 %v2226
      %v2228 = vpop.xlane.xlu0 %2227
      %v2229 = vsub.f32 %v2207, %v2222
      %v2230 = vsub.f32 %v2210, %v2225
      %v2231 = vsub.f32 %v2215, %v2228
      %v2232 = vmul.f32 %v2229, 1.442695
      %v2233 = vpow.pop %v2232
      %v2234 = vmul.f32 %v2230, 1.442695
      %v2235 = vpow.pop %v2234
      %v2236 = vmul.f32 %v2231, 1.442695
      %v2237 = vpow.pop %v2236
      %v2238 = vsel %vm1152, %v2233, 0.0
      %2239 = vadd.xlane.f32.xlu0 %v2238
      %v2240 = vpop.xlane.xlu0 %2239
      %v2241 = vsel %vm1152, %v2235, 0.0
      %2242 = vadd.xlane.f32.xlu0 %v2241
      %v2243 = vpop.xlane.xlu0 %2242
      %v2244 = vsel %vm1159, %v2237, 0.0
      %2245 = vadd.xlane.f32.xlu0 %v2244
      %v2246 = vpop.xlane.xlu0 %2245
      %v2247 = vrcp.pop %v2240
      %v2248 = vrcp.pop %v2243
      %v2249 = vrcp.pop %v2246
      %v2250 = vmul.f32 %v2233, %v2247
      %v2251 = vmul.f32 %v2235, %v2248
      %v2252 = vmul.f32 %v2237, %v2249
      %v2253 = vpack.c.bf16 %v2251, %v2250
      %v2254 = vpack.c.bf16 %v2252, %v2252
      %2255 = vrot.lane.b32.xlu0 %v1823, 48
      %v2256 = vpop.permute.xlu0 %2255
      %2257 = vrot.lane.b32.xlu0 %v1824, 48
      %v2258 = vpop.permute.xlu0 %2257
      %v2261 = vsel %vm1152, %v2253, 0
      %v2264 = vsel %vm1152, %v2254, 0
      %v2267 = vand.u32 %v2258, %v1202
      %2269 = vmatprep.subr.bf16.mxu0 0
      %2270 = vmatpush1.bf16.msra.mxu0 %v2256
      %2271 = vmatprep.subr.bf16.mxu0 0
      %2272 = vmatpush1.bf16.msra.mxu0 %v2267
      %2273 = vmatprep.subr.bf16.mxu0 0
      %2274 = vmatpush1.bf16.msra.mxu0 0
      %2275 = vmatprep.subr.bf16.mxu0 0
      %2276 = vmatpush1.bf16.msra.mxu0 0
      %2277 = vmatprep.subr.bf16.mxu0 0
      %2278 = vmatpush1.bf16.msra.mxu0 0
      %2279 = vmatprep.subr.bf16.mxu0 0
      %2280 = vmatpush1.bf16.msra.mxu0 0
      %2281 = vmatprep.subr.bf16.mxu0 0
      %2282 = vmatpush1.bf16.msra.mxu0 0
      %2283 = vmatprep.subr.bf16.mxu0 0
      %2284 = vmatpush1.bf16.msra.mxu0 0
      %2285 = vmatprep.subr.bf16.mxu0 0
      %2286 = vmatpush1.bf16.msra.mxu0 0
      %2287 = vmatprep.subr.bf16.mxu0 0
      %2288 = vmatpush1.bf16.msra.mxu0 0
      %2289 = vmatprep.subr.bf16.mxu0 0
      %2290 = vmatpush1.bf16.msra.mxu0 0
      %2291 = vmatprep.subr.bf16.mxu0 0
      %2292 = vmatpush1.bf16.msra.mxu0 0
      %2293 = vmatprep.subr.bf16.mxu0 0
      %2294 = vmatpush1.bf16.msra.mxu0 0
      %2295 = vmatprep.subr.bf16.mxu0 0
      %2296 = vmatpush1.bf16.msra.mxu0 0
      %2297 = vmatprep.subr.bf16.mxu0 0
      %2298 = vmatpush1.bf16.msra.mxu0 0
      %2299 = vmatprep.subr.bf16.mxu0 0
      %2300 = vmatpush1.bf16.msra.mxu0 0
      %2301 = vmatprep.mubr.bf16.mxu0 0
      %2302 = vmatmul.mubr.bf16.gmra.mrb[0].mxu0 %v2261
      %v2303 = vpop.f32.mrb[0].mxu0
      %v2304 = vadd.f32 0.0, %v2303
      %v2305 = vpop.f32.mrb[0].mxu0
      %v2306 = vpop.f32.mrb[0].mxu0
      %v2307 = vadd.f32 0.0, %v2306
      %v2308 = vpop.f32.mrb[0].mxu0
      %2309 = vmatprep.mubr.bf16.mxu0 0
      %2310 = vmatmul.mubr.bf16.gmra.mrb[0].mxu0 %v2264
      %v2311 = vpop.f32.mrb[0].mxu0
      %v2312 = vadd.f32 0.0, %v2311
      %v2313 = vpop.f32.mrb[0].mxu0
      %v2314 = vpop.f32.mrb[0].mxu0
      %v2315 = vpop.f32.mrb[0].mxu0
      %2316 = vdwg.mxu0
      %2317 = vrot.lane.b32.xlu0 %v1809, 104
      %v2318 = vpop.permute.xlu0 %2317
      %2319 = vrot.lane.b32.xlu0 %v1810, 104
      %v2320 = vpop.permute.xlu0 %2319
      %2321 = vrot.lane.b32.xlu0 %v1823, 72
      %v2322 = vpop.permute.xlu0 %2321
      %2323 = vrot.lane.b32.xlu0 %v1824, 72
      %v2324 = vpop.permute.xlu0 %2323
      %v2326 = vsel %vm1091, %v2318, 0
      %v2329 = vsel %vm1091, %v2320, 0
      %v2332 = vsel %vm1091, %v2322, 0
      %v2335 = vsel %vm1091, %v2324, 0
      %2337 = vmatprep.subr.bf16.mxu0 0
      %2338 = vmatpush1.bf16.xpose.msra.mxu0 %v2332
      %2339 = vmatprep.subr.bf16.mxu0 0
      %2340 = vmatpush1.bf16.xpose.msra.mxu0 %v2335
      %2341 = vmatprep.subr.bf16.mxu0 0
      %2342 = vmatpush1.bf16.xpose.msra.mxu0 0
      %2343 = vmatprep.subr.bf16.mxu0 0
      %2344 = vmatpush1.bf16.xpose.msra.mxu0 0
      %2345 = vmatprep.subr.bf16.mxu0 0
      %2346 = vmatpush1.bf16.xpose.msra.mxu0 0
      %2347 = vmatprep.subr.bf16.mxu0 0
      %2348 = vmatpush1.bf16.xpose.msra.mxu0 0
      %2349 = vmatprep.subr.bf16.mxu0 0
      %2350 = vmatpush1.bf16.xpose.msra.mxu0 0
      %2351 = vmatprep.subr.bf16.mxu0 0
      %2352 = vmatpush1.bf16.xpose.msra.mxu0 0
      %2353 = vmatprep.subr.bf16.mxu0 0
      %2354 = vmatpush1.bf16.xpose.msra.mxu0 0
      %2355 = vmatprep.subr.bf16.mxu0 0
      %2356 = vmatpush1.bf16.xpose.msra.mxu0 0
      %2357 = vmatprep.subr.bf16.mxu0 0
      %2358 = vmatpush1.bf16.xpose.msra.mxu0 0
      %2359 = vmatprep.subr.bf16.mxu0 0
      %2360 = vmatpush1.bf16.xpose.msra.mxu0 0
      %2361 = vmatprep.subr.bf16.mxu0 0
      %2362 = vmatpush1.bf16.xpose.msra.mxu0 0
      %2363 = vmatprep.subr.bf16.mxu0 0
      %2364 = vmatpush1.bf16.xpose.msra.mxu0 0
      %2365 = vmatprep.subr.bf16.mxu0 0
      %2366 = vmatpush1.bf16.xpose.msra.mxu0 0
      %2367 = vmatprep.subr.bf16.mxu0 0
      %2368 = vmatpush1.bf16.xpose.msra.mxu0 0
      %2369 = vmatprep.mubr.bf16.mxu0 0
      %2370 = vmatmul.mubr.bf16.gmra.mrb[0].mxu0 %v2326
      %v2371 = vpop.f32.mrb[0].mxu0
      %v2372 = vadd.f32 0.0, %v2371
      %v2373 = vpop.f32.mrb[0].mxu0
      %v2374 = vpop.f32.mrb[0].mxu0
      %v2375 = vadd.f32 0.0, %v2374
      %v2376 = vpop.f32.mrb[0].mxu0
      %2377 = vmatprep.mubr.bf16.mxu0 0
      %2378 = vmatmul.mubr.bf16.gmra.mrb[0].mxu0 %v2329
      %v2379 = vpop.f32.mrb[0].mxu0
      %v2380 = vadd.f32 0.0, %v2379
      %v2381 = vpop.f32.mrb[0].mxu0
      %v2382 = vpop.f32.mrb[0].mxu0
      %v2383 = vpop.f32.mrb[0].mxu0
      %2384 = vdwg.mxu0
      %v2385 = vsel %vm1152, %v2372, -inf
      %2386 = vmax.xlane.f32.xlu0 %v2385
      %v2387 = vpop.xlane.xlu0 %2386
      %v2388 = vsel %vm1152, %v2375, -inf
      %2389 = vmax.xlane.f32.xlu0 %v2388
      %v2390 = vpop.xlane.xlu0 %2389
      %v2391 = vsel %vm1159, %v2380, -inf
      %2392 = vmax.xlane.f32.xlu0 %v2391
      %v2393 = vpop.xlane.xlu0 %2392
      %v2394 = vsub.f32 %v2372, %v2387
      %v2395 = vsub.f32 %v2375, %v2390
      %v2396 = vsub.f32 %v2380, %v2393
      %v2397 = vmul.f32 %v2394, 1.442695
      %v2398 = vpow.pop %v2397
      %v2399 = vmul.f32 %v2395, 1.442695
      %v2400 = vpow.pop %v2399
      %v2401 = vmul.f32 %v2396, 1.442695
      %v2402 = vpow.pop %v2401
      %v2403 = vsel %vm1152, %v2398, 0.0
      %2404 = vadd.xlane.f32.xlu0 %v2403
      %v2405 = vpop.xlane.xlu0 %2404
      %v2406 = vsel %vm1152, %v2400, 0.0
      %2407 = vadd.xlane.f32.xlu0 %v2406
      %v2408 = vpop.xlane.xlu0 %2407
      %v2409 = vsel %vm1159, %v2402, 0.0
      %2410 = vadd.xlane.f32.xlu0 %v2409
      %v2411 = vpop.xlane.xlu0 %2410
      %v2412 = vrcp.pop %v2405
      %v2413 = vrcp.pop %v2408
      %v2414 = vrcp.pop %v2411
      %v2415 = vmul.f32 %v2398, %v2412
      %v2416 = vmul.f32 %v2400, %v2413
      %v2417 = vmul.f32 %v2402, %v2414
      %v2418 = vpack.c.bf16 %v2416, %v2415
      %v2419 = vpack.c.bf16 %v2417, %v2417
      %2420 = vrot.lane.b32.xlu0 %v1823, 40
      %v2421 = vpop.permute.xlu0 %2420
      %2422 = vrot.lane.b32.xlu0 %v1824, 40
      %v2423 = vpop.permute.xlu0 %2422
      %v2426 = vsel %vm1152, %v2418, 0
      %v2429 = vsel %vm1152, %v2419, 0
      %v2432 = vand.u32 %v2423, %v1202
      %2434 = vmatprep.subr.bf16.mxu0 0
      %2435 = vmatpush1.bf16.msra.mxu0 %v2421
      %2436 = vmatprep.subr.bf16.mxu0 0
      %2437 = vmatpush1.bf16.msra.mxu0 %v2432
      %2438 = vmatprep.subr.bf16.mxu0 0
      %2439 = vmatpush1.bf16.msra.mxu0 0
      %2440 = vmatprep.subr.bf16.mxu0 0
      %2441 = vmatpush1.bf16.msra.mxu0 0
      %2442 = vmatprep.subr.bf16.mxu0 0
      %2443 = vmatpush1.bf16.msra.mxu0 0
      %2444 = vmatprep.subr.bf16.mxu0 0
      %2445 = vmatpush1.bf16.msra.mxu0 0
      %2446 = vmatprep.subr.bf16.mxu0 0
      %2447 = vmatpush1.bf16.msra.mxu0 0
      %2448 = vmatprep.subr.bf16.mxu0 0
      %2449 = vmatpush1.bf16.msra.mxu0 0
      %2450 = vmatprep.subr.bf16.mxu0 0
      %2451 = vmatpush1.bf16.msra.mxu0 0
      %2452 = vmatprep.subr.bf16.mxu0 0
      %2453 = vmatpush1.bf16.msra.mxu0 0
      %2454 = vmatprep.subr.bf16.mxu0 0
      %2455 = vmatpush1.bf16.msra.mxu0 0
      %2456 = vmatprep.subr.bf16.mxu0 0
      %2457 = vmatpush1.bf16.msra.mxu0 0
      %2458 = vmatprep.subr.bf16.mxu0 0
      %2459 = vmatpush1.bf16.msra.mxu0 0
      %2460 = vmatprep.subr.bf16.mxu0 0
      %2461 = vmatpush1.bf16.msra.mxu0 0
      %2462 = vmatprep.subr.bf16.mxu0 0
      %2463 = vmatpush1.bf16.msra.mxu0 0
      %2464 = vmatprep.subr.bf16.mxu0 0
      %2465 = vmatpush1.bf16.msra.mxu0 0
      %2466 = vmatprep.mubr.bf16.mxu0 0
      %2467 = vmatmul.mubr.bf16.gmra.mrb[0].mxu0 %v2426
      %v2468 = vpop.f32.mrb[0].mxu0
      %v2469 = vadd.f32 0.0, %v2468
      %v2470 = vpop.f32.mrb[0].mxu0
      %v2471 = vpop.f32.mrb[0].mxu0
      %v2472 = vadd.f32 0.0, %v2471
      %v2473 = vpop.f32.mrb[0].mxu0
      %2474 = vmatprep.mubr.bf16.mxu0 0
      %2475 = vmatmul.mubr.bf16.gmra.mrb[0].mxu0 %v2429
      %v2476 = vpop.f32.mrb[0].mxu0
      %v2477 = vadd.f32 0.0, %v2476
      %v2478 = vpop.f32.mrb[0].mxu0
      %v2479 = vpop.f32.mrb[0].mxu0
      %v2480 = vpop.f32.mrb[0].mxu0
      %2481 = vdwg.mxu0
      %2485 = vrot.lane.b32.xlu0 %v2139, 8
      %v2486 = vpop.permute.xlu0 %2485
      %2487 = vrot.lane.b32.xlu0 %v2142, 8
      %v2488 = vpop.permute.xlu0 %2487
      %2489 = vrot.lane.b32.xlu0 %v2147, 8
      %v2490 = vpop.permute.xlu0 %2489
      %2497 = vrot.lane.b32.xlu0 %v2304, 16
      %v2498 = vpop.permute.xlu0 %2497
      %2499 = vrot.lane.b32.xlu0 %v2307, 16
      %v2500 = vpop.permute.xlu0 %2499
      %2501 = vrot.lane.b32.xlu0 %v2312, 16
      %v2502 = vpop.permute.xlu0 %2501
      %2509 = vrot.lane.b32.xlu0 %v2469, 24
      %v2510 = vpop.permute.xlu0 %2509
      %2511 = vrot.lane.b32.xlu0 %v2472, 24
      %v2512 = vpop.permute.xlu0 %2511
      %2513 = vrot.lane.b32.xlu0 %v2477, 24
      %v2514 = vpop.permute.xlu0 %2513
      %v2518 = vsel %vm1091, %v1974, %v2486
      %v2519 = vsel %vm1091, %v1977, %v2488
      %v2520 = vsel %vm1091, %v1982, %v2490
      %v2521 = vsel %vm1790, %v2518, %v2498
      %v2522 = vsel %vm1790, %v2519, %v2500
      %v2523 = vsel %vm1790, %v2520, %v2502
      %v2524 = vsel %vm1794, %v2521, %v2510
      %v2525 = vsel %vm1794, %v2522, %v2512
      %v2526 = vsel %vm1794, %v2523, %v2514
      %v2530 = vrot.slane %v2524, 7
      %v2531 = vrot.slane %v2525, 7
      %v2532 = vsel %vm1200, %v2530, %v2531
      %v2533 = vrot.slane %v2526, 7
      %v2534 = vsel %vm1200, %v2531, %v2533
      %v2538 = vsel %vm1200, %v1797, %v2530
      %v2539 = vld [vmem:[%s734] sm:$0xf]
      %v2540 = vld [vmem:[%s734 + $0x4] sm:$0xf]
      %v2541 = vld [vmem:[%s734 + $0x8] sm:$0xf]
      %v2542 = vld [vmem:[%s734 + $0xc] sm:$0xf]
      %v2543 = vpack.c.bf16 %v1796, %v1795
      %v2544 = vpack.c.bf16 %v2532, %v2538
      %v2545 = vpack.c.bf16 %v2534, %v2534
      %v2546 = vld [vmem:[%s737] sm:$0x1]
      %v2548 = vlaneseq
      %v2549 = vshrl.u32 %v2548, 7
      %v2550 = vsub.s32 0, %v2549
      %v2551 = vrot.slane %v2546, %v2550
      %v2557 = vunpack.c.l.b16 %v2539
      %v2558 = vunpack.c.l.b16 %v2540
      %v2559 = vunpack.c.l.b16 %v2541
      %v2560 = vunpack.c.l.b16 %v2542
      %v2561 = vpack.c.b16 %v2558, %v2557
      %v2562 = vpack.c.b16 %v2560, %v2559
      %v2566 = vsel %vm893, %v2543, 0
      %v2569 = vsel %vm893, %v2544, 0
      %v2572 = vsel %vm893, %v2545, 0
      %2574 = vmatprep.subr.bf16.mxu0 0
      %2575 = vmatpush1.bf16.msra.mxu0 %v2561
      %2576 = vmatprep.subr.bf16.mxu0 0
      %2577 = vmatpush1.bf16.msra.mxu0 %v2562
      %2578 = vmatprep.subr.bf16.mxu0 0
      %2579 = vmatpush1.bf16.msra.mxu0 0
      %2580 = vmatprep.subr.bf16.mxu0 0
      %2581 = vmatpush1.bf16.msra.mxu0 0
      %2582 = vmatprep.subr.bf16.mxu0 0
      %2583 = vmatpush1.bf16.msra.mxu0 0
      %2584 = vmatprep.subr.bf16.mxu0 0
      %2585 = vmatpush1.bf16.msra.mxu0 0
      %2586 = vmatprep.subr.bf16.mxu0 0
      %2587 = vmatpush1.bf16.msra.mxu0 0
      %2588 = vmatprep.subr.bf16.mxu0 0
      %2589 = vmatpush1.bf16.msra.mxu0 0
      %2590 = vmatprep.subr.bf16.mxu0 0
      %2591 = vmatpush1.bf16.msra.mxu0 0
      %2592 = vmatprep.subr.bf16.mxu0 0
      %2593 = vmatpush1.bf16.msra.mxu0 0
      %2594 = vmatprep.subr.bf16.mxu0 0
      %2595 = vmatpush1.bf16.msra.mxu0 0
      %2596 = vmatprep.subr.bf16.mxu0 0
      %2597 = vmatpush1.bf16.msra.mxu0 0
      %2598 = vmatprep.subr.bf16.mxu0 0
      %2599 = vmatpush1.bf16.msra.mxu0 0
      %2600 = vmatprep.subr.bf16.mxu0 0
      %2601 = vmatpush1.bf16.msra.mxu0 0
      %2602 = vmatprep.subr.bf16.mxu0 0
      %2603 = vmatpush1.bf16.msra.mxu0 0
      %2604 = vmatprep.subr.bf16.mxu0 0
      %2605 = vmatpush1.bf16.msra.mxu0 0
      %2606 = vmatprep.mubr.bf16.mxu0 0
      %2607 = vmatmul.mubr.bf16.gmra.mrb[0].mxu0 %v2566
      %v2608 = vpop.f32.mrb[0].mxu0
      %v2609 = vadd.f32 %v2551, %v2608
      %v2610 = vpop.f32.mrb[0].mxu0
      %v2611 = vpop.f32.mrb[0].mxu0
      %v2612 = vadd.f32 %v2551, %v2611
      %v2613 = vpop.f32.mrb[0].mxu0
      %2614 = vmatprep.mubr.bf16.mxu0 0
      %2615 = vmatmul.mubr.bf16.gmra.mrb[0].mxu0 %v2569
      %v2616 = vpop.f32.mrb[0].mxu0
      %v2617 = vadd.f32 %v2551, %v2616
      %v2618 = vpop.f32.mrb[0].mxu0
      %v2619 = vpop.f32.mrb[0].mxu0
      %v2620 = vadd.f32 %v2551, %v2619
      %v2621 = vpop.f32.mrb[0].mxu0
      %2622 = vmatprep.mubr.bf16.mxu0 0
      %2623 = vmatmul.mubr.bf16.gmra.mrb[0].mxu0 %v2572
      %v2624 = vpop.f32.mrb[0].mxu0
      %v2625 = vadd.f32 %v2551, %v2624
      %v2626 = vpop.f32.mrb[0].mxu0
      %v2627 = vpop.f32.mrb[0].mxu0
      %v2628 = vpop.f32.mrb[0].mxu0
      %2629 = vdwg.mxu0
      %v2630 = vadd.f32 %v886, %v2609
      %v2631 = vadd.f32 %v887, %v2612
      %v2632 = vadd.f32 %v888, %v2617
      %v2633 = vadd.f32 %v889, %v2620
      %v2634 = vadd.f32 %v890, %v2625
      %v2635 = vld [vmem:[%s740] sm:$0x1]
      %v2636 = vld [vmem:[%s743] sm:$0x1]
      %v2637 = vsel %vm893, %v2630, 0.0
      %2638 = vadd.xlane.f32.xlu0 %v2637
      %v2639 = vpop.xlane.xlu0 %2638
      %v2640 = vsel %vm893, %v2631, 0.0
      %2641 = vadd.xlane.f32.xlu0 %v2640
      %v2642 = vpop.xlane.xlu0 %2641
      %v2643 = vsel %vm893, %v2632, 0.0
      %2644 = vadd.xlane.f32.xlu0 %v2643
      %v2645 = vpop.xlane.xlu0 %2644
      %v2646 = vsel %vm893, %v2633, 0.0
      %2647 = vadd.xlane.f32.xlu0 %v2646
      %v2648 = vpop.xlane.xlu0 %2647
      %v2649 = vsel %vm906, %v2634, 0.0
      %2650 = vadd.xlane.f32.xlu0 %v2649
      %v2651 = vpop.xlane.xlu0 %2650
      %v2652 = vmul.f32 %v2639, %v910
      %v2653 = vmul.f32 %v2642, %v910
      %v2654 = vmul.f32 %v2645, %v910
      %v2655 = vmul.f32 %v2648, %v910
      %v2656 = vmul.f32 %v2651, %v910
      %v2657 = vsub.f32 %v2630, %v2652
      %v2658 = vsub.f32 %v2631, %v2653
      %v2659 = vsub.f32 %v2632, %v2654
      %v2660 = vsub.f32 %v2633, %v2655
      %v2661 = vsub.f32 %v2634, %v2656
      %v2662 = vmul.f32 %v2657, %v2657
      %v2663 = vmul.f32 %v2658, %v2658
      %v2664 = vmul.f32 %v2659, %v2659
      %v2665 = vmul.f32 %v2660, %v2660
      %v2666 = vmul.f32 %v2661, %v2661
      %v2667 = vsel %vm893, %v2662, 0.0
      %2668 = vadd.xlane.f32.xlu0 %v2667
      %v2669 = vpop.xlane.xlu0 %2668
      %v2670 = vsel %vm893, %v2663, 0.0
      %2671 = vadd.xlane.f32.xlu0 %v2670
      %v2672 = vpop.xlane.xlu0 %2671
      %v2673 = vsel %vm893, %v2664, 0.0
      %2674 = vadd.xlane.f32.xlu0 %v2673
      %v2675 = vpop.xlane.xlu0 %2674
      %v2676 = vsel %vm893, %v2665, 0.0
      %2677 = vadd.xlane.f32.xlu0 %v2676
      %v2678 = vpop.xlane.xlu0 %2677
      %v2679 = vsel %vm906, %v2666, 0.0
      %2680 = vadd.xlane.f32.xlu0 %v2679
      %v2681 = vpop.xlane.xlu0 %2680
      %v2682 = vmul.f32 %v2669, %v910
      %v2683 = vmul.f32 %v2672, %v910
      %v2684 = vmul.f32 %v2675, %v910
      %v2685 = vmul.f32 %v2678, %v910
      %v2686 = vmul.f32 %v2681, %v910
      %v2687 = vadd.f32 %v2682, 1e-06
      %v2688 = vadd.f32 %v2683, 1e-06
      %v2689 = vadd.f32 %v2684, 1e-06
      %v2690 = vadd.f32 %v2685, 1e-06
      %v2691 = vadd.f32 %v2686, 1e-06
      %v2692 = vrsqrt.pop %v2687
      %v2693 = vrsqrt.pop %v2688
      %v2694 = vrsqrt.pop %v2689
      %v2695 = vrsqrt.pop %v2690
      %v2696 = vrsqrt.pop %v2691
      %v2697 = vmul.f32 %v2657, %v2692
      %v2698 = vmul.f32 %v2658, %v2693
      %v2699 = vmul.f32 %v2659, %v2694
      %v2700 = vmul.f32 %v2660, %v2695
      %v2701 = vmul.f32 %v2661, %v2696
      %v2703 = vlaneseq
      %v2704 = vshrl.u32 %v2703, 7
      %v2705 = vsub.s32 0, %v2704
      %v2706 = vrot.slane %v2635, %v2705
      %v2708 = vmul.f32 %v2697, %v2706
      %v2709 = vmul.f32 %v2698, %v2706
      %v2710 = vmul.f32 %v2699, %v2706
      %v2711 = vmul.f32 %v2700, %v2706
      %v2712 = vmul.f32 %v2701, %v2706
      %v2714 = vlaneseq
      %v2715 = vshrl.u32 %v2714, 7
      %v2716 = vsub.s32 0, %v2715
      %v2717 = vrot.slane %v2636, %v2716
      %v2719 = vadd.f32 %v2708, %v2717
      %v2720 = vadd.f32 %v2709, %v2717
      %v2721 = vadd.f32 %v2710, %v2717
      %v2722 = vadd.f32 %v2711, %v2717
      %v2723 = vadd.f32 %v2712, %v2717
      %v2724 = vld [vmem:[%s748] sm:$0xf]
      %v2725 = vld [vmem:[%s748 + $0x4] sm:$0xf]
      %v2726 = vld [vmem:[%s748 + $0x8] sm:$0xf]
      %v2727 = vld [vmem:[%s748 + $0xc] sm:$0xf]
      %v2728 = vpack.c.bf16 %v2720, %v2719
      %v2729 = vpack.c.bf16 %v2722, %v2721
      %v2730 = vpack.c.bf16 %v2723, %v2723
      %v2731 = vld [vmem:[%s751] sm:$0x1]
      %v2733 = vlaneseq
      %v2734 = vshrl.u32 %v2733, 7
      %v2735 = vsub.s32 0, %v2734
      %v2736 = vrot.slane %v2731, %v2735
      %v2742 = vunpack.c.l.b16 %v2724
      %v2743 = vunpack.c.l.b16 %v2725
      %v2744 = vunpack.c.l.b16 %v2726
      %v2745 = vunpack.c.l.b16 %v2727
      %v2746 = vpack.c.b16 %v2743, %v2742
      %v2747 = vpack.c.b16 %v2745, %v2744
      %v2751 = vsel %vm893, %v2728, 0
      %v2754 = vsel %vm893, %v2729, 0
      %v2757 = vsel %vm893, %v2730, 0
      %2759 = vmatprep.subr.bf16.mxu0 0
      %2760 = vmatpush1.bf16.msra.mxu0 %v2746
      %2761 = vmatprep.subr.bf16.mxu0 0
      %2762 = vmatpush1.bf16.msra.mxu0 %v2747
      %2763 = vmatprep.subr.bf16.mxu0 0
      %2764 = vmatpush1.bf16.msra.mxu0 0
      %2765 = vmatprep.subr.bf16.mxu0 0
      %2766 = vmatpush1.bf16.msra.mxu0 0
      %2767 = vmatprep.subr.bf16.mxu0 0
      %2768 = vmatpush1.bf16.msra.mxu0 0
      %2769 = vmatprep.subr.bf16.mxu0 0
      %2770 = vmatpush1.bf16.msra.mxu0 0
      %2771 = vmatprep.subr.bf16.mxu0 0
      %2772 = vmatpush1.bf16.msra.mxu0 0
      %2773 = vmatprep.subr.bf16.mxu0 0
      %2774 = vmatpush1.bf16.msra.mxu0 0
      %2775 = vmatprep.subr.bf16.mxu0 0
      %2776 = vmatpush1.bf16.msra.mxu0 0
      %2777 = vmatprep.subr.bf16.mxu0 0
      %2778 = vmatpush1.bf16.msra.mxu0 0
      %2779 = vmatprep.subr.bf16.mxu0 0
      %2780 = vmatpush1.bf16.msra.mxu0 0
      %2781 = vmatprep.subr.bf16.mxu0 0
      %2782 = vmatpush1.bf16.msra.mxu0 0
      %2783 = vmatprep.subr.bf16.mxu0 0
      %2784 = vmatpush1.bf16.msra.mxu0 0
      %2785 = vmatprep.subr.bf16.mxu0 0
      %2786 = vmatpush1.bf16.msra.mxu0 0
      %2787 = vmatprep.subr.bf16.mxu0 0
      %2788 = vmatpush1.bf16.msra.mxu0 0
      %2789 = vmatprep.subr.bf16.mxu0 0
      %2790 = vmatpush1.bf16.msra.mxu0 0
      %2791 = vmatprep.mubr.bf16.mxu0 0
      %2792 = vmatmul.mubr.bf16.gmra.mrb[0].mxu0 %v2751
      %v2793 = vpop.f32.mrb[0].mxu0
      %v2794 = vadd.f32 %v2736, %v2793
      %v2795 = vpop.f32.mrb[0].mxu0
      %v2796 = vpop.f32.mrb[0].mxu0
      %v2797 = vadd.f32 %v2736, %v2796
      %v2798 = vpop.f32.mrb[0].mxu0
      %2799 = vmatprep.mubr.bf16.mxu0 0
      %2800 = vmatmul.mubr.bf16.gmra.mrb[0].mxu0 %v2754
      %v2801 = vpop.f32.mrb[0].mxu0
      %v2802 = vadd.f32 %v2736, %v2801
      %v2803 = vpop.f32.mrb[0].mxu0
      %v2804 = vpop.f32.mrb[0].mxu0
      %v2805 = vadd.f32 %v2736, %v2804
      %v2806 = vpop.f32.mrb[0].mxu0
      %2807 = vmatprep.mubr.bf16.mxu0 0
      %2808 = vmatmul.mubr.bf16.gmra.mrb[0].mxu0 %v2757
      %v2809 = vpop.f32.mrb[0].mxu0
      %v2810 = vadd.f32 %v2736, %v2809
      %v2811 = vpop.f32.mrb[0].mxu0
      %v2812 = vpop.f32.mrb[0].mxu0
      %v2813 = vpop.f32.mrb[0].mxu0
      %2814 = vdwg.mxu0
      %v2815 = vmul.f32 %v2794, 0.5
      %v2816 = vmul.f32 %v2797, 0.5
      %v2817 = vmul.f32 %v2802, 0.5
      %v2818 = vmul.f32 %v2805, 0.5
      %v2819 = vmul.f32 %v2810, 0.5
      %v2820 = vmul.f32 %v2794, 0.044715
      %v2821 = vmul.f32 %v2797, 0.044715
      %v2822 = vmul.f32 %v2802, 0.044715
      %v2823 = vmul.f32 %v2805, 0.044715
      %v2824 = vmul.f32 %v2810, 0.044715
      %v2825 = vmul.f32 %v2820, %v2794
      %v2826 = vmul.f32 %v2821, %v2797
      %v2827 = vmul.f32 %v2822, %v2802
      %v2828 = vmul.f32 %v2823, %v2805
      %v2829 = vmul.f32 %v2824, %v2810
      %v2830 = vmul.f32 %v2825, %v2794
      %v2831 = vmul.f32 %v2826, %v2797
      %v2832 = vmul.f32 %v2827, %v2802
      %v2833 = vmul.f32 %v2828, %v2805
      %v2834 = vmul.f32 %v2829, %v2810
      %v2835 = vadd.f32 %v2794, %v2830
      %v2836 = vadd.f32 %v2797, %v2831
      %v2837 = vadd.f32 %v2802, %v2832
      %v2838 = vadd.f32 %v2805, %v2833
      %v2839 = vadd.f32 %v2810, %v2834
      %v2840 = vmul.f32 %v2835, 0.7978846
      %v2841 = vmul.f32 %v2836, 0.7978846
      %v2842 = vmul.f32 %v2837, 0.7978846
      %v2843 = vmul.f32 %v2838, 0.7978846
      %v2844 = vmul.f32 %v2839, 0.7978846
      %v2845 = vtanh.pop %v2840
      %v2846 = vtanh.pop %v2841
      %v2847 = vtanh.pop %v2842
      %v2848 = vtanh.pop %v2843
      %v2849 = vtanh.pop %v2844
      %v2850 = vadd.f32 %v2845, 1.0
      %v2851 = vadd.f32 %v2846, 1.0
      %v2852 = vadd.f32 %v2847, 1.0
      %v2853 = vadd.f32 %v2848, 1.0
      %v2854 = vadd.f32 %v2849, 1.0
      %v2855 = vmul.f32 %v2815, %v2850
      %v2856 = vmul.f32 %v2816, %v2851
      %v2857 = vmul.f32 %v2817, %v2852
      %v2858 = vmul.f32 %v2818, %v2853
      %v2859 = vmul.f32 %v2819, %v2854
      %v2860 = vld [vmem:[%s756] sm:$0xf]
      %v2861 = vld [vmem:[%s756 + $0x4] sm:$0xf]
      %v2862 = vld [vmem:[%s756 + $0x8] sm:$0xf]
      %v2863 = vld [vmem:[%s756 + $0xc] sm:$0xf]
      %v2864 = vld [vmem:[%s756 + $0x10] sm:$0xf]
      %v2865 = vld [vmem:[%s756 + $0x14] sm:$0xf]
      %v2866 = vld [vmem:[%s756 + $0x18] sm:$0xf]
      %v2867 = vld [vmem:[%s756 + $0x1c] sm:$0xf]
      %v2868 = vld [vmem:[%s756 + $0x20] sm:$0xf]
      %v2869 = vld [vmem:[%s756 + $0x24] sm:$0xf]
      %v2870 = vld [vmem:[%s756 + $0x28] sm:$0xf]
      %v2871 = vld [vmem:[%s756 + $0x2c] sm:$0xf]
      %v2872 = vld [vmem:[%s756 + $0x30] sm:$0xf]
      %v2873 = vld [vmem:[%s756 + $0x34] sm:$0xf]
      %v2874 = vld [vmem:[%s756 + $0x38] sm:$0xf]
      %v2875 = vld [vmem:[%s756 + $0x3c] sm:$0xf]
      %v2876 = vpack.c.bf16 %v2856, %v2855
      %v2877 = vpack.c.bf16 %v2858, %v2857
      %v2878 = vpack.c.bf16 %v2859, %v2859
      %v2879 = vld [vmem:[%s759] sm:$0x1]
      %v2881 = vlaneseq
      %v2882 = vshrl.u32 %v2881, 7
      %v2883 = vsub.s32 0, %v2882
      %v2884 = vrot.slane %v2879, %v2883
      %v2902 = vunpack.c.l.b16 %v2860
      %v2903 = vunpack.c.l.b16 %v2861
      %v2904 = vunpack.c.l.b16 %v2862
      %v2905 = vunpack.c.l.b16 %v2863
      %v2906 = vunpack.c.l.b16 %v2864
      %v2907 = vunpack.c.l.b16 %v2865
      %v2908 = vunpack.c.l.b16 %v2866
      %v2909 = vunpack.c.l.b16 %v2867
      %v2910 = vunpack.c.l.b16 %v2868
      %v2911 = vunpack.c.l.b16 %v2869
      %v2912 = vunpack.c.l.b16 %v2870
      %v2913 = vunpack.c.l.b16 %v2871
      %v2914 = vunpack.c.l.b16 %v2872
      %v2915 = vunpack.c.l.b16 %v2873
      %v2916 = vunpack.c.l.b16 %v2874
      %v2917 = vunpack.c.l.b16 %v2875
      %v2918 = vpack.c.b16 %v2903, %v2902
      %v2919 = vpack.c.b16 %v2905, %v2904
      %v2920 = vpack.c.b16 %v2907, %v2906
      %v2921 = vpack.c.b16 %v2909, %v2908
      %v2922 = vpack.c.b16 %v2911, %v2910
      %v2923 = vpack.c.b16 %v2913, %v2912
      %v2924 = vpack.c.b16 %v2915, %v2914
      %v2925 = vpack.c.b16 %v2917, %v2916
      %2934 = vmatprep.subr.bf16.mxu0 0
      %2935 = vmatpush1.bf16.msra.mxu0 %v2918
      %2936 = vmatprep.subr.bf16.mxu0 0
      %2937 = vmatpush1.bf16.msra.mxu0 %v2919
      %2938 = vmatprep.subr.bf16.mxu0 0
      %2939 = vmatpush1.bf16.msra.mxu0 %v2920
      %2940 = vmatprep.subr.bf16.mxu0 0
      %2941 = vmatpush1.bf16.msra.mxu0 %v2921
      %2942 = vmatprep.subr.bf16.mxu0 0
      %2943 = vmatpush1.bf16.msra.mxu0 %v2922
      %2944 = vmatprep.subr.bf16.mxu0 0
      %2945 = vmatpush1.bf16.msra.mxu0 %v2923
      %2946 = vmatprep.subr.bf16.mxu0 0
      %2947 = vmatpush1.bf16.msra.mxu0 %v2924
      %2948 = vmatprep.subr.bf16.mxu0 0
      %2949 = vmatpush1.bf16.msra.mxu0 %v2925
      %2950 = vmatprep.subr.bf16.mxu0 0
      %2951 = vmatpush1.bf16.msra.mxu0 0
      %2952 = vmatprep.subr.bf16.mxu0 0
      %2953 = vmatpush1.bf16.msra.mxu0 0
      %2954 = vmatprep.subr.bf16.mxu0 0
      %2955 = vmatpush1.bf16.msra.mxu0 0
      %2956 = vmatprep.subr.bf16.mxu0 0
      %2957 = vmatpush1.bf16.msra.mxu0 0
      %2958 = vmatprep.subr.bf16.mxu0 0
      %2959 = vmatpush1.bf16.msra.mxu0 0
      %2960 = vmatprep.subr.bf16.mxu0 0
      %2961 = vmatpush1.bf16.msra.mxu0 0
      %2962 = vmatprep.subr.bf16.mxu0 0
      %2963 = vmatpush1.bf16.msra.mxu0 0
      %2964 = vmatprep.subr.bf16.mxu0 0
      %2965 = vmatpush1.bf16.msra.mxu0 0
      %2966 = vmatprep.mubr.bf16.mxu0 0
      %2967 = vmatmul.mubr.bf16.gmra.mrb[0].mxu0 %v2876
      %v2968 = vpop.f32.mrb[0].mxu0
      %v2969 = vadd.f32 %v2884, %v2968
      %v2970 = vpop.f32.mrb[0].mxu0
      %v2971 = vpop.f32.mrb[0].mxu0
      %v2972 = vadd.f32 %v2884, %v2971
      %v2973 = vpop.f32.mrb[0].mxu0
      %2974 = vmatprep.mubr.bf16.mxu0 0
      %2975 = vmatmul.mubr.bf16.gmra.mrb[0].mxu0 %v2877
      %v2976 = vpop.f32.mrb[0].mxu0
      %v2977 = vadd.f32 %v2884, %v2976
      %v2978 = vpop.f32.mrb[0].mxu0
      %v2979 = vpop.f32.mrb[0].mxu0
      %v2980 = vadd.f32 %v2884, %v2979
      %v2981 = vpop.f32.mrb[0].mxu0
      %2982 = vmatprep.mubr.bf16.mxu0 0
      %2983 = vmatmul.mubr.bf16.gmra.mrb[0].mxu0 %v2878
      %v2984 = vpop.f32.mrb[0].mxu0
      %v2985 = vadd.f32 %v2884, %v2984
      %v2986 = vpop.f32.mrb[0].mxu0
      %v2987 = vpop.f32.mrb[0].mxu0
      %v2988 = vpop.f32.mrb[0].mxu0
      %2989 = vdwg.mxu0
      %v2990 = vadd.f32 %v2630, %v2969
      %v2991 = vadd.f32 %v2631, %v2972
      %v2992 = vadd.f32 %v2632, %v2977
      %v2993 = vadd.f32 %v2633, %v2980
      %v2994 = vadd.f32 %v2634, %v2985
      %2995 = vst.msk [vmem:[#allocation2] sm:$0xff] %vm893, %v2990
      %2996 = vst.msk [vmem:[#allocation2 + $0x8] sm:$0xff] %vm893, %v2991
      %2997 = vst.msk [vmem:[#allocation2 + $0x10] sm:$0xff] %vm893, %v2992
      %2998 = vst.msk [vmem:[#allocation2 + $0x18] sm:$0xff] %vm893, %v2993
      %2999 = vst.msk [vmem:[#allocation2 + $0x20] sm:$0x3] %vm906, %v2994
      %p3000 = scmp.eq.s32.totalorder %s30, 1
      // Predicated region
      $region101: #{blip_base_forward.2} parent=95 // pred_check
        %p3001 = pneg %p3000
      $region102: #{blip_base_forward.2} parent=95 // pred_check_branch
        %3003 = sbr.rel (%p3001) target = $region104
      $region103: #{blip_base_forward.2} parent=95 // pred_region
        %v3004 = vld [vmem:[%s17] sm:$0x1]
        %v3005 = vld [vmem:[%s18] sm:$0x1]
        %v3006 = vsel %vm893, %v2990, 0.0
        %3007 = vadd.xlane.f32.xlu0 %v3006
        %v3008 = vpop.xlane.xlu0 %3007
        %v3009 = vsel %vm893, %v2991, 0.0
        %3010 = vadd.xlane.f32.xlu0 %v3009
        %v3011 = vpop.xlane.xlu0 %3010
        %v3012 = vsel %vm893, %v2992, 0.0
        %3013 = vadd.xlane.f32.xlu0 %v3012
        %v3014 = vpop.xlane.xlu0 %3013
        %v3015 = vsel %vm893, %v2993, 0.0
        %3016 = vadd.xlane.f32.xlu0 %v3015
        %v3017 = vpop.xlane.xlu0 %3016
        %v3018 = vsel %vm906, %v2994, 0.0
        %3019 = vadd.xlane.f32.xlu0 %v3018
        %v3020 = vpop.xlane.xlu0 %3019
        %v3021 = vmul.f32 %v3008, %v910
        %v3022 = vmul.f32 %v3011, %v910
        %v3023 = vmul.f32 %v3014, %v910
        %v3024 = vmul.f32 %v3017, %v910
        %v3025 = vmul.f32 %v3020, %v910
        %v3026 = vsub.f32 %v2990, %v3021
        %v3027 = vsub.f32 %v2991, %v3022
        %v3028 = vsub.f32 %v2992, %v3023
        %v3029 = vsub.f32 %v2993, %v3024
        %v3030 = vsub.f32 %v2994, %v3025
        %v3031 = vmul.f32 %v3026, %v3026
        %v3032 = vmul.f32 %v3027, %v3027
        %v3033 = vmul.f32 %v3028, %v3028
        %v3034 = vmul.f32 %v3029, %v3029
        %v3035 = vmul.f32 %v3030, %v3030
        %v3036 = vsel %vm893, %v3031, 0.0
        %3037 = vadd.xlane.f32.xlu0 %v3036
        %v3038 = vpop.xlane.xlu0 %3037
        %v3039 = vsel %vm893, %v3032, 0.0
        %3040 = vadd.xlane.f32.xlu0 %v3039
        %v3041 = vpop.xlane.xlu0 %3040
        %v3042 = vsel %vm893, %v3033, 0.0
        %3043 = vadd.xlane.f32.xlu0 %v3042
        %v3044 = vpop.xlane.xlu0 %3043
        %v3045 = vsel %vm893, %v3034, 0.0
        %3046 = vadd.xlane.f32.xlu0 %v3045
        %v3047 = vpop.xlane.xlu0 %3046
        %v3048 = vsel %vm906, %v3035, 0.0
        %3049 = vadd.xlane.f32.xlu0 %v3048
        %v3050 = vpop.xlane.xlu0 %3049
        %v3051 = vmul.f32 %v3038, %v910
        %v3052 = vmul.f32 %v3041, %v910
        %v3053 = vmul.f32 %v3044, %v910
        %v3054 = vmul.f32 %v3047, %v910
        %v3055 = vmul.f32 %v3050, %v910
        %v3056 = vadd.f32 %v3051, 1e-06
        %v3057 = vadd.f32 %v3052, 1e-06
        %v3058 = vadd.f32 %v3053, 1e-06
        %v3059 = vadd.f32 %v3054, 1e-06
        %v3060 = vadd.f32 %v3055, 1e-06
        %v3061 = vrsqrt.pop %v3056
        %v3062 = vrsqrt.pop %v3057
        %v3063 = vrsqrt.pop %v3058
        %v3064 = vrsqrt.pop %v3059
        %v3065 = vrsqrt.pop %v3060
        %v3066 = vmul.f32 %v3026, %v3061
        %v3067 = vmul.f32 %v3027, %v3062
        %v3068 = vmul.f32 %v3028, %v3063
        %v3069 = vmul.f32 %v3029, %v3064
        %v3070 = vmul.f32 %v3030, %v3065
        %v3072 = vlaneseq
        %v3073 = vshrl.u32 %v3072, 7
        %v3074 = vsub.s32 0, %v3073
        %v3075 = vrot.slane %v3004, %v3074
        %v3077 = vmul.f32 %v3066, %v3075
        %v3078 = vmul.f32 %v3067, %v3075
        %v3079 = vmul.f32 %v3068, %v3075
        %v3080 = vmul.f32 %v3069, %v3075
        %v3081 = vmul.f32 %v3070, %v3075
        %v3083 = vlaneseq
        %v3084 = vshrl.u32 %v3083, 7
        %v3085 = vsub.s32 0, %v3084
        %v3086 = vrot.slane %v3005, %v3085
        %v3088 = vadd.f32 %v3077, %v3086
        %v3089 = vadd.f32 %v3078, %v3086
        %v3090 = vadd.f32 %v3079, %v3086
        %v3091 = vadd.f32 %v3080, %v3086
        %v3092 = vadd.f32 %v3081, %v3086
        %v3093 = vpack.c.bf16 %v3089, %v3088
        %v3094 = vpack.c.bf16 %v3091, %v3090
        %v3095 = vpack.c.bf16 %v3092, %v3092
        %v3099 = vunpack.c.l.b16 %v3093
        %v3100 = vunpack.c.h.b16 %v3093
        %v3101 = vunpack.c.l.b16 %v3094
        %v3102 = vunpack.c.h.b16 %v3094
        %v3103 = vunpack.c.l.b16 %v3095
        %v3104 = vpack.c.b16 %v3099, %v3099
        %v3105 = vpack.c.b16 %v3100, %v3100
        %v3106 = vpack.c.b16 %v3101, %v3101
        %v3107 = vpack.c.b16 %v3102, %v3102
        %v3108 = vpack.c.b16 %v3103, %v3103
        %vm3114 = vcmask 257024
        %3115 = vst.msk [vmem:[%s19] sm:$0xf] %vm3114, %v3104
        %3116 = vst.msk [vmem:[%s19 + $0x4] sm:$0xf] %vm3114, %v3105
        %3117 = vst.msk [vmem:[%s19 + $0x8] sm:$0xf] %vm3114, %v3106
        %3118 = vst.msk [vmem:[%s19 + $0xc] sm:$0xf] %vm3114, %v3107
        %vm3119 = vcmask 253952
        %3120 = vst.msk [vmem:[%s19 + $0x10] sm:$0x1] %vm3119, %v3108
      $region104: #{blip_base_forward.2} parent=95 // pred_fallthru
        _
      // Predicated region
      $region105: #{blip_base_forward.2} parent=95 // pred_check
        %p3121 = pneg %p502
      $region106: #{blip_base_forward.2} parent=95 // pred_check_branch
        %3123 = sbr.rel (%p3121) target = $region108
      $region107: #{blip_base_forward.2} parent=95 // pred_region
        _
      $region108: #{blip_base_forward.2} parent=95 // pred_fallthru
        _
      // Predicated region
      $region109: #{blip_base_forward.2} parent=95 // pred_check
        %p3124 = pneg %p502
      $region110: #{blip_base_forward.2} parent=95 // pred_check_branch
        %3126 = sbr.rel (%p3124) target = $region112
      $region111: #{blip_base_forward.2} parent=95 // pred_region
        _
      $region112: #{blip_base_forward.2} parent=95 // pred_fallthru
        _
    $region96: #{blip_base_forward.2} parent=5 // pred_fallthru
      _
    %p3127 = scmp.le.s32.totalorder 2, %s25
    // Predicated region
    $region113: #{blip_base_forward.2} parent=5 // pred_check
      %p3128 = pneg %p3127
    $region114: #{blip_base_forward.2} parent=5 // pred_check_branch
      %3130 = sbr.rel (%p3128) target = $region116
    $region115: #{blip_base_forward.2} parent=5 // pred_region
      %s3131 = ssub.s32 %s25, 2
    $region116: #{blip_base_forward.2} parent=5 // pred_fallthru
      _
  $region6: #{blip_base_forward.2} parent=0 // loop_footer
    %s29 = sadd.s32 1, %s25
  $region7: #{blip_base_forward.2} parent=0 // loop_footer_branch
    %24 = sbr.rel target = $region3
  $region8: #{blip_base_forward.2} parent=0 // loop_exit
    _

</llo_original>
